<compile_context>
chip_gen: v7x
topology: tpu7x:2x2x1
jax: 0.10.0
libtpu: 0.0.40
codegen_flags: <defaults>
</compile_context>

<pallas_src>
import jax
import jax.numpy as jnp
from jax.experimental import pallas as pl
from jax.experimental.pallas import tpu as pltpu  # noqa: F401  (kept for parity; no scratch needed now)

B = 2      # batch
T = 10     # num_lags (encoder & decoder num_lags=10)
D = 11     # encoder input_dim (num_features default)
H = 64     # encoder_hidden_size == decoder_hidden_size (module default)
OUT = 5    # decoder out_dim (module default)


def _softmax_last(s):
    m = jnp.max(s, axis=-1, keepdims=True)
    e = jnp.exp(s - m)
    return e / jnp.sum(e, axis=-1, keepdims=True)


def _lstm_cell(x_in, h, c, w_fused, b):
    # Single fused matmul over concat([x, h]); gate column order is (i, f, o, g)
    # (a pure relabeling of PyTorch's (i, f, g, o) since weights are synthetic),
    # chosen so sigmoid(i,f) covers one full 128-lane vreg.
    z = jnp.concatenate([x_in, h], axis=-1)                      # (B, in+H)
    g = jnp.dot(z, w_fused, preferred_element_type=jnp.float32) + b  # (B, 4H)
    sif = jax.nn.sigmoid(g[:, 0:2 * H])                          # [i | f], 128 lanes
    i = sif[:, 0:H]
    f = sif[:, H:2 * H]
    o = jax.nn.sigmoid(g[:, 2 * H:3 * H])
    gg = jnp.tanh(g[:, 3 * H:4 * H])
    c_new = f * c + i * gg
    h_new = o * jnp.tanh(c_new)
    return h_new, c_new


def daae_kernel(x_ref, yh_ref, h0e_ref, c0e_ref, h0d_ref, c0d_ref,
                weh_ref, wec_ref, wex_ref, beatt_ref,
                we_gates_ref, be_ref,
                w1hc_ref, w1e_ref, b1_ref, w2_ref, b2_ref,
                wd_gates_ref, bd_ref,
                wfc_c_ref, wfc_y_ref, bfc_ref,
                wfo_ref, bfo_ref,
                out_ref):
    x = x_ref[...]           # (B, T, D)
    yh = yh_ref[...]         # (B, T, OUT)

    # ---------------- Encoder: input attention + LSTM ----------------
    h = h0e_ref[...]         # (B, H)
    c = c0e_ref[...]         # (B, H)
    weh = weh_ref[...]       # (1, H)
    wec = wec_ref[...]       # (1, H)
    wex = wex_ref[...]       # (1, T, 1)
    beatt = beatt_ref[...]   # (1, 1)
    we_gates = we_gates_ref[...]   # (D + H, 4H), rows [x | h], cols (i,f,o,g)
    be = be_ref[...]         # (1, 4H)

    # x-dependent part of the attention logits is constant across t:
    # term_x[b, d] = sum_t x[b, t, d] * w_x[t]
    term_x = jnp.sum(x * wex, axis=1)                      # (B, D)

    hs = []
    for t in range(T):
        # single combined cross-lane reduce for the (h, c) part of the logits
        s_hc = jnp.sum(h * weh + c * wec, axis=1, keepdims=True) + beatt  # (B, 1)
        at = _softmax_last(s_hc + term_x)                  # softmax over features
        weighted_input = at * x[:, t, :]                   # (B, D)
        h, c = _lstm_cell(weighted_input, h, c, we_gates, be)
        hs.append(h)                                       # keep in registers

    enc = jnp.stack(hs, axis=1)                            # (B, T, H) == x_encoded

    # ---------------- Decoder: temporal attention + LSTM ----------------
    hd = h0d_ref[...]        # (B, H)
    cd = c0d_ref[...]        # (B, H)
    w1hc = w1hc_ref[...]     # (2H, H), rows [h | c]
    w1e = w1e_ref[...]       # (H, H)
    b1 = b1_ref[...]         # (1, H)
    w2 = w2_ref[...]         # (1, 1, H)
    b2 = b2_ref[...]         # (1, 1)
    wd_gates = wd_gates_ref[...]   # (OUT + H, 4H), rows [y_tilde | h]
    bd = bd_ref[...]         # (1, 4H)
    wfc_c = wfc_c_ref[...]   # (H, OUT)
    wfc_y = wfc_y_ref[...]   # (OUT, OUT)
    bfc = bfc_ref[...]       # (1, OUT)
    wfo = wfo_ref[...]       # (2H, OUT), rows [h | context]
    bfo = bfo_ref[...]       # (1, OUT)

    # Loop-invariant projections, hoisted off the serial chain:
    #   x_encoded through the first attention layer (+ its bias),
    #   y_history through its half of fc (+ fc bias).
    enc_proj = jnp.einsum('bth,hk->btk', enc, w1e,
                          preferred_element_type=jnp.float32) + b1   # (B, T, H)
    yh_proj = jnp.einsum('bto,op->btp', yh, wfc_y,
                         preferred_element_type=jnp.float32) + bfc   # (B, T, OUT)

    context = jnp.zeros((B, H), dtype=jnp.float32)
    for t in range(T):
        # fused [h | c] query matmul (single 128-lane operand)
        hc = jnp.concatenate([hd, cd], axis=-1)                        # (B, 2H)
        q = jnp.dot(hc, w1hc, preferred_element_type=jnp.float32)      # (B, H)
        hidden = jnp.tanh(enc_proj + q[:, None, :])                    # (B, T, H)
        scores = jnp.sum(hidden * w2, axis=-1) + b2                    # (B, T)
        alpha = _softmax_last(scores)                                  # softmax over lags
        # context = bmm(alpha.unsqueeze(1), x_encoded)[:, 0, :] as a VPU reduce
        context = jnp.sum(alpha[:, :, None] * enc, axis=1)             # (B, H)
        # y_tilde = fc(cat(context, y_history[:, t])) — y_history half hoisted
        y_tilde = (jnp.dot(context, wfc_c, preferred_element_type=jnp.float32)
                   + yh_proj[:, t, :])                                 # (B, OUT)
        hd, cd = _lstm_cell(y_tilde, hd, cd, wd_gates, bd)

    # out = fc_out(cat(ht[0], context)) with a single fused (2H, OUT) matmul
    out_ref[...] = (jnp.dot(jnp.concatenate([hd, context], axis=-1), wfo,
                            preferred_element_type=jnp.float32)
                    + bfo)


PARAM_ORDER = [
    'weh', 'wec', 'wex', 'beatt',
    'we_gates', 'be',
    'w1hc', 'w1e', 'b1', 'w2', 'b2',
    'wd_gates', 'bd',
    'wfc_c', 'wfc_y', 'bfc',
    'wfo', 'bfo',
]


def dual_attention_autoencoder(x, y_hist, h0e, c0e, h0d, c0d, params):
    args = [x, y_hist, h0e, c0e, h0d, c0d] + [params[n] for n in PARAM_ORDER]
    return pl.pallas_call(
        daae_kernel,
        out_shape=jax.ShapeDtypeStruct((B, OUT), jnp.float32),
    )(*args)


def init_params(key):
    keys = iter(jax.random.split(key, 32))

    def nrm(shape, scale=0.1):
        return (scale * jax.random.normal(next(keys), shape)).astype(jnp.float32)

    p = {}
    # Encoder attention: Linear(2H + T, 1), weight split into [h | c | x] parts.
    p['weh'] = nrm((1, H))
    p['wec'] = nrm((1, H))
    p['wex'] = nrm((1, T, 1))
    p['beatt'] = nrm((1, 1))
    # Encoder LSTM (input_size=D, hidden=H): fused [W_ih; W_hh] with gate
    # columns (i, f, o, g); bias = b_ih + b_hh.
    p['we_gates'] = nrm((D + H, 4 * H))
    p['be'] = nrm((1, 4 * H))
    # Decoder attention: Linear(2H + H, H) split into fused [h | c] and enc
    # parts, Tanh, Linear(H, 1).
    p['w1hc'] = nrm((2 * H, H))
    p['w1e'] = nrm((H, H))
    p['b1'] = nrm((1, H))
    p['w2'] = nrm((1, 1, H))
    p['b2'] = nrm((1, 1))
    # Decoder LSTM (input_size=OUT, hidden=H), fused as above.
    p['wd_gates'] = nrm((OUT + H, 4 * H))
    p['bd'] = nrm((1, 4 * H))
    # fc: Linear(H + OUT, OUT); module does fc.weight.data.normal_() -> std 1.
    p['wfc_c'] = nrm((H, OUT), scale=1.0)
    p['wfc_y'] = nrm((OUT, OUT), scale=1.0)
    p['bfc'] = nrm((1, OUT))
    # fc_out: Linear(2H, OUT), fused rows [h | context].
    p['wfo'] = nrm((2 * H, OUT))
    p['bfo'] = nrm((1, OUT))
    return p


def xavier_state(key, b, h):
    # Matches nn.init.xavier_normal_ on a (1, B, H) tensor (deterministic here).
    fan_in, fan_out = b * h, h
    std = (2.0 / (fan_in + fan_out)) ** 0.5
    return (std * jax.random.normal(key, (b, h))).astype(jnp.float32)


if __name__ == "__main__":
    key = jax.random.PRNGKey(0)
    k_x, k_y, k_p, k_h1, k_h2, k_h3, k_h4 = jax.random.split(key, 7)

    x = jax.random.normal(k_x, (B, T, D), dtype=jnp.float32)         # encoder input
    y_hist = jax.random.normal(k_y, (B, T, OUT), dtype=jnp.float32)  # y_history

    params = init_params(k_p)
    # TODO(synk): the PyTorch module draws fresh xavier-normal h0/c0 every
    # forward call; here they are deterministic inputs seeded from PRNGKey(0).
    h0e = xavier_state(k_h1, B, H)
    c0e = xavier_state(k_h2, B, H)
    h0d = xavier_state(k_h3, B, H)
    c0d = xavier_state(k_h4, B, H)

    out = dual_attention_autoencoder(x, y_hist, h0e, c0e, h0d, c0d, params)
    out = jax.block_until_ready(out)
    assert out.shape == (B, OUT) and out.dtype == jnp.float32
    assert bool(jnp.all(jnp.isfinite(out)))
    print("KERNEL_OK")
</pallas_src>

<mosaic_0001>
module attributes {stable_mosaic.version = 11 : i64} {
  func.func @daae_kernel(%arg0: memref<2x10x11xf32, #tpu.memory_space<vmem>>, %arg1: memref<2x10x5xf32, #tpu.memory_space<vmem>>, %arg2: memref<2x64xf32, #tpu.memory_space<vmem>>, %arg3: memref<2x64xf32, #tpu.memory_space<vmem>>, %arg4: memref<2x64xf32, #tpu.memory_space<vmem>>, %arg5: memref<2x64xf32, #tpu.memory_space<vmem>>, %arg6: memref<1x64xf32, #tpu.memory_space<vmem>>, %arg7: memref<1x64xf32, #tpu.memory_space<vmem>>, %arg8: memref<1x10x1xf32, #tpu.memory_space<vmem>>, %arg9: memref<1x1xf32, #tpu.memory_space<vmem>>, %arg10: memref<75x256xf32, #tpu.memory_space<vmem>>, %arg11: memref<1x256xf32, #tpu.memory_space<vmem>>, %arg12: memref<128x64xf32, #tpu.memory_space<vmem>>, %arg13: memref<64x64xf32, #tpu.memory_space<vmem>>, %arg14: memref<1x64xf32, #tpu.memory_space<vmem>>, %arg15: memref<1x1x64xf32, #tpu.memory_space<vmem>>, %arg16: memref<1x1xf32, #tpu.memory_space<vmem>>, %arg17: memref<69x256xf32, #tpu.memory_space<vmem>>, %arg18: memref<1x256xf32, #tpu.memory_space<vmem>>, %arg19: memref<64x5xf32, #tpu.memory_space<vmem>>, %arg20: memref<5x5xf32, #tpu.memory_space<vmem>>, %arg21: memref<1x5xf32, #tpu.memory_space<vmem>>, %arg22: memref<128x5xf32, #tpu.memory_space<vmem>>, %arg23: memref<1x5xf32, #tpu.memory_space<vmem>>, %arg24: memref<2x5xf32, #tpu.memory_space<vmem>>) attributes {dimension_semantics = [], scalar_prefetch = 0 : i64, scratch_operands = 0 : i64, tpu.core_type = #tpu.core_type<tc>} {
    %c0 = arith.constant 0 : index
    %c0_0 = arith.constant 0 : index
    %c0_1 = arith.constant 0 : index
    %0 = vector.load %arg0[%c0, %c0_0, %c0_1] : memref<2x10x11xf32, #tpu.memory_space<vmem>>, vector<2x10x11xf32>
    %c0_2 = arith.constant 0 : index
    %c0_3 = arith.constant 0 : index
    %c0_4 = arith.constant 0 : index
    %1 = vector.load %arg1[%c0_2, %c0_3, %c0_4] : memref<2x10x5xf32, #tpu.memory_space<vmem>>, vector<2x10x5xf32>
    %c0_5 = arith.constant 0 : index
    %c0_6 = arith.constant 0 : index
    %2 = vector.load %arg2[%c0_5, %c0_6] : memref<2x64xf32, #tpu.memory_space<vmem>>, vector<2x64xf32>
    %c0_7 = arith.constant 0 : index
    %c0_8 = arith.constant 0 : index
    %3 = vector.load %arg3[%c0_7, %c0_8] : memref<2x64xf32, #tpu.memory_space<vmem>>, vector<2x64xf32>
    %c0_9 = arith.constant 0 : index
    %c0_10 = arith.constant 0 : index
    %4 = vector.load %arg6[%c0_9, %c0_10] : memref<1x64xf32, #tpu.memory_space<vmem>>, vector<1x64xf32>
    %c0_11 = arith.constant 0 : index
    %c0_12 = arith.constant 0 : index
    %5 = vector.load %arg7[%c0_11, %c0_12] : memref<1x64xf32, #tpu.memory_space<vmem>>, vector<1x64xf32>
    %c0_13 = arith.constant 0 : index
    %c0_14 = arith.constant 0 : index
    %c0_15 = arith.constant 0 : index
    %6 = vector.load %arg8[%c0_13, %c0_14, %c0_15] : memref<1x10x1xf32, #tpu.memory_space<vmem>>, vector<1x10x1xf32>
    %c0_16 = arith.constant 0 : index
    %c0_17 = arith.constant 0 : index
    %7 = vector.load %arg9[%c0_16, %c0_17] : memref<1x1xf32, #tpu.memory_space<vmem>>, vector<1x1xf32>
    %c0_18 = arith.constant 0 : index
    %c0_19 = arith.constant 0 : index
    %8 = vector.load %arg10[%c0_18, %c0_19] : memref<75x256xf32, #tpu.memory_space<vmem>>, vector<75x256xf32>
    %c0_20 = arith.constant 0 : index
    %c0_21 = arith.constant 0 : index
    %9 = vector.load %arg11[%c0_20, %c0_21] : memref<1x256xf32, #tpu.memory_space<vmem>>, vector<1x256xf32>
    %10 = vector.broadcast %6 : vector<1x10x1xf32> to vector<2x10x11xf32>
    %11 = arith.mulf %0, %10 : vector<2x10x11xf32>
    %cst = arith.constant dense<0.000000e+00> : vector<2x11xf32>
    %12 = vector.multi_reduction <add>, %11, %cst [1] : vector<2x10x11xf32> to vector<2x11xf32>
    %13 = vector.broadcast %4 : vector<1x64xf32> to vector<2x64xf32>
    %14 = arith.mulf %2, %13 : vector<2x64xf32>
    %15 = vector.broadcast %5 : vector<1x64xf32> to vector<2x64xf32>
    %16 = arith.mulf %3, %15 : vector<2x64xf32>
    %17 = arith.addf %14, %16 : vector<2x64xf32>
    %cst_22 = arith.constant dense<0.000000e+00> : vector<2xf32>
    %18 = vector.multi_reduction <add>, %17, %cst_22 [1] : vector<2x64xf32> to vector<2xf32>
    %19 = vector.shape_cast %18 : vector<2xf32> to vector<2x1xf32>
    %20 = vector.broadcast %7 : vector<1x1xf32> to vector<2x1xf32>
    %21 = arith.addf %19, %20 : vector<2x1xf32>
    %22 = vector.broadcast %21 : vector<2x1xf32> to vector<2x11xf32>
    %23 = arith.addf %22, %12 : vector<2x11xf32>
    %cst_23 = arith.constant dense<0xFF800000> : vector<2xf32>
    %24 = vector.multi_reduction <maximumf>, %23, %cst_23 [1] : vector<2x11xf32> to vector<2xf32>
    %25 = vector.shape_cast %24 : vector<2xf32> to vector<2x1xf32>
    %26 = vector.broadcast %25 : vector<2x1xf32> to vector<2x11xf32>
    %27 = arith.subf %23, %26 : vector<2x11xf32>
    %28 = math.exp %27 : vector<2x11xf32>
    %cst_24 = arith.constant dense<0.000000e+00> : vector<2xf32>
    %29 = vector.multi_reduction <add>, %28, %cst_24 [1] : vector<2x11xf32> to vector<2xf32>
    %30 = vector.shape_cast %29 : vector<2xf32> to vector<2x1xf32>
    %31 = vector.broadcast %30 : vector<2x1xf32> to vector<2x11xf32>
    %32 = arith.divf %28, %31 : vector<2x11xf32>
    %33 = vector.extract_strided_slice %0 {offsets = [0, 0, 0], sizes = [2, 1, 11], strides = [1, 1, 1]} : vector<2x10x11xf32> to vector<2x1x11xf32>
    %34 = vector.shape_cast %33 : vector<2x1x11xf32> to vector<2x11xf32>
    %35 = arith.mulf %32, %34 : vector<2x11xf32>
    %36 = tpu.concatenate %35, %2 in 1 : vector<2x11xf32>, vector<2x64xf32> -> vector<2x75xf32>
    %cst_25 = arith.constant dense<0.000000e+00> : vector<2x256xf32>
    %37 = tpu.matmul %36, %8, %cst_25 {dimension_numbers = #tpu.dot_dimension_numbers<[1], [0], [0], [1], [0, 0, 1, 1], [], []>} : vector<2x75xf32>, vector<75x256xf32>, vector<2x256xf32> -> vector<2x256xf32>
    %38 = vector.broadcast %9 : vector<1x256xf32> to vector<2x256xf32>
    %39 = arith.addf %37, %38 : vector<2x256xf32>
    %40 = vector.extract_strided_slice %39 {offsets = [0, 0], sizes = [2, 128], strides = [1, 1]} : vector<2x256xf32> to vector<2x128xf32>
    %41 = arith.negf %40 : vector<2x128xf32>
    %42 = math.exp %41 : vector<2x128xf32>
    %cst_26 = arith.constant 1.000000e+00 : f32
    %43 = vector.broadcast %cst_26 : f32 to vector<2x128xf32>
    %44 = arith.addf %43, %42 : vector<2x128xf32>
    %45 = arith.divf %43, %44 : vector<2x128xf32>
    %46 = vector.extract_strided_slice %45 {offsets = [0, 0], sizes = [2, 64], strides = [1, 1]} : vector<2x128xf32> to vector<2x64xf32>
    %47 = vector.extract_strided_slice %45 {offsets = [0, 64], sizes = [2, 64], strides = [1, 1]} : vector<2x128xf32> to vector<2x64xf32>
    %48 = vector.extract_strided_slice %39 {offsets = [0, 128], sizes = [2, 64], strides = [1, 1]} : vector<2x256xf32> to vector<2x64xf32>
    %49 = arith.negf %48 : vector<2x64xf32>
    %50 = math.exp %49 : vector<2x64xf32>
    %cst_27 = arith.constant 1.000000e+00 : f32
    %51 = vector.broadcast %cst_27 : f32 to vector<2x64xf32>
    %52 = arith.addf %51, %50 : vector<2x64xf32>
    %53 = arith.divf %51, %52 : vector<2x64xf32>
    %54 = vector.extract_strided_slice %39 {offsets = [0, 192], sizes = [2, 64], strides = [1, 1]} : vector<2x256xf32> to vector<2x64xf32>
    %55 = math.tanh %54 : vector<2x64xf32>
    %56 = arith.mulf %47, %3 : vector<2x64xf32>
    %57 = arith.mulf %46, %55 : vector<2x64xf32>
    %58 = arith.addf %56, %57 : vector<2x64xf32>
    %59 = math.tanh %58 : vector<2x64xf32>
    %60 = arith.mulf %53, %59 : vector<2x64xf32>
    %61 = vector.broadcast %4 : vector<1x64xf32> to vector<2x64xf32>
    %62 = arith.mulf %60, %61 : vector<2x64xf32>
    %63 = vector.broadcast %5 : vector<1x64xf32> to vector<2x64xf32>
    %64 = arith.mulf %58, %63 : vector<2x64xf32>
    %65 = arith.addf %62, %64 : vector<2x64xf32>
    %cst_28 = arith.constant dense<0.000000e+00> : vector<2xf32>
    %66 = vector.multi_reduction <add>, %65, %cst_28 [1] : vector<2x64xf32> to vector<2xf32>
    %67 = vector.shape_cast %66 : vector<2xf32> to vector<2x1xf32>
    %68 = vector.broadcast %7 : vector<1x1xf32> to vector<2x1xf32>
    %69 = arith.addf %67, %68 : vector<2x1xf32>
    %70 = vector.broadcast %69 : vector<2x1xf32> to vector<2x11xf32>
    %71 = arith.addf %70, %12 : vector<2x11xf32>
    %cst_29 = arith.constant dense<0xFF800000> : vector<2xf32>
    %72 = vector.multi_reduction <maximumf>, %71, %cst_29 [1] : vector<2x11xf32> to vector<2xf32>
    %73 = vector.shape_cast %72 : vector<2xf32> to vector<2x1xf32>
    %74 = vector.broadcast %73 : vector<2x1xf32> to vector<2x11xf32>
    %75 = arith.subf %71, %74 : vector<2x11xf32>
    %76 = math.exp %75 : vector<2x11xf32>
    %cst_30 = arith.constant dense<0.000000e+00> : vector<2xf32>
    %77 = vector.multi_reduction <add>, %76, %cst_30 [1] : vector<2x11xf32> to vector<2xf32>
    %78 = vector.shape_cast %77 : vector<2xf32> to vector<2x1xf32>
    %79 = vector.broadcast %78 : vector<2x1xf32> to vector<2x11xf32>
    %80 = arith.divf %76, %79 : vector<2x11xf32>
    %81 = vector.extract_strided_slice %0 {offsets = [0, 1, 0], sizes = [2, 1, 11], strides = [1, 1, 1]} : vector<2x10x11xf32> to vector<2x1x11xf32>
    %82 = vector.shape_cast %81 : vector<2x1x11xf32> to vector<2x11xf32>
    %83 = arith.mulf %80, %82 : vector<2x11xf32>
    %84 = tpu.concatenate %83, %60 in 1 : vector<2x11xf32>, vector<2x64xf32> -> vector<2x75xf32>
    %cst_31 = arith.constant dense<0.000000e+00> : vector<2x256xf32>
    %85 = tpu.matmul %84, %8, %cst_31 {dimension_numbers = #tpu.dot_dimension_numbers<[1], [0], [0], [1], [0, 0, 1, 1], [], []>} : vector<2x75xf32>, vector<75x256xf32>, vector<2x256xf32> -> vector<2x256xf32>
    %86 = vector.broadcast %9 : vector<1x256xf32> to vector<2x256xf32>
    %87 = arith.addf %85, %86 : vector<2x256xf32>
    %88 = vector.extract_strided_slice %87 {offsets = [0, 0], sizes = [2, 128], strides = [1, 1]} : vector<2x256xf32> to vector<2x128xf32>
    %89 = arith.negf %88 : vector<2x128xf32>
    %90 = math.exp %89 : vector<2x128xf32>
    %cst_32 = arith.constant 1.000000e+00 : f32
    %91 = vector.broadcast %cst_32 : f32 to vector<2x128xf32>
    %92 = arith.addf %91, %90 : vector<2x128xf32>
    %93 = arith.divf %91, %92 : vector<2x128xf32>
    %94 = vector.extract_strided_slice %93 {offsets = [0, 0], sizes = [2, 64], strides = [1, 1]} : vector<2x128xf32> to vector<2x64xf32>
    %95 = vector.extract_strided_slice %93 {offsets = [0, 64], sizes = [2, 64], strides = [1, 1]} : vector<2x128xf32> to vector<2x64xf32>
    %96 = vector.extract_strided_slice %87 {offsets = [0, 128], sizes = [2, 64], strides = [1, 1]} : vector<2x256xf32> to vector<2x64xf32>
    %97 = arith.negf %96 : vector<2x64xf32>
    %98 = math.exp %97 : vector<2x64xf32>
    %cst_33 = arith.constant 1.000000e+00 : f32
    %99 = vector.broadcast %cst_33 : f32 to vector<2x64xf32>
    %100 = arith.addf %99, %98 : vector<2x64xf32>
    %101 = arith.divf %99, %100 : vector<2x64xf32>
    %102 = vector.extract_strided_slice %87 {offsets = [0, 192], sizes = [2, 64], strides = [1, 1]} : vector<2x256xf32> to vector<2x64xf32>
    %103 = math.tanh %102 : vector<2x64xf32>
    %104 = arith.mulf %95, %58 : vector<2x64xf32>
    %105 = arith.mulf %94, %103 : vector<2x64xf32>
    %106 = arith.addf %104, %105 : vector<2x64xf32>
    %107 = math.tanh %106 : vector<2x64xf32>
    %108 = arith.mulf %101, %107 : vector<2x64xf32>
    %109 = vector.broadcast %4 : vector<1x64xf32> to vector<2x64xf32>
    %110 = arith.mulf %108, %109 : vector<2x64xf32>
    %111 = vector.broadcast %5 : vector<1x64xf32> to vector<2x64xf32>
    %112 = arith.mulf %106, %111 : vector<2x64xf32>
    %113 = arith.addf %110, %112 : vector<2x64xf32>
    %cst_34 = arith.constant dense<0.000000e+00> : vector<2xf32>
    %114 = vector.multi_reduction <add>, %113, %cst_34 [1] : vector<2x64xf32> to vector<2xf32>
    %115 = vector.shape_cast %114 : vector<2xf32> to vector<2x1xf32>
    %116 = vector.broadcast %7 : vector<1x1xf32> to vector<2x1xf32>
    %117 = arith.addf %115, %116 : vector<2x1xf32>
    %118 = vector.broadcast %117 : vector<2x1xf32> to vector<2x11xf32>
    %119 = arith.addf %118, %12 : vector<2x11xf32>
    %cst_35 = arith.constant dense<0xFF800000> : vector<2xf32>
    %120 = vector.multi_reduction <maximumf>, %119, %cst_35 [1] : vector<2x11xf32> to vector<2xf32>
    %121 = vector.shape_cast %120 : vector<2xf32> to vector<2x1xf32>
    %122 = vector.broadcast %121 : vector<2x1xf32> to vector<2x11xf32>
    %123 = arith.subf %119, %122 : vector<2x11xf32>
    %124 = math.exp %123 : vector<2x11xf32>
    %cst_36 = arith.constant dense<0.000000e+00> : vector<2xf32>
    %125 = vector.multi_reduction <add>, %124, %cst_36 [1] : vector<2x11xf32> to vector<2xf32>
    %126 = vector.shape_cast %125 : vector<2xf32> to vector<2x1xf32>
    %127 = vector.broadcast %126 : vector<2x1xf32> to vector<2x11xf32>
    %128 = arith.divf %124, %127 : vector<2x11xf32>
    %129 = vector.extract_strided_slice %0 {offsets = [0, 2, 0], sizes = [2, 1, 11], strides = [1, 1, 1]} : vector<2x10x11xf32> to vector<2x1x11xf32>
    %130 = vector.shape_cast %129 : vector<2x1x11xf32> to vector<2x11xf32>
    %131 = arith.mulf %128, %130 : vector<2x11xf32>
    %132 = tpu.concatenate %131, %108 in 1 : vector<2x11xf32>, vector<2x64xf32> -> vector<2x75xf32>
    %cst_37 = arith.constant dense<0.000000e+00> : vector<2x256xf32>
    %133 = tpu.matmul %132, %8, %cst_37 {dimension_numbers = #tpu.dot_dimension_numbers<[1], [0], [0], [1], [0, 0, 1, 1], [], []>} : vector<2x75xf32>, vector<75x256xf32>, vector<2x256xf32> -> vector<2x256xf32>
    %134 = vector.broadcast %9 : vector<1x256xf32> to vector<2x256xf32>
    %135 = arith.addf %133, %134 : vector<2x256xf32>
    %136 = vector.extract_strided_slice %135 {offsets = [0, 0], sizes = [2, 128], strides = [1, 1]} : vector<2x256xf32> to vector<2x128xf32>
    %137 = arith.negf %136 : vector<2x128xf32>
    %138 = math.exp %137 : vector<2x128xf32>
    %cst_38 = arith.constant 1.000000e+00 : f32
    %139 = vector.broadcast %cst_38 : f32 to vector<2x128xf32>
    %140 = arith.addf %139, %138 : vector<2x128xf32>
    %141 = arith.divf %139, %140 : vector<2x128xf32>
    %142 = vector.extract_strided_slice %141 {offsets = [0, 0], sizes = [2, 64], strides = [1, 1]} : vector<2x128xf32> to vector<2x64xf32>
    %143 = vector.extract_strided_slice %141 {offsets = [0, 64], sizes = [2, 64], strides = [1, 1]} : vector<2x128xf32> to vector<2x64xf32>
    %144 = vector.extract_strided_slice %135 {offsets = [0, 128], sizes = [2, 64], strides = [1, 1]} : vector<2x256xf32> to vector<2x64xf32>
    %145 = arith.negf %144 : vector<2x64xf32>
    %146 = math.exp %145 : vector<2x64xf32>
    %cst_39 = arith.constant 1.000000e+00 : f32
    %147 = vector.broadcast %cst_39 : f32 to vector<2x64xf32>
    %148 = arith.addf %147, %146 : vector<2x64xf32>
    %149 = arith.divf %147, %148 : vector<2x64xf32>
    %150 = vector.extract_strided_slice %135 {offsets = [0, 192], sizes = [2, 64], strides = [1, 1]} : vector<2x256xf32> to vector<2x64xf32>
    %151 = math.tanh %150 : vector<2x64xf32>
    %152 = arith.mulf %143, %106 : vector<2x64xf32>
    %153 = arith.mulf %142, %151 : vector<2x64xf32>
    %154 = arith.addf %152, %153 : vector<2x64xf32>
    %155 = math.tanh %154 : vector<2x64xf32>
    %156 = arith.mulf %149, %155 : vector<2x64xf32>
    %157 = vector.broadcast %4 : vector<1x64xf32> to vector<2x64xf32>
    %158 = arith.mulf %156, %157 : vector<2x64xf32>
    %159 = vector.broadcast %5 : vector<1x64xf32> to vector<2x64xf32>
    %160 = arith.mulf %154, %159 : vector<2x64xf32>
    %161 = arith.addf %158, %160 : vector<2x64xf32>
    %cst_40 = arith.constant dense<0.000000e+00> : vector<2xf32>
    %162 = vector.multi_reduction <add>, %161, %cst_40 [1] : vector<2x64xf32> to vector<2xf32>
    %163 = vector.shape_cast %162 : vector<2xf32> to vector<2x1xf32>
    %164 = vector.broadcast %7 : vector<1x1xf32> to vector<2x1xf32>
    %165 = arith.addf %163, %164 : vector<2x1xf32>
    %166 = vector.broadcast %165 : vector<2x1xf32> to vector<2x11xf32>
    %167 = arith.addf %166, %12 : vector<2x11xf32>
    %cst_41 = arith.constant dense<0xFF800000> : vector<2xf32>
    %168 = vector.multi_reduction <maximumf>, %167, %cst_41 [1] : vector<2x11xf32> to vector<2xf32>
    %169 = vector.shape_cast %168 : vector<2xf32> to vector<2x1xf32>
    %170 = vector.broadcast %169 : vector<2x1xf32> to vector<2x11xf32>
    %171 = arith.subf %167, %170 : vector<2x11xf32>
    %172 = math.exp %171 : vector<2x11xf32>
    %cst_42 = arith.constant dense<0.000000e+00> : vector<2xf32>
    %173 = vector.multi_reduction <add>, %172, %cst_42 [1] : vector<2x11xf32> to vector<2xf32>
    %174 = vector.shape_cast %173 : vector<2xf32> to vector<2x1xf32>
    %175 = vector.broadcast %174 : vector<2x1xf32> to vector<2x11xf32>
    %176 = arith.divf %172, %175 : vector<2x11xf32>
    %177 = vector.extract_strided_slice %0 {offsets = [0, 3, 0], sizes = [2, 1, 11], strides = [1, 1, 1]} : vector<2x10x11xf32> to vector<2x1x11xf32>
    %178 = vector.shape_cast %177 : vector<2x1x11xf32> to vector<2x11xf32>
    %179 = arith.mulf %176, %178 : vector<2x11xf32>
    %180 = tpu.concatenate %179, %156 in 1 : vector<2x11xf32>, vector<2x64xf32> -> vector<2x75xf32>
    %cst_43 = arith.constant dense<0.000000e+00> : vector<2x256xf32>
    %181 = tpu.matmul %180, %8, %cst_43 {dimension_numbers = #tpu.dot_dimension_numbers<[1], [0], [0], [1], [0, 0, 1, 1], [], []>} : vector<2x75xf32>, vector<75x256xf32>, vector<2x256xf32> -> vector<2x256xf32>
    %182 = vector.broadcast %9 : vector<1x256xf32> to vector<2x256xf32>
    %183 = arith.addf %181, %182 : vector<2x256xf32>
    %184 = vector.extract_strided_slice %183 {offsets = [0, 0], sizes = [2, 128], strides = [1, 1]} : vector<2x256xf32> to vector<2x128xf32>
    %185 = arith.negf %184 : vector<2x128xf32>
    %186 = math.exp %185 : vector<2x128xf32>
    %cst_44 = arith.constant 1.000000e+00 : f32
    %187 = vector.broadcast %cst_44 : f32 to vector<2x128xf32>
    %188 = arith.addf %187, %186 : vector<2x128xf32>
    %189 = arith.divf %187, %188 : vector<2x128xf32>
    %190 = vector.extract_strided_slice %189 {offsets = [0, 0], sizes = [2, 64], strides = [1, 1]} : vector<2x128xf32> to vector<2x64xf32>
    %191 = vector.extract_strided_slice %189 {offsets = [0, 64], sizes = [2, 64], strides = [1, 1]} : vector<2x128xf32> to vector<2x64xf32>
    %192 = vector.extract_strided_slice %183 {offsets = [0, 128], sizes = [2, 64], strides = [1, 1]} : vector<2x256xf32> to vector<2x64xf32>
    %193 = arith.negf %192 : vector<2x64xf32>
    %194 = math.exp %193 : vector<2x64xf32>
    %cst_45 = arith.constant 1.000000e+00 : f32
    %195 = vector.broadcast %cst_45 : f32 to vector<2x64xf32>
    %196 = arith.addf %195, %194 : vector<2x64xf32>
    %197 = arith.divf %195, %196 : vector<2x64xf32>
    %198 = vector.extract_strided_slice %183 {offsets = [0, 192], sizes = [2, 64], strides = [1, 1]} : vector<2x256xf32> to vector<2x64xf32>
    %199 = math.tanh %198 : vector<2x64xf32>
    %200 = arith.mulf %191, %154 : vector<2x64xf32>
    %201 = arith.mulf %190, %199 : vector<2x64xf32>
    %202 = arith.addf %200, %201 : vector<2x64xf32>
    %203 = math.tanh %202 : vector<2x64xf32>
    %204 = arith.mulf %197, %203 : vector<2x64xf32>
    %205 = vector.broadcast %4 : vector<1x64xf32> to vector<2x64xf32>
    %206 = arith.mulf %204, %205 : vector<2x64xf32>
    %207 = vector.broadcast %5 : vector<1x64xf32> to vector<2x64xf32>
    %208 = arith.mulf %202, %207 : vector<2x64xf32>
    %209 = arith.addf %206, %208 : vector<2x64xf32>
    %cst_46 = arith.constant dense<0.000000e+00> : vector<2xf32>
    %210 = vector.multi_reduction <add>, %209, %cst_46 [1] : vector<2x64xf32> to vector<2xf32>
    %211 = vector.shape_cast %210 : vector<2xf32> to vector<2x1xf32>
    %212 = vector.broadcast %7 : vector<1x1xf32> to vector<2x1xf32>
    %213 = arith.addf %211, %212 : vector<2x1xf32>
    %214 = vector.broadcast %213 : vector<2x1xf32> to vector<2x11xf32>
    %215 = arith.addf %214, %12 : vector<2x11xf32>
    %cst_47 = arith.constant dense<0xFF800000> : vector<2xf32>
    %216 = vector.multi_reduction <maximumf>, %215, %cst_47 [1] : vector<2x11xf32> to vector<2xf32>
    %217 = vector.shape_cast %216 : vector<2xf32> to vector<2x1xf32>
    %218 = vector.broadcast %217 : vector<2x1xf32> to vector<2x11xf32>
    %219 = arith.subf %215, %218 : vector<2x11xf32>
    %220 = math.exp %219 : vector<2x11xf32>
    %cst_48 = arith.constant dense<0.000000e+00> : vector<2xf32>
    %221 = vector.multi_reduction <add>, %220, %cst_48 [1] : vector<2x11xf32> to vector<2xf32>
    %222 = vector.shape_cast %221 : vector<2xf32> to vector<2x1xf32>
    %223 = vector.broadcast %222 : vector<2x1xf32> to vector<2x11xf32>
    %224 = arith.divf %220, %223 : vector<2x11xf32>
    %225 = vector.extract_strided_slice %0 {offsets = [0, 4, 0], sizes = [2, 1, 11], strides = [1, 1, 1]} : vector<2x10x11xf32> to vector<2x1x11xf32>
    %226 = vector.shape_cast %225 : vector<2x1x11xf32> to vector<2x11xf32>
    %227 = arith.mulf %224, %226 : vector<2x11xf32>
    %228 = tpu.concatenate %227, %204 in 1 : vector<2x11xf32>, vector<2x64xf32> -> vector<2x75xf32>
    %cst_49 = arith.constant dense<0.000000e+00> : vector<2x256xf32>
    %229 = tpu.matmul %228, %8, %cst_49 {dimension_numbers = #tpu.dot_dimension_numbers<[1], [0], [0], [1], [0, 0, 1, 1], [], []>} : vector<2x75xf32>, vector<75x256xf32>, vector<2x256xf32> -> vector<2x256xf32>
    %230 = vector.broadcast %9 : vector<1x256xf32> to vector<2x256xf32>
    %231 = arith.addf %229, %230 : vector<2x256xf32>
    %232 = vector.extract_strided_slice %231 {offsets = [0, 0], sizes = [2, 128], strides = [1, 1]} : vector<2x256xf32> to vector<2x128xf32>
    %233 = arith.negf %232 : vector<2x128xf32>
    %234 = math.exp %233 : vector<2x128xf32>
    %cst_50 = arith.constant 1.000000e+00 : f32
    %235 = vector.broadcast %cst_50 : f32 to vector<2x128xf32>
    %236 = arith.addf %235, %234 : vector<2x128xf32>
    %237 = arith.divf %235, %236 : vector<2x128xf32>
    %238 = vector.extract_strided_slice %237 {offsets = [0, 0], sizes = [2, 64], strides = [1, 1]} : vector<2x128xf32> to vector<2x64xf32>
    %239 = vector.extract_strided_slice %237 {offsets = [0, 64], sizes = [2, 64], strides = [1, 1]} : vector<2x128xf32> to vector<2x64xf32>
    %240 = vector.extract_strided_slice %231 {offsets = [0, 128], sizes = [2, 64], strides = [1, 1]} : vector<2x256xf32> to vector<2x64xf32>
    %241 = arith.negf %240 : vector<2x64xf32>
    %242 = math.exp %241 : vector<2x64xf32>
    %cst_51 = arith.constant 1.000000e+00 : f32
    %243 = vector.broadcast %cst_51 : f32 to vector<2x64xf32>
    %244 = arith.addf %243, %242 : vector<2x64xf32>
    %245 = arith.divf %243, %244 : vector<2x64xf32>
    %246 = vector.extract_strided_slice %231 {offsets = [0, 192], sizes = [2, 64], strides = [1, 1]} : vector<2x256xf32> to vector<2x64xf32>
    %247 = math.tanh %246 : vector<2x64xf32>
    %248 = arith.mulf %239, %202 : vector<2x64xf32>
    %249 = arith.mulf %238, %247 : vector<2x64xf32>
    %250 = arith.addf %248, %249 : vector<2x64xf32>
    %251 = math.tanh %250 : vector<2x64xf32>
    %252 = arith.mulf %245, %251 : vector<2x64xf32>
    %253 = vector.broadcast %4 : vector<1x64xf32> to vector<2x64xf32>
    %254 = arith.mulf %252, %253 : vector<2x64xf32>
    %255 = vector.broadcast %5 : vector<1x64xf32> to vector<2x64xf32>
    %256 = arith.mulf %250, %255 : vector<2x64xf32>
    %257 = arith.addf %254, %256 : vector<2x64xf32>
    %cst_52 = arith.constant dense<0.000000e+00> : vector<2xf32>
    %258 = vector.multi_reduction <add>, %257, %cst_52 [1] : vector<2x64xf32> to vector<2xf32>
    %259 = vector.shape_cast %258 : vector<2xf32> to vector<2x1xf32>
    %260 = vector.broadcast %7 : vector<1x1xf32> to vector<2x1xf32>
    %261 = arith.addf %259, %260 : vector<2x1xf32>
    %262 = vector.broadcast %261 : vector<2x1xf32> to vector<2x11xf32>
    %263 = arith.addf %262, %12 : vector<2x11xf32>
    %cst_53 = arith.constant dense<0xFF800000> : vector<2xf32>
    %264 = vector.multi_reduction <maximumf>, %263, %cst_53 [1] : vector<2x11xf32> to vector<2xf32>
    %265 = vector.shape_cast %264 : vector<2xf32> to vector<2x1xf32>
    %266 = vector.broadcast %265 : vector<2x1xf32> to vector<2x11xf32>
    %267 = arith.subf %263, %266 : vector<2x11xf32>
    %268 = math.exp %267 : vector<2x11xf32>
    %cst_54 = arith.constant dense<0.000000e+00> : vector<2xf32>
    %269 = vector.multi_reduction <add>, %268, %cst_54 [1] : vector<2x11xf32> to vector<2xf32>
    %270 = vector.shape_cast %269 : vector<2xf32> to vector<2x1xf32>
    %271 = vector.broadcast %270 : vector<2x1xf32> to vector<2x11xf32>
    %272 = arith.divf %268, %271 : vector<2x11xf32>
    %273 = vector.extract_strided_slice %0 {offsets = [0, 5, 0], sizes = [2, 1, 11], strides = [1, 1, 1]} : vector<2x10x11xf32> to vector<2x1x11xf32>
    %274 = vector.shape_cast %273 : vector<2x1x11xf32> to vector<2x11xf32>
    %275 = arith.mulf %272, %274 : vector<2x11xf32>
    %276 = tpu.concatenate %275, %252 in 1 : vector<2x11xf32>, vector<2x64xf32> -> vector<2x75xf32>
    %cst_55 = arith.constant dense<0.000000e+00> : vector<2x256xf32>
    %277 = tpu.matmul %276, %8, %cst_55 {dimension_numbers = #tpu.dot_dimension_numbers<[1], [0], [0], [1], [0, 0, 1, 1], [], []>} : vector<2x75xf32>, vector<75x256xf32>, vector<2x256xf32> -> vector<2x256xf32>
    %278 = vector.broadcast %9 : vector<1x256xf32> to vector<2x256xf32>
    %279 = arith.addf %277, %278 : vector<2x256xf32>
    %280 = vector.extract_strided_slice %279 {offsets = [0, 0], sizes = [2, 128], strides = [1, 1]} : vector<2x256xf32> to vector<2x128xf32>
    %281 = arith.negf %280 : vector<2x128xf32>
    %282 = math.exp %281 : vector<2x128xf32>
    %cst_56 = arith.constant 1.000000e+00 : f32
    %283 = vector.broadcast %cst_56 : f32 to vector<2x128xf32>
    %284 = arith.addf %283, %282 : vector<2x128xf32>
    %285 = arith.divf %283, %284 : vector<2x128xf32>
    %286 = vector.extract_strided_slice %285 {offsets = [0, 0], sizes = [2, 64], strides = [1, 1]} : vector<2x128xf32> to vector<2x64xf32>
    %287 = vector.extract_strided_slice %285 {offsets = [0, 64], sizes = [2, 64], strides = [1, 1]} : vector<2x128xf32> to vector<2x64xf32>
    %288 = vector.extract_strided_slice %279 {offsets = [0, 128], sizes = [2, 64], strides = [1, 1]} : vector<2x256xf32> to vector<2x64xf32>
    %289 = arith.negf %288 : vector<2x64xf32>
    %290 = math.exp %289 : vector<2x64xf32>
    %cst_57 = arith.constant 1.000000e+00 : f32
    %291 = vector.broadcast %cst_57 : f32 to vector<2x64xf32>
    %292 = arith.addf %291, %290 : vector<2x64xf32>
    %293 = arith.divf %291, %292 : vector<2x64xf32>
    %294 = vector.extract_strided_slice %279 {offsets = [0, 192], sizes = [2, 64], strides = [1, 1]} : vector<2x256xf32> to vector<2x64xf32>
    %295 = math.tanh %294 : vector<2x64xf32>
    %296 = arith.mulf %287, %250 : vector<2x64xf32>
    %297 = arith.mulf %286, %295 : vector<2x64xf32>
    %298 = arith.addf %296, %297 : vector<2x64xf32>
    %299 = math.tanh %298 : vector<2x64xf32>
    %300 = arith.mulf %293, %299 : vector<2x64xf32>
    %301 = vector.broadcast %4 : vector<1x64xf32> to vector<2x64xf32>
    %302 = arith.mulf %300, %301 : vector<2x64xf32>
    %303 = vector.broadcast %5 : vector<1x64xf32> to vector<2x64xf32>
    %304 = arith.mulf %298, %303 : vector<2x64xf32>
    %305 = arith.addf %302, %304 : vector<2x64xf32>
    %cst_58 = arith.constant dense<0.000000e+00> : vector<2xf32>
    %306 = vector.multi_reduction <add>, %305, %cst_58 [1] : vector<2x64xf32> to vector<2xf32>
    %307 = vector.shape_cast %306 : vector<2xf32> to vector<2x1xf32>
    %308 = vector.broadcast %7 : vector<1x1xf32> to vector<2x1xf32>
    %309 = arith.addf %307, %308 : vector<2x1xf32>
    %310 = vector.broadcast %309 : vector<2x1xf32> to vector<2x11xf32>
    %311 = arith.addf %310, %12 : vector<2x11xf32>
    %cst_59 = arith.constant dense<0xFF800000> : vector<2xf32>
    %312 = vector.multi_reduction <maximumf>, %311, %cst_59 [1] : vector<2x11xf32> to vector<2xf32>
    %313 = vector.shape_cast %312 : vector<2xf32> to vector<2x1xf32>
    %314 = vector.broadcast %313 : vector<2x1xf32> to vector<2x11xf32>
    %315 = arith.subf %311, %314 : vector<2x11xf32>
    %316 = math.exp %315 : vector<2x11xf32>
    %cst_60 = arith.constant dense<0.000000e+00> : vector<2xf32>
    %317 = vector.multi_reduction <add>, %316, %cst_60 [1] : vector<2x11xf32> to vector<2xf32>
    %318 = vector.shape_cast %317 : vector<2xf32> to vector<2x1xf32>
    %319 = vector.broadcast %318 : vector<2x1xf32> to vector<2x11xf32>
    %320 = arith.divf %316, %319 : vector<2x11xf32>
    %321 = vector.extract_strided_slice %0 {offsets = [0, 6, 0], sizes = [2, 1, 11], strides = [1, 1, 1]} : vector<2x10x11xf32> to vector<2x1x11xf32>
    %322 = vector.shape_cast %321 : vector<2x1x11xf32> to vector<2x11xf32>
    %323 = arith.mulf %320, %322 : vector<2x11xf32>
    %324 = tpu.concatenate %323, %300 in 1 : vector<2x11xf32>, vector<2x64xf32> -> vector<2x75xf32>
    %cst_61 = arith.constant dense<0.000000e+00> : vector<2x256xf32>
    %325 = tpu.matmul %324, %8, %cst_61 {dimension_numbers = #tpu.dot_dimension_numbers<[1], [0], [0], [1], [0, 0, 1, 1], [], []>} : vector<2x75xf32>, vector<75x256xf32>, vector<2x256xf32> -> vector<2x256xf32>
    %326 = vector.broadcast %9 : vector<1x256xf32> to vector<2x256xf32>
    %327 = arith.addf %325, %326 : vector<2x256xf32>
    %328 = vector.extract_strided_slice %327 {offsets = [0, 0], sizes = [2, 128], strides = [1, 1]} : vector<2x256xf32> to vector<2x128xf32>
    %329 = arith.negf %328 : vector<2x128xf32>
    %330 = math.exp %329 : vector<2x128xf32>
    %cst_62 = arith.constant 1.000000e+00 : f32
    %331 = vector.broadcast %cst_62 : f32 to vector<2x128xf32>
    %332 = arith.addf %331, %330 : vector<2x128xf32>
    %333 = arith.divf %331, %332 : vector<2x128xf32>
    %334 = vector.extract_strided_slice %333 {offsets = [0, 0], sizes = [2, 64], strides = [1, 1]} : vector<2x128xf32> to vector<2x64xf32>
    %335 = vector.extract_strided_slice %333 {offsets = [0, 64], sizes = [2, 64], strides = [1, 1]} : vector<2x128xf32> to vector<2x64xf32>
    %336 = vector.extract_strided_slice %327 {offsets = [0, 128], sizes = [2, 64], strides = [1, 1]} : vector<2x256xf32> to vector<2x64xf32>
    %337 = arith.negf %336 : vector<2x64xf32>
    %338 = math.exp %337 : vector<2x64xf32>
    %cst_63 = arith.constant 1.000000e+00 : f32
    %339 = vector.broadcast %cst_63 : f32 to vector<2x64xf32>
    %340 = arith.addf %339, %338 : vector<2x64xf32>
    %341 = arith.divf %339, %340 : vector<2x64xf32>
    %342 = vector.extract_strided_slice %327 {offsets = [0, 192], sizes = [2, 64], strides = [1, 1]} : vector<2x256xf32> to vector<2x64xf32>
    %343 = math.tanh %342 : vector<2x64xf32>
    %344 = arith.mulf %335, %298 : vector<2x64xf32>
    %345 = arith.mulf %334, %343 : vector<2x64xf32>
    %346 = arith.addf %344, %345 : vector<2x64xf32>
    %347 = math.tanh %346 : vector<2x64xf32>
    %348 = arith.mulf %341, %347 : vector<2x64xf32>
    %349 = vector.broadcast %4 : vector<1x64xf32> to vector<2x64xf32>
    %350 = arith.mulf %348, %349 : vector<2x64xf32>
    %351 = vector.broadcast %5 : vector<1x64xf32> to vector<2x64xf32>
    %352 = arith.mulf %346, %351 : vector<2x64xf32>
    %353 = arith.addf %350, %352 : vector<2x64xf32>
    %cst_64 = arith.constant dense<0.000000e+00> : vector<2xf32>
    %354 = vector.multi_reduction <add>, %353, %cst_64 [1] : vector<2x64xf32> to vector<2xf32>
    %355 = vector.shape_cast %354 : vector<2xf32> to vector<2x1xf32>
    %356 = vector.broadcast %7 : vector<1x1xf32> to vector<2x1xf32>
    %357 = arith.addf %355, %356 : vector<2x1xf32>
    %358 = vector.broadcast %357 : vector<2x1xf32> to vector<2x11xf32>
    %359 = arith.addf %358, %12 : vector<2x11xf32>
    %cst_65 = arith.constant dense<0xFF800000> : vector<2xf32>
    %360 = vector.multi_reduction <maximumf>, %359, %cst_65 [1] : vector<2x11xf32> to vector<2xf32>
    %361 = vector.shape_cast %360 : vector<2xf32> to vector<2x1xf32>
    %362 = vector.broadcast %361 : vector<2x1xf32> to vector<2x11xf32>
    %363 = arith.subf %359, %362 : vector<2x11xf32>
    %364 = math.exp %363 : vector<2x11xf32>
    %cst_66 = arith.constant dense<0.000000e+00> : vector<2xf32>
    %365 = vector.multi_reduction <add>, %364, %cst_66 [1] : vector<2x11xf32> to vector<2xf32>
    %366 = vector.shape_cast %365 : vector<2xf32> to vector<2x1xf32>
    %367 = vector.broadcast %366 : vector<2x1xf32> to vector<2x11xf32>
    %368 = arith.divf %364, %367 : vector<2x11xf32>
    %369 = vector.extract_strided_slice %0 {offsets = [0, 7, 0], sizes = [2, 1, 11], strides = [1, 1, 1]} : vector<2x10x11xf32> to vector<2x1x11xf32>
    %370 = vector.shape_cast %369 : vector<2x1x11xf32> to vector<2x11xf32>
    %371 = arith.mulf %368, %370 : vector<2x11xf32>
    %372 = tpu.concatenate %371, %348 in 1 : vector<2x11xf32>, vector<2x64xf32> -> vector<2x75xf32>
    %cst_67 = arith.constant dense<0.000000e+00> : vector<2x256xf32>
    %373 = tpu.matmul %372, %8, %cst_67 {dimension_numbers = #tpu.dot_dimension_numbers<[1], [0], [0], [1], [0, 0, 1, 1], [], []>} : vector<2x75xf32>, vector<75x256xf32>, vector<2x256xf32> -> vector<2x256xf32>
    %374 = vector.broadcast %9 : vector<1x256xf32> to vector<2x256xf32>
    %375 = arith.addf %373, %374 : vector<2x256xf32>
    %376 = vector.extract_strided_slice %375 {offsets = [0, 0], sizes = [2, 128], strides = [1, 1]} : vector<2x256xf32> to vector<2x128xf32>
    %377 = arith.negf %376 : vector<2x128xf32>
    %378 = math.exp %377 : vector<2x128xf32>
    %cst_68 = arith.constant 1.000000e+00 : f32
    %379 = vector.broadcast %cst_68 : f32 to vector<2x128xf32>
    %380 = arith.addf %379, %378 : vector<2x128xf32>
    %381 = arith.divf %379, %380 : vector<2x128xf32>
    %382 = vector.extract_strided_slice %381 {offsets = [0, 0], sizes = [2, 64], strides = [1, 1]} : vector<2x128xf32> to vector<2x64xf32>
    %383 = vector.extract_strided_slice %381 {offsets = [0, 64], sizes = [2, 64], strides = [1, 1]} : vector<2x128xf32> to vector<2x64xf32>
    %384 = vector.extract_strided_slice %375 {offsets = [0, 128], sizes = [2, 64], strides = [1, 1]} : vector<2x256xf32> to vector<2x64xf32>
    %385 = arith.negf %384 : vector<2x64xf32>
    %386 = math.exp %385 : vector<2x64xf32>
    %cst_69 = arith.constant 1.000000e+00 : f32
    %387 = vector.broadcast %cst_69 : f32 to vector<2x64xf32>
    %388 = arith.addf %387, %386 : vector<2x64xf32>
    %389 = arith.divf %387, %388 : vector<2x64xf32>
    %390 = vector.extract_strided_slice %375 {offsets = [0, 192], sizes = [2, 64], strides = [1, 1]} : vector<2x256xf32> to vector<2x64xf32>
    %391 = math.tanh %390 : vector<2x64xf32>
    %392 = arith.mulf %383, %346 : vector<2x64xf32>
    %393 = arith.mulf %382, %391 : vector<2x64xf32>
    %394 = arith.addf %392, %393 : vector<2x64xf32>
    %395 = math.tanh %394 : vector<2x64xf32>
    %396 = arith.mulf %389, %395 : vector<2x64xf32>
    %397 = vector.broadcast %4 : vector<1x64xf32> to vector<2x64xf32>
    %398 = arith.mulf %396, %397 : vector<2x64xf32>
    %399 = vector.broadcast %5 : vector<1x64xf32> to vector<2x64xf32>
    %400 = arith.mulf %394, %399 : vector<2x64xf32>
    %401 = arith.addf %398, %400 : vector<2x64xf32>
    %cst_70 = arith.constant dense<0.000000e+00> : vector<2xf32>
    %402 = vector.multi_reduction <add>, %401, %cst_70 [1] : vector<2x64xf32> to vector<2xf32>
    %403 = vector.shape_cast %402 : vector<2xf32> to vector<2x1xf32>
    %404 = vector.broadcast %7 : vector<1x1xf32> to vector<2x1xf32>
    %405 = arith.addf %403, %404 : vector<2x1xf32>
    %406 = vector.broadcast %405 : vector<2x1xf32> to vector<2x11xf32>
    %407 = arith.addf %406, %12 : vector<2x11xf32>
    %cst_71 = arith.constant dense<0xFF800000> : vector<2xf32>
    %408 = vector.multi_reduction <maximumf>, %407, %cst_71 [1] : vector<2x11xf32> to vector<2xf32>
    %409 = vector.shape_cast %408 : vector<2xf32> to vector<2x1xf32>
    %410 = vector.broadcast %409 : vector<2x1xf32> to vector<2x11xf32>
    %411 = arith.subf %407, %410 : vector<2x11xf32>
    %412 = math.exp %411 : vector<2x11xf32>
    %cst_72 = arith.constant dense<0.000000e+00> : vector<2xf32>
    %413 = vector.multi_reduction <add>, %412, %cst_72 [1] : vector<2x11xf32> to vector<2xf32>
    %414 = vector.shape_cast %413 : vector<2xf32> to vector<2x1xf32>
    %415 = vector.broadcast %414 : vector<2x1xf32> to vector<2x11xf32>
    %416 = arith.divf %412, %415 : vector<2x11xf32>
    %417 = vector.extract_strided_slice %0 {offsets = [0, 8, 0], sizes = [2, 1, 11], strides = [1, 1, 1]} : vector<2x10x11xf32> to vector<2x1x11xf32>
    %418 = vector.shape_cast %417 : vector<2x1x11xf32> to vector<2x11xf32>
    %419 = arith.mulf %416, %418 : vector<2x11xf32>
    %420 = tpu.concatenate %419, %396 in 1 : vector<2x11xf32>, vector<2x64xf32> -> vector<2x75xf32>
    %cst_73 = arith.constant dense<0.000000e+00> : vector<2x256xf32>
    %421 = tpu.matmul %420, %8, %cst_73 {dimension_numbers = #tpu.dot_dimension_numbers<[1], [0], [0], [1], [0, 0, 1, 1], [], []>} : vector<2x75xf32>, vector<75x256xf32>, vector<2x256xf32> -> vector<2x256xf32>
    %422 = vector.broadcast %9 : vector<1x256xf32> to vector<2x256xf32>
    %423 = arith.addf %421, %422 : vector<2x256xf32>
    %424 = vector.extract_strided_slice %423 {offsets = [0, 0], sizes = [2, 128], strides = [1, 1]} : vector<2x256xf32> to vector<2x128xf32>
    %425 = arith.negf %424 : vector<2x128xf32>
    %426 = math.exp %425 : vector<2x128xf32>
    %cst_74 = arith.constant 1.000000e+00 : f32
    %427 = vector.broadcast %cst_74 : f32 to vector<2x128xf32>
    %428 = arith.addf %427, %426 : vector<2x128xf32>
    %429 = arith.divf %427, %428 : vector<2x128xf32>
    %430 = vector.extract_strided_slice %429 {offsets = [0, 0], sizes = [2, 64], strides = [1, 1]} : vector<2x128xf32> to vector<2x64xf32>
    %431 = vector.extract_strided_slice %429 {offsets = [0, 64], sizes = [2, 64], strides = [1, 1]} : vector<2x128xf32> to vector<2x64xf32>
    %432 = vector.extract_strided_slice %423 {offsets = [0, 128], sizes = [2, 64], strides = [1, 1]} : vector<2x256xf32> to vector<2x64xf32>
    %433 = arith.negf %432 : vector<2x64xf32>
    %434 = math.exp %433 : vector<2x64xf32>
    %cst_75 = arith.constant 1.000000e+00 : f32
    %435 = vector.broadcast %cst_75 : f32 to vector<2x64xf32>
    %436 = arith.addf %435, %434 : vector<2x64xf32>
    %437 = arith.divf %435, %436 : vector<2x64xf32>
    %438 = vector.extract_strided_slice %423 {offsets = [0, 192], sizes = [2, 64], strides = [1, 1]} : vector<2x256xf32> to vector<2x64xf32>
    %439 = math.tanh %438 : vector<2x64xf32>
    %440 = arith.mulf %431, %394 : vector<2x64xf32>
    %441 = arith.mulf %430, %439 : vector<2x64xf32>
    %442 = arith.addf %440, %441 : vector<2x64xf32>
    %443 = math.tanh %442 : vector<2x64xf32>
    %444 = arith.mulf %437, %443 : vector<2x64xf32>
    %445 = vector.broadcast %4 : vector<1x64xf32> to vector<2x64xf32>
    %446 = arith.mulf %444, %445 : vector<2x64xf32>
    %447 = vector.broadcast %5 : vector<1x64xf32> to vector<2x64xf32>
    %448 = arith.mulf %442, %447 : vector<2x64xf32>
    %449 = arith.addf %446, %448 : vector<2x64xf32>
    %cst_76 = arith.constant dense<0.000000e+00> : vector<2xf32>
    %450 = vector.multi_reduction <add>, %449, %cst_76 [1] : vector<2x64xf32> to vector<2xf32>
    %451 = vector.shape_cast %450 : vector<2xf32> to vector<2x1xf32>
    %452 = vector.broadcast %7 : vector<1x1xf32> to vector<2x1xf32>
    %453 = arith.addf %451, %452 : vector<2x1xf32>
    %454 = vector.broadcast %453 : vector<2x1xf32> to vector<2x11xf32>
    %455 = arith.addf %454, %12 : vector<2x11xf32>
    %cst_77 = arith.constant dense<0xFF800000> : vector<2xf32>
    %456 = vector.multi_reduction <maximumf>, %455, %cst_77 [1] : vector<2x11xf32> to vector<2xf32>
    %457 = vector.shape_cast %456 : vector<2xf32> to vector<2x1xf32>
    %458 = vector.broadcast %457 : vector<2x1xf32> to vector<2x11xf32>
    %459 = arith.subf %455, %458 : vector<2x11xf32>
    %460 = math.exp %459 : vector<2x11xf32>
    %cst_78 = arith.constant dense<0.000000e+00> : vector<2xf32>
    %461 = vector.multi_reduction <add>, %460, %cst_78 [1] : vector<2x11xf32> to vector<2xf32>
    %462 = vector.shape_cast %461 : vector<2xf32> to vector<2x1xf32>
    %463 = vector.broadcast %462 : vector<2x1xf32> to vector<2x11xf32>
    %464 = arith.divf %460, %463 : vector<2x11xf32>
    %465 = vector.extract_strided_slice %0 {offsets = [0, 9, 0], sizes = [2, 1, 11], strides = [1, 1, 1]} : vector<2x10x11xf32> to vector<2x1x11xf32>
    %466 = vector.shape_cast %465 : vector<2x1x11xf32> to vector<2x11xf32>
    %467 = arith.mulf %464, %466 : vector<2x11xf32>
    %468 = tpu.concatenate %467, %444 in 1 : vector<2x11xf32>, vector<2x64xf32> -> vector<2x75xf32>
    %cst_79 = arith.constant dense<0.000000e+00> : vector<2x256xf32>
    %469 = tpu.matmul %468, %8, %cst_79 {dimension_numbers = #tpu.dot_dimension_numbers<[1], [0], [0], [1], [0, 0, 1, 1], [], []>} : vector<2x75xf32>, vector<75x256xf32>, vector<2x256xf32> -> vector<2x256xf32>
    %470 = vector.broadcast %9 : vector<1x256xf32> to vector<2x256xf32>
    %471 = arith.addf %469, %470 : vector<2x256xf32>
    %472 = vector.extract_strided_slice %471 {offsets = [0, 0], sizes = [2, 128], strides = [1, 1]} : vector<2x256xf32> to vector<2x128xf32>
    %473 = arith.negf %472 : vector<2x128xf32>
    %474 = math.exp %473 : vector<2x128xf32>
    %cst_80 = arith.constant 1.000000e+00 : f32
    %475 = vector.broadcast %cst_80 : f32 to vector<2x128xf32>
    %476 = arith.addf %475, %474 : vector<2x128xf32>
    %477 = arith.divf %475, %476 : vector<2x128xf32>
    %478 = vector.extract_strided_slice %477 {offsets = [0, 0], sizes = [2, 64], strides = [1, 1]} : vector<2x128xf32> to vector<2x64xf32>
    %479 = vector.extract_strided_slice %477 {offsets = [0, 64], sizes = [2, 64], strides = [1, 1]} : vector<2x128xf32> to vector<2x64xf32>
    %480 = vector.extract_strided_slice %471 {offsets = [0, 128], sizes = [2, 64], strides = [1, 1]} : vector<2x256xf32> to vector<2x64xf32>
    %481 = arith.negf %480 : vector<2x64xf32>
    %482 = math.exp %481 : vector<2x64xf32>
    %cst_81 = arith.constant 1.000000e+00 : f32
    %483 = vector.broadcast %cst_81 : f32 to vector<2x64xf32>
    %484 = arith.addf %483, %482 : vector<2x64xf32>
    %485 = arith.divf %483, %484 : vector<2x64xf32>
    %486 = vector.extract_strided_slice %471 {offsets = [0, 192], sizes = [2, 64], strides = [1, 1]} : vector<2x256xf32> to vector<2x64xf32>
    %487 = math.tanh %486 : vector<2x64xf32>
    %488 = arith.mulf %479, %442 : vector<2x64xf32>
    %489 = arith.mulf %478, %487 : vector<2x64xf32>
    %490 = arith.addf %488, %489 : vector<2x64xf32>
    %491 = math.tanh %490 : vector<2x64xf32>
    %492 = arith.mulf %485, %491 : vector<2x64xf32>
    %493 = vector.shape_cast %60 : vector<2x64xf32> to vector<2x1x64xf32>
    %494 = vector.shape_cast %108 : vector<2x64xf32> to vector<2x1x64xf32>
    %495 = vector.shape_cast %156 : vector<2x64xf32> to vector<2x1x64xf32>
    %496 = vector.shape_cast %204 : vector<2x64xf32> to vector<2x1x64xf32>
    %497 = vector.shape_cast %252 : vector<2x64xf32> to vector<2x1x64xf32>
    %498 = vector.shape_cast %300 : vector<2x64xf32> to vector<2x1x64xf32>
    %499 = vector.shape_cast %348 : vector<2x64xf32> to vector<2x1x64xf32>
    %500 = vector.shape_cast %396 : vector<2x64xf32> to vector<2x1x64xf32>
    %501 = vector.shape_cast %444 : vector<2x64xf32> to vector<2x1x64xf32>
    %502 = vector.shape_cast %492 : vector<2x64xf32> to vector<2x1x64xf32>
    %503 = tpu.concatenate %493, %494, %495, %496, %497, %498, %499, %500, %501, %502 in 1 : vector<2x1x64xf32>, vector<2x1x64xf32>, vector<2x1x64xf32>, vector<2x1x64xf32>, vector<2x1x64xf32>, vector<2x1x64xf32>, vector<2x1x64xf32>, vector<2x1x64xf32>, vector<2x1x64xf32>, vector<2x1x64xf32> -> vector<2x10x64xf32>
    %c0_82 = arith.constant 0 : index
    %c0_83 = arith.constant 0 : index
    %504 = vector.load %arg4[%c0_82, %c0_83] : memref<2x64xf32, #tpu.memory_space<vmem>>, vector<2x64xf32>
    %c0_84 = arith.constant 0 : index
    %c0_85 = arith.constant 0 : index
    %505 = vector.load %arg5[%c0_84, %c0_85] : memref<2x64xf32, #tpu.memory_space<vmem>>, vector<2x64xf32>
    %c0_86 = arith.constant 0 : index
    %c0_87 = arith.constant 0 : index
    %506 = vector.load %arg12[%c0_86, %c0_87] : memref<128x64xf32, #tpu.memory_space<vmem>>, vector<128x64xf32>
    %c0_88 = arith.constant 0 : index
    %c0_89 = arith.constant 0 : index
    %507 = vector.load %arg13[%c0_88, %c0_89] : memref<64x64xf32, #tpu.memory_space<vmem>>, vector<64x64xf32>
    %c0_90 = arith.constant 0 : index
    %c0_91 = arith.constant 0 : index
    %508 = vector.load %arg14[%c0_90, %c0_91] : memref<1x64xf32, #tpu.memory_space<vmem>>, vector<1x64xf32>
    %c0_92 = arith.constant 0 : index
    %c0_93 = arith.constant 0 : index
    %c0_94 = arith.constant 0 : index
    %509 = vector.load %arg15[%c0_92, %c0_93, %c0_94] : memref<1x1x64xf32, #tpu.memory_space<vmem>>, vector<1x1x64xf32>
    %c0_95 = arith.constant 0 : index
    %c0_96 = arith.constant 0 : index
    %510 = vector.load %arg16[%c0_95, %c0_96] : memref<1x1xf32, #tpu.memory_space<vmem>>, vector<1x1xf32>
    %c0_97 = arith.constant 0 : index
    %c0_98 = arith.constant 0 : index
    %511 = vector.load %arg17[%c0_97, %c0_98] : memref<69x256xf32, #tpu.memory_space<vmem>>, vector<69x256xf32>
    %c0_99 = arith.constant 0 : index
    %c0_100 = arith.constant 0 : index
    %512 = vector.load %arg18[%c0_99, %c0_100] : memref<1x256xf32, #tpu.memory_space<vmem>>, vector<1x256xf32>
    %c0_101 = arith.constant 0 : index
    %c0_102 = arith.constant 0 : index
    %513 = vector.load %arg19[%c0_101, %c0_102] : memref<64x5xf32, #tpu.memory_space<vmem>>, vector<64x5xf32>
    %c0_103 = arith.constant 0 : index
    %c0_104 = arith.constant 0 : index
    %514 = vector.load %arg20[%c0_103, %c0_104] : memref<5x5xf32, #tpu.memory_space<vmem>>, vector<5x5xf32>
    %c0_105 = arith.constant 0 : index
    %c0_106 = arith.constant 0 : index
    %515 = vector.load %arg21[%c0_105, %c0_106] : memref<1x5xf32, #tpu.memory_space<vmem>>, vector<1x5xf32>
    %c0_107 = arith.constant 0 : index
    %c0_108 = arith.constant 0 : index
    %516 = vector.load %arg22[%c0_107, %c0_108] : memref<128x5xf32, #tpu.memory_space<vmem>>, vector<128x5xf32>
    %c0_109 = arith.constant 0 : index
    %c0_110 = arith.constant 0 : index
    %517 = vector.load %arg23[%c0_109, %c0_110] : memref<1x5xf32, #tpu.memory_space<vmem>>, vector<1x5xf32>
    "tpu.trace_start"() <{level = 10 : i32, message = "bth,hk->btk"}> : () -> ()
    %cst_111 = arith.constant dense<0.000000e+00> : vector<2x10x64xf32>
    %518 = tpu.matmul %503, %507, %cst_111 {dimension_numbers = #tpu.dot_dimension_numbers<[2], [0], [0, 1], [1], [0, 0, 0, 1, 1, 1], [], []>} : vector<2x10x64xf32>, vector<64x64xf32>, vector<2x10x64xf32> -> vector<2x10x64xf32>
    "tpu.trace_stop"() : () -> ()
    %519 = vector.shape_cast %508 : vector<1x64xf32> to vector<1x1x64xf32>
    %520 = vector.broadcast %519 : vector<1x1x64xf32> to vector<2x10x64xf32>
    %521 = arith.addf %518, %520 : vector<2x10x64xf32>
    "tpu.trace_start"() <{level = 10 : i32, message = "bto,op->btp"}> : () -> ()
    %cst_112 = arith.constant dense<0.000000e+00> : vector<2x10x5xf32>
    %522 = tpu.matmul %1, %514, %cst_112 {dimension_numbers = #tpu.dot_dimension_numbers<[2], [0], [0, 1], [1], [0, 0, 0, 1, 1, 1], [], []>} : vector<2x10x5xf32>, vector<5x5xf32>, vector<2x10x5xf32> -> vector<2x10x5xf32>
    "tpu.trace_stop"() : () -> ()
    %523 = vector.shape_cast %515 : vector<1x5xf32> to vector<1x1x5xf32>
    %524 = vector.broadcast %523 : vector<1x1x5xf32> to vector<2x10x5xf32>
    %525 = arith.addf %522, %524 : vector<2x10x5xf32>
    %526 = tpu.concatenate %504, %505 in 1 : vector<2x64xf32>, vector<2x64xf32> -> vector<2x128xf32>
    %cst_113 = arith.constant dense<0.000000e+00> : vector<2x64xf32>
    %527 = tpu.matmul %526, %506, %cst_113 {dimension_numbers = #tpu.dot_dimension_numbers<[1], [0], [0], [1], [0, 0, 1, 1], [], []>} : vector<2x128xf32>, vector<128x64xf32>, vector<2x64xf32> -> vector<2x64xf32>
    %528 = vector.shape_cast %527 : vector<2x64xf32> to vector<2x1x64xf32>
    %529 = vector.broadcast %528 : vector<2x1x64xf32> to vector<2x10x64xf32>
    %530 = arith.addf %521, %529 : vector<2x10x64xf32>
    %531 = math.tanh %530 : vector<2x10x64xf32>
    %532 = vector.broadcast %509 : vector<1x1x64xf32> to vector<2x10x64xf32>
    %533 = arith.mulf %531, %532 : vector<2x10x64xf32>
    %cst_114 = arith.constant dense<0.000000e+00> : vector<2x10xf32>
    %534 = vector.multi_reduction <add>, %533, %cst_114 [2] : vector<2x10x64xf32> to vector<2x10xf32>
    %535 = vector.broadcast %510 : vector<1x1xf32> to vector<2x10xf32>
    %536 = arith.addf %534, %535 : vector<2x10xf32>
    %cst_115 = arith.constant dense<0xFF800000> : vector<2xf32>
    %537 = vector.multi_reduction <maximumf>, %536, %cst_115 [1] : vector<2x10xf32> to vector<2xf32>
    %538 = vector.shape_cast %537 : vector<2xf32> to vector<2x1xf32>
    %539 = vector.broadcast %538 : vector<2x1xf32> to vector<2x10xf32>
    %540 = arith.subf %536, %539 : vector<2x10xf32>
    %541 = math.exp %540 : vector<2x10xf32>
    %cst_116 = arith.constant dense<0.000000e+00> : vector<2xf32>
    %542 = vector.multi_reduction <add>, %541, %cst_116 [1] : vector<2x10xf32> to vector<2xf32>
    %543 = vector.shape_cast %542 : vector<2xf32> to vector<2x1xf32>
    %544 = vector.broadcast %543 : vector<2x1xf32> to vector<2x10xf32>
    %545 = arith.divf %541, %544 : vector<2x10xf32>
    %546 = vector.shape_cast %545 : vector<2x10xf32> to vector<2x10x1xf32>
    %547 = vector.broadcast %546 : vector<2x10x1xf32> to vector<2x10x64xf32>
    %548 = arith.mulf %547, %503 : vector<2x10x64xf32>
    %cst_117 = arith.constant dense<0.000000e+00> : vector<2x64xf32>
    %549 = vector.multi_reduction <add>, %548, %cst_117 [1] : vector<2x10x64xf32> to vector<2x64xf32>
    %cst_118 = arith.constant dense<0.000000e+00> : vector<2x5xf32>
    %550 = tpu.matmul %549, %513, %cst_118 {dimension_numbers = #tpu.dot_dimension_numbers<[1], [0], [0], [1], [0, 0, 1, 1], [], []>} : vector<2x64xf32>, vector<64x5xf32>, vector<2x5xf32> -> vector<2x5xf32>
    %551 = vector.extract_strided_slice %525 {offsets = [0, 0, 0], sizes = [2, 1, 5], strides = [1, 1, 1]} : vector<2x10x5xf32> to vector<2x1x5xf32>
    %552 = vector.shape_cast %551 : vector<2x1x5xf32> to vector<2x5xf32>
    %553 = arith.addf %550, %552 : vector<2x5xf32>
    %554 = tpu.concatenate %553, %504 in 1 : vector<2x5xf32>, vector<2x64xf32> -> vector<2x69xf32>
    %cst_119 = arith.constant dense<0.000000e+00> : vector<2x256xf32>
    %555 = tpu.matmul %554, %511, %cst_119 {dimension_numbers = #tpu.dot_dimension_numbers<[1], [0], [0], [1], [0, 0, 1, 1], [], []>} : vector<2x69xf32>, vector<69x256xf32>, vector<2x256xf32> -> vector<2x256xf32>
    %556 = vector.broadcast %512 : vector<1x256xf32> to vector<2x256xf32>
    %557 = arith.addf %555, %556 : vector<2x256xf32>
    %558 = vector.extract_strided_slice %557 {offsets = [0, 0], sizes = [2, 128], strides = [1, 1]} : vector<2x256xf32> to vector<2x128xf32>
    %559 = arith.negf %558 : vector<2x128xf32>
    %560 = math.exp %559 : vector<2x128xf32>
    %cst_120 = arith.constant 1.000000e+00 : f32
    %561 = vector.broadcast %cst_120 : f32 to vector<2x128xf32>
    %562 = arith.addf %561, %560 : vector<2x128xf32>
    %563 = arith.divf %561, %562 : vector<2x128xf32>
    %564 = vector.extract_strided_slice %563 {offsets = [0, 0], sizes = [2, 64], strides = [1, 1]} : vector<2x128xf32> to vector<2x64xf32>
    %565 = vector.extract_strided_slice %563 {offsets = [0, 64], sizes = [2, 64], strides = [1, 1]} : vector<2x128xf32> to vector<2x64xf32>
    %566 = vector.extract_strided_slice %557 {offsets = [0, 128], sizes = [2, 64], strides = [1, 1]} : vector<2x256xf32> to vector<2x64xf32>
    %567 = arith.negf %566 : vector<2x64xf32>
    %568 = math.exp %567 : vector<2x64xf32>
    %cst_121 = arith.constant 1.000000e+00 : f32
    %569 = vector.broadcast %cst_121 : f32 to vector<2x64xf32>
    %570 = arith.addf %569, %568 : vector<2x64xf32>
    %571 = arith.divf %569, %570 : vector<2x64xf32>
    %572 = vector.extract_strided_slice %557 {offsets = [0, 192], sizes = [2, 64], strides = [1, 1]} : vector<2x256xf32> to vector<2x64xf32>
    %573 = math.tanh %572 : vector<2x64xf32>
    %574 = arith.mulf %565, %505 : vector<2x64xf32>
    %575 = arith.mulf %564, %573 : vector<2x64xf32>
    %576 = arith.addf %574, %575 : vector<2x64xf32>
    %577 = math.tanh %576 : vector<2x64xf32>
    %578 = arith.mulf %571, %577 : vector<2x64xf32>
    %579 = tpu.concatenate %578, %576 in 1 : vector<2x64xf32>, vector<2x64xf32> -> vector<2x128xf32>
    %cst_122 = arith.constant dense<0.000000e+00> : vector<2x64xf32>
    %580 = tpu.matmul %579, %506, %cst_122 {dimension_numbers = #tpu.dot_dimension_numbers<[1], [0], [0], [1], [0, 0, 1, 1], [], []>} : vector<2x128xf32>, vector<128x64xf32>, vector<2x64xf32> -> vector<2x64xf32>
    %581 = vector.shape_cast %580 : vector<2x64xf32> to vector<2x1x64xf32>
    %582 = vector.broadcast %581 : vector<2x1x64xf32> to vector<2x10x64xf32>
    %583 = arith.addf %521, %582 : vector<2x10x64xf32>
    %584 = math.tanh %583 : vector<2x10x64xf32>
    %585 = vector.broadcast %509 : vector<1x1x64xf32> to vector<2x10x64xf32>
    %586 = arith.mulf %584, %585 : vector<2x10x64xf32>
    %cst_123 = arith.constant dense<0.000000e+00> : vector<2x10xf32>
    %587 = vector.multi_reduction <add>, %586, %cst_123 [2] : vector<2x10x64xf32> to vector<2x10xf32>
    %588 = vector.broadcast %510 : vector<1x1xf32> to vector<2x10xf32>
    %589 = arith.addf %587, %588 : vector<2x10xf32>
    %cst_124 = arith.constant dense<0xFF800000> : vector<2xf32>
    %590 = vector.multi_reduction <maximumf>, %589, %cst_124 [1] : vector<2x10xf32> to vector<2xf32>
    %591 = vector.shape_cast %590 : vector<2xf32> to vector<2x1xf32>
    %592 = vector.broadcast %591 : vector<2x1xf32> to vector<2x10xf32>
    %593 = arith.subf %589, %592 : vector<2x10xf32>
    %594 = math.exp %593 : vector<2x10xf32>
    %cst_125 = arith.constant dense<0.000000e+00> : vector<2xf32>
    %595 = vector.multi_reduction <add>, %594, %cst_125 [1] : vector<2x10xf32> to vector<2xf32>
    %596 = vector.shape_cast %595 : vector<2xf32> to vector<2x1xf32>
    %597 = vector.broadcast %596 : vector<2x1xf32> to vector<2x10xf32>
    %598 = arith.divf %594, %597 : vector<2x10xf32>
    %599 = vector.shape_cast %598 : vector<2x10xf32> to vector<2x10x1xf32>
    %600 = vector.broadcast %599 : vector<2x10x1xf32> to vector<2x10x64xf32>
    %601 = arith.mulf %600, %503 : vector<2x10x64xf32>
    %cst_126 = arith.constant dense<0.000000e+00> : vector<2x64xf32>
    %602 = vector.multi_reduction <add>, %601, %cst_126 [1] : vector<2x10x64xf32> to vector<2x64xf32>
    %cst_127 = arith.constant dense<0.000000e+00> : vector<2x5xf32>
    %603 = tpu.matmul %602, %513, %cst_127 {dimension_numbers = #tpu.dot_dimension_numbers<[1], [0], [0], [1], [0, 0, 1, 1], [], []>} : vector<2x64xf32>, vector<64x5xf32>, vector<2x5xf32> -> vector<2x5xf32>
    %604 = vector.extract_strided_slice %525 {offsets = [0, 1, 0], sizes = [2, 1, 5], strides = [1, 1, 1]} : vector<2x10x5xf32> to vector<2x1x5xf32>
    %605 = vector.shape_cast %604 : vector<2x1x5xf32> to vector<2x5xf32>
    %606 = arith.addf %603, %605 : vector<2x5xf32>
    %607 = tpu.concatenate %606, %578 in 1 : vector<2x5xf32>, vector<2x64xf32> -> vector<2x69xf32>
    %cst_128 = arith.constant dense<0.000000e+00> : vector<2x256xf32>
    %608 = tpu.matmul %607, %511, %cst_128 {dimension_numbers = #tpu.dot_dimension_numbers<[1], [0], [0], [1], [0, 0, 1, 1], [], []>} : vector<2x69xf32>, vector<69x256xf32>, vector<2x256xf32> -> vector<2x256xf32>
    %609 = vector.broadcast %512 : vector<1x256xf32> to vector<2x256xf32>
    %610 = arith.addf %608, %609 : vector<2x256xf32>
    %611 = vector.extract_strided_slice %610 {offsets = [0, 0], sizes = [2, 128], strides = [1, 1]} : vector<2x256xf32> to vector<2x128xf32>
    %612 = arith.negf %611 : vector<2x128xf32>
    %613 = math.exp %612 : vector<2x128xf32>
    %cst_129 = arith.constant 1.000000e+00 : f32
    %614 = vector.broadcast %cst_129 : f32 to vector<2x128xf32>
    %615 = arith.addf %614, %613 : vector<2x128xf32>
    %616 = arith.divf %614, %615 : vector<2x128xf32>
    %617 = vector.extract_strided_slice %616 {offsets = [0, 0], sizes = [2, 64], strides = [1, 1]} : vector<2x128xf32> to vector<2x64xf32>
    %618 = vector.extract_strided_slice %616 {offsets = [0, 64], sizes = [2, 64], strides = [1, 1]} : vector<2x128xf32> to vector<2x64xf32>
    %619 = vector.extract_strided_slice %610 {offsets = [0, 128], sizes = [2, 64], strides = [1, 1]} : vector<2x256xf32> to vector<2x64xf32>
    %620 = arith.negf %619 : vector<2x64xf32>
    %621 = math.exp %620 : vector<2x64xf32>
    %cst_130 = arith.constant 1.000000e+00 : f32
    %622 = vector.broadcast %cst_130 : f32 to vector<2x64xf32>
    %623 = arith.addf %622, %621 : vector<2x64xf32>
    %624 = arith.divf %622, %623 : vector<2x64xf32>
    %625 = vector.extract_strided_slice %610 {offsets = [0, 192], sizes = [2, 64], strides = [1, 1]} : vector<2x256xf32> to vector<2x64xf32>
    %626 = math.tanh %625 : vector<2x64xf32>
    %627 = arith.mulf %618, %576 : vector<2x64xf32>
    %628 = arith.mulf %617, %626 : vector<2x64xf32>
    %629 = arith.addf %627, %628 : vector<2x64xf32>
    %630 = math.tanh %629 : vector<2x64xf32>
    %631 = arith.mulf %624, %630 : vector<2x64xf32>
    %632 = tpu.concatenate %631, %629 in 1 : vector<2x64xf32>, vector<2x64xf32> -> vector<2x128xf32>
    %cst_131 = arith.constant dense<0.000000e+00> : vector<2x64xf32>
    %633 = tpu.matmul %632, %506, %cst_131 {dimension_numbers = #tpu.dot_dimension_numbers<[1], [0], [0], [1], [0, 0, 1, 1], [], []>} : vector<2x128xf32>, vector<128x64xf32>, vector<2x64xf32> -> vector<2x64xf32>
    %634 = vector.shape_cast %633 : vector<2x64xf32> to vector<2x1x64xf32>
    %635 = vector.broadcast %634 : vector<2x1x64xf32> to vector<2x10x64xf32>
    %636 = arith.addf %521, %635 : vector<2x10x64xf32>
    %637 = math.tanh %636 : vector<2x10x64xf32>
    %638 = vector.broadcast %509 : vector<1x1x64xf32> to vector<2x10x64xf32>
    %639 = arith.mulf %637, %638 : vector<2x10x64xf32>
    %cst_132 = arith.constant dense<0.000000e+00> : vector<2x10xf32>
    %640 = vector.multi_reduction <add>, %639, %cst_132 [2] : vector<2x10x64xf32> to vector<2x10xf32>
    %641 = vector.broadcast %510 : vector<1x1xf32> to vector<2x10xf32>
    %642 = arith.addf %640, %641 : vector<2x10xf32>
    %cst_133 = arith.constant dense<0xFF800000> : vector<2xf32>
    %643 = vector.multi_reduction <maximumf>, %642, %cst_133 [1] : vector<2x10xf32> to vector<2xf32>
    %644 = vector.shape_cast %643 : vector<2xf32> to vector<2x1xf32>
    %645 = vector.broadcast %644 : vector<2x1xf32> to vector<2x10xf32>
    %646 = arith.subf %642, %645 : vector<2x10xf32>
    %647 = math.exp %646 : vector<2x10xf32>
    %cst_134 = arith.constant dense<0.000000e+00> : vector<2xf32>
    %648 = vector.multi_reduction <add>, %647, %cst_134 [1] : vector<2x10xf32> to vector<2xf32>
    %649 = vector.shape_cast %648 : vector<2xf32> to vector<2x1xf32>
    %650 = vector.broadcast %649 : vector<2x1xf32> to vector<2x10xf32>
    %651 = arith.divf %647, %650 : vector<2x10xf32>
    %652 = vector.shape_cast %651 : vector<2x10xf32> to vector<2x10x1xf32>
    %653 = vector.broadcast %652 : vector<2x10x1xf32> to vector<2x10x64xf32>
    %654 = arith.mulf %653, %503 : vector<2x10x64xf32>
    %cst_135 = arith.constant dense<0.000000e+00> : vector<2x64xf32>
    %655 = vector.multi_reduction <add>, %654, %cst_135 [1] : vector<2x10x64xf32> to vector<2x64xf32>
    %cst_136 = arith.constant dense<0.000000e+00> : vector<2x5xf32>
    %656 = tpu.matmul %655, %513, %cst_136 {dimension_numbers = #tpu.dot_dimension_numbers<[1], [0], [0], [1], [0, 0, 1, 1], [], []>} : vector<2x64xf32>, vector<64x5xf32>, vector<2x5xf32> -> vector<2x5xf32>
    %657 = vector.extract_strided_slice %525 {offsets = [0, 2, 0], sizes = [2, 1, 5], strides = [1, 1, 1]} : vector<2x10x5xf32> to vector<2x1x5xf32>
    %658 = vector.shape_cast %657 : vector<2x1x5xf32> to vector<2x5xf32>
    %659 = arith.addf %656, %658 : vector<2x5xf32>
    %660 = tpu.concatenate %659, %631 in 1 : vector<2x5xf32>, vector<2x64xf32> -> vector<2x69xf32>
    %cst_137 = arith.constant dense<0.000000e+00> : vector<2x256xf32>
    %661 = tpu.matmul %660, %511, %cst_137 {dimension_numbers = #tpu.dot_dimension_numbers<[1], [0], [0], [1], [0, 0, 1, 1], [], []>} : vector<2x69xf32>, vector<69x256xf32>, vector<2x256xf32> -> vector<2x256xf32>
    %662 = vector.broadcast %512 : vector<1x256xf32> to vector<2x256xf32>
    %663 = arith.addf %661, %662 : vector<2x256xf32>
    %664 = vector.extract_strided_slice %663 {offsets = [0, 0], sizes = [2, 128], strides = [1, 1]} : vector<2x256xf32> to vector<2x128xf32>
    %665 = arith.negf %664 : vector<2x128xf32>
    %666 = math.exp %665 : vector<2x128xf32>
    %cst_138 = arith.constant 1.000000e+00 : f32
    %667 = vector.broadcast %cst_138 : f32 to vector<2x128xf32>
    %668 = arith.addf %667, %666 : vector<2x128xf32>
    %669 = arith.divf %667, %668 : vector<2x128xf32>
    %670 = vector.extract_strided_slice %669 {offsets = [0, 0], sizes = [2, 64], strides = [1, 1]} : vector<2x128xf32> to vector<2x64xf32>
    %671 = vector.extract_strided_slice %669 {offsets = [0, 64], sizes = [2, 64], strides = [1, 1]} : vector<2x128xf32> to vector<2x64xf32>
    %672 = vector.extract_strided_slice %663 {offsets = [0, 128], sizes = [2, 64], strides = [1, 1]} : vector<2x256xf32> to vector<2x64xf32>
    %673 = arith.negf %672 : vector<2x64xf32>
    %674 = math.exp %673 : vector<2x64xf32>
    %cst_139 = arith.constant 1.000000e+00 : f32
    %675 = vector.broadcast %cst_139 : f32 to vector<2x64xf32>
    %676 = arith.addf %675, %674 : vector<2x64xf32>
    %677 = arith.divf %675, %676 : vector<2x64xf32>
    %678 = vector.extract_strided_slice %663 {offsets = [0, 192], sizes = [2, 64], strides = [1, 1]} : vector<2x256xf32> to vector<2x64xf32>
    %679 = math.tanh %678 : vector<2x64xf32>
    %680 = arith.mulf %671, %629 : vector<2x64xf32>
    %681 = arith.mulf %670, %679 : vector<2x64xf32>
    %682 = arith.addf %680, %681 : vector<2x64xf32>
    %683 = math.tanh %682 : vector<2x64xf32>
    %684 = arith.mulf %677, %683 : vector<2x64xf32>
    %685 = tpu.concatenate %684, %682 in 1 : vector<2x64xf32>, vector<2x64xf32> -> vector<2x128xf32>
    %cst_140 = arith.constant dense<0.000000e+00> : vector<2x64xf32>
    %686 = tpu.matmul %685, %506, %cst_140 {dimension_numbers = #tpu.dot_dimension_numbers<[1], [0], [0], [1], [0, 0, 1, 1], [], []>} : vector<2x128xf32>, vector<128x64xf32>, vector<2x64xf32> -> vector<2x64xf32>
    %687 = vector.shape_cast %686 : vector<2x64xf32> to vector<2x1x64xf32>
    %688 = vector.broadcast %687 : vector<2x1x64xf32> to vector<2x10x64xf32>
    %689 = arith.addf %521, %688 : vector<2x10x64xf32>
    %690 = math.tanh %689 : vector<2x10x64xf32>
    %691 = vector.broadcast %509 : vector<1x1x64xf32> to vector<2x10x64xf32>
    %692 = arith.mulf %690, %691 : vector<2x10x64xf32>
    %cst_141 = arith.constant dense<0.000000e+00> : vector<2x10xf32>
    %693 = vector.multi_reduction <add>, %692, %cst_141 [2] : vector<2x10x64xf32> to vector<2x10xf32>
    %694 = vector.broadcast %510 : vector<1x1xf32> to vector<2x10xf32>
    %695 = arith.addf %693, %694 : vector<2x10xf32>
    %cst_142 = arith.constant dense<0xFF800000> : vector<2xf32>
    %696 = vector.multi_reduction <maximumf>, %695, %cst_142 [1] : vector<2x10xf32> to vector<2xf32>
    %697 = vector.shape_cast %696 : vector<2xf32> to vector<2x1xf32>
    %698 = vector.broadcast %697 : vector<2x1xf32> to vector<2x10xf32>
    %699 = arith.subf %695, %698 : vector<2x10xf32>
    %700 = math.exp %699 : vector<2x10xf32>
    %cst_143 = arith.constant dense<0.000000e+00> : vector<2xf32>
    %701 = vector.multi_reduction <add>, %700, %cst_143 [1] : vector<2x10xf32> to vector<2xf32>
    %702 = vector.shape_cast %701 : vector<2xf32> to vector<2x1xf32>
    %703 = vector.broadcast %702 : vector<2x1xf32> to vector<2x10xf32>
    %704 = arith.divf %700, %703 : vector<2x10xf32>
    %705 = vector.shape_cast %704 : vector<2x10xf32> to vector<2x10x1xf32>
    %706 = vector.broadcast %705 : vector<2x10x1xf32> to vector<2x10x64xf32>
    %707 = arith.mulf %706, %503 : vector<2x10x64xf32>
    %cst_144 = arith.constant dense<0.000000e+00> : vector<2x64xf32>
    %708 = vector.multi_reduction <add>, %707, %cst_144 [1] : vector<2x10x64xf32> to vector<2x64xf32>
    %cst_145 = arith.constant dense<0.000000e+00> : vector<2x5xf32>
    %709 = tpu.matmul %708, %513, %cst_145 {dimension_numbers = #tpu.dot_dimension_numbers<[1], [0], [0], [1], [0, 0, 1, 1], [], []>} : vector<2x64xf32>, vector<64x5xf32>, vector<2x5xf32> -> vector<2x5xf32>
    %710 = vector.extract_strided_slice %525 {offsets = [0, 3, 0], sizes = [2, 1, 5], strides = [1, 1, 1]} : vector<2x10x5xf32> to vector<2x1x5xf32>
    %711 = vector.shape_cast %710 : vector<2x1x5xf32> to vector<2x5xf32>
    %712 = arith.addf %709, %711 : vector<2x5xf32>
    %713 = tpu.concatenate %712, %684 in 1 : vector<2x5xf32>, vector<2x64xf32> -> vector<2x69xf32>
    %cst_146 = arith.constant dense<0.000000e+00> : vector<2x256xf32>
    %714 = tpu.matmul %713, %511, %cst_146 {dimension_numbers = #tpu.dot_dimension_numbers<[1], [0], [0], [1], [0, 0, 1, 1], [], []>} : vector<2x69xf32>, vector<69x256xf32>, vector<2x256xf32> -> vector<2x256xf32>
    %715 = vector.broadcast %512 : vector<1x256xf32> to vector<2x256xf32>
    %716 = arith.addf %714, %715 : vector<2x256xf32>
    %717 = vector.extract_strided_slice %716 {offsets = [0, 0], sizes = [2, 128], strides = [1, 1]} : vector<2x256xf32> to vector<2x128xf32>
    %718 = arith.negf %717 : vector<2x128xf32>
    %719 = math.exp %718 : vector<2x128xf32>
    %cst_147 = arith.constant 1.000000e+00 : f32
    %720 = vector.broadcast %cst_147 : f32 to vector<2x128xf32>
    %721 = arith.addf %720, %719 : vector<2x128xf32>
    %722 = arith.divf %720, %721 : vector<2x128xf32>
    %723 = vector.extract_strided_slice %722 {offsets = [0, 0], sizes = [2, 64], strides = [1, 1]} : vector<2x128xf32> to vector<2x64xf32>
    %724 = vector.extract_strided_slice %722 {offsets = [0, 64], sizes = [2, 64], strides = [1, 1]} : vector<2x128xf32> to vector<2x64xf32>
    %725 = vector.extract_strided_slice %716 {offsets = [0, 128], sizes = [2, 64], strides = [1, 1]} : vector<2x256xf32> to vector<2x64xf32>
    %726 = arith.negf %725 : vector<2x64xf32>
    %727 = math.exp %726 : vector<2x64xf32>
    %cst_148 = arith.constant 1.000000e+00 : f32
    %728 = vector.broadcast %cst_148 : f32 to vector<2x64xf32>
    %729 = arith.addf %728, %727 : vector<2x64xf32>
    %730 = arith.divf %728, %729 : vector<2x64xf32>
    %731 = vector.extract_strided_slice %716 {offsets = [0, 192], sizes = [2, 64], strides = [1, 1]} : vector<2x256xf32> to vector<2x64xf32>
    %732 = math.tanh %731 : vector<2x64xf32>
    %733 = arith.mulf %724, %682 : vector<2x64xf32>
    %734 = arith.mulf %723, %732 : vector<2x64xf32>
    %735 = arith.addf %733, %734 : vector<2x64xf32>
    %736 = math.tanh %735 : vector<2x64xf32>
    %737 = arith.mulf %730, %736 : vector<2x64xf32>
    %738 = tpu.concatenate %737, %735 in 1 : vector<2x64xf32>, vector<2x64xf32> -> vector<2x128xf32>
    %cst_149 = arith.constant dense<0.000000e+00> : vector<2x64xf32>
    %739 = tpu.matmul %738, %506, %cst_149 {dimension_numbers = #tpu.dot_dimension_numbers<[1], [0], [0], [1], [0, 0, 1, 1], [], []>} : vector<2x128xf32>, vector<128x64xf32>, vector<2x64xf32> -> vector<2x64xf32>
    %740 = vector.shape_cast %739 : vector<2x64xf32> to vector<2x1x64xf32>
    %741 = vector.broadcast %740 : vector<2x1x64xf32> to vector<2x10x64xf32>
    %742 = arith.addf %521, %741 : vector<2x10x64xf32>
    %743 = math.tanh %742 : vector<2x10x64xf32>
    %744 = vector.broadcast %509 : vector<1x1x64xf32> to vector<2x10x64xf32>
    %745 = arith.mulf %743, %744 : vector<2x10x64xf32>
    %cst_150 = arith.constant dense<0.000000e+00> : vector<2x10xf32>
    %746 = vector.multi_reduction <add>, %745, %cst_150 [2] : vector<2x10x64xf32> to vector<2x10xf32>
    %747 = vector.broadcast %510 : vector<1x1xf32> to vector<2x10xf32>
    %748 = arith.addf %746, %747 : vector<2x10xf32>
    %cst_151 = arith.constant dense<0xFF800000> : vector<2xf32>
    %749 = vector.multi_reduction <maximumf>, %748, %cst_151 [1] : vector<2x10xf32> to vector<2xf32>
    %750 = vector.shape_cast %749 : vector<2xf32> to vector<2x1xf32>
    %751 = vector.broadcast %750 : vector<2x1xf32> to vector<2x10xf32>
    %752 = arith.subf %748, %751 : vector<2x10xf32>
    %753 = math.exp %752 : vector<2x10xf32>
    %cst_152 = arith.constant dense<0.000000e+00> : vector<2xf32>
    %754 = vector.multi_reduction <add>, %753, %cst_152 [1] : vector<2x10xf32> to vector<2xf32>
    %755 = vector.shape_cast %754 : vector<2xf32> to vector<2x1xf32>
    %756 = vector.broadcast %755 : vector<2x1xf32> to vector<2x10xf32>
    %757 = arith.divf %753, %756 : vector<2x10xf32>
    %758 = vector.shape_cast %757 : vector<2x10xf32> to vector<2x10x1xf32>
    %759 = vector.broadcast %758 : vector<2x10x1xf32> to vector<2x10x64xf32>
    %760 = arith.mulf %759, %503 : vector<2x10x64xf32>
    %cst_153 = arith.constant dense<0.000000e+00> : vector<2x64xf32>
    %761 = vector.multi_reduction <add>, %760, %cst_153 [1] : vector<2x10x64xf32> to vector<2x64xf32>
    %cst_154 = arith.constant dense<0.000000e+00> : vector<2x5xf32>
    %762 = tpu.matmul %761, %513, %cst_154 {dimension_numbers = #tpu.dot_dimension_numbers<[1], [0], [0], [1], [0, 0, 1, 1], [], []>} : vector<2x64xf32>, vector<64x5xf32>, vector<2x5xf32> -> vector<2x5xf32>
    %763 = vector.extract_strided_slice %525 {offsets = [0, 4, 0], sizes = [2, 1, 5], strides = [1, 1, 1]} : vector<2x10x5xf32> to vector<2x1x5xf32>
    %764 = vector.shape_cast %763 : vector<2x1x5xf32> to vector<2x5xf32>
    %765 = arith.addf %762, %764 : vector<2x5xf32>
    %766 = tpu.concatenate %765, %737 in 1 : vector<2x5xf32>, vector<2x64xf32> -> vector<2x69xf32>
    %cst_155 = arith.constant dense<0.000000e+00> : vector<2x256xf32>
    %767 = tpu.matmul %766, %511, %cst_155 {dimension_numbers = #tpu.dot_dimension_numbers<[1], [0], [0], [1], [0, 0, 1, 1], [], []>} : vector<2x69xf32>, vector<69x256xf32>, vector<2x256xf32> -> vector<2x256xf32>
    %768 = vector.broadcast %512 : vector<1x256xf32> to vector<2x256xf32>
    %769 = arith.addf %767, %768 : vector<2x256xf32>
    %770 = vector.extract_strided_slice %769 {offsets = [0, 0], sizes = [2, 128], strides = [1, 1]} : vector<2x256xf32> to vector<2x128xf32>
    %771 = arith.negf %770 : vector<2x128xf32>
    %772 = math.exp %771 : vector<2x128xf32>
    %cst_156 = arith.constant 1.000000e+00 : f32
    %773 = vector.broadcast %cst_156 : f32 to vector<2x128xf32>
    %774 = arith.addf %773, %772 : vector<2x128xf32>
    %775 = arith.divf %773, %774 : vector<2x128xf32>
    %776 = vector.extract_strided_slice %775 {offsets = [0, 0], sizes = [2, 64], strides = [1, 1]} : vector<2x128xf32> to vector<2x64xf32>
    %777 = vector.extract_strided_slice %775 {offsets = [0, 64], sizes = [2, 64], strides = [1, 1]} : vector<2x128xf32> to vector<2x64xf32>
    %778 = vector.extract_strided_slice %769 {offsets = [0, 128], sizes = [2, 64], strides = [1, 1]} : vector<2x256xf32> to vector<2x64xf32>
    %779 = arith.negf %778 : vector<2x64xf32>
    %780 = math.exp %779 : vector<2x64xf32>
    %cst_157 = arith.constant 1.000000e+00 : f32
    %781 = vector.broadcast %cst_157 : f32 to vector<2x64xf32>
    %782 = arith.addf %781, %780 : vector<2x64xf32>
    %783 = arith.divf %781, %782 : vector<2x64xf32>
    %784 = vector.extract_strided_slice %769 {offsets = [0, 192], sizes = [2, 64], strides = [1, 1]} : vector<2x256xf32> to vector<2x64xf32>
    %785 = math.tanh %784 : vector<2x64xf32>
    %786 = arith.mulf %777, %735 : vector<2x64xf32>
    %787 = arith.mulf %776, %785 : vector<2x64xf32>
    %788 = arith.addf %786, %787 : vector<2x64xf32>
    %789 = math.tanh %788 : vector<2x64xf32>
    %790 = arith.mulf %783, %789 : vector<2x64xf32>
    %791 = tpu.concatenate %790, %788 in 1 : vector<2x64xf32>, vector<2x64xf32> -> vector<2x128xf32>
    %cst_158 = arith.constant dense<0.000000e+00> : vector<2x64xf32>
    %792 = tpu.matmul %791, %506, %cst_158 {dimension_numbers = #tpu.dot_dimension_numbers<[1], [0], [0], [1], [0, 0, 1, 1], [], []>} : vector<2x128xf32>, vector<128x64xf32>, vector<2x64xf32> -> vector<2x64xf32>
    %793 = vector.shape_cast %792 : vector<2x64xf32> to vector<2x1x64xf32>
    %794 = vector.broadcast %793 : vector<2x1x64xf32> to vector<2x10x64xf32>
    %795 = arith.addf %521, %794 : vector<2x10x64xf32>
    %796 = math.tanh %795 : vector<2x10x64xf32>
    %797 = vector.broadcast %509 : vector<1x1x64xf32> to vector<2x10x64xf32>
    %798 = arith.mulf %796, %797 : vector<2x10x64xf32>
    %cst_159 = arith.constant dense<0.000000e+00> : vector<2x10xf32>
    %799 = vector.multi_reduction <add>, %798, %cst_159 [2] : vector<2x10x64xf32> to vector<2x10xf32>
    %800 = vector.broadcast %510 : vector<1x1xf32> to vector<2x10xf32>
    %801 = arith.addf %799, %800 : vector<2x10xf32>
    %cst_160 = arith.constant dense<0xFF800000> : vector<2xf32>
    %802 = vector.multi_reduction <maximumf>, %801, %cst_160 [1] : vector<2x10xf32> to vector<2xf32>
    %803 = vector.shape_cast %802 : vector<2xf32> to vector<2x1xf32>
    %804 = vector.broadcast %803 : vector<2x1xf32> to vector<2x10xf32>
    %805 = arith.subf %801, %804 : vector<2x10xf32>
    %806 = math.exp %805 : vector<2x10xf32>
    %cst_161 = arith.constant dense<0.000000e+00> : vector<2xf32>
    %807 = vector.multi_reduction <add>, %806, %cst_161 [1] : vector<2x10xf32> to vector<2xf32>
    %808 = vector.shape_cast %807 : vector<2xf32> to vector<2x1xf32>
    %809 = vector.broadcast %808 : vector<2x1xf32> to vector<2x10xf32>
    %810 = arith.divf %806, %809 : vector<2x10xf32>
    %811 = vector.shape_cast %810 : vector<2x10xf32> to vector<2x10x1xf32>
    %812 = vector.broadcast %811 : vector<2x10x1xf32> to vector<2x10x64xf32>
    %813 = arith.mulf %812, %503 : vector<2x10x64xf32>
    %cst_162 = arith.constant dense<0.000000e+00> : vector<2x64xf32>
    %814 = vector.multi_reduction <add>, %813, %cst_162 [1] : vector<2x10x64xf32> to vector<2x64xf32>
    %cst_163 = arith.constant dense<0.000000e+00> : vector<2x5xf32>
    %815 = tpu.matmul %814, %513, %cst_163 {dimension_numbers = #tpu.dot_dimension_numbers<[1], [0], [0], [1], [0, 0, 1, 1], [], []>} : vector<2x64xf32>, vector<64x5xf32>, vector<2x5xf32> -> vector<2x5xf32>
    %816 = vector.extract_strided_slice %525 {offsets = [0, 5, 0], sizes = [2, 1, 5], strides = [1, 1, 1]} : vector<2x10x5xf32> to vector<2x1x5xf32>
    %817 = vector.shape_cast %816 : vector<2x1x5xf32> to vector<2x5xf32>
    %818 = arith.addf %815, %817 : vector<2x5xf32>
    %819 = tpu.concatenate %818, %790 in 1 : vector<2x5xf32>, vector<2x64xf32> -> vector<2x69xf32>
    %cst_164 = arith.constant dense<0.000000e+00> : vector<2x256xf32>
    %820 = tpu.matmul %819, %511, %cst_164 {dimension_numbers = #tpu.dot_dimension_numbers<[1], [0], [0], [1], [0, 0, 1, 1], [], []>} : vector<2x69xf32>, vector<69x256xf32>, vector<2x256xf32> -> vector<2x256xf32>
    %821 = vector.broadcast %512 : vector<1x256xf32> to vector<2x256xf32>
    %822 = arith.addf %820, %821 : vector<2x256xf32>
    %823 = vector.extract_strided_slice %822 {offsets = [0, 0], sizes = [2, 128], strides = [1, 1]} : vector<2x256xf32> to vector<2x128xf32>
    %824 = arith.negf %823 : vector<2x128xf32>
    %825 = math.exp %824 : vector<2x128xf32>
    %cst_165 = arith.constant 1.000000e+00 : f32
    %826 = vector.broadcast %cst_165 : f32 to vector<2x128xf32>
    %827 = arith.addf %826, %825 : vector<2x128xf32>
    %828 = arith.divf %826, %827 : vector<2x128xf32>
    %829 = vector.extract_strided_slice %828 {offsets = [0, 0], sizes = [2, 64], strides = [1, 1]} : vector<2x128xf32> to vector<2x64xf32>
    %830 = vector.extract_strided_slice %828 {offsets = [0, 64], sizes = [2, 64], strides = [1, 1]} : vector<2x128xf32> to vector<2x64xf32>
    %831 = vector.extract_strided_slice %822 {offsets = [0, 128], sizes = [2, 64], strides = [1, 1]} : vector<2x256xf32> to vector<2x64xf32>
    %832 = arith.negf %831 : vector<2x64xf32>
    %833 = math.exp %832 : vector<2x64xf32>
    %cst_166 = arith.constant 1.000000e+00 : f32
    %834 = vector.broadcast %cst_166 : f32 to vector<2x64xf32>
    %835 = arith.addf %834, %833 : vector<2x64xf32>
    %836 = arith.divf %834, %835 : vector<2x64xf32>
    %837 = vector.extract_strided_slice %822 {offsets = [0, 192], sizes = [2, 64], strides = [1, 1]} : vector<2x256xf32> to vector<2x64xf32>
    %838 = math.tanh %837 : vector<2x64xf32>
    %839 = arith.mulf %830, %788 : vector<2x64xf32>
    %840 = arith.mulf %829, %838 : vector<2x64xf32>
    %841 = arith.addf %839, %840 : vector<2x64xf32>
    %842 = math.tanh %841 : vector<2x64xf32>
    %843 = arith.mulf %836, %842 : vector<2x64xf32>
    %844 = tpu.concatenate %843, %841 in 1 : vector<2x64xf32>, vector<2x64xf32> -> vector<2x128xf32>
    %cst_167 = arith.constant dense<0.000000e+00> : vector<2x64xf32>
    %845 = tpu.matmul %844, %506, %cst_167 {dimension_numbers = #tpu.dot_dimension_numbers<[1], [0], [0], [1], [0, 0, 1, 1], [], []>} : vector<2x128xf32>, vector<128x64xf32>, vector<2x64xf32> -> vector<2x64xf32>
    %846 = vector.shape_cast %845 : vector<2x64xf32> to vector<2x1x64xf32>
    %847 = vector.broadcast %846 : vector<2x1x64xf32> to vector<2x10x64xf32>
    %848 = arith.addf %521, %847 : vector<2x10x64xf32>
    %849 = math.tanh %848 : vector<2x10x64xf32>
    %850 = vector.broadcast %509 : vector<1x1x64xf32> to vector<2x10x64xf32>
    %851 = arith.mulf %849, %850 : vector<2x10x64xf32>
    %cst_168 = arith.constant dense<0.000000e+00> : vector<2x10xf32>
    %852 = vector.multi_reduction <add>, %851, %cst_168 [2] : vector<2x10x64xf32> to vector<2x10xf32>
    %853 = vector.broadcast %510 : vector<1x1xf32> to vector<2x10xf32>
    %854 = arith.addf %852, %853 : vector<2x10xf32>
    %cst_169 = arith.constant dense<0xFF800000> : vector<2xf32>
    %855 = vector.multi_reduction <maximumf>, %854, %cst_169 [1] : vector<2x10xf32> to vector<2xf32>
    %856 = vector.shape_cast %855 : vector<2xf32> to vector<2x1xf32>
    %857 = vector.broadcast %856 : vector<2x1xf32> to vector<2x10xf32>
    %858 = arith.subf %854, %857 : vector<2x10xf32>
    %859 = math.exp %858 : vector<2x10xf32>
    %cst_170 = arith.constant dense<0.000000e+00> : vector<2xf32>
    %860 = vector.multi_reduction <add>, %859, %cst_170 [1] : vector<2x10xf32> to vector<2xf32>
    %861 = vector.shape_cast %860 : vector<2xf32> to vector<2x1xf32>
    %862 = vector.broadcast %861 : vector<2x1xf32> to vector<2x10xf32>
    %863 = arith.divf %859, %862 : vector<2x10xf32>
    %864 = vector.shape_cast %863 : vector<2x10xf32> to vector<2x10x1xf32>
    %865 = vector.broadcast %864 : vector<2x10x1xf32> to vector<2x10x64xf32>
    %866 = arith.mulf %865, %503 : vector<2x10x64xf32>
    %cst_171 = arith.constant dense<0.000000e+00> : vector<2x64xf32>
    %867 = vector.multi_reduction <add>, %866, %cst_171 [1] : vector<2x10x64xf32> to vector<2x64xf32>
    %cst_172 = arith.constant dense<0.000000e+00> : vector<2x5xf32>
    %868 = tpu.matmul %867, %513, %cst_172 {dimension_numbers = #tpu.dot_dimension_numbers<[1], [0], [0], [1], [0, 0, 1, 1], [], []>} : vector<2x64xf32>, vector<64x5xf32>, vector<2x5xf32> -> vector<2x5xf32>
    %869 = vector.extract_strided_slice %525 {offsets = [0, 6, 0], sizes = [2, 1, 5], strides = [1, 1, 1]} : vector<2x10x5xf32> to vector<2x1x5xf32>
    %870 = vector.shape_cast %869 : vector<2x1x5xf32> to vector<2x5xf32>
    %871 = arith.addf %868, %870 : vector<2x5xf32>
    %872 = tpu.concatenate %871, %843 in 1 : vector<2x5xf32>, vector<2x64xf32> -> vector<2x69xf32>
    %cst_173 = arith.constant dense<0.000000e+00> : vector<2x256xf32>
    %873 = tpu.matmul %872, %511, %cst_173 {dimension_numbers = #tpu.dot_dimension_numbers<[1], [0], [0], [1], [0, 0, 1, 1], [], []>} : vector<2x69xf32>, vector<69x256xf32>, vector<2x256xf32> -> vector<2x256xf32>
    %874 = vector.broadcast %512 : vector<1x256xf32> to vector<2x256xf32>
    %875 = arith.addf %873, %874 : vector<2x256xf32>
    %876 = vector.extract_strided_slice %875 {offsets = [0, 0], sizes = [2, 128], strides = [1, 1]} : vector<2x256xf32> to vector<2x128xf32>
    %877 = arith.negf %876 : vector<2x128xf32>
    %878 = math.exp %877 : vector<2x128xf32>
    %cst_174 = arith.constant 1.000000e+00 : f32
    %879 = vector.broadcast %cst_174 : f32 to vector<2x128xf32>
    %880 = arith.addf %879, %878 : vector<2x128xf32>
    %881 = arith.divf %879, %880 : vector<2x128xf32>
    %882 = vector.extract_strided_slice %881 {offsets = [0, 0], sizes = [2, 64], strides = [1, 1]} : vector<2x128xf32> to vector<2x64xf32>
    %883 = vector.extract_strided_slice %881 {offsets = [0, 64], sizes = [2, 64], strides = [1, 1]} : vector<2x128xf32> to vector<2x64xf32>
    %884 = vector.extract_strided_slice %875 {offsets = [0, 128], sizes = [2, 64], strides = [1, 1]} : vector<2x256xf32> to vector<2x64xf32>
    %885 = arith.negf %884 : vector<2x64xf32>
    %886 = math.exp %885 : vector<2x64xf32>
    %cst_175 = arith.constant 1.000000e+00 : f32
    %887 = vector.broadcast %cst_175 : f32 to vector<2x64xf32>
    %888 = arith.addf %887, %886 : vector<2x64xf32>
    %889 = arith.divf %887, %888 : vector<2x64xf32>
    %890 = vector.extract_strided_slice %875 {offsets = [0, 192], sizes = [2, 64], strides = [1, 1]} : vector<2x256xf32> to vector<2x64xf32>
    %891 = math.tanh %890 : vector<2x64xf32>
    %892 = arith.mulf %883, %841 : vector<2x64xf32>
    %893 = arith.mulf %882, %891 : vector<2x64xf32>
    %894 = arith.addf %892, %893 : vector<2x64xf32>
    %895 = math.tanh %894 : vector<2x64xf32>
    %896 = arith.mulf %889, %895 : vector<2x64xf32>
    %897 = tpu.concatenate %896, %894 in 1 : vector<2x64xf32>, vector<2x64xf32> -> vector<2x128xf32>
    %cst_176 = arith.constant dense<0.000000e+00> : vector<2x64xf32>
    %898 = tpu.matmul %897, %506, %cst_176 {dimension_numbers = #tpu.dot_dimension_numbers<[1], [0], [0], [1], [0, 0, 1, 1], [], []>} : vector<2x128xf32>, vector<128x64xf32>, vector<2x64xf32> -> vector<2x64xf32>
    %899 = vector.shape_cast %898 : vector<2x64xf32> to vector<2x1x64xf32>
    %900 = vector.broadcast %899 : vector<2x1x64xf32> to vector<2x10x64xf32>
    %901 = arith.addf %521, %900 : vector<2x10x64xf32>
    %902 = math.tanh %901 : vector<2x10x64xf32>
    %903 = vector.broadcast %509 : vector<1x1x64xf32> to vector<2x10x64xf32>
    %904 = arith.mulf %902, %903 : vector<2x10x64xf32>
    %cst_177 = arith.constant dense<0.000000e+00> : vector<2x10xf32>
    %905 = vector.multi_reduction <add>, %904, %cst_177 [2] : vector<2x10x64xf32> to vector<2x10xf32>
    %906 = vector.broadcast %510 : vector<1x1xf32> to vector<2x10xf32>
    %907 = arith.addf %905, %906 : vector<2x10xf32>
    %cst_178 = arith.constant dense<0xFF800000> : vector<2xf32>
    %908 = vector.multi_reduction <maximumf>, %907, %cst_178 [1] : vector<2x10xf32> to vector<2xf32>
    %909 = vector.shape_cast %908 : vector<2xf32> to vector<2x1xf32>
    %910 = vector.broadcast %909 : vector<2x1xf32> to vector<2x10xf32>
    %911 = arith.subf %907, %910 : vector<2x10xf32>
    %912 = math.exp %911 : vector<2x10xf32>
    %cst_179 = arith.constant dense<0.000000e+00> : vector<2xf32>
    %913 = vector.multi_reduction <add>, %912, %cst_179 [1] : vector<2x10xf32> to vector<2xf32>
    %914 = vector.shape_cast %913 : vector<2xf32> to vector<2x1xf32>
    %915 = vector.broadcast %914 : vector<2x1xf32> to vector<2x10xf32>
    %916 = arith.divf %912, %915 : vector<2x10xf32>
    %917 = vector.shape_cast %916 : vector<2x10xf32> to vector<2x10x1xf32>
    %918 = vector.broadcast %917 : vector<2x10x1xf32> to vector<2x10x64xf32>
    %919 = arith.mulf %918, %503 : vector<2x10x64xf32>
    %cst_180 = arith.constant dense<0.000000e+00> : vector<2x64xf32>
    %920 = vector.multi_reduction <add>, %919, %cst_180 [1] : vector<2x10x64xf32> to vector<2x64xf32>
    %cst_181 = arith.constant dense<0.000000e+00> : vector<2x5xf32>
    %921 = tpu.matmul %920, %513, %cst_181 {dimension_numbers = #tpu.dot_dimension_numbers<[1], [0], [0], [1], [0, 0, 1, 1], [], []>} : vector<2x64xf32>, vector<64x5xf32>, vector<2x5xf32> -> vector<2x5xf32>
    %922 = vector.extract_strided_slice %525 {offsets = [0, 7, 0], sizes = [2, 1, 5], strides = [1, 1, 1]} : vector<2x10x5xf32> to vector<2x1x5xf32>
    %923 = vector.shape_cast %922 : vector<2x1x5xf32> to vector<2x5xf32>
    %924 = arith.addf %921, %923 : vector<2x5xf32>
    %925 = tpu.concatenate %924, %896 in 1 : vector<2x5xf32>, vector<2x64xf32> -> vector<2x69xf32>
    %cst_182 = arith.constant dense<0.000000e+00> : vector<2x256xf32>
    %926 = tpu.matmul %925, %511, %cst_182 {dimension_numbers = #tpu.dot_dimension_numbers<[1], [0], [0], [1], [0, 0, 1, 1], [], []>} : vector<2x69xf32>, vector<69x256xf32>, vector<2x256xf32> -> vector<2x256xf32>
    %927 = vector.broadcast %512 : vector<1x256xf32> to vector<2x256xf32>
    %928 = arith.addf %926, %927 : vector<2x256xf32>
    %929 = vector.extract_strided_slice %928 {offsets = [0, 0], sizes = [2, 128], strides = [1, 1]} : vector<2x256xf32> to vector<2x128xf32>
    %930 = arith.negf %929 : vector<2x128xf32>
    %931 = math.exp %930 : vector<2x128xf32>
    %cst_183 = arith.constant 1.000000e+00 : f32
    %932 = vector.broadcast %cst_183 : f32 to vector<2x128xf32>
    %933 = arith.addf %932, %931 : vector<2x128xf32>
    %934 = arith.divf %932, %933 : vector<2x128xf32>
    %935 = vector.extract_strided_slice %934 {offsets = [0, 0], sizes = [2, 64], strides = [1, 1]} : vector<2x128xf32> to vector<2x64xf32>
    %936 = vector.extract_strided_slice %934 {offsets = [0, 64], sizes = [2, 64], strides = [1, 1]} : vector<2x128xf32> to vector<2x64xf32>
    %937 = vector.extract_strided_slice %928 {offsets = [0, 128], sizes = [2, 64], strides = [1, 1]} : vector<2x256xf32> to vector<2x64xf32>
    %938 = arith.negf %937 : vector<2x64xf32>
    %939 = math.exp %938 : vector<2x64xf32>
    %cst_184 = arith.constant 1.000000e+00 : f32
    %940 = vector.broadcast %cst_184 : f32 to vector<2x64xf32>
    %941 = arith.addf %940, %939 : vector<2x64xf32>
    %942 = arith.divf %940, %941 : vector<2x64xf32>
    %943 = vector.extract_strided_slice %928 {offsets = [0, 192], sizes = [2, 64], strides = [1, 1]} : vector<2x256xf32> to vector<2x64xf32>
    %944 = math.tanh %943 : vector<2x64xf32>
    %945 = arith.mulf %936, %894 : vector<2x64xf32>
    %946 = arith.mulf %935, %944 : vector<2x64xf32>
    %947 = arith.addf %945, %946 : vector<2x64xf32>
    %948 = math.tanh %947 : vector<2x64xf32>
    %949 = arith.mulf %942, %948 : vector<2x64xf32>
    %950 = tpu.concatenate %949, %947 in 1 : vector<2x64xf32>, vector<2x64xf32> -> vector<2x128xf32>
    %cst_185 = arith.constant dense<0.000000e+00> : vector<2x64xf32>
    %951 = tpu.matmul %950, %506, %cst_185 {dimension_numbers = #tpu.dot_dimension_numbers<[1], [0], [0], [1], [0, 0, 1, 1], [], []>} : vector<2x128xf32>, vector<128x64xf32>, vector<2x64xf32> -> vector<2x64xf32>
    %952 = vector.shape_cast %951 : vector<2x64xf32> to vector<2x1x64xf32>
    %953 = vector.broadcast %952 : vector<2x1x64xf32> to vector<2x10x64xf32>
    %954 = arith.addf %521, %953 : vector<2x10x64xf32>
    %955 = math.tanh %954 : vector<2x10x64xf32>
    %956 = vector.broadcast %509 : vector<1x1x64xf32> to vector<2x10x64xf32>
    %957 = arith.mulf %955, %956 : vector<2x10x64xf32>
    %cst_186 = arith.constant dense<0.000000e+00> : vector<2x10xf32>
    %958 = vector.multi_reduction <add>, %957, %cst_186 [2] : vector<2x10x64xf32> to vector<2x10xf32>
    %959 = vector.broadcast %510 : vector<1x1xf32> to vector<2x10xf32>
    %960 = arith.addf %958, %959 : vector<2x10xf32>
    %cst_187 = arith.constant dense<0xFF800000> : vector<2xf32>
    %961 = vector.multi_reduction <maximumf>, %960, %cst_187 [1] : vector<2x10xf32> to vector<2xf32>
    %962 = vector.shape_cast %961 : vector<2xf32> to vector<2x1xf32>
    %963 = vector.broadcast %962 : vector<2x1xf32> to vector<2x10xf32>
    %964 = arith.subf %960, %963 : vector<2x10xf32>
    %965 = math.exp %964 : vector<2x10xf32>
    %cst_188 = arith.constant dense<0.000000e+00> : vector<2xf32>
    %966 = vector.multi_reduction <add>, %965, %cst_188 [1] : vector<2x10xf32> to vector<2xf32>
    %967 = vector.shape_cast %966 : vector<2xf32> to vector<2x1xf32>
    %968 = vector.broadcast %967 : vector<2x1xf32> to vector<2x10xf32>
    %969 = arith.divf %965, %968 : vector<2x10xf32>
    %970 = vector.shape_cast %969 : vector<2x10xf32> to vector<2x10x1xf32>
    %971 = vector.broadcast %970 : vector<2x10x1xf32> to vector<2x10x64xf32>
    %972 = arith.mulf %971, %503 : vector<2x10x64xf32>
    %cst_189 = arith.constant dense<0.000000e+00> : vector<2x64xf32>
    %973 = vector.multi_reduction <add>, %972, %cst_189 [1] : vector<2x10x64xf32> to vector<2x64xf32>
    %cst_190 = arith.constant dense<0.000000e+00> : vector<2x5xf32>
    %974 = tpu.matmul %973, %513, %cst_190 {dimension_numbers = #tpu.dot_dimension_numbers<[1], [0], [0], [1], [0, 0, 1, 1], [], []>} : vector<2x64xf32>, vector<64x5xf32>, vector<2x5xf32> -> vector<2x5xf32>
    %975 = vector.extract_strided_slice %525 {offsets = [0, 8, 0], sizes = [2, 1, 5], strides = [1, 1, 1]} : vector<2x10x5xf32> to vector<2x1x5xf32>
    %976 = vector.shape_cast %975 : vector<2x1x5xf32> to vector<2x5xf32>
    %977 = arith.addf %974, %976 : vector<2x5xf32>
    %978 = tpu.concatenate %977, %949 in 1 : vector<2x5xf32>, vector<2x64xf32> -> vector<2x69xf32>
    %cst_191 = arith.constant dense<0.000000e+00> : vector<2x256xf32>
    %979 = tpu.matmul %978, %511, %cst_191 {dimension_numbers = #tpu.dot_dimension_numbers<[1], [0], [0], [1], [0, 0, 1, 1], [], []>} : vector<2x69xf32>, vector<69x256xf32>, vector<2x256xf32> -> vector<2x256xf32>
    %980 = vector.broadcast %512 : vector<1x256xf32> to vector<2x256xf32>
    %981 = arith.addf %979, %980 : vector<2x256xf32>
    %982 = vector.extract_strided_slice %981 {offsets = [0, 0], sizes = [2, 128], strides = [1, 1]} : vector<2x256xf32> to vector<2x128xf32>
    %983 = arith.negf %982 : vector<2x128xf32>
    %984 = math.exp %983 : vector<2x128xf32>
    %cst_192 = arith.constant 1.000000e+00 : f32
    %985 = vector.broadcast %cst_192 : f32 to vector<2x128xf32>
    %986 = arith.addf %985, %984 : vector<2x128xf32>
    %987 = arith.divf %985, %986 : vector<2x128xf32>
    %988 = vector.extract_strided_slice %987 {offsets = [0, 0], sizes = [2, 64], strides = [1, 1]} : vector<2x128xf32> to vector<2x64xf32>
    %989 = vector.extract_strided_slice %987 {offsets = [0, 64], sizes = [2, 64], strides = [1, 1]} : vector<2x128xf32> to vector<2x64xf32>
    %990 = vector.extract_strided_slice %981 {offsets = [0, 128], sizes = [2, 64], strides = [1, 1]} : vector<2x256xf32> to vector<2x64xf32>
    %991 = arith.negf %990 : vector<2x64xf32>
    %992 = math.exp %991 : vector<2x64xf32>
    %cst_193 = arith.constant 1.000000e+00 : f32
    %993 = vector.broadcast %cst_193 : f32 to vector<2x64xf32>
    %994 = arith.addf %993, %992 : vector<2x64xf32>
    %995 = arith.divf %993, %994 : vector<2x64xf32>
    %996 = vector.extract_strided_slice %981 {offsets = [0, 192], sizes = [2, 64], strides = [1, 1]} : vector<2x256xf32> to vector<2x64xf32>
    %997 = math.tanh %996 : vector<2x64xf32>
    %998 = arith.mulf %989, %947 : vector<2x64xf32>
    %999 = arith.mulf %988, %997 : vector<2x64xf32>
    %1000 = arith.addf %998, %999 : vector<2x64xf32>
    %1001 = math.tanh %1000 : vector<2x64xf32>
    %1002 = arith.mulf %995, %1001 : vector<2x64xf32>
    %1003 = tpu.concatenate %1002, %1000 in 1 : vector<2x64xf32>, vector<2x64xf32> -> vector<2x128xf32>
    %cst_194 = arith.constant dense<0.000000e+00> : vector<2x64xf32>
    %1004 = tpu.matmul %1003, %506, %cst_194 {dimension_numbers = #tpu.dot_dimension_numbers<[1], [0], [0], [1], [0, 0, 1, 1], [], []>} : vector<2x128xf32>, vector<128x64xf32>, vector<2x64xf32> -> vector<2x64xf32>
    %1005 = vector.shape_cast %1004 : vector<2x64xf32> to vector<2x1x64xf32>
    %1006 = vector.broadcast %1005 : vector<2x1x64xf32> to vector<2x10x64xf32>
    %1007 = arith.addf %521, %1006 : vector<2x10x64xf32>
    %1008 = math.tanh %1007 : vector<2x10x64xf32>
    %1009 = vector.broadcast %509 : vector<1x1x64xf32> to vector<2x10x64xf32>
    %1010 = arith.mulf %1008, %1009 : vector<2x10x64xf32>
    %cst_195 = arith.constant dense<0.000000e+00> : vector<2x10xf32>
    %1011 = vector.multi_reduction <add>, %1010, %cst_195 [2] : vector<2x10x64xf32> to vector<2x10xf32>
    %1012 = vector.broadcast %510 : vector<1x1xf32> to vector<2x10xf32>
    %1013 = arith.addf %1011, %1012 : vector<2x10xf32>
    %cst_196 = arith.constant dense<0xFF800000> : vector<2xf32>
    %1014 = vector.multi_reduction <maximumf>, %1013, %cst_196 [1] : vector<2x10xf32> to vector<2xf32>
    %1015 = vector.shape_cast %1014 : vector<2xf32> to vector<2x1xf32>
    %1016 = vector.broadcast %1015 : vector<2x1xf32> to vector<2x10xf32>
    %1017 = arith.subf %1013, %1016 : vector<2x10xf32>
    %1018 = math.exp %1017 : vector<2x10xf32>
    %cst_197 = arith.constant dense<0.000000e+00> : vector<2xf32>
    %1019 = vector.multi_reduction <add>, %1018, %cst_197 [1] : vector<2x10xf32> to vector<2xf32>
    %1020 = vector.shape_cast %1019 : vector<2xf32> to vector<2x1xf32>
    %1021 = vector.broadcast %1020 : vector<2x1xf32> to vector<2x10xf32>
    %1022 = arith.divf %1018, %1021 : vector<2x10xf32>
    %1023 = vector.shape_cast %1022 : vector<2x10xf32> to vector<2x10x1xf32>
    %1024 = vector.broadcast %1023 : vector<2x10x1xf32> to vector<2x10x64xf32>
    %1025 = arith.mulf %1024, %503 : vector<2x10x64xf32>
    %cst_198 = arith.constant dense<0.000000e+00> : vector<2x64xf32>
    %1026 = vector.multi_reduction <add>, %1025, %cst_198 [1] : vector<2x10x64xf32> to vector<2x64xf32>
    %cst_199 = arith.constant dense<0.000000e+00> : vector<2x5xf32>
    %1027 = tpu.matmul %1026, %513, %cst_199 {dimension_numbers = #tpu.dot_dimension_numbers<[1], [0], [0], [1], [0, 0, 1, 1], [], []>} : vector<2x64xf32>, vector<64x5xf32>, vector<2x5xf32> -> vector<2x5xf32>
    %1028 = vector.extract_strided_slice %525 {offsets = [0, 9, 0], sizes = [2, 1, 5], strides = [1, 1, 1]} : vector<2x10x5xf32> to vector<2x1x5xf32>
    %1029 = vector.shape_cast %1028 : vector<2x1x5xf32> to vector<2x5xf32>
    %1030 = arith.addf %1027, %1029 : vector<2x5xf32>
    %1031 = tpu.concatenate %1030, %1002 in 1 : vector<2x5xf32>, vector<2x64xf32> -> vector<2x69xf32>
    %cst_200 = arith.constant dense<0.000000e+00> : vector<2x256xf32>
    %1032 = tpu.matmul %1031, %511, %cst_200 {dimension_numbers = #tpu.dot_dimension_numbers<[1], [0], [0], [1], [0, 0, 1, 1], [], []>} : vector<2x69xf32>, vector<69x256xf32>, vector<2x256xf32> -> vector<2x256xf32>
    %1033 = vector.broadcast %512 : vector<1x256xf32> to vector<2x256xf32>
    %1034 = arith.addf %1032, %1033 : vector<2x256xf32>
    %1035 = vector.extract_strided_slice %1034 {offsets = [0, 0], sizes = [2, 128], strides = [1, 1]} : vector<2x256xf32> to vector<2x128xf32>
    %1036 = arith.negf %1035 : vector<2x128xf32>
    %1037 = math.exp %1036 : vector<2x128xf32>
    %cst_201 = arith.constant 1.000000e+00 : f32
    %1038 = vector.broadcast %cst_201 : f32 to vector<2x128xf32>
    %1039 = arith.addf %1038, %1037 : vector<2x128xf32>
    %1040 = arith.divf %1038, %1039 : vector<2x128xf32>
    %1041 = vector.extract_strided_slice %1040 {offsets = [0, 0], sizes = [2, 64], strides = [1, 1]} : vector<2x128xf32> to vector<2x64xf32>
    %1042 = vector.extract_strided_slice %1040 {offsets = [0, 64], sizes = [2, 64], strides = [1, 1]} : vector<2x128xf32> to vector<2x64xf32>
    %1043 = vector.extract_strided_slice %1034 {offsets = [0, 128], sizes = [2, 64], strides = [1, 1]} : vector<2x256xf32> to vector<2x64xf32>
    %1044 = arith.negf %1043 : vector<2x64xf32>
    %1045 = math.exp %1044 : vector<2x64xf32>
    %cst_202 = arith.constant 1.000000e+00 : f32
    %1046 = vector.broadcast %cst_202 : f32 to vector<2x64xf32>
    %1047 = arith.addf %1046, %1045 : vector<2x64xf32>
    %1048 = arith.divf %1046, %1047 : vector<2x64xf32>
    %1049 = vector.extract_strided_slice %1034 {offsets = [0, 192], sizes = [2, 64], strides = [1, 1]} : vector<2x256xf32> to vector<2x64xf32>
    %1050 = math.tanh %1049 : vector<2x64xf32>
    %1051 = arith.mulf %1042, %1000 : vector<2x64xf32>
    %1052 = arith.mulf %1041, %1050 : vector<2x64xf32>
    %1053 = arith.addf %1051, %1052 : vector<2x64xf32>
    %1054 = math.tanh %1053 : vector<2x64xf32>
    %1055 = arith.mulf %1048, %1054 : vector<2x64xf32>
    %1056 = tpu.concatenate %1055, %1026 in 1 : vector<2x64xf32>, vector<2x64xf32> -> vector<2x128xf32>
    %cst_203 = arith.constant dense<0.000000e+00> : vector<2x5xf32>
    %1057 = tpu.matmul %1056, %516, %cst_203 {dimension_numbers = #tpu.dot_dimension_numbers<[1], [0], [0], [1], [0, 0, 1, 1], [], []>} : vector<2x128xf32>, vector<128x5xf32>, vector<2x5xf32> -> vector<2x5xf32>
    %1058 = vector.broadcast %517 : vector<1x5xf32> to vector<2x5xf32>
    %1059 = arith.addf %1057, %1058 : vector<2x5xf32>
    %c0_204 = arith.constant 0 : index
    %c0_205 = arith.constant 0 : index
    %1060 = vector.load %arg24[%c0_204, %c0_205] : memref<2x5xf32, #tpu.memory_space<vmem>>, vector<2x5xf32>
    tpu.vector_store %arg24[%c0_204, %c0_205], %1059 {strides = array<i32>} : memref<2x5xf32, #tpu.memory_space<vmem>>, vector<2x5xf32>,
    return
  }
}

</mosaic_0001>

<llo_original>
// kernel: tpu_custom_call.1
$region0: #{tpu_custom_call.1}
  #allocation0 [shape = 'u32[]', space=smem, size = 0x4, offset = 0x4, fixed_abs, tag = 'smem constant byte address 0x4 - core index']
  #allocation1 [shape = 'u32[144,128]{1,0:T(1,128)}', space=vmem, size = 0x12000, scoped, tag = 'internal scratch']
  #allocation2 [shape = 'f32[1,1]{1,0:T(1,128)S(1)}', space=vmem, size = 0x200, scoped, tag = 'scoped memory for tpu_custom_call.1']
  #allocation3 [shape = 'f32[1,1]{1,0:T(1,128)S(1)}', space=vmem, size = 0x200, scoped, tag = 'scoped memory for tpu_custom_call.1']
  %s0 = inlined_call_operand.vmem [shape: f32[2,10,11], index: 0, kind: input, shape index: {}]
  %s1 = inlined_call_operand.vmem [shape: f32[2,10,5], index: 1, kind: input, shape index: {}]
  %s2 = inlined_call_operand.vmem [shape: f32[2,64], index: 2, kind: input, shape index: {}]
  %s3 = inlined_call_operand.vmem [shape: f32[2,64], index: 3, kind: input, shape index: {}]
  %s4 = inlined_call_operand.vmem [shape: f32[2,64], index: 4, kind: input, shape index: {}]
  %s5 = inlined_call_operand.vmem [shape: f32[2,64], index: 5, kind: input, shape index: {}]
  %s6 = inlined_call_operand.vmem [shape: f32[1,64], index: 6, kind: input, shape index: {}]
  %s7 = inlined_call_operand.vmem [shape: f32[1,64], index: 7, kind: input, shape index: {}]
  %s8 = inlined_call_operand.vmem [shape: f32[1,10,1], index: 8, kind: input, shape index: {}]
  %s9 = inlined_call_operand.<no memory space> [shape: f32[1,1], index: 9, kind: input, shape index: {}]
  %s10 = inlined_call_operand.vmem [shape: f32[75,256], index: 10, kind: input, shape index: {}]
  %s11 = inlined_call_operand.vmem [shape: f32[1,256], index: 11, kind: input, shape index: {}]
  %s12 = inlined_call_operand.vmem [shape: f32[128,64], index: 12, kind: input, shape index: {}]
  %s13 = inlined_call_operand.vmem [shape: f32[64,64], index: 13, kind: input, shape index: {}]
  %s14 = inlined_call_operand.vmem [shape: f32[1,64], index: 14, kind: input, shape index: {}]
  %s15 = inlined_call_operand.vmem [shape: f32[1,1,64], index: 15, kind: input, shape index: {}]
  %s16 = inlined_call_operand.<no memory space> [shape: f32[1,1], index: 16, kind: input, shape index: {}]
  %s17 = inlined_call_operand.vmem [shape: f32[69,256], index: 17, kind: input, shape index: {}]
  %s18 = inlined_call_operand.vmem [shape: f32[1,256], index: 18, kind: input, shape index: {}]
  %s19 = inlined_call_operand.vmem [shape: f32[64,5], index: 19, kind: input, shape index: {}]
  %s20 = inlined_call_operand.vmem [shape: f32[5,5], index: 20, kind: input, shape index: {}]
  %s21 = inlined_call_operand.vmem [shape: f32[1,5], index: 21, kind: input, shape index: {}]
  %s22 = inlined_call_operand.vmem [shape: f32[128,5], index: 22, kind: input, shape index: {}]
  %s23 = inlined_call_operand.vmem [shape: f32[1,5], index: 23, kind: input, shape index: {}]
  %s24 = inlined_call_operand.hbm [shape: f32[2,5], index: 24, kind: output, shape index: {}]
  %s25 = sld [smem:[#allocation0]]
  $region106: #{tpu_custom_call.1} parent=0
    _
  %s27 = ssub.s32 1, %s25
  %s28 = scalar_select 0, %s27, %s25
  %v29 = vstv %s9
  %30 = vst [vmem:[#allocation2] sm:$0x1] %v29
  %v31 = vstv %s16
  %32 = vst [vmem:[#allocation3] sm:$0x1] %v31
  $region1: #{tpu_custom_call.1} parent=0
    #allocation4 [shape = 'u8[1024]{0}', space=vmem, size = 0x400, scoped, tag = 'output window, operand 0, single buffered']
    #allocation5 [shape = 's32[1]{0}', space=sflag, size = 0x4, scoped, tag = 'scoped memory for tpu_custom_call.1']
    %33 = vsyncpa [#allocation5], 0
    // Predicated region
    $region2: #{tpu_custom_call.1} parent=1 // pred_check
      _
    $region3: #{tpu_custom_call.1} parent=1 // pred_check_branch
      %35 = sbr.rel (0) target = $region5
    $region4: #{tpu_custom_call.1} parent=1 // pred_region
      _
    $region5: #{tpu_custom_call.1} parent=1 // pred_fallthru
      _
    // Predicated region
    $region6: #{tpu_custom_call.1} parent=1 // pred_check
      _
    $region7: #{tpu_custom_call.1} parent=1 // pred_check_branch
      %37 = sbr.rel (0) target = $region9
    $region8: #{tpu_custom_call.1} parent=1 // pred_region
      _
    $region9: #{tpu_custom_call.1} parent=1 // pred_fallthru
      _
    // Predicated region
    $region10: #{tpu_custom_call.1} parent=1 // pred_check
      _
    $region11: #{tpu_custom_call.1} parent=1 // pred_check_branch
      %39 = sbr.rel (0) target = $region13
    $region12: #{tpu_custom_call.1} parent=1 // pred_region
      _
    $region13: #{tpu_custom_call.1} parent=1 // pred_fallthru
      _
    // Predicated region
    $region14: #{tpu_custom_call.1} parent=1 // pred_check
      _
    $region15: #{tpu_custom_call.1} parent=1 // pred_check_branch
      %41 = sbr.rel (0) target = $region17
    $region16: #{tpu_custom_call.1} parent=1 // pred_region
      _
    $region17: #{tpu_custom_call.1} parent=1 // pred_fallthru
      _
    // Predicated region
    $region18: #{tpu_custom_call.1} parent=1 // pred_check
      _
    $region19: #{tpu_custom_call.1} parent=1 // pred_check_branch
      %43 = sbr.rel (0) target = $region21
    $region20: #{tpu_custom_call.1} parent=1 // pred_region
      _
    $region21: #{tpu_custom_call.1} parent=1 // pred_fallthru
      _
    // Predicated region
    $region22: #{tpu_custom_call.1} parent=1 // pred_check
      _
    $region23: #{tpu_custom_call.1} parent=1 // pred_check_branch
      %45 = sbr.rel (0) target = $region25
    $region24: #{tpu_custom_call.1} parent=1 // pred_region
      _
    $region25: #{tpu_custom_call.1} parent=1 // pred_fallthru
      _
    // Predicated region
    $region26: #{tpu_custom_call.1} parent=1 // pred_check
      _
    $region27: #{tpu_custom_call.1} parent=1 // pred_check_branch
      %47 = sbr.rel (0) target = $region29
    $region28: #{tpu_custom_call.1} parent=1 // pred_region
      _
    $region29: #{tpu_custom_call.1} parent=1 // pred_fallthru
      _
    // Predicated region
    $region30: #{tpu_custom_call.1} parent=1 // pred_check
      _
    $region31: #{tpu_custom_call.1} parent=1 // pred_check_branch
      %49 = sbr.rel (0) target = $region33
    $region32: #{tpu_custom_call.1} parent=1 // pred_region
      _
    $region33: #{tpu_custom_call.1} parent=1 // pred_fallthru
      _
    // Predicated region
    $region34: #{tpu_custom_call.1} parent=1 // pred_check
      _
    $region35: #{tpu_custom_call.1} parent=1 // pred_check_branch
      %51 = sbr.rel (0) target = $region37
    $region36: #{tpu_custom_call.1} parent=1 // pred_region
      _
    $region37: #{tpu_custom_call.1} parent=1 // pred_fallthru
      _
    // Predicated region
    $region38: #{tpu_custom_call.1} parent=1 // pred_check
      _
    $region39: #{tpu_custom_call.1} parent=1 // pred_check_branch
      %53 = sbr.rel (0) target = $region41
    $region40: #{tpu_custom_call.1} parent=1 // pred_region
      _
    $region41: #{tpu_custom_call.1} parent=1 // pred_fallthru
      _
    // Predicated region
    $region42: #{tpu_custom_call.1} parent=1 // pred_check
      _
    $region43: #{tpu_custom_call.1} parent=1 // pred_check_branch
      %55 = sbr.rel (0) target = $region45
    $region44: #{tpu_custom_call.1} parent=1 // pred_region
      _
    $region45: #{tpu_custom_call.1} parent=1 // pred_fallthru
      _
    // Predicated region
    $region46: #{tpu_custom_call.1} parent=1 // pred_check
      _
    $region47: #{tpu_custom_call.1} parent=1 // pred_check_branch
      %57 = sbr.rel (0) target = $region49
    $region48: #{tpu_custom_call.1} parent=1 // pred_region
      _
    $region49: #{tpu_custom_call.1} parent=1 // pred_fallthru
      _
    // Predicated region
    $region50: #{tpu_custom_call.1} parent=1 // pred_check
      _
    $region51: #{tpu_custom_call.1} parent=1 // pred_check_branch
      %59 = sbr.rel (0) target = $region53
    $region52: #{tpu_custom_call.1} parent=1 // pred_region
      _
    $region53: #{tpu_custom_call.1} parent=1 // pred_fallthru
      _
    // Predicated region
    $region54: #{tpu_custom_call.1} parent=1 // pred_check
      _
    $region55: #{tpu_custom_call.1} parent=1 // pred_check_branch
      %61 = sbr.rel (0) target = $region57
    $region56: #{tpu_custom_call.1} parent=1 // pred_region
      _
    $region57: #{tpu_custom_call.1} parent=1 // pred_fallthru
      _
    // Predicated region
    $region58: #{tpu_custom_call.1} parent=1 // pred_check
      _
    $region59: #{tpu_custom_call.1} parent=1 // pred_check_branch
      %63 = sbr.rel (0) target = $region61
    $region60: #{tpu_custom_call.1} parent=1 // pred_region
      _
    $region61: #{tpu_custom_call.1} parent=1 // pred_fallthru
      _
    // Predicated region
    $region62: #{tpu_custom_call.1} parent=1 // pred_check
      _
    $region63: #{tpu_custom_call.1} parent=1 // pred_check_branch
      %65 = sbr.rel (0) target = $region65
    $region64: #{tpu_custom_call.1} parent=1 // pred_region
      _
    $region65: #{tpu_custom_call.1} parent=1 // pred_fallthru
      _
    // Predicated region
    $region66: #{tpu_custom_call.1} parent=1 // pred_check
      _
    $region67: #{tpu_custom_call.1} parent=1 // pred_check_branch
      %67 = sbr.rel (0) target = $region69
    $region68: #{tpu_custom_call.1} parent=1 // pred_region
      _
    $region69: #{tpu_custom_call.1} parent=1 // pred_fallthru
      _
    // Predicated region
    $region70: #{tpu_custom_call.1} parent=1 // pred_check
      _
    $region71: #{tpu_custom_call.1} parent=1 // pred_check_branch
      %69 = sbr.rel (0) target = $region73
    $region72: #{tpu_custom_call.1} parent=1 // pred_region
      _
    $region73: #{tpu_custom_call.1} parent=1 // pred_fallthru
      _
    // Predicated region
    $region74: #{tpu_custom_call.1} parent=1 // pred_check
      _
    $region75: #{tpu_custom_call.1} parent=1 // pred_check_branch
      %71 = sbr.rel (0) target = $region77
    $region76: #{tpu_custom_call.1} parent=1 // pred_region
      _
    $region77: #{tpu_custom_call.1} parent=1 // pred_fallthru
      _
    // Predicated region
    $region78: #{tpu_custom_call.1} parent=1 // pred_check
      _
    $region79: #{tpu_custom_call.1} parent=1 // pred_check_branch
      %73 = sbr.rel (0) target = $region81
    $region80: #{tpu_custom_call.1} parent=1 // pred_region
      _
    $region81: #{tpu_custom_call.1} parent=1 // pred_fallthru
      _
    // Predicated region
    $region82: #{tpu_custom_call.1} parent=1 // pred_check
      _
    $region83: #{tpu_custom_call.1} parent=1 // pred_check_branch
      %75 = sbr.rel (0) target = $region85
    $region84: #{tpu_custom_call.1} parent=1 // pred_region
      _
    $region85: #{tpu_custom_call.1} parent=1 // pred_fallthru
      _
    // Predicated region
    $region86: #{tpu_custom_call.1} parent=1 // pred_check
      _
    $region87: #{tpu_custom_call.1} parent=1 // pred_check_branch
      %77 = sbr.rel (0) target = $region89
    $region88: #{tpu_custom_call.1} parent=1 // pred_region
      _
    $region89: #{tpu_custom_call.1} parent=1 // pred_fallthru
      _
    // Predicated region
    $region90: #{tpu_custom_call.1} parent=1 // pred_check
      _
    $region91: #{tpu_custom_call.1} parent=1 // pred_check_branch
      %79 = sbr.rel (0) target = $region93
    $region92: #{tpu_custom_call.1} parent=1 // pred_region
      _
    $region93: #{tpu_custom_call.1} parent=1 // pred_fallthru
      _
    // Predicated region
    $region94: #{tpu_custom_call.1} parent=1 // pred_check
      _
    $region95: #{tpu_custom_call.1} parent=1 // pred_check_branch
      %81 = sbr.rel (0) target = $region97
    $region96: #{tpu_custom_call.1} parent=1 // pred_region
      _
    $region97: #{tpu_custom_call.1} parent=1 // pred_fallthru
      _
    %v82 = vld [vmem:[%s0] sm:$0xff]
    %v83 = vld [vmem:[%s0 + $0x8] sm:$0x3]
    %v84 = vld [vmem:[%s0 + $0x10] sm:$0xff]
    %v85 = vld [vmem:[%s0 + $0x18] sm:$0x3]
    %v86 = vld [vmem:[%s1] sm:$0xff]
    %v87 = vld [vmem:[%s1 + $0x8] sm:$0x3]
    %v88 = vld [vmem:[%s1 + $0x10] sm:$0xff]
    %v89 = vld [vmem:[%s1 + $0x18] sm:$0x3]
    %v90 = vld [vmem:[%s2] sm:$0x3]
    %v91 = vld [vmem:[%s3] sm:$0x3]
    %v92 = vld [vmem:[%s6] sm:$0x1]
    %v93 = vld [vmem:[%s7] sm:$0x1]
    %v94 = vld [vmem:[%s8] sm:$0xff]
    %v95 = vld [vmem:[%s8 + $0x8] sm:$0x3]
    %v96 = vld [vmem:[#allocation2] sm:$0x1]
    %v97 = vld [vmem:[%s10] sm:$0xff]
    %v98 = vld [vmem:[%s10 + $0x8] sm:$0xff]
    %v99 = vld [vmem:[%s10 + $0x10] sm:$0xff]
    %v100 = vld [vmem:[%s10 + $0x18] sm:$0xff]
    %v101 = vld [vmem:[%s10 + $0x20] sm:$0xff]
    %v102 = vld [vmem:[%s10 + $0x28] sm:$0xff]
    %v103 = vld [vmem:[%s10 + $0x30] sm:$0xff]
    %v104 = vld [vmem:[%s10 + $0x38] sm:$0xff]
    %v105 = vld [vmem:[%s10 + $0x40] sm:$0xff]
    %v106 = vld [vmem:[%s10 + $0x48] sm:$0xff]
    %v107 = vld [vmem:[%s10 + $0x50] sm:$0xff]
    %v108 = vld [vmem:[%s10 + $0x58] sm:$0xff]
    %v109 = vld [vmem:[%s10 + $0x60] sm:$0xff]
    %v110 = vld [vmem:[%s10 + $0x68] sm:$0xff]
    %v111 = vld [vmem:[%s10 + $0x70] sm:$0xff]
    %v112 = vld [vmem:[%s10 + $0x78] sm:$0xff]
    %v113 = vld [vmem:[%s10 + $0x80] sm:$0xff]
    %v114 = vld [vmem:[%s10 + $0x88] sm:$0xff]
    %v115 = vld [vmem:[%s10 + $0x90] sm:$0x7]
    %v116 = vld [vmem:[%s10 + $0x98] sm:$0x7]
    %v117 = vld [vmem:[%s11] sm:$0x3]
    %119 = vset.pattern.permute.xlu0 0
    %120 = vperm.xlu0 %119, %v94
    %v121 = vpop.permute.xlu0 %120
    %124 = vset.pattern.permute.xlu0 0
    %125 = vperm.xlu0 %124, %v95
    %v126 = vpop.permute.xlu0 %125
    %v128 = vmul.f32 %v82, %v121
    %v129 = vmul.f32 %v83, %v126
    %v130 = vmul.f32 %v84, %v121
    %v131 = vmul.f32 %v85, %v126
    %vm132 = vcmask 89088
    %v133 = vsel %vm132, %v128, 0.0
    %vm134 = vcmask 82944
    %v135 = vsel %vm134, %v129, 0.0
    %v136 = vadd.f32 %v133, %v135
    %v137 = vrot.slane %v136, 4
    %v138 = vadd.f32 %v136, %v137
    %v139 = vrot.slane %v138, 2
    %v140 = vadd.f32 %v138, %v139
    %v141 = vrot.slane %v140, 1
    %v142 = vadd.f32 %v140, %v141
    %v143 = vsel %vm132, %v130, 0.0
    %v144 = vsel %vm134, %v131, 0.0
    %v145 = vadd.f32 %v143, %v144
    %v146 = vrot.slane %v145, 4
    %v147 = vadd.f32 %v145, %v146
    %v148 = vrot.slane %v147, 2
    %v149 = vadd.f32 %v147, %v148
    %v150 = vrot.slane %v149, 1
    %v151 = vadd.f32 %v149, %v150
    %v153 = vlaneseq
    %v154 = vshrl.u32 %v153, 7
    %v155 = vsub.s32 0, %v154
    %v156 = vrot.slane %v92, %v155
    %v158 = vmul.f32 %v90, %v156
    %v160 = vlaneseq
    %v161 = vshrl.u32 %v160, 7
    %v162 = vsub.s32 0, %v161
    %v163 = vrot.slane %v93, %v162
    %v165 = vmul.f32 %v91, %v163
    %v166 = vadd.f32 %v158, %v165
    %vm167 = vcmask 517120
    %v168 = vsel %vm167, %v166, 0.0
    %169 = vadd.xlane.f32.xlu0 %v168
    %v170 = vpop.xlane.xlu0 %169
    %v172 = vlaneseq
    %v173 = vshrl.u32 %v172, 7
    %v174 = vsub.s32 0, %v173
    %v175 = vrot.slane %v96, %v174
    %v177 = vadd.f32 %v170, %v175
    %179 = vset.pattern.permute.xlu0 0
    %180 = vperm.xlu0 %179, %v177
    %v181 = vpop.permute.xlu0 %180
    %vm185 = vcmask 1041409
    %v186 = vsel %vm185, %v151, %v142
    %v188 = vadd.f32 %v181, %v186
    %v189 = vsel %vm134, %v188, -inf
    %190 = vmax.xlane.f32.xlu0 %v189
    %v191 = vpop.xlane.xlu0 %190
    %v192 = vsub.f32 %v188, %v191
    %v193 = vmul.f32 %v192, 1.442695
    %v194 = vpow.pop %v193
    %v195 = vsel %vm134, %v194, 0.0
    %196 = vadd.xlane.f32.xlu0 %v195
    %v197 = vpop.xlane.xlu0 %196
    %v198 = vrcp.pop %v197
    %v199 = vmul.f32 %v194, %v198
    %v202 = vrot.slane %v84, 7
    %v203 = vsel %vm185, %v202, %v82
    %v205 = vmul.f32 %v199, %v203
    %207 = vrot.lane.b32.xlu0 %v90, 11
    %v208 = vpop.permute.xlu0 %207
    %v210 = vsel %vm132, %v205, %v208
    %v212 = vlaneseq
    %v213 = vshrl.u32 %v212, 7
    %v214 = vsub.s32 0, %v213
    %v215 = vrot.slane %v117, %v214
    %v216 = vlaneseq
    %v217 = vshrl.u32 %v216, 7
    %v218 = vsub.s32 1, %v217
    %v219 = vrot.slane %v117, %v218
    %vm222 = vcmask 613376
    %v224 = vsel %vm222, %v210, 0
    %vm226 = vcmask 1042432
    %v228 = vsel %vm226, %v115, 0
    %v231 = vsel %vm226, %v116, 0
    %233 = vmatprep.subr.mxu0 %v98
    %234 = vmatpush1.msra.mxu0 %v97
    %235 = vmatprep.subr.mxu0 %v100
    %236 = vmatpush1.msra.mxu0 %v99
    %237 = vmatprep.subr.mxu0 %v102
    %238 = vmatpush1.msra.mxu0 %v101
    %239 = vmatprep.subr.mxu0 %v104
    %240 = vmatpush1.msra.mxu0 %v103
    %241 = vmatprep.subr.mxu0 %v106
    %242 = vmatpush1.msra.mxu0 %v105
    %243 = vmatprep.subr.mxu0 %v108
    %244 = vmatpush1.msra.mxu0 %v107
    %245 = vmatprep.subr.mxu0 %v110
    %246 = vmatpush1.msra.mxu0 %v109
    %247 = vmatprep.subr.mxu0 %v112
    %248 = vmatpush1.msra.mxu0 %v111
    %249 = vmatprep.subr.mxu0 %v114
    %250 = vmatpush1.msra.mxu0 %v113
    %251 = vmatprep.subr.mxu0 %v231
    %252 = vmatpush1.msra.mxu0 %v228
    %253 = vmatprep.subr.mxu0 0.0
    %254 = vmatpush1.msra.mxu0 0.0
    %255 = vmatprep.subr.mxu0 0.0
    %256 = vmatpush1.msra.mxu0 0.0
    %257 = vmatprep.subr.mxu0 0.0
    %258 = vmatpush1.msra.mxu0 0.0
    %259 = vmatprep.subr.mxu0 0.0
    %260 = vmatpush1.msra.mxu0 0.0
    %261 = vmatprep.subr.mxu0 0.0
    %262 = vmatpush1.msra.mxu0 0.0
    %263 = vmatprep.subr.mxu0 0.0
    %264 = vmatpush1.msra.mxu0 0.0
    %265 = vmatprep.subr.mxu0 0.0
    %266 = vmatpush1.msra.mxu0 0.0
    %267 = vmatprep.subr.mxu0 0.0
    %268 = vmatpush1.msra.mxu0 0.0
    %269 = vmatprep.subr.mxu0 0.0
    %270 = vmatpush1.msra.mxu0 0.0
    %271 = vmatprep.subr.mxu0 0.0
    %272 = vmatpush1.msra.mxu0 0.0
    %273 = vmatprep.subr.mxu0 0.0
    %274 = vmatpush1.msra.mxu0 0.0
    %275 = vmatprep.subr.mxu0 0.0
    %276 = vmatpush1.msra.mxu0 0.0
    %277 = vmatprep.subr.mxu0 0.0
    %278 = vmatpush1.msra.mxu0 0.0
    %279 = vmatprep.subr.mxu0 0.0
    %280 = vmatpush1.msra.mxu0 0.0
    %281 = vmatprep.subr.mxu0 0.0
    %282 = vmatpush1.msra.mxu0 0.0
    %283 = vmatprep.subr.mxu0 0.0
    %284 = vmatpush1.msra.mxu0 0.0
    %285 = vmatprep.subr.mxu0 0.0
    %286 = vmatpush1.msra.mxu0 0.0
    %287 = vmatprep.subr.mxu0 0.0
    %288 = vmatpush1.msra.mxu0 0.0
    %289 = vmatprep.subr.mxu0 0.0
    %290 = vmatpush1.msra.mxu0 0.0
    %291 = vmatprep.subr.mxu0 0.0
    %292 = vmatpush1.msra.mxu0 0.0
    %293 = vmatprep.subr.mxu0 0.0
    %294 = vmatpush1.msra.mxu0 0.0
    %295 = vmatprep.subr.mxu0 0.0
    %296 = vmatpush1.msra.mxu0 0.0
    %297 = vmatprep.mubr.f32.mxu0 0.0
    %298 = vmatmul.mubr.f32.gmra.mrb[0].mxu0 %v224
    %v299 = vpop.f32.mrb[0].mxu0
    %v300 = vadd.f32 %v215, %v299
    %v301 = vpop.f32.mrb[0].mxu0
    %v302 = vadd.f32 %v219, %v301
    %303 = vdwg.mxu0
    %v304 = vxor.u32 %v300, 2147483648
    %v305 = vmul.f32 %v304, 1.442695
    %v306 = vpow.pop %v305
    %v307 = vadd.f32 %v306, 1.0
    %v308 = vrcp.pop %v307
    %v309 = vmul.f32 1.0, %v308
    %v310 = vxor.u32 %v302, 2147483648
    %v311 = vmul.f32 %v310, 1.442695
    %v312 = vpow.pop %v311
    %v313 = vadd.f32 %v312, 1.0
    %v314 = vrcp.pop %v313
    %v315 = vmul.f32 1.0, %v314
    %v316 = vtanh.pop %v302
    %318 = vrot.lane.b32.xlu0 %v91, 64
    %v319 = vpop.permute.xlu0 %318
    %v321 = vmul.f32 %v309, %v319
    %323 = vrot.lane.b32.xlu0 %v316, 64
    %v324 = vpop.permute.xlu0 %323
    %v326 = vmul.f32 %v309, %v324
    %328 = vrot.lane.b32.xlu0 %v326, 64
    %v329 = vpop.permute.xlu0 %328
    %v331 = vadd.f32 %v321, %v329
    %v332 = vtanh.pop %v331
    %334 = vrot.lane.b32.xlu0 %v332, 64
    %v335 = vpop.permute.xlu0 %334
    %v337 = vmul.f32 %v315, %v335
    %v338 = vmul.f32 %v337, %v156
    %339 = vrot.lane.b32.xlu0 %v163, 64
    %v340 = vpop.permute.xlu0 %339
    %v342 = vmul.f32 %v331, %v340
    %344 = vrot.lane.b32.xlu0 %v342, 64
    %v345 = vpop.permute.xlu0 %344
    %v347 = vadd.f32 %v338, %v345
    %v348 = vsel %vm167, %v347, 0.0
    %349 = vadd.xlane.f32.xlu0 %v348
    %v350 = vpop.xlane.xlu0 %349
    %v351 = vadd.f32 %v350, %v175
    %353 = vset.pattern.permute.xlu0 0
    %354 = vperm.xlu0 %353, %v351
    %v355 = vpop.permute.xlu0 %354
    %v357 = vadd.f32 %v355, %v186
    %v358 = vsel %vm134, %v357, -inf
    %359 = vmax.xlane.f32.xlu0 %v358
    %v360 = vpop.xlane.xlu0 %359
    %v361 = vsub.f32 %v357, %v360
    %v362 = vmul.f32 %v361, 1.442695
    %v363 = vpow.pop %v362
    %v364 = vsel %vm134, %v363, 0.0
    %365 = vadd.xlane.f32.xlu0 %v364
    %v366 = vpop.xlane.xlu0 %365
    %v367 = vrcp.pop %v366
    %v368 = vmul.f32 %v363, %v367
    %v369 = vrot.slane %v82, 1
    %v370 = vsel %vm185, %v84, %v369
    %v372 = vmul.f32 %v368, %v370
    %374 = vrot.lane.b32.xlu0 %v337, 11
    %v375 = vpop.permute.xlu0 %374
    %v377 = vsel %vm132, %v372, %v375
    %v379 = vsel %vm222, %v377, 0
    %381 = vmatprep.subr.mxu0 %v98
    %382 = vmatpush1.msra.mxu0 %v97
    %383 = vmatprep.subr.mxu0 %v100
    %384 = vmatpush1.msra.mxu0 %v99
    %385 = vmatprep.subr.mxu0 %v102
    %386 = vmatpush1.msra.mxu0 %v101
    %387 = vmatprep.subr.mxu0 %v104
    %388 = vmatpush1.msra.mxu0 %v103
    %389 = vmatprep.subr.mxu0 %v106
    %390 = vmatpush1.msra.mxu0 %v105
    %391 = vmatprep.subr.mxu0 %v108
    %392 = vmatpush1.msra.mxu0 %v107
    %393 = vmatprep.subr.mxu0 %v110
    %394 = vmatpush1.msra.mxu0 %v109
    %395 = vmatprep.subr.mxu0 %v112
    %396 = vmatpush1.msra.mxu0 %v111
    %397 = vmatprep.subr.mxu0 %v114
    %398 = vmatpush1.msra.mxu0 %v113
    %399 = vmatprep.subr.mxu0 %v231
    %400 = vmatpush1.msra.mxu0 %v228
    %401 = vmatprep.subr.mxu0 0.0
    %402 = vmatpush1.msra.mxu0 0.0
    %403 = vmatprep.subr.mxu0 0.0
    %404 = vmatpush1.msra.mxu0 0.0
    %405 = vmatprep.subr.mxu0 0.0
    %406 = vmatpush1.msra.mxu0 0.0
    %407 = vmatprep.subr.mxu0 0.0
    %408 = vmatpush1.msra.mxu0 0.0
    %409 = vmatprep.subr.mxu0 0.0
    %410 = vmatpush1.msra.mxu0 0.0
    %411 = vmatprep.subr.mxu0 0.0
    %412 = vmatpush1.msra.mxu0 0.0
    %413 = vmatprep.subr.mxu0 0.0
    %414 = vmatpush1.msra.mxu0 0.0
    %415 = vmatprep.subr.mxu0 0.0
    %416 = vmatpush1.msra.mxu0 0.0
    %417 = vmatprep.subr.mxu0 0.0
    %418 = vmatpush1.msra.mxu0 0.0
    %419 = vmatprep.subr.mxu0 0.0
    %420 = vmatpush1.msra.mxu0 0.0
    %421 = vmatprep.subr.mxu0 0.0
    %422 = vmatpush1.msra.mxu0 0.0
    %423 = vmatprep.subr.mxu0 0.0
    %424 = vmatpush1.msra.mxu0 0.0
    %425 = vmatprep.subr.mxu0 0.0
    %426 = vmatpush1.msra.mxu0 0.0
    %427 = vmatprep.subr.mxu0 0.0
    %428 = vmatpush1.msra.mxu0 0.0
    %429 = vmatprep.subr.mxu0 0.0
    %430 = vmatpush1.msra.mxu0 0.0
    %431 = vmatprep.subr.mxu0 0.0
    %432 = vmatpush1.msra.mxu0 0.0
    %433 = vmatprep.subr.mxu0 0.0
    %434 = vmatpush1.msra.mxu0 0.0
    %435 = vmatprep.subr.mxu0 0.0
    %436 = vmatpush1.msra.mxu0 0.0
    %437 = vmatprep.subr.mxu0 0.0
    %438 = vmatpush1.msra.mxu0 0.0
    %439 = vmatprep.subr.mxu0 0.0
    %440 = vmatpush1.msra.mxu0 0.0
    %441 = vmatprep.subr.mxu0 0.0
    %442 = vmatpush1.msra.mxu0 0.0
    %443 = vmatprep.subr.mxu0 0.0
    %444 = vmatpush1.msra.mxu0 0.0
    %445 = vmatprep.mubr.f32.mxu0 0.0
    %446 = vmatmul.mubr.f32.gmra.mrb[0].mxu0 %v379
    %v447 = vpop.f32.mrb[0].mxu0
    %v448 = vadd.f32 %v215, %v447
    %v449 = vpop.f32.mrb[0].mxu0
    %v450 = vadd.f32 %v219, %v449
    %451 = vdwg.mxu0
    %v452 = vxor.u32 %v448, 2147483648
    %v453 = vmul.f32 %v452, 1.442695
    %v454 = vpow.pop %v453
    %v455 = vadd.f32 %v454, 1.0
    %v456 = vrcp.pop %v455
    %v457 = vmul.f32 1.0, %v456
    %v458 = vxor.u32 %v450, 2147483648
    %v459 = vmul.f32 %v458, 1.442695
    %v460 = vpow.pop %v459
    %v461 = vadd.f32 %v460, 1.0
    %v462 = vrcp.pop %v461
    %v463 = vmul.f32 1.0, %v462
    %v464 = vtanh.pop %v450
    %v465 = vmul.f32 %v457, %v331
    %467 = vrot.lane.b32.xlu0 %v464, 64
    %v468 = vpop.permute.xlu0 %467
    %v470 = vmul.f32 %v457, %v468
    %472 = vrot.lane.b32.xlu0 %v470, 64
    %v473 = vpop.permute.xlu0 %472
    %v475 = vadd.f32 %v465, %v473
    %v476 = vtanh.pop %v475
    %478 = vrot.lane.b32.xlu0 %v476, 64
    %v479 = vpop.permute.xlu0 %478
    %v481 = vmul.f32 %v463, %v479
    %v482 = vmul.f32 %v481, %v156
    %v483 = vmul.f32 %v475, %v340
    %485 = vrot.lane.b32.xlu0 %v483, 64
    %v486 = vpop.permute.xlu0 %485
    %v488 = vadd.f32 %v482, %v486
    %v489 = vsel %vm167, %v488, 0.0
    %490 = vadd.xlane.f32.xlu0 %v489
    %v491 = vpop.xlane.xlu0 %490
    %v492 = vadd.f32 %v491, %v175
    %494 = vset.pattern.permute.xlu0 0
    %495 = vperm.xlu0 %494, %v492
    %v496 = vpop.permute.xlu0 %495
    %v498 = vadd.f32 %v496, %v186
    %v499 = vsel %vm134, %v498, -inf
    %500 = vmax.xlane.f32.xlu0 %v499
    %v501 = vpop.xlane.xlu0 %500
    %v502 = vsub.f32 %v498, %v501
    %v503 = vmul.f32 %v502, 1.442695
    %v504 = vpow.pop %v503
    %v505 = vsel %vm134, %v504, 0.0
    %506 = vadd.xlane.f32.xlu0 %v505
    %v507 = vpop.xlane.xlu0 %506
    %v508 = vrcp.pop %v507
    %v509 = vmul.f32 %v504, %v508
    %v510 = vrot.slane %v82, 2
    %v511 = vrot.slane %v84, 1
    %v512 = vsel %vm185, %v511, %v510
    %v514 = vmul.f32 %v509, %v512
    %516 = vrot.lane.b32.xlu0 %v481, 11
    %v517 = vpop.permute.xlu0 %516
    %v519 = vsel %vm132, %v514, %v517
    %v521 = vsel %vm222, %v519, 0
    %523 = vmatprep.subr.mxu0 %v98
    %524 = vmatpush1.msra.mxu0 %v97
    %525 = vmatprep.subr.mxu0 %v100
    %526 = vmatpush1.msra.mxu0 %v99
    %527 = vmatprep.subr.mxu0 %v102
    %528 = vmatpush1.msra.mxu0 %v101
    %529 = vmatprep.subr.mxu0 %v104
    %530 = vmatpush1.msra.mxu0 %v103
    %531 = vmatprep.subr.mxu0 %v106
    %532 = vmatpush1.msra.mxu0 %v105
    %533 = vmatprep.subr.mxu0 %v108
    %534 = vmatpush1.msra.mxu0 %v107
    %535 = vmatprep.subr.mxu0 %v110
    %536 = vmatpush1.msra.mxu0 %v109
    %537 = vmatprep.subr.mxu0 %v112
    %538 = vmatpush1.msra.mxu0 %v111
    %539 = vmatprep.subr.mxu0 %v114
    %540 = vmatpush1.msra.mxu0 %v113
    %541 = vmatprep.subr.mxu0 %v231
    %542 = vmatpush1.msra.mxu0 %v228
    %543 = vmatprep.subr.mxu0 0.0
    %544 = vmatpush1.msra.mxu0 0.0
    %545 = vmatprep.subr.mxu0 0.0
    %546 = vmatpush1.msra.mxu0 0.0
    %547 = vmatprep.subr.mxu0 0.0
    %548 = vmatpush1.msra.mxu0 0.0
    %549 = vmatprep.subr.mxu0 0.0
    %550 = vmatpush1.msra.mxu0 0.0
    %551 = vmatprep.subr.mxu0 0.0
    %552 = vmatpush1.msra.mxu0 0.0
    %553 = vmatprep.subr.mxu0 0.0
    %554 = vmatpush1.msra.mxu0 0.0
    %555 = vmatprep.subr.mxu0 0.0
    %556 = vmatpush1.msra.mxu0 0.0
    %557 = vmatprep.subr.mxu0 0.0
    %558 = vmatpush1.msra.mxu0 0.0
    %559 = vmatprep.subr.mxu0 0.0
    %560 = vmatpush1.msra.mxu0 0.0
    %561 = vmatprep.subr.mxu0 0.0
    %562 = vmatpush1.msra.mxu0 0.0
    %563 = vmatprep.subr.mxu0 0.0
    %564 = vmatpush1.msra.mxu0 0.0
    %565 = vmatprep.subr.mxu0 0.0
    %566 = vmatpush1.msra.mxu0 0.0
    %567 = vmatprep.subr.mxu0 0.0
    %568 = vmatpush1.msra.mxu0 0.0
    %569 = vmatprep.subr.mxu0 0.0
    %570 = vmatpush1.msra.mxu0 0.0
    %571 = vmatprep.subr.mxu0 0.0
    %572 = vmatpush1.msra.mxu0 0.0
    %573 = vmatprep.subr.mxu0 0.0
    %574 = vmatpush1.msra.mxu0 0.0
    %575 = vmatprep.subr.mxu0 0.0
    %576 = vmatpush1.msra.mxu0 0.0
    %577 = vmatprep.subr.mxu0 0.0
    %578 = vmatpush1.msra.mxu0 0.0
    %579 = vmatprep.subr.mxu0 0.0
    %580 = vmatpush1.msra.mxu0 0.0
    %581 = vmatprep.subr.mxu0 0.0
    %582 = vmatpush1.msra.mxu0 0.0
    %583 = vmatprep.subr.mxu0 0.0
    %584 = vmatpush1.msra.mxu0 0.0
    %585 = vmatprep.subr.mxu0 0.0
    %586 = vmatpush1.msra.mxu0 0.0
    %587 = vmatprep.mubr.f32.mxu0 0.0
    %588 = vmatmul.mubr.f32.gmra.mrb[0].mxu0 %v521
    %v589 = vpop.f32.mrb[0].mxu0
    %v590 = vadd.f32 %v215, %v589
    %v591 = vpop.f32.mrb[0].mxu0
    %v592 = vadd.f32 %v219, %v591
    %593 = vdwg.mxu0
    %v594 = vxor.u32 %v590, 2147483648
    %v595 = vmul.f32 %v594, 1.442695
    %v596 = vpow.pop %v595
    %v597 = vadd.f32 %v596, 1.0
    %v598 = vrcp.pop %v597
    %v599 = vmul.f32 1.0, %v598
    %v600 = vxor.u32 %v592, 2147483648
    %v601 = vmul.f32 %v600, 1.442695
    %v602 = vpow.pop %v601
    %v603 = vadd.f32 %v602, 1.0
    %v604 = vrcp.pop %v603
    %v605 = vmul.f32 1.0, %v604
    %v606 = vtanh.pop %v592
    %v607 = vmul.f32 %v599, %v475
    %609 = vrot.lane.b32.xlu0 %v606, 64
    %v610 = vpop.permute.xlu0 %609
    %v612 = vmul.f32 %v599, %v610
    %614 = vrot.lane.b32.xlu0 %v612, 64
    %v615 = vpop.permute.xlu0 %614
    %v617 = vadd.f32 %v607, %v615
    %v618 = vtanh.pop %v617
    %620 = vrot.lane.b32.xlu0 %v618, 64
    %v621 = vpop.permute.xlu0 %620
    %v623 = vmul.f32 %v605, %v621
    %v624 = vmul.f32 %v623, %v156
    %v625 = vmul.f32 %v617, %v340
    %627 = vrot.lane.b32.xlu0 %v625, 64
    %v628 = vpop.permute.xlu0 %627
    %v630 = vadd.f32 %v624, %v628
    %v631 = vsel %vm167, %v630, 0.0
    %632 = vadd.xlane.f32.xlu0 %v631
    %v633 = vpop.xlane.xlu0 %632
    %v634 = vadd.f32 %v633, %v175
    %636 = vset.pattern.permute.xlu0 0
    %637 = vperm.xlu0 %636, %v634
    %v638 = vpop.permute.xlu0 %637
    %v640 = vadd.f32 %v638, %v186
    %v641 = vsel %vm134, %v640, -inf
    %642 = vmax.xlane.f32.xlu0 %v641
    %v643 = vpop.xlane.xlu0 %642
    %v644 = vsub.f32 %v640, %v643
    %v645 = vmul.f32 %v644, 1.442695
    %v646 = vpow.pop %v645
    %v647 = vsel %vm134, %v646, 0.0
    %648 = vadd.xlane.f32.xlu0 %v647
    %v649 = vpop.xlane.xlu0 %648
    %v650 = vrcp.pop %v649
    %v651 = vmul.f32 %v646, %v650
    %v652 = vrot.slane %v82, 3
    %v653 = vrot.slane %v84, 2
    %v654 = vsel %vm185, %v653, %v652
    %v656 = vmul.f32 %v651, %v654
    %658 = vrot.lane.b32.xlu0 %v623, 11
    %v659 = vpop.permute.xlu0 %658
    %v661 = vsel %vm132, %v656, %v659
    %v663 = vsel %vm222, %v661, 0
    %665 = vmatprep.subr.mxu0 %v98
    %666 = vmatpush1.msra.mxu0 %v97
    %667 = vmatprep.subr.mxu0 %v100
    %668 = vmatpush1.msra.mxu0 %v99
    %669 = vmatprep.subr.mxu0 %v102
    %670 = vmatpush1.msra.mxu0 %v101
    %671 = vmatprep.subr.mxu0 %v104
    %672 = vmatpush1.msra.mxu0 %v103
    %673 = vmatprep.subr.mxu0 %v106
    %674 = vmatpush1.msra.mxu0 %v105
    %675 = vmatprep.subr.mxu0 %v108
    %676 = vmatpush1.msra.mxu0 %v107
    %677 = vmatprep.subr.mxu0 %v110
    %678 = vmatpush1.msra.mxu0 %v109
    %679 = vmatprep.subr.mxu0 %v112
    %680 = vmatpush1.msra.mxu0 %v111
    %681 = vmatprep.subr.mxu0 %v114
    %682 = vmatpush1.msra.mxu0 %v113
    %683 = vmatprep.subr.mxu0 %v231
    %684 = vmatpush1.msra.mxu0 %v228
    %685 = vmatprep.subr.mxu0 0.0
    %686 = vmatpush1.msra.mxu0 0.0
    %687 = vmatprep.subr.mxu0 0.0
    %688 = vmatpush1.msra.mxu0 0.0
    %689 = vmatprep.subr.mxu0 0.0
    %690 = vmatpush1.msra.mxu0 0.0
    %691 = vmatprep.subr.mxu0 0.0
    %692 = vmatpush1.msra.mxu0 0.0
    %693 = vmatprep.subr.mxu0 0.0
    %694 = vmatpush1.msra.mxu0 0.0
    %695 = vmatprep.subr.mxu0 0.0
    %696 = vmatpush1.msra.mxu0 0.0
    %697 = vmatprep.subr.mxu0 0.0
    %698 = vmatpush1.msra.mxu0 0.0
    %699 = vmatprep.subr.mxu0 0.0
    %700 = vmatpush1.msra.mxu0 0.0
    %701 = vmatprep.subr.mxu0 0.0
    %702 = vmatpush1.msra.mxu0 0.0
    %703 = vmatprep.subr.mxu0 0.0
    %704 = vmatpush1.msra.mxu0 0.0
    %705 = vmatprep.subr.mxu0 0.0
    %706 = vmatpush1.msra.mxu0 0.0
    %707 = vmatprep.subr.mxu0 0.0
    %708 = vmatpush1.msra.mxu0 0.0
    %709 = vmatprep.subr.mxu0 0.0
    %710 = vmatpush1.msra.mxu0 0.0
    %711 = vmatprep.subr.mxu0 0.0
    %712 = vmatpush1.msra.mxu0 0.0
    %713 = vmatprep.subr.mxu0 0.0
    %714 = vmatpush1.msra.mxu0 0.0
    %715 = vmatprep.subr.mxu0 0.0
    %716 = vmatpush1.msra.mxu0 0.0
    %717 = vmatprep.subr.mxu0 0.0
    %718 = vmatpush1.msra.mxu0 0.0
    %719 = vmatprep.subr.mxu0 0.0
    %720 = vmatpush1.msra.mxu0 0.0
    %721 = vmatprep.subr.mxu0 0.0
    %722 = vmatpush1.msra.mxu0 0.0
    %723 = vmatprep.subr.mxu0 0.0
    %724 = vmatpush1.msra.mxu0 0.0
    %725 = vmatprep.subr.mxu0 0.0
    %726 = vmatpush1.msra.mxu0 0.0
    %727 = vmatprep.subr.mxu0 0.0
    %728 = vmatpush1.msra.mxu0 0.0
    %729 = vmatprep.mubr.f32.mxu0 0.0
    %730 = vmatmul.mubr.f32.gmra.mrb[0].mxu0 %v663
    %v731 = vpop.f32.mrb[0].mxu0
    %v732 = vadd.f32 %v215, %v731
    %v733 = vpop.f32.mrb[0].mxu0
    %v734 = vadd.f32 %v219, %v733
    %735 = vdwg.mxu0
    %v736 = vxor.u32 %v732, 2147483648
    %v737 = vmul.f32 %v736, 1.442695
    %v738 = vpow.pop %v737
    %v739 = vadd.f32 %v738, 1.0
    %v740 = vrcp.pop %v739
    %v741 = vmul.f32 1.0, %v740
    %v742 = vxor.u32 %v734, 2147483648
    %v743 = vmul.f32 %v742, 1.442695
    %v744 = vpow.pop %v743
    %v745 = vadd.f32 %v744, 1.0
    %v746 = vrcp.pop %v745
    %v747 = vmul.f32 1.0, %v746
    %v748 = vtanh.pop %v734
    %v749 = vmul.f32 %v741, %v617
    %751 = vrot.lane.b32.xlu0 %v748, 64
    %v752 = vpop.permute.xlu0 %751
    %v754 = vmul.f32 %v741, %v752
    %756 = vrot.lane.b32.xlu0 %v754, 64
    %v757 = vpop.permute.xlu0 %756
    %v759 = vadd.f32 %v749, %v757
    %v760 = vtanh.pop %v759
    %762 = vrot.lane.b32.xlu0 %v760, 64
    %v763 = vpop.permute.xlu0 %762
    %v765 = vmul.f32 %v747, %v763
    %v766 = vmul.f32 %v765, %v156
    %v767 = vmul.f32 %v759, %v340
    %769 = vrot.lane.b32.xlu0 %v767, 64
    %v770 = vpop.permute.xlu0 %769
    %v772 = vadd.f32 %v766, %v770
    %v773 = vsel %vm167, %v772, 0.0
    %774 = vadd.xlane.f32.xlu0 %v773
    %v775 = vpop.xlane.xlu0 %774
    %v776 = vadd.f32 %v775, %v175
    %778 = vset.pattern.permute.xlu0 0
    %779 = vperm.xlu0 %778, %v776
    %v780 = vpop.permute.xlu0 %779
    %v782 = vadd.f32 %v780, %v186
    %v783 = vsel %vm134, %v782, -inf
    %784 = vmax.xlane.f32.xlu0 %v783
    %v785 = vpop.xlane.xlu0 %784
    %v786 = vsub.f32 %v782, %v785
    %v787 = vmul.f32 %v786, 1.442695
    %v788 = vpow.pop %v787
    %v789 = vsel %vm134, %v788, 0.0
    %790 = vadd.xlane.f32.xlu0 %v789
    %v791 = vpop.xlane.xlu0 %790
    %v792 = vrcp.pop %v791
    %v793 = vmul.f32 %v788, %v792
    %v794 = vrot.slane %v82, 4
    %v795 = vrot.slane %v84, 3
    %v796 = vsel %vm185, %v795, %v794
    %v798 = vmul.f32 %v793, %v796
    %800 = vrot.lane.b32.xlu0 %v765, 11
    %v801 = vpop.permute.xlu0 %800
    %v803 = vsel %vm132, %v798, %v801
    %v805 = vsel %vm222, %v803, 0
    %807 = vmatprep.subr.mxu0 %v98
    %808 = vmatpush1.msra.mxu0 %v97
    %809 = vmatprep.subr.mxu0 %v100
    %810 = vmatpush1.msra.mxu0 %v99
    %811 = vmatprep.subr.mxu0 %v102
    %812 = vmatpush1.msra.mxu0 %v101
    %813 = vmatprep.subr.mxu0 %v104
    %814 = vmatpush1.msra.mxu0 %v103
    %815 = vmatprep.subr.mxu0 %v106
    %816 = vmatpush1.msra.mxu0 %v105
    %817 = vmatprep.subr.mxu0 %v108
    %818 = vmatpush1.msra.mxu0 %v107
    %819 = vmatprep.subr.mxu0 %v110
    %820 = vmatpush1.msra.mxu0 %v109
    %821 = vmatprep.subr.mxu0 %v112
    %822 = vmatpush1.msra.mxu0 %v111
    %823 = vmatprep.subr.mxu0 %v114
    %824 = vmatpush1.msra.mxu0 %v113
    %825 = vmatprep.subr.mxu0 %v231
    %826 = vmatpush1.msra.mxu0 %v228
    %827 = vmatprep.subr.mxu0 0.0
    %828 = vmatpush1.msra.mxu0 0.0
    %829 = vmatprep.subr.mxu0 0.0
    %830 = vmatpush1.msra.mxu0 0.0
    %831 = vmatprep.subr.mxu0 0.0
    %832 = vmatpush1.msra.mxu0 0.0
    %833 = vmatprep.subr.mxu0 0.0
    %834 = vmatpush1.msra.mxu0 0.0
    %835 = vmatprep.subr.mxu0 0.0
    %836 = vmatpush1.msra.mxu0 0.0
    %837 = vmatprep.subr.mxu0 0.0
    %838 = vmatpush1.msra.mxu0 0.0
    %839 = vmatprep.subr.mxu0 0.0
    %840 = vmatpush1.msra.mxu0 0.0
    %841 = vmatprep.subr.mxu0 0.0
    %842 = vmatpush1.msra.mxu0 0.0
    %843 = vmatprep.subr.mxu0 0.0
    %844 = vmatpush1.msra.mxu0 0.0
    %845 = vmatprep.subr.mxu0 0.0
    %846 = vmatpush1.msra.mxu0 0.0
    %847 = vmatprep.subr.mxu0 0.0
    %848 = vmatpush1.msra.mxu0 0.0
    %849 = vmatprep.subr.mxu0 0.0
    %850 = vmatpush1.msra.mxu0 0.0
    %851 = vmatprep.subr.mxu0 0.0
    %852 = vmatpush1.msra.mxu0 0.0
    %853 = vmatprep.subr.mxu0 0.0
    %854 = vmatpush1.msra.mxu0 0.0
    %855 = vmatprep.subr.mxu0 0.0
    %856 = vmatpush1.msra.mxu0 0.0
    %857 = vmatprep.subr.mxu0 0.0
    %858 = vmatpush1.msra.mxu0 0.0
    %859 = vmatprep.subr.mxu0 0.0
    %860 = vmatpush1.msra.mxu0 0.0
    %861 = vmatprep.subr.mxu0 0.0
    %862 = vmatpush1.msra.mxu0 0.0
    %863 = vmatprep.subr.mxu0 0.0
    %864 = vmatpush1.msra.mxu0 0.0
    %865 = vmatprep.subr.mxu0 0.0
    %866 = vmatpush1.msra.mxu0 0.0
    %867 = vmatprep.subr.mxu0 0.0
    %868 = vmatpush1.msra.mxu0 0.0
    %869 = vmatprep.subr.mxu0 0.0
    %870 = vmatpush1.msra.mxu0 0.0
    %871 = vmatprep.mubr.f32.mxu0 0.0
    %872 = vmatmul.mubr.f32.gmra.mrb[0].mxu0 %v805
    %v873 = vpop.f32.mrb[0].mxu0
    %v874 = vadd.f32 %v215, %v873
    %v875 = vpop.f32.mrb[0].mxu0
    %v876 = vadd.f32 %v219, %v875
    %877 = vdwg.mxu0
    %v878 = vxor.u32 %v874, 2147483648
    %v879 = vmul.f32 %v878, 1.442695
    %v880 = vpow.pop %v879
    %v881 = vadd.f32 %v880, 1.0
    %v882 = vrcp.pop %v881
    %v883 = vmul.f32 1.0, %v882
    %v884 = vxor.u32 %v876, 2147483648
    %v885 = vmul.f32 %v884, 1.442695
    %v886 = vpow.pop %v885
    %v887 = vadd.f32 %v886, 1.0
    %v888 = vrcp.pop %v887
    %v889 = vmul.f32 1.0, %v888
    %v890 = vtanh.pop %v876
    %v891 = vmul.f32 %v883, %v759
    %893 = vrot.lane.b32.xlu0 %v890, 64
    %v894 = vpop.permute.xlu0 %893
    %v896 = vmul.f32 %v883, %v894
    %898 = vrot.lane.b32.xlu0 %v896, 64
    %v899 = vpop.permute.xlu0 %898
    %v901 = vadd.f32 %v891, %v899
    %v902 = vtanh.pop %v901
    %904 = vrot.lane.b32.xlu0 %v902, 64
    %v905 = vpop.permute.xlu0 %904
    %v907 = vmul.f32 %v889, %v905
    %v908 = vmul.f32 %v907, %v156
    %v909 = vmul.f32 %v901, %v340
    %911 = vrot.lane.b32.xlu0 %v909, 64
    %v912 = vpop.permute.xlu0 %911
    %v914 = vadd.f32 %v908, %v912
    %v915 = vsel %vm167, %v914, 0.0
    %916 = vadd.xlane.f32.xlu0 %v915
    %v917 = vpop.xlane.xlu0 %916
    %v918 = vadd.f32 %v917, %v175
    %920 = vset.pattern.permute.xlu0 0
    %921 = vperm.xlu0 %920, %v918
    %v922 = vpop.permute.xlu0 %921
    %v924 = vadd.f32 %v922, %v186
    %v925 = vsel %vm134, %v924, -inf
    %926 = vmax.xlane.f32.xlu0 %v925
    %v927 = vpop.xlane.xlu0 %926
    %v928 = vsub.f32 %v924, %v927
    %v929 = vmul.f32 %v928, 1.442695
    %v930 = vpow.pop %v929
    %v931 = vsel %vm134, %v930, 0.0
    %932 = vadd.xlane.f32.xlu0 %v931
    %v933 = vpop.xlane.xlu0 %932
    %v934 = vrcp.pop %v933
    %v935 = vmul.f32 %v930, %v934
    %v936 = vrot.slane %v82, 5
    %v937 = vrot.slane %v84, 4
    %v938 = vsel %vm185, %v937, %v936
    %v940 = vmul.f32 %v935, %v938
    %942 = vrot.lane.b32.xlu0 %v907, 11
    %v943 = vpop.permute.xlu0 %942
    %v945 = vsel %vm132, %v940, %v943
    %v947 = vsel %vm222, %v945, 0
    %949 = vmatprep.subr.mxu0 %v98
    %950 = vmatpush1.msra.mxu0 %v97
    %951 = vmatprep.subr.mxu0 %v100
    %952 = vmatpush1.msra.mxu0 %v99
    %953 = vmatprep.subr.mxu0 %v102
    %954 = vmatpush1.msra.mxu0 %v101
    %955 = vmatprep.subr.mxu0 %v104
    %956 = vmatpush1.msra.mxu0 %v103
    %957 = vmatprep.subr.mxu0 %v106
    %958 = vmatpush1.msra.mxu0 %v105
    %959 = vmatprep.subr.mxu0 %v108
    %960 = vmatpush1.msra.mxu0 %v107
    %961 = vmatprep.subr.mxu0 %v110
    %962 = vmatpush1.msra.mxu0 %v109
    %963 = vmatprep.subr.mxu0 %v112
    %964 = vmatpush1.msra.mxu0 %v111
    %965 = vmatprep.subr.mxu0 %v114
    %966 = vmatpush1.msra.mxu0 %v113
    %967 = vmatprep.subr.mxu0 %v231
    %968 = vmatpush1.msra.mxu0 %v228
    %969 = vmatprep.subr.mxu0 0.0
    %970 = vmatpush1.msra.mxu0 0.0
    %971 = vmatprep.subr.mxu0 0.0
    %972 = vmatpush1.msra.mxu0 0.0
    %973 = vmatprep.subr.mxu0 0.0
    %974 = vmatpush1.msra.mxu0 0.0
    %975 = vmatprep.subr.mxu0 0.0
    %976 = vmatpush1.msra.mxu0 0.0
    %977 = vmatprep.subr.mxu0 0.0
    %978 = vmatpush1.msra.mxu0 0.0
    %979 = vmatprep.subr.mxu0 0.0
    %980 = vmatpush1.msra.mxu0 0.0
    %981 = vmatprep.subr.mxu0 0.0
    %982 = vmatpush1.msra.mxu0 0.0
    %983 = vmatprep.subr.mxu0 0.0
    %984 = vmatpush1.msra.mxu0 0.0
    %985 = vmatprep.subr.mxu0 0.0
    %986 = vmatpush1.msra.mxu0 0.0
    %987 = vmatprep.subr.mxu0 0.0
    %988 = vmatpush1.msra.mxu0 0.0
    %989 = vmatprep.subr.mxu0 0.0
    %990 = vmatpush1.msra.mxu0 0.0
    %991 = vmatprep.subr.mxu0 0.0
    %992 = vmatpush1.msra.mxu0 0.0
    %993 = vmatprep.subr.mxu0 0.0
    %994 = vmatpush1.msra.mxu0 0.0
    %995 = vmatprep.subr.mxu0 0.0
    %996 = vmatpush1.msra.mxu0 0.0
    %997 = vmatprep.subr.mxu0 0.0
    %998 = vmatpush1.msra.mxu0 0.0
    %999 = vmatprep.subr.mxu0 0.0
    %1000 = vmatpush1.msra.mxu0 0.0
    %1001 = vmatprep.subr.mxu0 0.0
    %1002 = vmatpush1.msra.mxu0 0.0
    %1003 = vmatprep.subr.mxu0 0.0
    %1004 = vmatpush1.msra.mxu0 0.0
    %1005 = vmatprep.subr.mxu0 0.0
    %1006 = vmatpush1.msra.mxu0 0.0
    %1007 = vmatprep.subr.mxu0 0.0
    %1008 = vmatpush1.msra.mxu0 0.0
    %1009 = vmatprep.subr.mxu0 0.0
    %1010 = vmatpush1.msra.mxu0 0.0
    %1011 = vmatprep.subr.mxu0 0.0
    %1012 = vmatpush1.msra.mxu0 0.0
    %1013 = vmatprep.mubr.f32.mxu0 0.0
    %1014 = vmatmul.mubr.f32.gmra.mrb[0].mxu0 %v947
    %v1015 = vpop.f32.mrb[0].mxu0
    %v1016 = vadd.f32 %v215, %v1015
    %v1017 = vpop.f32.mrb[0].mxu0
    %v1018 = vadd.f32 %v219, %v1017
    %1019 = vdwg.mxu0
    %v1020 = vxor.u32 %v1016, 2147483648
    %v1021 = vmul.f32 %v1020, 1.442695
    %v1022 = vpow.pop %v1021
    %v1023 = vadd.f32 %v1022, 1.0
    %v1024 = vrcp.pop %v1023
    %v1025 = vmul.f32 1.0, %v1024
    %v1026 = vxor.u32 %v1018, 2147483648
    %v1027 = vmul.f32 %v1026, 1.442695
    %v1028 = vpow.pop %v1027
    %v1029 = vadd.f32 %v1028, 1.0
    %v1030 = vrcp.pop %v1029
    %v1031 = vmul.f32 1.0, %v1030
    %v1032 = vtanh.pop %v1018
    %v1033 = vmul.f32 %v1025, %v901
    %1035 = vrot.lane.b32.xlu0 %v1032, 64
    %v1036 = vpop.permute.xlu0 %1035
    %v1038 = vmul.f32 %v1025, %v1036
    %1040 = vrot.lane.b32.xlu0 %v1038, 64
    %v1041 = vpop.permute.xlu0 %1040
    %v1043 = vadd.f32 %v1033, %v1041
    %v1044 = vtanh.pop %v1043
    %1046 = vrot.lane.b32.xlu0 %v1044, 64
    %v1047 = vpop.permute.xlu0 %1046
    %v1049 = vmul.f32 %v1031, %v1047
    %v1050 = vmul.f32 %v1049, %v156
    %v1051 = vmul.f32 %v1043, %v340
    %1053 = vrot.lane.b32.xlu0 %v1051, 64
    %v1054 = vpop.permute.xlu0 %1053
    %v1056 = vadd.f32 %v1050, %v1054
    %v1057 = vsel %vm167, %v1056, 0.0
    %1058 = vadd.xlane.f32.xlu0 %v1057
    %v1059 = vpop.xlane.xlu0 %1058
    %v1060 = vadd.f32 %v1059, %v175
    %1062 = vset.pattern.permute.xlu0 0
    %1063 = vperm.xlu0 %1062, %v1060
    %v1064 = vpop.permute.xlu0 %1063
    %v1066 = vadd.f32 %v1064, %v186
    %v1067 = vsel %vm134, %v1066, -inf
    %1068 = vmax.xlane.f32.xlu0 %v1067
    %v1069 = vpop.xlane.xlu0 %1068
    %v1070 = vsub.f32 %v1066, %v1069
    %v1071 = vmul.f32 %v1070, 1.442695
    %v1072 = vpow.pop %v1071
    %v1073 = vsel %vm134, %v1072, 0.0
    %1074 = vadd.xlane.f32.xlu0 %v1073
    %v1075 = vpop.xlane.xlu0 %1074
    %v1076 = vrcp.pop %v1075
    %v1077 = vmul.f32 %v1072, %v1076
    %v1078 = vrot.slane %v82, 6
    %v1079 = vrot.slane %v84, 5
    %v1080 = vsel %vm185, %v1079, %v1078
    %v1082 = vmul.f32 %v1077, %v1080
    %1084 = vrot.lane.b32.xlu0 %v1049, 11
    %v1085 = vpop.permute.xlu0 %1084
    %v1087 = vsel %vm132, %v1082, %v1085
    %v1089 = vsel %vm222, %v1087, 0
    %1091 = vmatprep.subr.mxu0 %v98
    %1092 = vmatpush1.msra.mxu0 %v97
    %1093 = vmatprep.subr.mxu0 %v100
    %1094 = vmatpush1.msra.mxu0 %v99
    %1095 = vmatprep.subr.mxu0 %v102
    %1096 = vmatpush1.msra.mxu0 %v101
    %1097 = vmatprep.subr.mxu0 %v104
    %1098 = vmatpush1.msra.mxu0 %v103
    %1099 = vmatprep.subr.mxu0 %v106
    %1100 = vmatpush1.msra.mxu0 %v105
    %1101 = vmatprep.subr.mxu0 %v108
    %1102 = vmatpush1.msra.mxu0 %v107
    %1103 = vmatprep.subr.mxu0 %v110
    %1104 = vmatpush1.msra.mxu0 %v109
    %1105 = vmatprep.subr.mxu0 %v112
    %1106 = vmatpush1.msra.mxu0 %v111
    %1107 = vmatprep.subr.mxu0 %v114
    %1108 = vmatpush1.msra.mxu0 %v113
    %1109 = vmatprep.subr.mxu0 %v231
    %1110 = vmatpush1.msra.mxu0 %v228
    %1111 = vmatprep.subr.mxu0 0.0
    %1112 = vmatpush1.msra.mxu0 0.0
    %1113 = vmatprep.subr.mxu0 0.0
    %1114 = vmatpush1.msra.mxu0 0.0
    %1115 = vmatprep.subr.mxu0 0.0
    %1116 = vmatpush1.msra.mxu0 0.0
    %1117 = vmatprep.subr.mxu0 0.0
    %1118 = vmatpush1.msra.mxu0 0.0
    %1119 = vmatprep.subr.mxu0 0.0
    %1120 = vmatpush1.msra.mxu0 0.0
    %1121 = vmatprep.subr.mxu0 0.0
    %1122 = vmatpush1.msra.mxu0 0.0
    %1123 = vmatprep.subr.mxu0 0.0
    %1124 = vmatpush1.msra.mxu0 0.0
    %1125 = vmatprep.subr.mxu0 0.0
    %1126 = vmatpush1.msra.mxu0 0.0
    %1127 = vmatprep.subr.mxu0 0.0
    %1128 = vmatpush1.msra.mxu0 0.0
    %1129 = vmatprep.subr.mxu0 0.0
    %1130 = vmatpush1.msra.mxu0 0.0
    %1131 = vmatprep.subr.mxu0 0.0
    %1132 = vmatpush1.msra.mxu0 0.0
    %1133 = vmatprep.subr.mxu0 0.0
    %1134 = vmatpush1.msra.mxu0 0.0
    %1135 = vmatprep.subr.mxu0 0.0
    %1136 = vmatpush1.msra.mxu0 0.0
    %1137 = vmatprep.subr.mxu0 0.0
    %1138 = vmatpush1.msra.mxu0 0.0
    %1139 = vmatprep.subr.mxu0 0.0
    %1140 = vmatpush1.msra.mxu0 0.0
    %1141 = vmatprep.subr.mxu0 0.0
    %1142 = vmatpush1.msra.mxu0 0.0
    %1143 = vmatprep.subr.mxu0 0.0
    %1144 = vmatpush1.msra.mxu0 0.0
    %1145 = vmatprep.subr.mxu0 0.0
    %1146 = vmatpush1.msra.mxu0 0.0
    %1147 = vmatprep.subr.mxu0 0.0
    %1148 = vmatpush1.msra.mxu0 0.0
    %1149 = vmatprep.subr.mxu0 0.0
    %1150 = vmatpush1.msra.mxu0 0.0
    %1151 = vmatprep.subr.mxu0 0.0
    %1152 = vmatpush1.msra.mxu0 0.0
    %1153 = vmatprep.subr.mxu0 0.0
    %1154 = vmatpush1.msra.mxu0 0.0
    %1155 = vmatprep.mubr.f32.mxu0 0.0
    %1156 = vmatmul.mubr.f32.gmra.mrb[0].mxu0 %v1089
    %v1157 = vpop.f32.mrb[0].mxu0
    %v1158 = vadd.f32 %v215, %v1157
    %v1159 = vpop.f32.mrb[0].mxu0
    %v1160 = vadd.f32 %v219, %v1159
    %1161 = vdwg.mxu0
    %v1162 = vxor.u32 %v1158, 2147483648
    %v1163 = vmul.f32 %v1162, 1.442695
    %v1164 = vpow.pop %v1163
    %v1165 = vadd.f32 %v1164, 1.0
    %v1166 = vrcp.pop %v1165
    %v1167 = vmul.f32 1.0, %v1166
    %v1168 = vxor.u32 %v1160, 2147483648
    %v1169 = vmul.f32 %v1168, 1.442695
    %v1170 = vpow.pop %v1169
    %v1171 = vadd.f32 %v1170, 1.0
    %v1172 = vrcp.pop %v1171
    %v1173 = vmul.f32 1.0, %v1172
    %v1174 = vtanh.pop %v1160
    %v1175 = vmul.f32 %v1167, %v1043
    %1177 = vrot.lane.b32.xlu0 %v1174, 64
    %v1178 = vpop.permute.xlu0 %1177
    %v1180 = vmul.f32 %v1167, %v1178
    %1182 = vrot.lane.b32.xlu0 %v1180, 64
    %v1183 = vpop.permute.xlu0 %1182
    %v1185 = vadd.f32 %v1175, %v1183
    %v1186 = vtanh.pop %v1185
    %1188 = vrot.lane.b32.xlu0 %v1186, 64
    %v1189 = vpop.permute.xlu0 %1188
    %v1191 = vmul.f32 %v1173, %v1189
    %v1192 = vmul.f32 %v1191, %v156
    %v1193 = vmul.f32 %v1185, %v340
    %1195 = vrot.lane.b32.xlu0 %v1193, 64
    %v1196 = vpop.permute.xlu0 %1195
    %v1198 = vadd.f32 %v1192, %v1196
    %v1199 = vsel %vm167, %v1198, 0.0
    %1200 = vadd.xlane.f32.xlu0 %v1199
    %v1201 = vpop.xlane.xlu0 %1200
    %v1202 = vadd.f32 %v1201, %v175
    %1204 = vset.pattern.permute.xlu0 0
    %1205 = vperm.xlu0 %1204, %v1202
    %v1206 = vpop.permute.xlu0 %1205
    %v1208 = vadd.f32 %v1206, %v186
    %v1209 = vsel %vm134, %v1208, -inf
    %1210 = vmax.xlane.f32.xlu0 %v1209
    %v1211 = vpop.xlane.xlu0 %1210
    %v1212 = vsub.f32 %v1208, %v1211
    %v1213 = vmul.f32 %v1212, 1.442695
    %v1214 = vpow.pop %v1213
    %v1215 = vsel %vm134, %v1214, 0.0
    %1216 = vadd.xlane.f32.xlu0 %v1215
    %v1217 = vpop.xlane.xlu0 %1216
    %v1218 = vrcp.pop %v1217
    %v1219 = vmul.f32 %v1214, %v1218
    %v1220 = vrot.slane %v82, 7
    %v1221 = vrot.slane %v84, 6
    %v1222 = vsel %vm185, %v1221, %v1220
    %v1224 = vmul.f32 %v1219, %v1222
    %1226 = vrot.lane.b32.xlu0 %v1191, 11
    %v1227 = vpop.permute.xlu0 %1226
    %v1229 = vsel %vm132, %v1224, %v1227
    %v1231 = vsel %vm222, %v1229, 0
    %1233 = vmatprep.subr.mxu0 %v98
    %1234 = vmatpush1.msra.mxu0 %v97
    %1235 = vmatprep.subr.mxu0 %v100
    %1236 = vmatpush1.msra.mxu0 %v99
    %1237 = vmatprep.subr.mxu0 %v102
    %1238 = vmatpush1.msra.mxu0 %v101
    %1239 = vmatprep.subr.mxu0 %v104
    %1240 = vmatpush1.msra.mxu0 %v103
    %1241 = vmatprep.subr.mxu0 %v106
    %1242 = vmatpush1.msra.mxu0 %v105
    %1243 = vmatprep.subr.mxu0 %v108
    %1244 = vmatpush1.msra.mxu0 %v107
    %1245 = vmatprep.subr.mxu0 %v110
    %1246 = vmatpush1.msra.mxu0 %v109
    %1247 = vmatprep.subr.mxu0 %v112
    %1248 = vmatpush1.msra.mxu0 %v111
    %1249 = vmatprep.subr.mxu0 %v114
    %1250 = vmatpush1.msra.mxu0 %v113
    %1251 = vmatprep.subr.mxu0 %v231
    %1252 = vmatpush1.msra.mxu0 %v228
    %1253 = vmatprep.subr.mxu0 0.0
    %1254 = vmatpush1.msra.mxu0 0.0
    %1255 = vmatprep.subr.mxu0 0.0
    %1256 = vmatpush1.msra.mxu0 0.0
    %1257 = vmatprep.subr.mxu0 0.0
    %1258 = vmatpush1.msra.mxu0 0.0
    %1259 = vmatprep.subr.mxu0 0.0
    %1260 = vmatpush1.msra.mxu0 0.0
    %1261 = vmatprep.subr.mxu0 0.0
    %1262 = vmatpush1.msra.mxu0 0.0
    %1263 = vmatprep.subr.mxu0 0.0
    %1264 = vmatpush1.msra.mxu0 0.0
    %1265 = vmatprep.subr.mxu0 0.0
    %1266 = vmatpush1.msra.mxu0 0.0
    %1267 = vmatprep.subr.mxu0 0.0
    %1268 = vmatpush1.msra.mxu0 0.0
    %1269 = vmatprep.subr.mxu0 0.0
    %1270 = vmatpush1.msra.mxu0 0.0
    %1271 = vmatprep.subr.mxu0 0.0
    %1272 = vmatpush1.msra.mxu0 0.0
    %1273 = vmatprep.subr.mxu0 0.0
    %1274 = vmatpush1.msra.mxu0 0.0
    %1275 = vmatprep.subr.mxu0 0.0
    %1276 = vmatpush1.msra.mxu0 0.0
    %1277 = vmatprep.subr.mxu0 0.0
    %1278 = vmatpush1.msra.mxu0 0.0
    %1279 = vmatprep.subr.mxu0 0.0
    %1280 = vmatpush1.msra.mxu0 0.0
    %1281 = vmatprep.subr.mxu0 0.0
    %1282 = vmatpush1.msra.mxu0 0.0
    %1283 = vmatprep.subr.mxu0 0.0
    %1284 = vmatpush1.msra.mxu0 0.0
    %1285 = vmatprep.subr.mxu0 0.0
    %1286 = vmatpush1.msra.mxu0 0.0
    %1287 = vmatprep.subr.mxu0 0.0
    %1288 = vmatpush1.msra.mxu0 0.0
    %1289 = vmatprep.subr.mxu0 0.0
    %1290 = vmatpush1.msra.mxu0 0.0
    %1291 = vmatprep.subr.mxu0 0.0
    %1292 = vmatpush1.msra.mxu0 0.0
    %1293 = vmatprep.subr.mxu0 0.0
    %1294 = vmatpush1.msra.mxu0 0.0
    %1295 = vmatprep.subr.mxu0 0.0
    %1296 = vmatpush1.msra.mxu0 0.0
    %1297 = vmatprep.mubr.f32.mxu0 0.0
    %1298 = vmatmul.mubr.f32.gmra.mrb[0].mxu0 %v1231
    %v1299 = vpop.f32.mrb[0].mxu0
    %v1300 = vadd.f32 %v215, %v1299
    %v1301 = vpop.f32.mrb[0].mxu0
    %v1302 = vadd.f32 %v219, %v1301
    %1303 = vdwg.mxu0
    %v1304 = vxor.u32 %v1300, 2147483648
    %v1305 = vmul.f32 %v1304, 1.442695
    %v1306 = vpow.pop %v1305
    %v1307 = vadd.f32 %v1306, 1.0
    %v1308 = vrcp.pop %v1307
    %v1309 = vmul.f32 1.0, %v1308
    %v1310 = vxor.u32 %v1302, 2147483648
    %v1311 = vmul.f32 %v1310, 1.442695
    %v1312 = vpow.pop %v1311
    %v1313 = vadd.f32 %v1312, 1.0
    %v1314 = vrcp.pop %v1313
    %v1315 = vmul.f32 1.0, %v1314
    %v1316 = vtanh.pop %v1302
    %v1317 = vmul.f32 %v1309, %v1185
    %1319 = vrot.lane.b32.xlu0 %v1316, 64
    %v1320 = vpop.permute.xlu0 %1319
    %v1322 = vmul.f32 %v1309, %v1320
    %1324 = vrot.lane.b32.xlu0 %v1322, 64
    %v1325 = vpop.permute.xlu0 %1324
    %v1327 = vadd.f32 %v1317, %v1325
    %v1328 = vtanh.pop %v1327
    %1330 = vrot.lane.b32.xlu0 %v1328, 64
    %v1331 = vpop.permute.xlu0 %1330
    %v1333 = vmul.f32 %v1315, %v1331
    %v1334 = vmul.f32 %v1333, %v156
    %v1335 = vmul.f32 %v1327, %v340
    %1337 = vrot.lane.b32.xlu0 %v1335, 64
    %v1338 = vpop.permute.xlu0 %1337
    %v1340 = vadd.f32 %v1334, %v1338
    %v1341 = vsel %vm167, %v1340, 0.0
    %1342 = vadd.xlane.f32.xlu0 %v1341
    %v1343 = vpop.xlane.xlu0 %1342
    %v1344 = vadd.f32 %v1343, %v175
    %1346 = vset.pattern.permute.xlu0 0
    %1347 = vperm.xlu0 %1346, %v1344
    %v1348 = vpop.permute.xlu0 %1347
    %v1350 = vadd.f32 %v1348, %v186
    %v1351 = vsel %vm134, %v1350, -inf
    %1352 = vmax.xlane.f32.xlu0 %v1351
    %v1353 = vpop.xlane.xlu0 %1352
    %v1354 = vsub.f32 %v1350, %v1353
    %v1355 = vmul.f32 %v1354, 1.442695
    %v1356 = vpow.pop %v1355
    %v1357 = vsel %vm134, %v1356, 0.0
    %1358 = vadd.xlane.f32.xlu0 %v1357
    %v1359 = vpop.xlane.xlu0 %1358
    %v1360 = vrcp.pop %v1359
    %v1361 = vmul.f32 %v1356, %v1360
    %v1364 = vrot.slane %v85, 7
    %v1365 = vsel %vm185, %v1364, %v83
    %v1367 = vmul.f32 %v1361, %v1365
    %1369 = vrot.lane.b32.xlu0 %v1333, 11
    %v1370 = vpop.permute.xlu0 %1369
    %v1372 = vsel %vm132, %v1367, %v1370
    %v1374 = vsel %vm222, %v1372, 0
    %1376 = vmatprep.subr.mxu0 %v98
    %1377 = vmatpush1.msra.mxu0 %v97
    %1378 = vmatprep.subr.mxu0 %v100
    %1379 = vmatpush1.msra.mxu0 %v99
    %1380 = vmatprep.subr.mxu0 %v102
    %1381 = vmatpush1.msra.mxu0 %v101
    %1382 = vmatprep.subr.mxu0 %v104
    %1383 = vmatpush1.msra.mxu0 %v103
    %1384 = vmatprep.subr.mxu0 %v106
    %1385 = vmatpush1.msra.mxu0 %v105
    %1386 = vmatprep.subr.mxu0 %v108
    %1387 = vmatpush1.msra.mxu0 %v107
    %1388 = vmatprep.subr.mxu0 %v110
    %1389 = vmatpush1.msra.mxu0 %v109
    %1390 = vmatprep.subr.mxu0 %v112
    %1391 = vmatpush1.msra.mxu0 %v111
    %1392 = vmatprep.subr.mxu0 %v114
    %1393 = vmatpush1.msra.mxu0 %v113
    %1394 = vmatprep.subr.mxu0 %v231
    %1395 = vmatpush1.msra.mxu0 %v228
    %1396 = vmatprep.subr.mxu0 0.0
    %1397 = vmatpush1.msra.mxu0 0.0
    %1398 = vmatprep.subr.mxu0 0.0
    %1399 = vmatpush1.msra.mxu0 0.0
    %1400 = vmatprep.subr.mxu0 0.0
    %1401 = vmatpush1.msra.mxu0 0.0
    %1402 = vmatprep.subr.mxu0 0.0
    %1403 = vmatpush1.msra.mxu0 0.0
    %1404 = vmatprep.subr.mxu0 0.0
    %1405 = vmatpush1.msra.mxu0 0.0
    %1406 = vmatprep.subr.mxu0 0.0
    %1407 = vmatpush1.msra.mxu0 0.0
    %1408 = vmatprep.subr.mxu0 0.0
    %1409 = vmatpush1.msra.mxu0 0.0
    %1410 = vmatprep.subr.mxu0 0.0
    %1411 = vmatpush1.msra.mxu0 0.0
    %1412 = vmatprep.subr.mxu0 0.0
    %1413 = vmatpush1.msra.mxu0 0.0
    %1414 = vmatprep.subr.mxu0 0.0
    %1415 = vmatpush1.msra.mxu0 0.0
    %1416 = vmatprep.subr.mxu0 0.0
    %1417 = vmatpush1.msra.mxu0 0.0
    %1418 = vmatprep.subr.mxu0 0.0
    %1419 = vmatpush1.msra.mxu0 0.0
    %1420 = vmatprep.subr.mxu0 0.0
    %1421 = vmatpush1.msra.mxu0 0.0
    %1422 = vmatprep.subr.mxu0 0.0
    %1423 = vmatpush1.msra.mxu0 0.0
    %1424 = vmatprep.subr.mxu0 0.0
    %1425 = vmatpush1.msra.mxu0 0.0
    %1426 = vmatprep.subr.mxu0 0.0
    %1427 = vmatpush1.msra.mxu0 0.0
    %1428 = vmatprep.subr.mxu0 0.0
    %1429 = vmatpush1.msra.mxu0 0.0
    %1430 = vmatprep.subr.mxu0 0.0
    %1431 = vmatpush1.msra.mxu0 0.0
    %1432 = vmatprep.subr.mxu0 0.0
    %1433 = vmatpush1.msra.mxu0 0.0
    %1434 = vmatprep.subr.mxu0 0.0
    %1435 = vmatpush1.msra.mxu0 0.0
    %1436 = vmatprep.subr.mxu0 0.0
    %1437 = vmatpush1.msra.mxu0 0.0
    %1438 = vmatprep.subr.mxu0 0.0
    %1439 = vmatpush1.msra.mxu0 0.0
    %1440 = vmatprep.mubr.f32.mxu0 0.0
    %1441 = vmatmul.mubr.f32.gmra.mrb[0].mxu0 %v1374
    %v1442 = vpop.f32.mrb[0].mxu0
    %v1443 = vadd.f32 %v215, %v1442
    %v1444 = vpop.f32.mrb[0].mxu0
    %v1445 = vadd.f32 %v219, %v1444
    %1446 = vdwg.mxu0
    %v1447 = vxor.u32 %v1443, 2147483648
    %v1448 = vmul.f32 %v1447, 1.442695
    %v1449 = vpow.pop %v1448
    %v1450 = vadd.f32 %v1449, 1.0
    %v1451 = vrcp.pop %v1450
    %v1452 = vmul.f32 1.0, %v1451
    %v1453 = vxor.u32 %v1445, 2147483648
    %v1454 = vmul.f32 %v1453, 1.442695
    %v1455 = vpow.pop %v1454
    %v1456 = vadd.f32 %v1455, 1.0
    %v1457 = vrcp.pop %v1456
    %v1458 = vmul.f32 1.0, %v1457
    %v1459 = vtanh.pop %v1445
    %v1460 = vmul.f32 %v1452, %v1327
    %1462 = vrot.lane.b32.xlu0 %v1459, 64
    %v1463 = vpop.permute.xlu0 %1462
    %v1465 = vmul.f32 %v1452, %v1463
    %1467 = vrot.lane.b32.xlu0 %v1465, 64
    %v1468 = vpop.permute.xlu0 %1467
    %v1470 = vadd.f32 %v1460, %v1468
    %v1471 = vtanh.pop %v1470
    %1473 = vrot.lane.b32.xlu0 %v1471, 64
    %v1474 = vpop.permute.xlu0 %1473
    %v1476 = vmul.f32 %v1458, %v1474
    %v1477 = vmul.f32 %v1476, %v156
    %v1478 = vmul.f32 %v1470, %v340
    %1480 = vrot.lane.b32.xlu0 %v1478, 64
    %v1481 = vpop.permute.xlu0 %1480
    %v1483 = vadd.f32 %v1477, %v1481
    %v1484 = vsel %vm167, %v1483, 0.0
    %1485 = vadd.xlane.f32.xlu0 %v1484
    %v1486 = vpop.xlane.xlu0 %1485
    %v1487 = vadd.f32 %v1486, %v175
    %1489 = vset.pattern.permute.xlu0 0
    %1490 = vperm.xlu0 %1489, %v1487
    %v1491 = vpop.permute.xlu0 %1490
    %v1493 = vadd.f32 %v1491, %v186
    %v1494 = vsel %vm134, %v1493, -inf
    %1495 = vmax.xlane.f32.xlu0 %v1494
    %v1496 = vpop.xlane.xlu0 %1495
    %v1497 = vsub.f32 %v1493, %v1496
    %v1498 = vmul.f32 %v1497, 1.442695
    %v1499 = vpow.pop %v1498
    %v1500 = vsel %vm134, %v1499, 0.0
    %1501 = vadd.xlane.f32.xlu0 %v1500
    %v1502 = vpop.xlane.xlu0 %1501
    %v1503 = vrcp.pop %v1502
    %v1504 = vmul.f32 %v1499, %v1503
    %v1505 = vrot.slane %v83, 1
    %v1506 = vsel %vm185, %v85, %v1505
    %v1508 = vmul.f32 %v1504, %v1506
    %1510 = vrot.lane.b32.xlu0 %v1476, 11
    %v1511 = vpop.permute.xlu0 %1510
    %v1513 = vsel %vm132, %v1508, %v1511
    %v1515 = vsel %vm222, %v1513, 0
    %1517 = vmatprep.subr.mxu0 %v98
    %1518 = vmatpush1.msra.mxu0 %v97
    %1519 = vmatprep.subr.mxu0 %v100
    %1520 = vmatpush1.msra.mxu0 %v99
    %1521 = vmatprep.subr.mxu0 %v102
    %1522 = vmatpush1.msra.mxu0 %v101
    %1523 = vmatprep.subr.mxu0 %v104
    %1524 = vmatpush1.msra.mxu0 %v103
    %1525 = vmatprep.subr.mxu0 %v106
    %1526 = vmatpush1.msra.mxu0 %v105
    %1527 = vmatprep.subr.mxu0 %v108
    %1528 = vmatpush1.msra.mxu0 %v107
    %1529 = vmatprep.subr.mxu0 %v110
    %1530 = vmatpush1.msra.mxu0 %v109
    %1531 = vmatprep.subr.mxu0 %v112
    %1532 = vmatpush1.msra.mxu0 %v111
    %1533 = vmatprep.subr.mxu0 %v114
    %1534 = vmatpush1.msra.mxu0 %v113
    %1535 = vmatprep.subr.mxu0 %v231
    %1536 = vmatpush1.msra.mxu0 %v228
    %1537 = vmatprep.subr.mxu0 0.0
    %1538 = vmatpush1.msra.mxu0 0.0
    %1539 = vmatprep.subr.mxu0 0.0
    %1540 = vmatpush1.msra.mxu0 0.0
    %1541 = vmatprep.subr.mxu0 0.0
    %1542 = vmatpush1.msra.mxu0 0.0
    %1543 = vmatprep.subr.mxu0 0.0
    %1544 = vmatpush1.msra.mxu0 0.0
    %1545 = vmatprep.subr.mxu0 0.0
    %1546 = vmatpush1.msra.mxu0 0.0
    %1547 = vmatprep.subr.mxu0 0.0
    %1548 = vmatpush1.msra.mxu0 0.0
    %1549 = vmatprep.subr.mxu0 0.0
    %1550 = vmatpush1.msra.mxu0 0.0
    %1551 = vmatprep.subr.mxu0 0.0
    %1552 = vmatpush1.msra.mxu0 0.0
    %1553 = vmatprep.subr.mxu0 0.0
    %1554 = vmatpush1.msra.mxu0 0.0
    %1555 = vmatprep.subr.mxu0 0.0
    %1556 = vmatpush1.msra.mxu0 0.0
    %1557 = vmatprep.subr.mxu0 0.0
    %1558 = vmatpush1.msra.mxu0 0.0
    %1559 = vmatprep.subr.mxu0 0.0
    %1560 = vmatpush1.msra.mxu0 0.0
    %1561 = vmatprep.subr.mxu0 0.0
    %1562 = vmatpush1.msra.mxu0 0.0
    %1563 = vmatprep.subr.mxu0 0.0
    %1564 = vmatpush1.msra.mxu0 0.0
    %1565 = vmatprep.subr.mxu0 0.0
    %1566 = vmatpush1.msra.mxu0 0.0
    %1567 = vmatprep.subr.mxu0 0.0
    %1568 = vmatpush1.msra.mxu0 0.0
    %1569 = vmatprep.subr.mxu0 0.0
    %1570 = vmatpush1.msra.mxu0 0.0
    %1571 = vmatprep.subr.mxu0 0.0
    %1572 = vmatpush1.msra.mxu0 0.0
    %1573 = vmatprep.subr.mxu0 0.0
    %1574 = vmatpush1.msra.mxu0 0.0
    %1575 = vmatprep.subr.mxu0 0.0
    %1576 = vmatpush1.msra.mxu0 0.0
    %1577 = vmatprep.subr.mxu0 0.0
    %1578 = vmatpush1.msra.mxu0 0.0
    %1579 = vmatprep.subr.mxu0 0.0
    %1580 = vmatpush1.msra.mxu0 0.0
    %1581 = vmatprep.mubr.f32.mxu0 0.0
    %1582 = vmatmul.mubr.f32.gmra.mrb[0].mxu0 %v1515
    %v1583 = vpop.f32.mrb[0].mxu0
    %v1584 = vadd.f32 %v215, %v1583
    %v1585 = vpop.f32.mrb[0].mxu0
    %v1586 = vadd.f32 %v219, %v1585
    %1587 = vdwg.mxu0
    %v1588 = vxor.u32 %v1584, 2147483648
    %v1589 = vmul.f32 %v1588, 1.442695
    %v1590 = vpow.pop %v1589
    %v1591 = vadd.f32 %v1590, 1.0
    %v1592 = vrcp.pop %v1591
    %v1593 = vmul.f32 1.0, %v1592
    %v1594 = vxor.u32 %v1586, 2147483648
    %v1595 = vmul.f32 %v1594, 1.442695
    %v1596 = vpow.pop %v1595
    %v1597 = vadd.f32 %v1596, 1.0
    %v1598 = vrcp.pop %v1597
    %v1599 = vmul.f32 1.0, %v1598
    %v1600 = vtanh.pop %v1586
    %v1601 = vmul.f32 %v1593, %v1470
    %1603 = vrot.lane.b32.xlu0 %v1600, 64
    %v1604 = vpop.permute.xlu0 %1603
    %v1606 = vmul.f32 %v1593, %v1604
    %1608 = vrot.lane.b32.xlu0 %v1606, 64
    %v1609 = vpop.permute.xlu0 %1608
    %v1611 = vadd.f32 %v1601, %v1609
    %v1612 = vtanh.pop %v1611
    %1614 = vrot.lane.b32.xlu0 %v1612, 64
    %v1615 = vpop.permute.xlu0 %1614
    %v1617 = vmul.f32 %v1599, %v1615
    %v1619 = vunpack.c.l.s4 1966171168
    %v1620 = vunpack.c.0.s8 %v1619
    %v1621 = vlaneseq
    %v1622 = vshrl.u32 %v1621, 7
    %v1623 = vsub.s32 %v1620, %v1622
    %v1624 = vrot.slane %v337, %v1623
    %v1625 = vcombine.high %v1624, %v1624
    %v1627 = vunpack.c.l.s4 1966171168
    %v1628 = vunpack.c.0.s8 %v1627
    %v1629 = vlaneseq
    %v1630 = vshrl.u32 %v1629, 7
    %v1631 = vsub.s32 %v1628, %v1630
    %v1632 = vrot.slane %v1624, %v1631
    %v1634 = vunpack.c.l.s4 1966171168
    %v1635 = vunpack.c.0.s8 %v1634
    %v1636 = vlaneseq
    %v1637 = vshrl.u32 %v1636, 7
    %v1638 = vsub.s32 %v1635, %v1637
    %v1639 = vrot.slane %v1625, %v1638
    %v1643 = vunpack.c.l.s4 1966171168
    %v1644 = vunpack.c.0.s8 %v1643
    %v1645 = vlaneseq
    %v1646 = vshrl.u32 %v1645, 7
    %v1647 = vsub.s32 %v1644, %v1646
    %v1648 = vrot.slane %v481, %v1647
    %v1649 = vcombine.high %v1648, %v1648
    %v1651 = vunpack.c.l.s4 1966171168
    %v1652 = vunpack.c.0.s8 %v1651
    %v1653 = vlaneseq
    %v1654 = vshrl.u32 %v1653, 7
    %v1655 = vsub.s32 %v1652, %v1654
    %v1656 = vrot.slane %v1648, %v1655
    %v1658 = vunpack.c.l.s4 1966171168
    %v1659 = vunpack.c.0.s8 %v1658
    %v1660 = vlaneseq
    %v1661 = vshrl.u32 %v1660, 7
    %v1662 = vsub.s32 %v1659, %v1661
    %v1663 = vrot.slane %v1649, %v1662
    %v1665 = vunpack.c.l.s4 1966171168
    %v1666 = vunpack.c.0.s8 %v1665
    %v1667 = vlaneseq
    %v1668 = vshrl.u32 %v1667, 7
    %v1669 = vsub.s32 %v1666, %v1668
    %v1670 = vrot.slane %v623, %v1669
    %v1671 = vcombine.high %v1670, %v1670
    %v1673 = vunpack.c.l.s4 1966171168
    %v1674 = vunpack.c.0.s8 %v1673
    %v1675 = vlaneseq
    %v1676 = vshrl.u32 %v1675, 7
    %v1677 = vsub.s32 %v1674, %v1676
    %v1678 = vrot.slane %v1670, %v1677
    %v1680 = vunpack.c.l.s4 1966171168
    %v1681 = vunpack.c.0.s8 %v1680
    %v1682 = vlaneseq
    %v1683 = vshrl.u32 %v1682, 7
    %v1684 = vsub.s32 %v1681, %v1683
    %v1685 = vrot.slane %v1671, %v1684
    %v1687 = vunpack.c.l.s4 1966171168
    %v1688 = vunpack.c.0.s8 %v1687
    %v1689 = vlaneseq
    %v1690 = vshrl.u32 %v1689, 7
    %v1691 = vsub.s32 %v1688, %v1690
    %v1692 = vrot.slane %v765, %v1691
    %v1693 = vcombine.high %v1692, %v1692
    %v1695 = vunpack.c.l.s4 1966171168
    %v1696 = vunpack.c.0.s8 %v1695
    %v1697 = vlaneseq
    %v1698 = vshrl.u32 %v1697, 7
    %v1699 = vsub.s32 %v1696, %v1698
    %v1700 = vrot.slane %v1692, %v1699
    %v1702 = vunpack.c.l.s4 1966171168
    %v1703 = vunpack.c.0.s8 %v1702
    %v1704 = vlaneseq
    %v1705 = vshrl.u32 %v1704, 7
    %v1706 = vsub.s32 %v1703, %v1705
    %v1707 = vrot.slane %v1693, %v1706
    %v1709 = vunpack.c.l.s4 1966171168
    %v1710 = vunpack.c.0.s8 %v1709
    %v1711 = vlaneseq
    %v1712 = vshrl.u32 %v1711, 7
    %v1713 = vsub.s32 %v1710, %v1712
    %v1714 = vrot.slane %v907, %v1713
    %v1715 = vcombine.high %v1714, %v1714
    %v1717 = vunpack.c.l.s4 1966171168
    %v1718 = vunpack.c.0.s8 %v1717
    %v1719 = vlaneseq
    %v1720 = vshrl.u32 %v1719, 7
    %v1721 = vsub.s32 %v1718, %v1720
    %v1722 = vrot.slane %v1714, %v1721
    %v1724 = vunpack.c.l.s4 1966171168
    %v1725 = vunpack.c.0.s8 %v1724
    %v1726 = vlaneseq
    %v1727 = vshrl.u32 %v1726, 7
    %v1728 = vsub.s32 %v1725, %v1727
    %v1729 = vrot.slane %v1715, %v1728
    %v1731 = vunpack.c.l.s4 1966171168
    %v1732 = vunpack.c.0.s8 %v1731
    %v1733 = vlaneseq
    %v1734 = vshrl.u32 %v1733, 7
    %v1735 = vsub.s32 %v1732, %v1734
    %v1736 = vrot.slane %v1049, %v1735
    %v1737 = vcombine.high %v1736, %v1736
    %v1739 = vunpack.c.l.s4 1966171168
    %v1740 = vunpack.c.0.s8 %v1739
    %v1741 = vlaneseq
    %v1742 = vshrl.u32 %v1741, 7
    %v1743 = vsub.s32 %v1740, %v1742
    %v1744 = vrot.slane %v1736, %v1743
    %v1746 = vunpack.c.l.s4 1966171168
    %v1747 = vunpack.c.0.s8 %v1746
    %v1748 = vlaneseq
    %v1749 = vshrl.u32 %v1748, 7
    %v1750 = vsub.s32 %v1747, %v1749
    %v1751 = vrot.slane %v1737, %v1750
    %v1753 = vunpack.c.l.s4 1966171168
    %v1754 = vunpack.c.0.s8 %v1753
    %v1755 = vlaneseq
    %v1756 = vshrl.u32 %v1755, 7
    %v1757 = vsub.s32 %v1754, %v1756
    %v1758 = vrot.slane %v1191, %v1757
    %v1759 = vcombine.high %v1758, %v1758
    %v1761 = vunpack.c.l.s4 1966171168
    %v1762 = vunpack.c.0.s8 %v1761
    %v1763 = vlaneseq
    %v1764 = vshrl.u32 %v1763, 7
    %v1765 = vsub.s32 %v1762, %v1764
    %v1766 = vrot.slane %v1758, %v1765
    %v1768 = vunpack.c.l.s4 1966171168
    %v1769 = vunpack.c.0.s8 %v1768
    %v1770 = vlaneseq
    %v1771 = vshrl.u32 %v1770, 7
    %v1772 = vsub.s32 %v1769, %v1771
    %v1773 = vrot.slane %v1759, %v1772
    %v1775 = vunpack.c.l.s4 1966171168
    %v1776 = vunpack.c.0.s8 %v1775
    %v1777 = vlaneseq
    %v1778 = vshrl.u32 %v1777, 7
    %v1779 = vsub.s32 %v1776, %v1778
    %v1780 = vrot.slane %v1333, %v1779
    %v1781 = vcombine.high %v1780, %v1780
    %v1783 = vunpack.c.l.s4 1966171168
    %v1784 = vunpack.c.0.s8 %v1783
    %v1785 = vlaneseq
    %v1786 = vshrl.u32 %v1785, 7
    %v1787 = vsub.s32 %v1784, %v1786
    %v1788 = vrot.slane %v1780, %v1787
    %v1790 = vunpack.c.l.s4 1966171168
    %v1791 = vunpack.c.0.s8 %v1790
    %v1792 = vlaneseq
    %v1793 = vshrl.u32 %v1792, 7
    %v1794 = vsub.s32 %v1791, %v1793
    %v1795 = vrot.slane %v1781, %v1794
    %v1797 = vunpack.c.l.s4 1966171168
    %v1798 = vunpack.c.0.s8 %v1797
    %v1799 = vlaneseq
    %v1800 = vshrl.u32 %v1799, 7
    %v1801 = vsub.s32 %v1798, %v1800
    %v1802 = vrot.slane %v1476, %v1801
    %v1803 = vcombine.high %v1802, %v1802
    %v1805 = vunpack.c.l.s4 1966171168
    %v1806 = vunpack.c.0.s8 %v1805
    %v1807 = vlaneseq
    %v1808 = vshrl.u32 %v1807, 7
    %v1809 = vsub.s32 %v1806, %v1808
    %v1810 = vrot.slane %v1802, %v1809
    %v1812 = vunpack.c.l.s4 1966171168
    %v1813 = vunpack.c.0.s8 %v1812
    %v1814 = vlaneseq
    %v1815 = vshrl.u32 %v1814, 7
    %v1816 = vsub.s32 %v1813, %v1815
    %v1817 = vrot.slane %v1803, %v1816
    %v1822 = vunpack.c.l.s4 1966171168
    %v1823 = vunpack.c.0.s8 %v1822
    %v1824 = vlaneseq
    %v1825 = vshrl.u32 %v1824, 7
    %v1826 = vsub.s32 %v1823, %v1825
    %v1827 = vrot.slane %v1617, %v1826
    %v1828 = vcombine.high %v1827, %v1827
    %v1830 = vunpack.c.l.s4 1966171168
    %v1831 = vunpack.c.0.s8 %v1830
    %v1832 = vlaneseq
    %v1833 = vshrl.u32 %v1832, 7
    %v1834 = vsub.s32 %v1831, %v1833
    %v1835 = vrot.slane %v1827, %v1834
    %v1837 = vunpack.c.l.s4 1966171168
    %v1838 = vunpack.c.0.s8 %v1837
    %v1839 = vlaneseq
    %v1840 = vshrl.u32 %v1839, 7
    %v1841 = vsub.s32 %v1838, %v1840
    %v1842 = vrot.slane %v1828, %v1841
    %v1843 = vlaneseq
    %v1844 = vshrl.u32 %v1843, 7
    %v1845 = vsub.s32 0, %v1844
    %v1846 = vrot.slane %v1656, %v1845
    %v1847 = vlaneseq
    %v1848 = vshrl.u32 %v1847, 7
    %v1849 = vsub.s32 0, %v1848
    %v1850 = vrot.slane %v1663, %v1849
    %v1853 = vlaneseq
    %v1854 = vshrl.u32 %v1853, 7
    %v1855 = vsub.s32 0, %v1854
    %v1856 = vrot.slane %v1678, %v1855
    %v1857 = vlaneseq
    %v1858 = vshrl.u32 %v1857, 7
    %v1859 = vsub.s32 0, %v1858
    %v1860 = vrot.slane %v1685, %v1859
    %v1863 = vlaneseq
    %v1864 = vshrl.u32 %v1863, 7
    %v1865 = vsub.s32 0, %v1864
    %v1866 = vrot.slane %v1700, %v1865
    %v1867 = vlaneseq
    %v1868 = vshrl.u32 %v1867, 7
    %v1869 = vsub.s32 0, %v1868
    %v1870 = vrot.slane %v1707, %v1869
    %v1873 = vlaneseq
    %v1874 = vshrl.u32 %v1873, 7
    %v1875 = vsub.s32 0, %v1874
    %v1876 = vrot.slane %v1722, %v1875
    %v1877 = vlaneseq
    %v1878 = vshrl.u32 %v1877, 7
    %v1879 = vsub.s32 0, %v1878
    %v1880 = vrot.slane %v1729, %v1879
    %v1883 = vlaneseq
    %v1884 = vshrl.u32 %v1883, 7
    %v1885 = vsub.s32 0, %v1884
    %v1886 = vrot.slane %v1744, %v1885
    %v1887 = vlaneseq
    %v1888 = vshrl.u32 %v1887, 7
    %v1889 = vsub.s32 0, %v1888
    %v1890 = vrot.slane %v1751, %v1889
    %v1893 = vlaneseq
    %v1894 = vshrl.u32 %v1893, 7
    %v1895 = vsub.s32 0, %v1894
    %v1896 = vrot.slane %v1766, %v1895
    %v1897 = vlaneseq
    %v1898 = vshrl.u32 %v1897, 7
    %v1899 = vsub.s32 0, %v1898
    %v1900 = vrot.slane %v1773, %v1899
    %v1903 = vlaneseq
    %v1904 = vshrl.u32 %v1903, 7
    %v1905 = vsub.s32 0, %v1904
    %v1906 = vrot.slane %v1788, %v1905
    %v1907 = vlaneseq
    %v1908 = vshrl.u32 %v1907, 7
    %v1909 = vsub.s32 0, %v1908
    %v1910 = vrot.slane %v1795, %v1909
    %v1913 = vlaneseq
    %v1914 = vshrl.u32 %v1913, 7
    %v1915 = vsub.s32 0, %v1914
    %v1916 = vrot.slane %v1835, %v1915
    %v1917 = vlaneseq
    %v1918 = vshrl.u32 %v1917, 7
    %v1919 = vsub.s32 0, %v1918
    %v1920 = vrot.slane %v1842, %v1919
    %vm1923 = vcmask 1040384
    %v1924 = vsel %vm1923, %v1632, %v1846
    %v1925 = vsel %vm1923, %v1639, %v1850
    %vm1926 = vcmask 1041408
    %v1927 = vsel %vm1926, %v1924, %v1856
    %v1928 = vsel %vm1926, %v1925, %v1860
    %v1929 = vsel %vm226, %v1927, %v1866
    %v1930 = vsel %vm226, %v1928, %v1870
    %vm1931 = vcmask 1043456
    %v1932 = vsel %vm1931, %v1929, %v1876
    %v1933 = vsel %vm1931, %v1930, %v1880
    %vm1934 = vcmask 1044480
    %v1935 = vsel %vm1934, %v1932, %v1886
    %v1936 = vsel %vm1934, %v1933, %v1890
    %vm1937 = vcmask 1045504
    %v1938 = vsel %vm1937, %v1935, %v1896
    %v1939 = vsel %vm1937, %v1936, %v1900
    %vm1940 = vcmask 1046528
    %v1941 = vsel %vm1940, %v1938, %v1906
    %v1942 = vsel %vm1940, %v1939, %v1910
    %v1943 = vsel %vm1923, %v1810, %v1916
    %v1944 = vsel %vm1923, %v1817, %v1920
    %v1945 = vld [vmem:[%s4] sm:$0x3]
    %v1946 = vld [vmem:[%s5] sm:$0x3]
    %v1947 = vld [vmem:[%s12] sm:$0xff]
    %v1948 = vld [vmem:[%s12 + $0x8] sm:$0xff]
    %v1949 = vld [vmem:[%s12 + $0x10] sm:$0xff]
    %v1950 = vld [vmem:[%s12 + $0x18] sm:$0xff]
    %v1951 = vld [vmem:[%s12 + $0x20] sm:$0xff]
    %v1952 = vld [vmem:[%s12 + $0x28] sm:$0xff]
    %v1953 = vld [vmem:[%s12 + $0x30] sm:$0xff]
    %v1954 = vld [vmem:[%s12 + $0x38] sm:$0xff]
    %v1955 = vld [vmem:[%s12 + $0x40] sm:$0xff]
    %v1956 = vld [vmem:[%s12 + $0x48] sm:$0xff]
    %v1957 = vld [vmem:[%s12 + $0x50] sm:$0xff]
    %v1958 = vld [vmem:[%s12 + $0x58] sm:$0xff]
    %v1959 = vld [vmem:[%s12 + $0x60] sm:$0xff]
    %v1960 = vld [vmem:[%s12 + $0x68] sm:$0xff]
    %v1961 = vld [vmem:[%s12 + $0x70] sm:$0xff]
    %v1962 = vld [vmem:[%s12 + $0x78] sm:$0xff]
    %v1963 = vld [vmem:[%s13] sm:$0xff]
    %v1964 = vld [vmem:[%s13 + $0x8] sm:$0xff]
    %v1965 = vld [vmem:[%s13 + $0x10] sm:$0xff]
    %v1966 = vld [vmem:[%s13 + $0x18] sm:$0xff]
    %v1967 = vld [vmem:[%s13 + $0x20] sm:$0xff]
    %v1968 = vld [vmem:[%s13 + $0x28] sm:$0xff]
    %v1969 = vld [vmem:[%s13 + $0x30] sm:$0xff]
    %v1970 = vld [vmem:[%s13 + $0x38] sm:$0xff]
    %v1971 = vld [vmem:[%s14] sm:$0x1]
    %v1972 = vld [vmem:[%s15] sm:$0x1]
    %v1973 = vld [vmem:[#allocation3] sm:$0x1]
    %v1974 = vld [vmem:[%s17] sm:$0xff]
    %v1975 = vld [vmem:[%s17 + $0x8] sm:$0xff]
    %v1976 = vld [vmem:[%s17 + $0x10] sm:$0xff]
    %v1977 = vld [vmem:[%s17 + $0x18] sm:$0xff]
    %v1978 = vld [vmem:[%s17 + $0x20] sm:$0xff]
    %v1979 = vld [vmem:[%s17 + $0x28] sm:$0xff]
    %v1980 = vld [vmem:[%s17 + $0x30] sm:$0xff]
    %v1981 = vld [vmem:[%s17 + $0x38] sm:$0xff]
    %v1982 = vld [vmem:[%s17 + $0x40] sm:$0xff]
    %v1983 = vld [vmem:[%s17 + $0x48] sm:$0xff]
    %v1984 = vld [vmem:[%s17 + $0x50] sm:$0xff]
    %v1985 = vld [vmem:[%s17 + $0x58] sm:$0xff]
    %v1986 = vld [vmem:[%s17 + $0x60] sm:$0xff]
    %v1987 = vld [vmem:[%s17 + $0x68] sm:$0xff]
    %v1988 = vld [vmem:[%s17 + $0x70] sm:$0xff]
    %v1989 = vld [vmem:[%s17 + $0x78] sm:$0xff]
    %v1990 = vld [vmem:[%s17 + $0x80] sm:$0x1f]
    %v1991 = vld [vmem:[%s17 + $0x88] sm:$0x1f]
    %v1992 = vld [vmem:[%s18] sm:$0x3]
    %v1993 = vld [vmem:[%s19] sm:$0xff]
    %v1994 = vld [vmem:[%s19 + $0x8] sm:$0xff]
    %v1995 = vld [vmem:[%s19 + $0x10] sm:$0xff]
    %v1996 = vld [vmem:[%s19 + $0x18] sm:$0xff]
    %v1997 = vld [vmem:[%s19 + $0x20] sm:$0xff]
    %v1998 = vld [vmem:[%s19 + $0x28] sm:$0xff]
    %v1999 = vld [vmem:[%s19 + $0x30] sm:$0xff]
    %v2000 = vld [vmem:[%s19 + $0x38] sm:$0xff]
    %v2001 = vld [vmem:[%s20] sm:$0x1f]
    %v2002 = vld [vmem:[%s21] sm:$0x1]
    %v2003 = vld [vmem:[%s22] sm:$0xff]
    %v2004 = vld [vmem:[%s22 + $0x8] sm:$0xff]
    %v2005 = vld [vmem:[%s22 + $0x10] sm:$0xff]
    %v2006 = vld [vmem:[%s22 + $0x18] sm:$0xff]
    %v2007 = vld [vmem:[%s22 + $0x20] sm:$0xff]
    %v2008 = vld [vmem:[%s22 + $0x28] sm:$0xff]
    %v2009 = vld [vmem:[%s22 + $0x30] sm:$0xff]
    %v2010 = vld [vmem:[%s22 + $0x38] sm:$0xff]
    %v2011 = vld [vmem:[%s22 + $0x40] sm:$0xff]
    %v2012 = vld [vmem:[%s22 + $0x48] sm:$0xff]
    %v2013 = vld [vmem:[%s22 + $0x50] sm:$0xff]
    %v2014 = vld [vmem:[%s22 + $0x58] sm:$0xff]
    %v2015 = vld [vmem:[%s22 + $0x60] sm:$0xff]
    %v2016 = vld [vmem:[%s22 + $0x68] sm:$0xff]
    %v2017 = vld [vmem:[%s22 + $0x70] sm:$0xff]
    %v2018 = vld [vmem:[%s22 + $0x78] sm:$0xff]
    %v2019 = vld [vmem:[%s23] sm:$0x1]
    %v2021 = vlaneseq
    %v2022 = vshrl.u32 %v2021, 7
    %v2023 = vsub.s32 0, %v2022
    %v2024 = vrot.slane %v1971, %v2023
    %v2029 = vcombine.high %v1941, %v1941
    %v2031 = vunpack.c.l.s4 1983009808
    %v2032 = vunpack.c.0.s8 %v2031
    %v2033 = vlaneseq
    %v2034 = vshrl.u32 %v2033, 7
    %v2035 = vsub.s32 %v2032, %v2034
    %v2036 = vrot.slane %v1941, %v2035
    %v2038 = vunpack.c.l.s4 1983009808
    %v2039 = vunpack.c.0.s8 %v2038
    %v2040 = vlaneseq
    %v2041 = vshrl.u32 %v2040, 7
    %v2042 = vsub.s32 %v2039, %v2041
    %v2043 = vrot.slane %v2029, %v2042
    %v2044 = vcombine.high %v2036, %v2036
    %v2045 = vcombine.high %v2043, %v2043
    %v2047 = vunpack.c.l.s4 1983009808
    %v2048 = vunpack.c.0.s8 %v2047
    %v2049 = vlaneseq
    %v2050 = vshrl.u32 %v2049, 7
    %v2051 = vsub.s32 %v2048, %v2050
    %v2052 = vrot.slane %v1943, %v2051
    %v2053 = vcombine.high %v1942, %v1942
    %v2055 = vunpack.c.l.s4 1983009808
    %v2056 = vunpack.c.0.s8 %v2055
    %v2057 = vlaneseq
    %v2058 = vshrl.u32 %v2057, 7
    %v2059 = vsub.s32 %v2056, %v2058
    %v2060 = vrot.slane %v1942, %v2059
    %v2062 = vunpack.c.l.s4 1983009808
    %v2063 = vunpack.c.0.s8 %v2062
    %v2064 = vlaneseq
    %v2065 = vshrl.u32 %v2064, 7
    %v2066 = vsub.s32 %v2063, %v2065
    %v2067 = vrot.slane %v2053, %v2066
    %v2068 = vcombine.high %v2060, %v2060
    %v2069 = vcombine.high %v2067, %v2067
    %v2071 = vunpack.c.l.s4 1983009808
    %v2072 = vunpack.c.0.s8 %v2071
    %v2073 = vlaneseq
    %v2074 = vshrl.u32 %v2073, 7
    %v2075 = vsub.s32 %v2072, %v2074
    %v2076 = vrot.slane %v1944, %v2075
    %v2077 = vcombine.high %v2024, %v2024
    %v2079 = vunpack.c.l.s4 1983009808
    %v2080 = vunpack.c.0.s8 %v2079
    %v2081 = vlaneseq
    %v2082 = vshrl.u32 %v2081, 7
    %v2083 = vsub.s32 %v2080, %v2082
    %v2084 = vrot.slane %v2024, %v2083
    %v2086 = vunpack.c.l.s4 1983009808
    %v2087 = vunpack.c.0.s8 %v2086
    %v2088 = vlaneseq
    %v2089 = vshrl.u32 %v2088, 7
    %v2090 = vsub.s32 %v2087, %v2089
    %v2091 = vrot.slane %v2077, %v2090
    %v2092 = vcombine.high %v2084, %v2084
    %v2093 = vcombine.high %v2091, %v2091
    %v2094 = vcombine.low %v2036, %v2044
    %v2095 = vcombine.low %v2043, %v2045
    %v2097 = vunpack.c.l.s4 1983009808
    %v2098 = vunpack.c.0.s8 %v2097
    %v2099 = vlaneseq
    %v2100 = vshrl.u32 %v2099, 7
    %v2101 = vsub.s32 %v2098, %v2100
    %v2102 = vrot.slane %v2094, %v2101
    %v2104 = vunpack.c.l.s4 1983009808
    %v2105 = vunpack.c.0.s8 %v2104
    %v2106 = vlaneseq
    %v2107 = vshrl.u32 %v2106, 7
    %v2108 = vsub.s32 %v2105, %v2107
    %v2109 = vrot.slane %v2095, %v2108
    %v2110 = vcombine.low %v2102, %v2109
    %v2111 = vcombine.low %v2052, %v2060
    %v2112 = vcombine.low %v2068, %v2067
    %v2114 = vunpack.c.l.s4 1983009808
    %v2115 = vunpack.c.0.s8 %v2114
    %v2116 = vlaneseq
    %v2117 = vshrl.u32 %v2116, 7
    %v2118 = vsub.s32 %v2115, %v2117
    %v2119 = vrot.slane %v2111, %v2118
    %v2121 = vunpack.c.l.s4 1983009808
    %v2122 = vunpack.c.0.s8 %v2121
    %v2123 = vlaneseq
    %v2124 = vshrl.u32 %v2123, 7
    %v2125 = vsub.s32 %v2122, %v2124
    %v2126 = vrot.slane %v2112, %v2125
    %v2127 = vcombine.low %v2119, %v2126
    %v2128 = vcombine.low %v2069, %v2076
    %v2130 = vunpack.c.l.s4 1983009808
    %v2131 = vunpack.c.0.s8 %v2130
    %v2132 = vlaneseq
    %v2133 = vshrl.u32 %v2132, 7
    %v2134 = vsub.s32 %v2131, %v2133
    %v2135 = vrot.slane %v2128, %v2134
    %v2136 = vcombine.low %v2084, %v2092
    %v2137 = vcombine.low %v2091, %v2093
    %v2139 = vunpack.c.l.s4 1983009808
    %v2140 = vunpack.c.0.s8 %v2139
    %v2141 = vlaneseq
    %v2142 = vshrl.u32 %v2141, 7
    %v2143 = vsub.s32 %v2140, %v2142
    %v2144 = vrot.slane %v2136, %v2143
    %v2146 = vunpack.c.l.s4 1983009808
    %v2147 = vunpack.c.0.s8 %v2146
    %v2148 = vlaneseq
    %v2149 = vshrl.u32 %v2148, 7
    %v2150 = vsub.s32 %v2147, %v2149
    %v2151 = vrot.slane %v2137, %v2150
    %v2152 = vcombine.low %v2144, %v2151
    %v2153 = vcombine.low %v2084, %v2084
    %v2154 = vcombine.low %v2092, %v2091
    %v2156 = vunpack.c.l.s4 1983009808
    %v2157 = vunpack.c.0.s8 %v2156
    %v2158 = vlaneseq
    %v2159 = vshrl.u32 %v2158, 7
    %v2160 = vsub.s32 %v2157, %v2159
    %v2161 = vrot.slane %v2153, %v2160
    %v2163 = vunpack.c.l.s4 1983009808
    %v2164 = vunpack.c.0.s8 %v2163
    %v2165 = vlaneseq
    %v2166 = vshrl.u32 %v2165, 7
    %v2167 = vsub.s32 %v2164, %v2166
    %v2168 = vrot.slane %v2154, %v2167
    %v2169 = vcombine.low %v2161, %v2168
    %v2170 = vcombine.low %v2093, %v2084
    %v2172 = vunpack.c.l.s4 1983009808
    %v2173 = vunpack.c.0.s8 %v2172
    %v2174 = vlaneseq
    %v2175 = vshrl.u32 %v2174, 7
    %v2176 = vsub.s32 %v2173, %v2175
    %v2177 = vrot.slane %v2170, %v2176
    %vm2181 = vcmask 523264
    %v2182 = vsel %vm2181, %v2110, 0
    %v2184 = vsel %vm2181, %v2127, 0
    %v2186 = vsel %vm2181, %v2135, 0
    %2188 = vmatprep.subr.mxu0 0.0
    %2189 = vmatpush1.msra.mxu0 %v1963
    %2190 = vmatprep.subr.mxu0 0.0
    %2191 = vmatpush1.msra.mxu0 %v1964
    %2192 = vmatprep.subr.mxu0 0.0
    %2193 = vmatpush1.msra.mxu0 %v1965
    %2194 = vmatprep.subr.mxu0 0.0
    %2195 = vmatpush1.msra.mxu0 %v1966
    %2196 = vmatprep.subr.mxu0 0.0
    %2197 = vmatpush1.msra.mxu0 %v1967
    %2198 = vmatprep.subr.mxu0 0.0
    %2199 = vmatpush1.msra.mxu0 %v1968
    %2200 = vmatprep.subr.mxu0 0.0
    %2201 = vmatpush1.msra.mxu0 %v1969
    %2202 = vmatprep.subr.mxu0 0.0
    %2203 = vmatpush1.msra.mxu0 %v1970
    %2204 = vmatprep.subr.mxu0 0.0
    %2205 = vmatpush1.msra.mxu0 0.0
    %2206 = vmatprep.subr.mxu0 0.0
    %2207 = vmatpush1.msra.mxu0 0.0
    %2208 = vmatprep.subr.mxu0 0.0
    %2209 = vmatpush1.msra.mxu0 0.0
    %2210 = vmatprep.subr.mxu0 0.0
    %2211 = vmatpush1.msra.mxu0 0.0
    %2212 = vmatprep.subr.mxu0 0.0
    %2213 = vmatpush1.msra.mxu0 0.0
    %2214 = vmatprep.subr.mxu0 0.0
    %2215 = vmatpush1.msra.mxu0 0.0
    %2216 = vmatprep.subr.mxu0 0.0
    %2217 = vmatpush1.msra.mxu0 0.0
    %2218 = vmatprep.subr.mxu0 0.0
    %2219 = vmatpush1.msra.mxu0 0.0
    %2220 = vmatprep.subr.mxu0 0.0
    %2221 = vmatpush1.msra.mxu0 0.0
    %2222 = vmatprep.subr.mxu0 0.0
    %2223 = vmatpush1.msra.mxu0 0.0
    %2224 = vmatprep.subr.mxu0 0.0
    %2225 = vmatpush1.msra.mxu0 0.0
    %2226 = vmatprep.subr.mxu0 0.0
    %2227 = vmatpush1.msra.mxu0 0.0
    %2228 = vmatprep.subr.mxu0 0.0
    %2229 = vmatpush1.msra.mxu0 0.0
    %2230 = vmatprep.subr.mxu0 0.0
    %2231 = vmatpush1.msra.mxu0 0.0
    %2232 = vmatprep.subr.mxu0 0.0
    %2233 = vmatpush1.msra.mxu0 0.0
    %2234 = vmatprep.subr.mxu0 0.0
    %2235 = vmatpush1.msra.mxu0 0.0
    %2236 = vmatprep.subr.mxu0 0.0
    %2237 = vmatpush1.msra.mxu0 0.0
    %2238 = vmatprep.subr.mxu0 0.0
    %2239 = vmatpush1.msra.mxu0 0.0
    %2240 = vmatprep.subr.mxu0 0.0
    %2241 = vmatpush1.msra.mxu0 0.0
    %2242 = vmatprep.subr.mxu0 0.0
    %2243 = vmatpush1.msra.mxu0 0.0
    %2244 = vmatprep.subr.mxu0 0.0
    %2245 = vmatpush1.msra.mxu0 0.0
    %2246 = vmatprep.subr.mxu0 0.0
    %2247 = vmatpush1.msra.mxu0 0.0
    %2248 = vmatprep.subr.mxu0 0.0
    %2249 = vmatpush1.msra.mxu0 0.0
    %2250 = vmatprep.subr.mxu0 0.0
    %2251 = vmatpush1.msra.mxu0 0.0
    %2252 = vmatprep.mubr.f32.mxu0 0.0
    %2253 = vmatmul.mubr.f32.gmra.mrb[0].mxu0 %v2182
    %v2254 = vpop.f32.mrb[0].mxu0
    %v2255 = vadd.f32 %v2152, %v2254
    %v2256 = vpop.f32.mrb[0].mxu0
    %2257 = vmatprep.mubr.f32.mxu0 0.0
    %2258 = vmatmul.mubr.f32.gmra.mrb[0].mxu0 %v2184
    %v2259 = vpop.f32.mrb[0].mxu0
    %v2260 = vadd.f32 %v2169, %v2259
    %v2261 = vpop.f32.mrb[0].mxu0
    %2262 = vmatprep.mubr.f32.mxu0 0.0
    %2263 = vmatmul.mubr.f32.gmra.mrb[0].mxu0 %v2186
    %v2264 = vpop.f32.mrb[0].mxu0
    %v2265 = vadd.f32 %v2177, %v2264
    %v2266 = vpop.f32.mrb[0].mxu0
    %2267 = vdwg.mxu0
    %v2271 = vcombine.high %v2255, %v2255
    %v2273 = vunpack.c.l.s4 1983009808
    %v2274 = vunpack.c.0.s8 %v2273
    %v2275 = vlaneseq
    %v2276 = vshrl.u32 %v2275, 7
    %v2277 = vsub.s32 %v2274, %v2276
    %v2278 = vrot.slane %v2255, %v2277
    %v2280 = vunpack.c.l.s4 1983009808
    %v2281 = vunpack.c.0.s8 %v2280
    %v2282 = vlaneseq
    %v2283 = vshrl.u32 %v2282, 7
    %v2284 = vsub.s32 %v2281, %v2283
    %v2285 = vrot.slane %v2271, %v2284
    %v2286 = vcombine.high %v2278, %v2278
    %v2287 = vcombine.high %v2285, %v2285
    %v2288 = vcombine.high %v2260, %v2260
    %v2290 = vunpack.c.l.s4 1983009808
    %v2291 = vunpack.c.0.s8 %v2290
    %v2292 = vlaneseq
    %v2293 = vshrl.u32 %v2292, 7
    %v2294 = vsub.s32 %v2291, %v2293
    %v2295 = vrot.slane %v2260, %v2294
    %v2297 = vunpack.c.l.s4 1983009808
    %v2298 = vunpack.c.0.s8 %v2297
    %v2299 = vlaneseq
    %v2300 = vshrl.u32 %v2299, 7
    %v2301 = vsub.s32 %v2298, %v2300
    %v2302 = vrot.slane %v2288, %v2301
    %v2303 = vcombine.high %v2295, %v2295
    %v2304 = vcombine.high %v2302, %v2302
    %v2306 = vunpack.c.l.s4 1983009808
    %v2307 = vunpack.c.0.s8 %v2306
    %v2308 = vlaneseq
    %v2309 = vshrl.u32 %v2308, 7
    %v2310 = vsub.s32 %v2307, %v2309
    %v2311 = vrot.slane %v2265, %v2310
    %v2312 = vcombine.high %v2311, %v2311
    %v2324 = vlaneseq
    %v2325 = vshrl.u32 %v2324, 7
    %v2326 = vsub.s32 0, %v2325
    %v2327 = vrot.slane %v2002, %v2326
    %v2332 = vcombine.high %v86, %v86
    %v2334 = vunpack.c.l.s4 1983009808
    %v2335 = vunpack.c.0.s8 %v2334
    %v2336 = vlaneseq
    %v2337 = vshrl.u32 %v2336, 7
    %v2338 = vsub.s32 %v2335, %v2337
    %v2339 = vrot.slane %v86, %v2338
    %v2341 = vunpack.c.l.s4 1983009808
    %v2342 = vunpack.c.0.s8 %v2341
    %v2343 = vlaneseq
    %v2344 = vshrl.u32 %v2343, 7
    %v2345 = vsub.s32 %v2342, %v2344
    %v2346 = vrot.slane %v2332, %v2345
    %v2347 = vcombine.high %v2339, %v2339
    %v2348 = vcombine.high %v2346, %v2346
    %v2350 = vunpack.c.l.s4 1983009808
    %v2351 = vunpack.c.0.s8 %v2350
    %v2352 = vlaneseq
    %v2353 = vshrl.u32 %v2352, 7
    %v2354 = vsub.s32 %v2351, %v2353
    %v2355 = vrot.slane %v87, %v2354
    %v2356 = vcombine.high %v88, %v88
    %v2358 = vunpack.c.l.s4 1983009808
    %v2359 = vunpack.c.0.s8 %v2358
    %v2360 = vlaneseq
    %v2361 = vshrl.u32 %v2360, 7
    %v2362 = vsub.s32 %v2359, %v2361
    %v2363 = vrot.slane %v88, %v2362
    %v2365 = vunpack.c.l.s4 1983009808
    %v2366 = vunpack.c.0.s8 %v2365
    %v2367 = vlaneseq
    %v2368 = vshrl.u32 %v2367, 7
    %v2369 = vsub.s32 %v2366, %v2368
    %v2370 = vrot.slane %v2356, %v2369
    %v2371 = vcombine.high %v2363, %v2363
    %v2372 = vcombine.high %v2370, %v2370
    %v2374 = vunpack.c.l.s4 1983009808
    %v2375 = vunpack.c.0.s8 %v2374
    %v2376 = vlaneseq
    %v2377 = vshrl.u32 %v2376, 7
    %v2378 = vsub.s32 %v2375, %v2377
    %v2379 = vrot.slane %v89, %v2378
    %v2380 = vcombine.high %v2327, %v2327
    %v2382 = vunpack.c.l.s4 1983009808
    %v2383 = vunpack.c.0.s8 %v2382
    %v2384 = vlaneseq
    %v2385 = vshrl.u32 %v2384, 7
    %v2386 = vsub.s32 %v2383, %v2385
    %v2387 = vrot.slane %v2327, %v2386
    %v2389 = vunpack.c.l.s4 1983009808
    %v2390 = vunpack.c.0.s8 %v2389
    %v2391 = vlaneseq
    %v2392 = vshrl.u32 %v2391, 7
    %v2393 = vsub.s32 %v2390, %v2392
    %v2394 = vrot.slane %v2380, %v2393
    %v2395 = vcombine.high %v2387, %v2387
    %v2396 = vcombine.high %v2394, %v2394
    %v2397 = vcombine.low %v2339, %v2347
    %v2398 = vcombine.low %v2346, %v2348
    %v2400 = vunpack.c.l.s4 1983009808
    %v2401 = vunpack.c.0.s8 %v2400
    %v2402 = vlaneseq
    %v2403 = vshrl.u32 %v2402, 7
    %v2404 = vsub.s32 %v2401, %v2403
    %v2405 = vrot.slane %v2397, %v2404
    %v2407 = vunpack.c.l.s4 1983009808
    %v2408 = vunpack.c.0.s8 %v2407
    %v2409 = vlaneseq
    %v2410 = vshrl.u32 %v2409, 7
    %v2411 = vsub.s32 %v2408, %v2410
    %v2412 = vrot.slane %v2398, %v2411
    %v2413 = vcombine.low %v2405, %v2412
    %v2414 = vcombine.low %v2355, %v2363
    %v2415 = vcombine.low %v2371, %v2370
    %v2417 = vunpack.c.l.s4 1983009808
    %v2418 = vunpack.c.0.s8 %v2417
    %v2419 = vlaneseq
    %v2420 = vshrl.u32 %v2419, 7
    %v2421 = vsub.s32 %v2418, %v2420
    %v2422 = vrot.slane %v2414, %v2421
    %v2424 = vunpack.c.l.s4 1983009808
    %v2425 = vunpack.c.0.s8 %v2424
    %v2426 = vlaneseq
    %v2427 = vshrl.u32 %v2426, 7
    %v2428 = vsub.s32 %v2425, %v2427
    %v2429 = vrot.slane %v2415, %v2428
    %v2430 = vcombine.low %v2422, %v2429
    %v2431 = vcombine.low %v2372, %v2379
    %v2433 = vunpack.c.l.s4 1983009808
    %v2434 = vunpack.c.0.s8 %v2433
    %v2435 = vlaneseq
    %v2436 = vshrl.u32 %v2435, 7
    %v2437 = vsub.s32 %v2434, %v2436
    %v2438 = vrot.slane %v2431, %v2437
    %v2439 = vcombine.low %v2387, %v2395
    %v2440 = vcombine.low %v2394, %v2396
    %v2442 = vunpack.c.l.s4 1983009808
    %v2443 = vunpack.c.0.s8 %v2442
    %v2444 = vlaneseq
    %v2445 = vshrl.u32 %v2444, 7
    %v2446 = vsub.s32 %v2443, %v2445
    %v2447 = vrot.slane %v2439, %v2446
    %v2449 = vunpack.c.l.s4 1983009808
    %v2450 = vunpack.c.0.s8 %v2449
    %v2451 = vlaneseq
    %v2452 = vshrl.u32 %v2451, 7
    %v2453 = vsub.s32 %v2450, %v2452
    %v2454 = vrot.slane %v2440, %v2453
    %v2455 = vcombine.low %v2447, %v2454
    %v2456 = vcombine.low %v2387, %v2387
    %v2457 = vcombine.low %v2395, %v2394
    %v2459 = vunpack.c.l.s4 1983009808
    %v2460 = vunpack.c.0.s8 %v2459
    %v2461 = vlaneseq
    %v2462 = vshrl.u32 %v2461, 7
    %v2463 = vsub.s32 %v2460, %v2462
    %v2464 = vrot.slane %v2456, %v2463
    %v2466 = vunpack.c.l.s4 1983009808
    %v2467 = vunpack.c.0.s8 %v2466
    %v2468 = vlaneseq
    %v2469 = vshrl.u32 %v2468, 7
    %v2470 = vsub.s32 %v2467, %v2469
    %v2471 = vrot.slane %v2457, %v2470
    %v2472 = vcombine.low %v2464, %v2471
    %v2473 = vcombine.low %v2396, %v2387
    %v2475 = vunpack.c.l.s4 1983009808
    %v2476 = vunpack.c.0.s8 %v2475
    %v2477 = vlaneseq
    %v2478 = vshrl.u32 %v2477, 7
    %v2479 = vsub.s32 %v2476, %v2478
    %v2480 = vrot.slane %v2473, %v2479
    %vm2484 = vcmask 39936
    %v2485 = vsel %vm2484, %v2413, 0
    %v2487 = vsel %vm2484, %v2430, 0
    %v2489 = vsel %vm2484, %v2438, 0
    %v2492 = vsel %vm1934, %v2001, 0
    %2494 = vmatprep.subr.mxu0 0.0
    %2495 = vmatpush1.msra.mxu0 %v2492
    %2496 = vmatprep.subr.mxu0 0.0
    %2497 = vmatpush1.msra.mxu0 0.0
    %2498 = vmatprep.subr.mxu0 0.0
    %2499 = vmatpush1.msra.mxu0 0.0
    %2500 = vmatprep.subr.mxu0 0.0
    %2501 = vmatpush1.msra.mxu0 0.0
    %2502 = vmatprep.subr.mxu0 0.0
    %2503 = vmatpush1.msra.mxu0 0.0
    %2504 = vmatprep.subr.mxu0 0.0
    %2505 = vmatpush1.msra.mxu0 0.0
    %2506 = vmatprep.subr.mxu0 0.0
    %2507 = vmatpush1.msra.mxu0 0.0
    %2508 = vmatprep.subr.mxu0 0.0
    %2509 = vmatpush1.msra.mxu0 0.0
    %2510 = vmatprep.subr.mxu0 0.0
    %2511 = vmatpush1.msra.mxu0 0.0
    %2512 = vmatprep.subr.mxu0 0.0
    %2513 = vmatpush1.msra.mxu0 0.0
    %2514 = vmatprep.subr.mxu0 0.0
    %2515 = vmatpush1.msra.mxu0 0.0
    %2516 = vmatprep.subr.mxu0 0.0
    %2517 = vmatpush1.msra.mxu0 0.0
    %2518 = vmatprep.subr.mxu0 0.0
    %2519 = vmatpush1.msra.mxu0 0.0
    %2520 = vmatprep.subr.mxu0 0.0
    %2521 = vmatpush1.msra.mxu0 0.0
    %2522 = vmatprep.subr.mxu0 0.0
    %2523 = vmatpush1.msra.mxu0 0.0
    %2524 = vmatprep.subr.mxu0 0.0
    %2525 = vmatpush1.msra.mxu0 0.0
    %2526 = vmatprep.subr.mxu0 0.0
    %2527 = vmatpush1.msra.mxu0 0.0
    %2528 = vmatprep.subr.mxu0 0.0
    %2529 = vmatpush1.msra.mxu0 0.0
    %2530 = vmatprep.subr.mxu0 0.0
    %2531 = vmatpush1.msra.mxu0 0.0
    %2532 = vmatprep.subr.mxu0 0.0
    %2533 = vmatpush1.msra.mxu0 0.0
    %2534 = vmatprep.subr.mxu0 0.0
    %2535 = vmatpush1.msra.mxu0 0.0
    %2536 = vmatprep.subr.mxu0 0.0
    %2537 = vmatpush1.msra.mxu0 0.0
    %2538 = vmatprep.subr.mxu0 0.0
    %2539 = vmatpush1.msra.mxu0 0.0
    %2540 = vmatprep.subr.mxu0 0.0
    %2541 = vmatpush1.msra.mxu0 0.0
    %2542 = vmatprep.subr.mxu0 0.0
    %2543 = vmatpush1.msra.mxu0 0.0
    %2544 = vmatprep.subr.mxu0 0.0
    %2545 = vmatpush1.msra.mxu0 0.0
    %2546 = vmatprep.subr.mxu0 0.0
    %2547 = vmatpush1.msra.mxu0 0.0
    %2548 = vmatprep.subr.mxu0 0.0
    %2549 = vmatpush1.msra.mxu0 0.0
    %2550 = vmatprep.subr.mxu0 0.0
    %2551 = vmatpush1.msra.mxu0 0.0
    %2552 = vmatprep.subr.mxu0 0.0
    %2553 = vmatpush1.msra.mxu0 0.0
    %2554 = vmatprep.subr.mxu0 0.0
    %2555 = vmatpush1.msra.mxu0 0.0
    %2556 = vmatprep.subr.mxu0 0.0
    %2557 = vmatpush1.msra.mxu0 0.0
    %2558 = vmatprep.mubr.f32.mxu0 0.0
    %2559 = vmatmul.mubr.f32.gmra.mrb[0].mxu0 %v2485
    %v2560 = vpop.f32.mrb[0].mxu0
    %v2561 = vadd.f32 %v2455, %v2560
    %v2562 = vpop.f32.mrb[0].mxu0
    %2563 = vmatprep.mubr.f32.mxu0 0.0
    %2564 = vmatmul.mubr.f32.gmra.mrb[0].mxu0 %v2487
    %v2565 = vpop.f32.mrb[0].mxu0
    %v2566 = vadd.f32 %v2472, %v2565
    %v2567 = vpop.f32.mrb[0].mxu0
    %2568 = vmatprep.mubr.f32.mxu0 0.0
    %2569 = vmatmul.mubr.f32.gmra.mrb[0].mxu0 %v2489
    %v2570 = vpop.f32.mrb[0].mxu0
    %v2571 = vadd.f32 %v2480, %v2570
    %v2572 = vpop.f32.mrb[0].mxu0
    %2573 = vdwg.mxu0
    %v2577 = vcombine.high %v2561, %v2561
    %v2579 = vunpack.c.l.s4 1983009808
    %v2580 = vunpack.c.0.s8 %v2579
    %v2581 = vlaneseq
    %v2582 = vshrl.u32 %v2581, 7
    %v2583 = vsub.s32 %v2580, %v2582
    %v2584 = vrot.slane %v2561, %v2583
    %v2586 = vunpack.c.l.s4 1983009808
    %v2587 = vunpack.c.0.s8 %v2586
    %v2588 = vlaneseq
    %v2589 = vshrl.u32 %v2588, 7
    %v2590 = vsub.s32 %v2587, %v2589
    %v2591 = vrot.slane %v2577, %v2590
    %v2592 = vcombine.high %v2584, %v2584
    %v2593 = vcombine.high %v2591, %v2591
    %v2594 = vcombine.high %v2566, %v2566
    %v2596 = vunpack.c.l.s4 1983009808
    %v2597 = vunpack.c.0.s8 %v2596
    %v2598 = vlaneseq
    %v2599 = vshrl.u32 %v2598, 7
    %v2600 = vsub.s32 %v2597, %v2599
    %v2601 = vrot.slane %v2566, %v2600
    %v2603 = vunpack.c.l.s4 1983009808
    %v2604 = vunpack.c.0.s8 %v2603
    %v2605 = vlaneseq
    %v2606 = vshrl.u32 %v2605, 7
    %v2607 = vsub.s32 %v2604, %v2606
    %v2608 = vrot.slane %v2594, %v2607
    %v2609 = vcombine.high %v2601, %v2601
    %v2610 = vcombine.high %v2608, %v2608
    %v2612 = vunpack.c.l.s4 1983009808
    %v2613 = vunpack.c.0.s8 %v2612
    %v2614 = vlaneseq
    %v2615 = vshrl.u32 %v2614, 7
    %v2616 = vsub.s32 %v2613, %v2615
    %v2617 = vrot.slane %v2571, %v2616
    %v2618 = vcombine.high %v2617, %v2617
    %2620 = vrot.lane.b32.xlu0 %v1946, 64
    %v2621 = vpop.permute.xlu0 %2620
    %v2623 = vsel %vm2181, %v1945, %v2621
    %2624 = vmatprep.subr.mxu0 0.0
    %2625 = vmatpush1.msra.mxu0 %v1947
    %2626 = vmatprep.subr.mxu0 0.0
    %2627 = vmatpush1.msra.mxu0 %v1948
    %2628 = vmatprep.subr.mxu0 0.0
    %2629 = vmatpush1.msra.mxu0 %v1949
    %2630 = vmatprep.subr.mxu0 0.0
    %2631 = vmatpush1.msra.mxu0 %v1950
    %2632 = vmatprep.subr.mxu0 0.0
    %2633 = vmatpush1.msra.mxu0 %v1951
    %2634 = vmatprep.subr.mxu0 0.0
    %2635 = vmatpush1.msra.mxu0 %v1952
    %2636 = vmatprep.subr.mxu0 0.0
    %2637 = vmatpush1.msra.mxu0 %v1953
    %2638 = vmatprep.subr.mxu0 0.0
    %2639 = vmatpush1.msra.mxu0 %v1954
    %2640 = vmatprep.subr.mxu0 0.0
    %2641 = vmatpush1.msra.mxu0 %v1955
    %2642 = vmatprep.subr.mxu0 0.0
    %2643 = vmatpush1.msra.mxu0 %v1956
    %2644 = vmatprep.subr.mxu0 0.0
    %2645 = vmatpush1.msra.mxu0 %v1957
    %2646 = vmatprep.subr.mxu0 0.0
    %2647 = vmatpush1.msra.mxu0 %v1958
    %2648 = vmatprep.subr.mxu0 0.0
    %2649 = vmatpush1.msra.mxu0 %v1959
    %2650 = vmatprep.subr.mxu0 0.0
    %2651 = vmatpush1.msra.mxu0 %v1960
    %2652 = vmatprep.subr.mxu0 0.0
    %2653 = vmatpush1.msra.mxu0 %v1961
    %2654 = vmatprep.subr.mxu0 0.0
    %2655 = vmatpush1.msra.mxu0 %v1962
    %2656 = vmatprep.subr.mxu0 0.0
    %2657 = vmatpush1.msra.mxu0 0.0
    %2658 = vmatprep.subr.mxu0 0.0
    %2659 = vmatpush1.msra.mxu0 0.0
    %2660 = vmatprep.subr.mxu0 0.0
    %2661 = vmatpush1.msra.mxu0 0.0
    %2662 = vmatprep.subr.mxu0 0.0
    %2663 = vmatpush1.msra.mxu0 0.0
    %2664 = vmatprep.subr.mxu0 0.0
    %2665 = vmatpush1.msra.mxu0 0.0
    %2666 = vmatprep.subr.mxu0 0.0
    %2667 = vmatpush1.msra.mxu0 0.0
    %2668 = vmatprep.subr.mxu0 0.0
    %2669 = vmatpush1.msra.mxu0 0.0
    %2670 = vmatprep.subr.mxu0 0.0
    %2671 = vmatpush1.msra.mxu0 0.0
    %2672 = vmatprep.subr.mxu0 0.0
    %2673 = vmatpush1.msra.mxu0 0.0
    %2674 = vmatprep.subr.mxu0 0.0
    %2675 = vmatpush1.msra.mxu0 0.0
    %2676 = vmatprep.subr.mxu0 0.0
    %2677 = vmatpush1.msra.mxu0 0.0
    %2678 = vmatprep.subr.mxu0 0.0
    %2679 = vmatpush1.msra.mxu0 0.0
    %2680 = vmatprep.subr.mxu0 0.0
    %2681 = vmatpush1.msra.mxu0 0.0
    %2682 = vmatprep.subr.mxu0 0.0
    %2683 = vmatpush1.msra.mxu0 0.0
    %2684 = vmatprep.subr.mxu0 0.0
    %2685 = vmatpush1.msra.mxu0 0.0
    %2686 = vmatprep.subr.mxu0 0.0
    %2687 = vmatpush1.msra.mxu0 0.0
    %2688 = vmatprep.mubr.f32.mxu0 0.0
    %2689 = vmatmul.mubr.f32.gmra.mrb[0].mxu0 %v2623
    %v2690 = vpop.f32.mrb[0].mxu0
    %v2691 = vadd.f32 0.0, %v2690
    %v2692 = vpop.f32.mrb[0].mxu0
    %2693 = vdwg.mxu0
    %v2696 = vunpack.c.l.s4 1966171168
    %v2697 = vunpack.c.0.s8 %v2696
    %v2698 = vlaneseq
    %v2699 = vshrl.u32 %v2698, 7
    %v2700 = vsub.s32 %v2697, %v2699
    %v2701 = vrot.slane %v2691, %v2700
    %v2702 = vcombine.high %v2701, %v2701
    %v2704 = vunpack.c.l.s4 1966171168
    %v2705 = vunpack.c.0.s8 %v2704
    %v2706 = vlaneseq
    %v2707 = vshrl.u32 %v2706, 7
    %v2708 = vsub.s32 %v2705, %v2707
    %v2709 = vrot.slane %v2701, %v2708
    %v2711 = vunpack.c.l.s4 1966171168
    %v2712 = vunpack.c.0.s8 %v2711
    %v2713 = vlaneseq
    %v2714 = vshrl.u32 %v2713, 7
    %v2715 = vsub.s32 %v2712, %v2714
    %v2716 = vrot.slane %v2702, %v2715
    %v2717 = vlaneseq
    %v2718 = vshrl.u32 %v2717, 7
    %v2719 = vsub.s32 0, %v2718
    %v2720 = vrot.slane %v2709, %v2719
    %v2721 = vlaneseq
    %v2722 = vshrl.u32 %v2721, 7
    %v2723 = vsub.s32 0, %v2722
    %v2724 = vrot.slane %v2716, %v2723
    %v2725 = vcombine.high %v2720, %v2720
    %v2727 = vunpack.c.l.s4 1983009808
    %v2728 = vunpack.c.0.s8 %v2727
    %v2729 = vlaneseq
    %v2730 = vshrl.u32 %v2729, 7
    %v2731 = vsub.s32 %v2728, %v2730
    %v2732 = vrot.slane %v2720, %v2731
    %v2734 = vunpack.c.l.s4 1983009808
    %v2735 = vunpack.c.0.s8 %v2734
    %v2736 = vlaneseq
    %v2737 = vshrl.u32 %v2736, 7
    %v2738 = vsub.s32 %v2735, %v2737
    %v2739 = vrot.slane %v2725, %v2738
    %v2740 = vcombine.high %v2732, %v2732
    %v2741 = vcombine.high %v2739, %v2739
    %v2742 = vcombine.high %v2724, %v2724
    %v2744 = vunpack.c.l.s4 1983009808
    %v2745 = vunpack.c.0.s8 %v2744
    %v2746 = vlaneseq
    %v2747 = vshrl.u32 %v2746, 7
    %v2748 = vsub.s32 %v2745, %v2747
    %v2749 = vrot.slane %v2724, %v2748
    %v2751 = vunpack.c.l.s4 1983009808
    %v2752 = vunpack.c.0.s8 %v2751
    %v2753 = vlaneseq
    %v2754 = vshrl.u32 %v2753, 7
    %v2755 = vsub.s32 %v2752, %v2754
    %v2756 = vrot.slane %v2742, %v2755
    %v2757 = vcombine.high %v2749, %v2749
    %v2758 = vcombine.high %v2756, %v2756
    %v2767 = vadd.f32 %v2278, %v2732
    %v2768 = vadd.f32 %v2286, %v2740
    %v2769 = vadd.f32 %v2285, %v2739
    %v2770 = vadd.f32 %v2287, %v2741
    %v2771 = vadd.f32 %v2295, %v2732
    %v2772 = vadd.f32 %v2303, %v2749
    %v2773 = vadd.f32 %v2302, %v2757
    %v2774 = vadd.f32 %v2304, %v2756
    %v2775 = vadd.f32 %v2311, %v2758
    %v2776 = vadd.f32 %v2312, %v2749
    %v2777 = vtanh.pop %v2767
    %v2778 = vtanh.pop %v2768
    %v2779 = vtanh.pop %v2769
    %v2780 = vtanh.pop %v2770
    %v2781 = vtanh.pop %v2771
    %v2782 = vtanh.pop %v2772
    %v2783 = vtanh.pop %v2773
    %v2784 = vtanh.pop %v2774
    %v2785 = vtanh.pop %v2775
    %v2786 = vtanh.pop %v2776
    %v2788 = vlaneseq
    %v2789 = vshrl.u32 %v2788, 7
    %v2790 = vsub.s32 0, %v2789
    %v2791 = vrot.slane %v1972, %v2790
    %v2792 = vcombine.high %v2791, %v2791
    %v2794 = vunpack.c.l.s4 1983009808
    %v2795 = vunpack.c.0.s8 %v2794
    %v2796 = vlaneseq
    %v2797 = vshrl.u32 %v2796, 7
    %v2798 = vsub.s32 %v2795, %v2797
    %v2799 = vrot.slane %v2791, %v2798
    %v2801 = vunpack.c.l.s4 1983009808
    %v2802 = vunpack.c.0.s8 %v2801
    %v2803 = vlaneseq
    %v2804 = vshrl.u32 %v2803, 7
    %v2805 = vsub.s32 %v2802, %v2804
    %v2806 = vrot.slane %v2792, %v2805
    %v2807 = vcombine.high %v2799, %v2799
    %v2808 = vcombine.high %v2806, %v2806
    %v2813 = vmul.f32 %v2777, %v2799
    %v2814 = vmul.f32 %v2778, %v2807
    %v2815 = vmul.f32 %v2779, %v2806
    %v2816 = vmul.f32 %v2780, %v2808
    %v2817 = vmul.f32 %v2781, %v2799
    %v2818 = vmul.f32 %v2782, %v2799
    %v2819 = vmul.f32 %v2783, %v2807
    %v2820 = vmul.f32 %v2784, %v2806
    %v2821 = vmul.f32 %v2785, %v2808
    %v2822 = vmul.f32 %v2786, %v2799
    %v2833 = vcombine.low %v2813, %v2814
    %v2834 = vcombine.low %v2815, %v2816
    %v2836 = vunpack.c.l.s4 1983009808
    %v2837 = vunpack.c.0.s8 %v2836
    %v2838 = vlaneseq
    %v2839 = vshrl.u32 %v2838, 7
    %v2840 = vsub.s32 %v2837, %v2839
    %v2841 = vrot.slane %v2833, %v2840
    %v2843 = vunpack.c.l.s4 1983009808
    %v2844 = vunpack.c.0.s8 %v2843
    %v2845 = vlaneseq
    %v2846 = vshrl.u32 %v2845, 7
    %v2847 = vsub.s32 %v2844, %v2846
    %v2848 = vrot.slane %v2834, %v2847
    %v2849 = vcombine.low %v2841, %v2848
    %v2851 = vunpack.c.l.s4 1983009808
    %v2852 = vunpack.c.0.s8 %v2851
    %v2853 = vlaneseq
    %v2854 = vshrl.u32 %v2853, 7
    %v2855 = vsub.s32 %v2852, %v2854
    %v2856 = vrot.slane %v2817, %v2855
    %v2857 = vcombine.low %v2818, %v2819
    %v2858 = vcombine.low %v2820, %v2821
    %v2860 = vunpack.c.l.s4 1983009808
    %v2861 = vunpack.c.0.s8 %v2860
    %v2862 = vlaneseq
    %v2863 = vshrl.u32 %v2862, 7
    %v2864 = vsub.s32 %v2861, %v2863
    %v2865 = vrot.slane %v2857, %v2864
    %v2867 = vunpack.c.l.s4 1983009808
    %v2868 = vunpack.c.0.s8 %v2867
    %v2869 = vlaneseq
    %v2870 = vshrl.u32 %v2869, 7
    %v2871 = vsub.s32 %v2868, %v2870
    %v2872 = vrot.slane %v2858, %v2871
    %v2873 = vcombine.low %v2865, %v2872
    %v2875 = vunpack.c.l.s4 1983009808
    %v2876 = vunpack.c.0.s8 %v2875
    %v2877 = vlaneseq
    %v2878 = vshrl.u32 %v2877, 7
    %v2879 = vsub.s32 %v2876, %v2878
    %v2880 = vrot.slane %v2822, %v2879
    %v2885 = vsel %vm2181, %v2849, 0.0
    %2886 = vadd.xlane.f32.xlu0 %v2885
    %v2887 = vpop.xlane.xlu0 %2886
    %v2888 = vsel %vm167, %v2856, 0.0
    %2889 = vadd.xlane.f32.xlu0 %v2888
    %v2890 = vpop.xlane.xlu0 %2889
    %v2891 = vsel %vm2181, %v2873, 0.0
    %2892 = vadd.xlane.f32.xlu0 %v2891
    %v2893 = vpop.xlane.xlu0 %2892
    %v2894 = vsel %vm167, %v2880, 0.0
    %2895 = vadd.xlane.f32.xlu0 %v2894
    %v2896 = vpop.xlane.xlu0 %2895
    %v2898 = vlaneseq
    %v2899 = vshrl.u32 %v2898, 7
    %v2900 = vsub.s32 0, %v2899
    %v2901 = vrot.slane %v1973, %v2900
    %2902 = vset.pattern.permute.xlu0 0
    %2903 = vperm.xlu0 %2902, %v2901
    %v2904 = vpop.permute.xlu0 %2903
    %v2906 = vadd.f32 %v2887, %v2904
    %v2907 = vadd.f32 %v2890, %v2904
    %v2908 = vadd.f32 %v2893, %v2904
    %v2909 = vadd.f32 %v2896, %v2904
    %v2914 = vlaneseq
    %v2915 = vand.u32 %v2914, 127
    %v2916 = vlaneseq
    %v2917 = vshrl.u32 %v2916, 7
    %v2918 = vsub.s32 %v2915, %v2917
    %v2919 = vrot.slane %v2906, %v2918
    %v2920 = vadd.s32 %v2915, 4294967288
    %v2921 = vlaneseq
    %v2922 = vshrl.u32 %v2921, 7
    %v2923 = vsub.s32 %v2920, %v2922
    %v2924 = vrot.slane %v2907, %v2923
    %vm2925 = vcmask 130112
    %v2926 = vsel %vm2925, %v2924, %v2919
    %v2927 = vlaneseq
    %v2928 = vshrl.u32 %v2927, 7
    %v2929 = vsub.s32 %v2915, %v2928
    %v2930 = vrot.slane %v2908, %v2929
    %v2931 = vlaneseq
    %v2932 = vshrl.u32 %v2931, 7
    %v2933 = vsub.s32 %v2920, %v2932
    %v2934 = vrot.slane %v2909, %v2933
    %v2935 = vsel %vm2925, %v2934, %v2930
    %v2936 = vsel %vm185, %v2935, %v2926
    %vm2938 = vcmask 74752
    %v2939 = vsel %vm2938, %v2936, -inf
    %2940 = vmax.xlane.f32.xlu0 %v2939
    %v2941 = vpop.xlane.xlu0 %2940
    %v2943 = vlaneseq
    %v2944 = vshrl.u32 %v2943, 7
    %v2945 = vsub.s32 0, %v2944
    %v2946 = vrot.slane %v2941, %v2945
    %v2947 = vlaneseq
    %v2948 = vshrl.u32 %v2947, 7
    %v2949 = vsub.s32 1, %v2948
    %v2950 = vrot.slane %v2941, %v2949
    %v2953 = vsub.f32 %v2906, %v2946
    %v2954 = vsub.f32 %v2907, %v2946
    %v2955 = vsub.f32 %v2908, %v2950
    %v2956 = vsub.f32 %v2909, %v2950
    %v2957 = vmul.f32 %v2953, 1.442695
    %v2958 = vpow.pop %v2957
    %v2959 = vmul.f32 %v2954, 1.442695
    %v2960 = vpow.pop %v2959
    %v2961 = vmul.f32 %v2955, 1.442695
    %v2962 = vpow.pop %v2961
    %v2963 = vmul.f32 %v2956, 1.442695
    %v2964 = vpow.pop %v2963
    %2969 = vset.pattern.permute.xlu0 0
    %2970 = vperm.xlu0 %2969, %v2958
    %v2971 = vpop.permute.xlu0 %2970
    %2972 = vset.pattern.permute.xlu0 0
    %2973 = vperm.xlu0 %2972, %v2960
    %v2974 = vpop.permute.xlu0 %2973
    %2975 = vset.pattern.permute.xlu0 0
    %2976 = vperm.xlu0 %2975, %v2962
    %v2977 = vpop.permute.xlu0 %2976
    %2978 = vset.pattern.permute.xlu0 0
    %2979 = vperm.xlu0 %2978, %v2964
    %v2980 = vpop.permute.xlu0 %2979
    %v2981 = vlaneseq
    %v2982 = vshrl.u32 %v2981, 7
    %v2983 = vsub.s32 %v2915, %v2982
    %v2984 = vrot.slane %v2971, %v2983
    %v2985 = vlaneseq
    %v2986 = vshrl.u32 %v2985, 7
    %v2987 = vsub.s32 %v2920, %v2986
    %v2988 = vrot.slane %v2974, %v2987
    %v2989 = vsel %vm2925, %v2988, %v2984
    %v2990 = vlaneseq
    %v2991 = vshrl.u32 %v2990, 7
    %v2992 = vsub.s32 %v2915, %v2991
    %v2993 = vrot.slane %v2977, %v2992
    %v2994 = vlaneseq
    %v2995 = vshrl.u32 %v2994, 7
    %v2996 = vsub.s32 %v2920, %v2995
    %v2997 = vrot.slane %v2980, %v2996
    %v2998 = vsel %vm2925, %v2997, %v2993
    %v2999 = vsel %vm185, %v2998, %v2989
    %v3001 = vsel %vm2938, %v2999, 0.0
    %3002 = vadd.xlane.f32.xlu0 %v3001
    %v3003 = vpop.xlane.xlu0 %3002
    %v3005 = vlaneseq
    %v3006 = vshrl.u32 %v3005, 7
    %v3007 = vsub.s32 0, %v3006
    %v3008 = vrot.slane %v3003, %v3007
    %v3009 = vlaneseq
    %v3010 = vshrl.u32 %v3009, 7
    %v3011 = vsub.s32 1, %v3010
    %v3012 = vrot.slane %v3003, %v3011
    %v3015 = vrcp.pop %v3008
    %v3016 = vmul.f32 %v2958, %v3015
    %v3017 = vmul.f32 %v2960, %v3015
    %v3018 = vrcp.pop %v3012
    %v3019 = vmul.f32 %v2962, %v3018
    %v3020 = vmul.f32 %v2964, %v3018
    %3022 = vset.pattern.permute.xlu0 0
    %3023 = vperm.xlu0 %3022, %v3016
    %v3024 = vpop.permute.xlu0 %3023
    %3027 = vset.pattern.permute.xlu0 0
    %3028 = vperm.xlu0 %3027, %v3017
    %v3029 = vpop.permute.xlu0 %3028
    %3032 = vset.pattern.permute.xlu0 0
    %3033 = vperm.xlu0 %3032, %v3019
    %v3034 = vpop.permute.xlu0 %3033
    %3037 = vset.pattern.permute.xlu0 0
    %3038 = vperm.xlu0 %3037, %v3020
    %v3039 = vpop.permute.xlu0 %3038
    %v3041 = vmul.f32 %v3024, %v1941
    %v3042 = vmul.f32 %v3029, %v1943
    %v3043 = vmul.f32 %v3034, %v1942
    %v3044 = vmul.f32 %v3039, %v1944
    %v3045 = vsel %vm2181, %v3041, 0.0
    %v3046 = vsel %vm167, %v3042, 0.0
    %v3047 = vadd.f32 %v3045, %v3046
    %v3048 = vrot.slane %v3047, 4
    %v3049 = vadd.f32 %v3047, %v3048
    %v3050 = vrot.slane %v3049, 2
    %v3051 = vadd.f32 %v3049, %v3050
    %v3052 = vrot.slane %v3051, 1
    %v3053 = vadd.f32 %v3051, %v3052
    %v3054 = vsel %vm2181, %v3043, 0.0
    %v3055 = vsel %vm167, %v3044, 0.0
    %v3056 = vadd.f32 %v3054, %v3055
    %v3057 = vrot.slane %v3056, 4
    %v3058 = vadd.f32 %v3056, %v3057
    %v3059 = vrot.slane %v3058, 2
    %v3060 = vadd.f32 %v3058, %v3059
    %v3061 = vrot.slane %v3060, 1
    %v3062 = vadd.f32 %v3060, %v3061
    %v3065 = vsel %vm185, %v3062, %v3053
    %v3066 = vlaneseq
    %v3067 = vshrl.u32 %v3066, 7
    %v3068 = vsub.s32 0, %v3067
    %v3069 = vrot.slane %v2584, %v3068
    %v3070 = vlaneseq
    %v3071 = vshrl.u32 %v3070, 7
    %v3072 = vsub.s32 0, %v3071
    %v3073 = vrot.slane %v2609, %v3072
    %v3074 = vsel %vm185, %v3073, %v3069
    %v3076 = vsel %vm2181, %v3065, 0
    %3078 = vmatprep.subr.mxu0 0.0
    %3079 = vmatpush1.msra.mxu0 %v1993
    %3080 = vmatprep.subr.mxu0 0.0
    %3081 = vmatpush1.msra.mxu0 %v1994
    %3082 = vmatprep.subr.mxu0 0.0
    %3083 = vmatpush1.msra.mxu0 %v1995
    %3084 = vmatprep.subr.mxu0 0.0
    %3085 = vmatpush1.msra.mxu0 %v1996
    %3086 = vmatprep.subr.mxu0 0.0
    %3087 = vmatpush1.msra.mxu0 %v1997
    %3088 = vmatprep.subr.mxu0 0.0
    %3089 = vmatpush1.msra.mxu0 %v1998
    %3090 = vmatprep.subr.mxu0 0.0
    %3091 = vmatpush1.msra.mxu0 %v1999
    %3092 = vmatprep.subr.mxu0 0.0
    %3093 = vmatpush1.msra.mxu0 %v2000
    %3094 = vmatprep.subr.mxu0 0.0
    %3095 = vmatpush1.msra.mxu0 0.0
    %3096 = vmatprep.subr.mxu0 0.0
    %3097 = vmatpush1.msra.mxu0 0.0
    %3098 = vmatprep.subr.mxu0 0.0
    %3099 = vmatpush1.msra.mxu0 0.0
    %3100 = vmatprep.subr.mxu0 0.0
    %3101 = vmatpush1.msra.mxu0 0.0
    %3102 = vmatprep.subr.mxu0 0.0
    %3103 = vmatpush1.msra.mxu0 0.0
    %3104 = vmatprep.subr.mxu0 0.0
    %3105 = vmatpush1.msra.mxu0 0.0
    %3106 = vmatprep.subr.mxu0 0.0
    %3107 = vmatpush1.msra.mxu0 0.0
    %3108 = vmatprep.subr.mxu0 0.0
    %3109 = vmatpush1.msra.mxu0 0.0
    %3110 = vmatprep.subr.mxu0 0.0
    %3111 = vmatpush1.msra.mxu0 0.0
    %3112 = vmatprep.subr.mxu0 0.0
    %3113 = vmatpush1.msra.mxu0 0.0
    %3114 = vmatprep.subr.mxu0 0.0
    %3115 = vmatpush1.msra.mxu0 0.0
    %3116 = vmatprep.subr.mxu0 0.0
    %3117 = vmatpush1.msra.mxu0 0.0
    %3118 = vmatprep.subr.mxu0 0.0
    %3119 = vmatpush1.msra.mxu0 0.0
    %3120 = vmatprep.subr.mxu0 0.0
    %3121 = vmatpush1.msra.mxu0 0.0
    %3122 = vmatprep.subr.mxu0 0.0
    %3123 = vmatpush1.msra.mxu0 0.0
    %3124 = vmatprep.subr.mxu0 0.0
    %3125 = vmatpush1.msra.mxu0 0.0
    %3126 = vmatprep.subr.mxu0 0.0
    %3127 = vmatpush1.msra.mxu0 0.0
    %3128 = vmatprep.subr.mxu0 0.0
    %3129 = vmatpush1.msra.mxu0 0.0
    %3130 = vmatprep.subr.mxu0 0.0
    %3131 = vmatpush1.msra.mxu0 0.0
    %3132 = vmatprep.subr.mxu0 0.0
    %3133 = vmatpush1.msra.mxu0 0.0
    %3134 = vmatprep.subr.mxu0 0.0
    %3135 = vmatpush1.msra.mxu0 0.0
    %3136 = vmatprep.subr.mxu0 0.0
    %3137 = vmatpush1.msra.mxu0 0.0
    %3138 = vmatprep.subr.mxu0 0.0
    %3139 = vmatpush1.msra.mxu0 0.0
    %3140 = vmatprep.subr.mxu0 0.0
    %3141 = vmatpush1.msra.mxu0 0.0
    %3142 = vmatprep.mubr.f32.mxu0 0.0
    %3143 = vmatmul.mubr.f32.gmra.mrb[0].mxu0 %v3076
    %v3144 = vpop.f32.mrb[0].mxu0
    %v3145 = vadd.f32 %v3074, %v3144
    %v3146 = vpop.f32.mrb[0].mxu0
    %3147 = vdwg.mxu0
    %3149 = vrot.lane.b32.xlu0 %v1945, 5
    %v3150 = vpop.permute.xlu0 %3149
    %v3152 = vsel %vm2484, %v3145, %v3150
    %v3154 = vlaneseq
    %v3155 = vshrl.u32 %v3154, 7
    %v3156 = vsub.s32 0, %v3155
    %v3157 = vrot.slane %v1992, %v3156
    %v3158 = vlaneseq
    %v3159 = vshrl.u32 %v3158, 7
    %v3160 = vsub.s32 1, %v3159
    %v3161 = vrot.slane %v1992, %v3160
    %vm3164 = vcmask 564224
    %v3166 = vsel %vm3164, %v3152, 0
    %v3169 = vsel %vm1934, %v1990, 0
    %v3172 = vsel %vm1934, %v1991, 0
    %3174 = vmatprep.subr.mxu0 %v1975
    %3175 = vmatpush1.msra.mxu0 %v1974
    %3176 = vmatprep.subr.mxu0 %v1977
    %3177 = vmatpush1.msra.mxu0 %v1976
    %3178 = vmatprep.subr.mxu0 %v1979
    %3179 = vmatpush1.msra.mxu0 %v1978
    %3180 = vmatprep.subr.mxu0 %v1981
    %3181 = vmatpush1.msra.mxu0 %v1980
    %3182 = vmatprep.subr.mxu0 %v1983
    %3183 = vmatpush1.msra.mxu0 %v1982
    %3184 = vmatprep.subr.mxu0 %v1985
    %3185 = vmatpush1.msra.mxu0 %v1984
    %3186 = vmatprep.subr.mxu0 %v1987
    %3187 = vmatpush1.msra.mxu0 %v1986
    %3188 = vmatprep.subr.mxu0 %v1989
    %3189 = vmatpush1.msra.mxu0 %v1988
    %3190 = vmatprep.subr.mxu0 %v3172
    %3191 = vmatpush1.msra.mxu0 %v3169
    %3192 = vmatprep.subr.mxu0 0.0
    %3193 = vmatpush1.msra.mxu0 0.0
    %3194 = vmatprep.subr.mxu0 0.0
    %3195 = vmatpush1.msra.mxu0 0.0
    %3196 = vmatprep.subr.mxu0 0.0
    %3197 = vmatpush1.msra.mxu0 0.0
    %3198 = vmatprep.subr.mxu0 0.0
    %3199 = vmatpush1.msra.mxu0 0.0
    %3200 = vmatprep.subr.mxu0 0.0
    %3201 = vmatpush1.msra.mxu0 0.0
    %3202 = vmatprep.subr.mxu0 0.0
    %3203 = vmatpush1.msra.mxu0 0.0
    %3204 = vmatprep.subr.mxu0 0.0
    %3205 = vmatpush1.msra.mxu0 0.0
    %3206 = vmatprep.subr.mxu0 0.0
    %3207 = vmatpush1.msra.mxu0 0.0
    %3208 = vmatprep.subr.mxu0 0.0
    %3209 = vmatpush1.msra.mxu0 0.0
    %3210 = vmatprep.subr.mxu0 0.0
    %3211 = vmatpush1.msra.mxu0 0.0
    %3212 = vmatprep.subr.mxu0 0.0
    %3213 = vmatpush1.msra.mxu0 0.0
    %3214 = vmatprep.subr.mxu0 0.0
    %3215 = vmatpush1.msra.mxu0 0.0
    %3216 = vmatprep.subr.mxu0 0.0
    %3217 = vmatpush1.msra.mxu0 0.0
    %3218 = vmatprep.subr.mxu0 0.0
    %3219 = vmatpush1.msra.mxu0 0.0
    %3220 = vmatprep.subr.mxu0 0.0
    %3221 = vmatpush1.msra.mxu0 0.0
    %3222 = vmatprep.subr.mxu0 0.0
    %3223 = vmatpush1.msra.mxu0 0.0
    %3224 = vmatprep.subr.mxu0 0.0
    %3225 = vmatpush1.msra.mxu0 0.0
    %3226 = vmatprep.subr.mxu0 0.0
    %3227 = vmatpush1.msra.mxu0 0.0
    %3228 = vmatprep.subr.mxu0 0.0
    %3229 = vmatpush1.msra.mxu0 0.0
    %3230 = vmatprep.subr.mxu0 0.0
    %3231 = vmatpush1.msra.mxu0 0.0
    %3232 = vmatprep.subr.mxu0 0.0
    %3233 = vmatpush1.msra.mxu0 0.0
    %3234 = vmatprep.subr.mxu0 0.0
    %3235 = vmatpush1.msra.mxu0 0.0
    %3236 = vmatprep.subr.mxu0 0.0
    %3237 = vmatpush1.msra.mxu0 0.0
    %3238 = vmatprep.mubr.f32.mxu0 0.0
    %3239 = vmatmul.mubr.f32.gmra.mrb[0].mxu0 %v3166
    %v3240 = vpop.f32.mrb[0].mxu0
    %v3241 = vadd.f32 %v3157, %v3240
    %v3242 = vpop.f32.mrb[0].mxu0
    %v3243 = vadd.f32 %v3161, %v3242
    %3244 = vdwg.mxu0
    %v3245 = vxor.u32 %v3241, 2147483648
    %v3246 = vmul.f32 %v3245, 1.442695
    %v3247 = vpow.pop %v3246
    %v3248 = vadd.f32 %v3247, 1.0
    %v3249 = vrcp.pop %v3248
    %v3250 = vmul.f32 1.0, %v3249
    %v3251 = vxor.u32 %v3243, 2147483648
    %v3252 = vmul.f32 %v3251, 1.442695
    %v3253 = vpow.pop %v3252
    %v3254 = vadd.f32 %v3253, 1.0
    %v3255 = vrcp.pop %v3254
    %v3256 = vmul.f32 1.0, %v3255
    %v3257 = vtanh.pop %v3243
    %v3258 = vmul.f32 %v3250, %v2621
    %3260 = vrot.lane.b32.xlu0 %v3257, 64
    %v3261 = vpop.permute.xlu0 %3260
    %v3263 = vmul.f32 %v3250, %v3261
    %3265 = vrot.lane.b32.xlu0 %v3263, 64
    %v3266 = vpop.permute.xlu0 %3265
    %v3268 = vadd.f32 %v3258, %v3266
    %v3269 = vtanh.pop %v3268
    %3271 = vrot.lane.b32.xlu0 %v3269, 64
    %v3272 = vpop.permute.xlu0 %3271
    %v3274 = vmul.f32 %v3256, %v3272
    %v3275 = vsel %vm2181, %v3274, %v3268
    %3276 = vmatprep.subr.mxu0 0.0
    %3277 = vmatpush1.msra.mxu0 %v1947
    %3278 = vmatprep.subr.mxu0 0.0
    %3279 = vmatpush1.msra.mxu0 %v1948
    %3280 = vmatprep.subr.mxu0 0.0
    %3281 = vmatpush1.msra.mxu0 %v1949
    %3282 = vmatprep.subr.mxu0 0.0
    %3283 = vmatpush1.msra.mxu0 %v1950
    %3284 = vmatprep.subr.mxu0 0.0
    %3285 = vmatpush1.msra.mxu0 %v1951
    %3286 = vmatprep.subr.mxu0 0.0
    %3287 = vmatpush1.msra.mxu0 %v1952
    %3288 = vmatprep.subr.mxu0 0.0
    %3289 = vmatpush1.msra.mxu0 %v1953
    %3290 = vmatprep.subr.mxu0 0.0
    %3291 = vmatpush1.msra.mxu0 %v1954
    %3292 = vmatprep.subr.mxu0 0.0
    %3293 = vmatpush1.msra.mxu0 %v1955
    %3294 = vmatprep.subr.mxu0 0.0
    %3295 = vmatpush1.msra.mxu0 %v1956
    %3296 = vmatprep.subr.mxu0 0.0
    %3297 = vmatpush1.msra.mxu0 %v1957
    %3298 = vmatprep.subr.mxu0 0.0
    %3299 = vmatpush1.msra.mxu0 %v1958
    %3300 = vmatprep.subr.mxu0 0.0
    %3301 = vmatpush1.msra.mxu0 %v1959
    %3302 = vmatprep.subr.mxu0 0.0
    %3303 = vmatpush1.msra.mxu0 %v1960
    %3304 = vmatprep.subr.mxu0 0.0
    %3305 = vmatpush1.msra.mxu0 %v1961
    %3306 = vmatprep.subr.mxu0 0.0
    %3307 = vmatpush1.msra.mxu0 %v1962
    %3308 = vmatprep.subr.mxu0 0.0
    %3309 = vmatpush1.msra.mxu0 0.0
    %3310 = vmatprep.subr.mxu0 0.0
    %3311 = vmatpush1.msra.mxu0 0.0
    %3312 = vmatprep.subr.mxu0 0.0
    %3313 = vmatpush1.msra.mxu0 0.0
    %3314 = vmatprep.subr.mxu0 0.0
    %3315 = vmatpush1.msra.mxu0 0.0
    %3316 = vmatprep.subr.mxu0 0.0
    %3317 = vmatpush1.msra.mxu0 0.0
    %3318 = vmatprep.subr.mxu0 0.0
    %3319 = vmatpush1.msra.mxu0 0.0
    %3320 = vmatprep.subr.mxu0 0.0
    %3321 = vmatpush1.msra.mxu0 0.0
    %3322 = vmatprep.subr.mxu0 0.0
    %3323 = vmatpush1.msra.mxu0 0.0
    %3324 = vmatprep.subr.mxu0 0.0
    %3325 = vmatpush1.msra.mxu0 0.0
    %3326 = vmatprep.subr.mxu0 0.0
    %3327 = vmatpush1.msra.mxu0 0.0
    %3328 = vmatprep.subr.mxu0 0.0
    %3329 = vmatpush1.msra.mxu0 0.0
    %3330 = vmatprep.subr.mxu0 0.0
    %3331 = vmatpush1.msra.mxu0 0.0
    %3332 = vmatprep.subr.mxu0 0.0
    %3333 = vmatpush1.msra.mxu0 0.0
    %3334 = vmatprep.subr.mxu0 0.0
    %3335 = vmatpush1.msra.mxu0 0.0
    %3336 = vmatprep.subr.mxu0 0.0
    %3337 = vmatpush1.msra.mxu0 0.0
    %3338 = vmatprep.subr.mxu0 0.0
    %3339 = vmatpush1.msra.mxu0 0.0
    %3340 = vmatprep.mubr.f32.mxu0 0.0
    %3341 = vmatmul.mubr.f32.gmra.mrb[0].mxu0 %v3275
    %v3342 = vpop.f32.mrb[0].mxu0
    %v3343 = vadd.f32 0.0, %v3342
    %v3344 = vpop.f32.mrb[0].mxu0
    %3345 = vdwg.mxu0
    %v3348 = vunpack.c.l.s4 1966171168
    %v3349 = vunpack.c.0.s8 %v3348
    %v3350 = vlaneseq
    %v3351 = vshrl.u32 %v3350, 7
    %v3352 = vsub.s32 %v3349, %v3351
    %v3353 = vrot.slane %v3343, %v3352
    %v3354 = vcombine.high %v3353, %v3353
    %v3356 = vunpack.c.l.s4 1966171168
    %v3357 = vunpack.c.0.s8 %v3356
    %v3358 = vlaneseq
    %v3359 = vshrl.u32 %v3358, 7
    %v3360 = vsub.s32 %v3357, %v3359
    %v3361 = vrot.slane %v3353, %v3360
    %v3363 = vunpack.c.l.s4 1966171168
    %v3364 = vunpack.c.0.s8 %v3363
    %v3365 = vlaneseq
    %v3366 = vshrl.u32 %v3365, 7
    %v3367 = vsub.s32 %v3364, %v3366
    %v3368 = vrot.slane %v3354, %v3367
    %v3369 = vlaneseq
    %v3370 = vshrl.u32 %v3369, 7
    %v3371 = vsub.s32 0, %v3370
    %v3372 = vrot.slane %v3361, %v3371
    %v3373 = vlaneseq
    %v3374 = vshrl.u32 %v3373, 7
    %v3375 = vsub.s32 0, %v3374
    %v3376 = vrot.slane %v3368, %v3375
    %v3377 = vcombine.high %v3372, %v3372
    %v3379 = vunpack.c.l.s4 1983009808
    %v3380 = vunpack.c.0.s8 %v3379
    %v3381 = vlaneseq
    %v3382 = vshrl.u32 %v3381, 7
    %v3383 = vsub.s32 %v3380, %v3382
    %v3384 = vrot.slane %v3372, %v3383
    %v3386 = vunpack.c.l.s4 1983009808
    %v3387 = vunpack.c.0.s8 %v3386
    %v3388 = vlaneseq
    %v3389 = vshrl.u32 %v3388, 7
    %v3390 = vsub.s32 %v3387, %v3389
    %v3391 = vrot.slane %v3377, %v3390
    %v3392 = vcombine.high %v3384, %v3384
    %v3393 = vcombine.high %v3391, %v3391
    %v3394 = vcombine.high %v3376, %v3376
    %v3396 = vunpack.c.l.s4 1983009808
    %v3397 = vunpack.c.0.s8 %v3396
    %v3398 = vlaneseq
    %v3399 = vshrl.u32 %v3398, 7
    %v3400 = vsub.s32 %v3397, %v3399
    %v3401 = vrot.slane %v3376, %v3400
    %v3403 = vunpack.c.l.s4 1983009808
    %v3404 = vunpack.c.0.s8 %v3403
    %v3405 = vlaneseq
    %v3406 = vshrl.u32 %v3405, 7
    %v3407 = vsub.s32 %v3404, %v3406
    %v3408 = vrot.slane %v3394, %v3407
    %v3409 = vcombine.high %v3401, %v3401
    %v3410 = vcombine.high %v3408, %v3408
    %v3419 = vadd.f32 %v2278, %v3384
    %v3420 = vadd.f32 %v2286, %v3392
    %v3421 = vadd.f32 %v2285, %v3391
    %v3422 = vadd.f32 %v2287, %v3393
    %v3423 = vadd.f32 %v2295, %v3384
    %v3424 = vadd.f32 %v2303, %v3401
    %v3425 = vadd.f32 %v2302, %v3409
    %v3426 = vadd.f32 %v2304, %v3408
    %v3427 = vadd.f32 %v2311, %v3410
    %v3428 = vadd.f32 %v2312, %v3401
    %v3429 = vtanh.pop %v3419
    %v3430 = vtanh.pop %v3420
    %v3431 = vtanh.pop %v3421
    %v3432 = vtanh.pop %v3422
    %v3433 = vtanh.pop %v3423
    %v3434 = vtanh.pop %v3424
    %v3435 = vtanh.pop %v3425
    %v3436 = vtanh.pop %v3426
    %v3437 = vtanh.pop %v3427
    %v3438 = vtanh.pop %v3428
    %v3439 = vmul.f32 %v3429, %v2799
    %v3440 = vmul.f32 %v3430, %v2807
    %v3441 = vmul.f32 %v3431, %v2806
    %v3442 = vmul.f32 %v3432, %v2808
    %v3443 = vmul.f32 %v3433, %v2799
    %v3444 = vmul.f32 %v3434, %v2799
    %v3445 = vmul.f32 %v3435, %v2807
    %v3446 = vmul.f32 %v3436, %v2806
    %v3447 = vmul.f32 %v3437, %v2808
    %v3448 = vmul.f32 %v3438, %v2799
    %v3459 = vcombine.low %v3439, %v3440
    %v3460 = vcombine.low %v3441, %v3442
    %v3462 = vunpack.c.l.s4 1983009808
    %v3463 = vunpack.c.0.s8 %v3462
    %v3464 = vlaneseq
    %v3465 = vshrl.u32 %v3464, 7
    %v3466 = vsub.s32 %v3463, %v3465
    %v3467 = vrot.slane %v3459, %v3466
    %v3469 = vunpack.c.l.s4 1983009808
    %v3470 = vunpack.c.0.s8 %v3469
    %v3471 = vlaneseq
    %v3472 = vshrl.u32 %v3471, 7
    %v3473 = vsub.s32 %v3470, %v3472
    %v3474 = vrot.slane %v3460, %v3473
    %v3475 = vcombine.low %v3467, %v3474
    %v3477 = vunpack.c.l.s4 1983009808
    %v3478 = vunpack.c.0.s8 %v3477
    %v3479 = vlaneseq
    %v3480 = vshrl.u32 %v3479, 7
    %v3481 = vsub.s32 %v3478, %v3480
    %v3482 = vrot.slane %v3443, %v3481
    %v3483 = vcombine.low %v3444, %v3445
    %v3484 = vcombine.low %v3446, %v3447
    %v3486 = vunpack.c.l.s4 1983009808
    %v3487 = vunpack.c.0.s8 %v3486
    %v3488 = vlaneseq
    %v3489 = vshrl.u32 %v3488, 7
    %v3490 = vsub.s32 %v3487, %v3489
    %v3491 = vrot.slane %v3483, %v3490
    %v3493 = vunpack.c.l.s4 1983009808
    %v3494 = vunpack.c.0.s8 %v3493
    %v3495 = vlaneseq
    %v3496 = vshrl.u32 %v3495, 7
    %v3497 = vsub.s32 %v3494, %v3496
    %v3498 = vrot.slane %v3484, %v3497
    %v3499 = vcombine.low %v3491, %v3498
    %v3501 = vunpack.c.l.s4 1983009808
    %v3502 = vunpack.c.0.s8 %v3501
    %v3503 = vlaneseq
    %v3504 = vshrl.u32 %v3503, 7
    %v3505 = vsub.s32 %v3502, %v3504
    %v3506 = vrot.slane %v3448, %v3505
    %v3511 = vsel %vm2181, %v3475, 0.0
    %3512 = vadd.xlane.f32.xlu0 %v3511
    %v3513 = vpop.xlane.xlu0 %3512
    %v3514 = vsel %vm167, %v3482, 0.0
    %3515 = vadd.xlane.f32.xlu0 %v3514
    %v3516 = vpop.xlane.xlu0 %3515
    %v3517 = vsel %vm2181, %v3499, 0.0
    %3518 = vadd.xlane.f32.xlu0 %v3517
    %v3519 = vpop.xlane.xlu0 %3518
    %v3520 = vsel %vm167, %v3506, 0.0
    %3521 = vadd.xlane.f32.xlu0 %v3520
    %v3522 = vpop.xlane.xlu0 %3521
    %v3523 = vadd.f32 %v3513, %v2904
    %v3524 = vadd.f32 %v3516, %v2904
    %v3525 = vadd.f32 %v3519, %v2904
    %v3526 = vadd.f32 %v3522, %v2904
    %v3531 = vlaneseq
    %v3532 = vshrl.u32 %v3531, 7
    %v3533 = vsub.s32 %v2915, %v3532
    %v3534 = vrot.slane %v3523, %v3533
    %v3535 = vlaneseq
    %v3536 = vshrl.u32 %v3535, 7
    %v3537 = vsub.s32 %v2920, %v3536
    %v3538 = vrot.slane %v3524, %v3537
    %v3539 = vsel %vm2925, %v3538, %v3534
    %v3540 = vlaneseq
    %v3541 = vshrl.u32 %v3540, 7
    %v3542 = vsub.s32 %v2915, %v3541
    %v3543 = vrot.slane %v3525, %v3542
    %v3544 = vlaneseq
    %v3545 = vshrl.u32 %v3544, 7
    %v3546 = vsub.s32 %v2920, %v3545
    %v3547 = vrot.slane %v3526, %v3546
    %v3548 = vsel %vm2925, %v3547, %v3543
    %v3549 = vsel %vm185, %v3548, %v3539
    %v3551 = vsel %vm2938, %v3549, -inf
    %3552 = vmax.xlane.f32.xlu0 %v3551
    %v3553 = vpop.xlane.xlu0 %3552
    %v3555 = vlaneseq
    %v3556 = vshrl.u32 %v3555, 7
    %v3557 = vsub.s32 0, %v3556
    %v3558 = vrot.slane %v3553, %v3557
    %v3559 = vlaneseq
    %v3560 = vshrl.u32 %v3559, 7
    %v3561 = vsub.s32 1, %v3560
    %v3562 = vrot.slane %v3553, %v3561
    %v3565 = vsub.f32 %v3523, %v3558
    %v3566 = vsub.f32 %v3524, %v3558
    %v3567 = vsub.f32 %v3525, %v3562
    %v3568 = vsub.f32 %v3526, %v3562
    %v3569 = vmul.f32 %v3565, 1.442695
    %v3570 = vpow.pop %v3569
    %v3571 = vmul.f32 %v3566, 1.442695
    %v3572 = vpow.pop %v3571
    %v3573 = vmul.f32 %v3567, 1.442695
    %v3574 = vpow.pop %v3573
    %v3575 = vmul.f32 %v3568, 1.442695
    %v3576 = vpow.pop %v3575
    %3581 = vset.pattern.permute.xlu0 0
    %3582 = vperm.xlu0 %3581, %v3570
    %v3583 = vpop.permute.xlu0 %3582
    %3584 = vset.pattern.permute.xlu0 0
    %3585 = vperm.xlu0 %3584, %v3572
    %v3586 = vpop.permute.xlu0 %3585
    %3587 = vset.pattern.permute.xlu0 0
    %3588 = vperm.xlu0 %3587, %v3574
    %v3589 = vpop.permute.xlu0 %3588
    %3590 = vset.pattern.permute.xlu0 0
    %3591 = vperm.xlu0 %3590, %v3576
    %v3592 = vpop.permute.xlu0 %3591
    %v3593 = vlaneseq
    %v3594 = vshrl.u32 %v3593, 7
    %v3595 = vsub.s32 %v2915, %v3594
    %v3596 = vrot.slane %v3583, %v3595
    %v3597 = vlaneseq
    %v3598 = vshrl.u32 %v3597, 7
    %v3599 = vsub.s32 %v2920, %v3598
    %v3600 = vrot.slane %v3586, %v3599
    %v3601 = vsel %vm2925, %v3600, %v3596
    %v3602 = vlaneseq
    %v3603 = vshrl.u32 %v3602, 7
    %v3604 = vsub.s32 %v2915, %v3603
    %v3605 = vrot.slane %v3589, %v3604
    %v3606 = vlaneseq
    %v3607 = vshrl.u32 %v3606, 7
    %v3608 = vsub.s32 %v2920, %v3607
    %v3609 = vrot.slane %v3592, %v3608
    %v3610 = vsel %vm2925, %v3609, %v3605
    %v3611 = vsel %vm185, %v3610, %v3601
    %v3613 = vsel %vm2938, %v3611, 0.0
    %3614 = vadd.xlane.f32.xlu0 %v3613
    %v3615 = vpop.xlane.xlu0 %3614
    %v3617 = vlaneseq
    %v3618 = vshrl.u32 %v3617, 7
    %v3619 = vsub.s32 0, %v3618
    %v3620 = vrot.slane %v3615, %v3619
    %v3621 = vlaneseq
    %v3622 = vshrl.u32 %v3621, 7
    %v3623 = vsub.s32 1, %v3622
    %v3624 = vrot.slane %v3615, %v3623
    %v3627 = vrcp.pop %v3620
    %v3628 = vmul.f32 %v3570, %v3627
    %v3629 = vmul.f32 %v3572, %v3627
    %v3630 = vrcp.pop %v3624
    %v3631 = vmul.f32 %v3574, %v3630
    %v3632 = vmul.f32 %v3576, %v3630
    %3634 = vset.pattern.permute.xlu0 0
    %3635 = vperm.xlu0 %3634, %v3628
    %v3636 = vpop.permute.xlu0 %3635
    %3639 = vset.pattern.permute.xlu0 0
    %3640 = vperm.xlu0 %3639, %v3629
    %v3641 = vpop.permute.xlu0 %3640
    %3644 = vset.pattern.permute.xlu0 0
    %3645 = vperm.xlu0 %3644, %v3631
    %v3646 = vpop.permute.xlu0 %3645
    %3649 = vset.pattern.permute.xlu0 0
    %3650 = vperm.xlu0 %3649, %v3632
    %v3651 = vpop.permute.xlu0 %3650
    %v3653 = vmul.f32 %v3636, %v1941
    %v3654 = vmul.f32 %v3641, %v1943
    %v3655 = vmul.f32 %v3646, %v1942
    %v3656 = vmul.f32 %v3651, %v1944
    %v3657 = vsel %vm2181, %v3653, 0.0
    %v3658 = vsel %vm167, %v3654, 0.0
    %v3659 = vadd.f32 %v3657, %v3658
    %v3660 = vrot.slane %v3659, 4
    %v3661 = vadd.f32 %v3659, %v3660
    %v3662 = vrot.slane %v3661, 2
    %v3663 = vadd.f32 %v3661, %v3662
    %v3664 = vrot.slane %v3663, 1
    %v3665 = vadd.f32 %v3663, %v3664
    %v3666 = vsel %vm2181, %v3655, 0.0
    %v3667 = vsel %vm167, %v3656, 0.0
    %v3668 = vadd.f32 %v3666, %v3667
    %v3669 = vrot.slane %v3668, 4
    %v3670 = vadd.f32 %v3668, %v3669
    %v3671 = vrot.slane %v3670, 2
    %v3672 = vadd.f32 %v3670, %v3671
    %v3673 = vrot.slane %v3672, 1
    %v3674 = vadd.f32 %v3672, %v3673
    %v3677 = vsel %vm185, %v3674, %v3665
    %v3678 = vlaneseq
    %v3679 = vshrl.u32 %v3678, 7
    %v3680 = vsub.s32 1, %v3679
    %v3681 = vrot.slane %v2584, %v3680
    %v3682 = vlaneseq
    %v3683 = vshrl.u32 %v3682, 7
    %v3684 = vsub.s32 1, %v3683
    %v3685 = vrot.slane %v2609, %v3684
    %v3686 = vsel %vm185, %v3685, %v3681
    %v3688 = vsel %vm2181, %v3677, 0
    %3690 = vmatprep.subr.mxu0 0.0
    %3691 = vmatpush1.msra.mxu0 %v1993
    %3692 = vmatprep.subr.mxu0 0.0
    %3693 = vmatpush1.msra.mxu0 %v1994
    %3694 = vmatprep.subr.mxu0 0.0
    %3695 = vmatpush1.msra.mxu0 %v1995
    %3696 = vmatprep.subr.mxu0 0.0
    %3697 = vmatpush1.msra.mxu0 %v1996
    %3698 = vmatprep.subr.mxu0 0.0
    %3699 = vmatpush1.msra.mxu0 %v1997
    %3700 = vmatprep.subr.mxu0 0.0
    %3701 = vmatpush1.msra.mxu0 %v1998
    %3702 = vmatprep.subr.mxu0 0.0
    %3703 = vmatpush1.msra.mxu0 %v1999
    %3704 = vmatprep.subr.mxu0 0.0
    %3705 = vmatpush1.msra.mxu0 %v2000
    %3706 = vmatprep.subr.mxu0 0.0
    %3707 = vmatpush1.msra.mxu0 0.0
    %3708 = vmatprep.subr.mxu0 0.0
    %3709 = vmatpush1.msra.mxu0 0.0
    %3710 = vmatprep.subr.mxu0 0.0
    %3711 = vmatpush1.msra.mxu0 0.0
    %3712 = vmatprep.subr.mxu0 0.0
    %3713 = vmatpush1.msra.mxu0 0.0
    %3714 = vmatprep.subr.mxu0 0.0
    %3715 = vmatpush1.msra.mxu0 0.0
    %3716 = vmatprep.subr.mxu0 0.0
    %3717 = vmatpush1.msra.mxu0 0.0
    %3718 = vmatprep.subr.mxu0 0.0
    %3719 = vmatpush1.msra.mxu0 0.0
    %3720 = vmatprep.subr.mxu0 0.0
    %3721 = vmatpush1.msra.mxu0 0.0
    %3722 = vmatprep.subr.mxu0 0.0
    %3723 = vmatpush1.msra.mxu0 0.0
    %3724 = vmatprep.subr.mxu0 0.0
    %3725 = vmatpush1.msra.mxu0 0.0
    %3726 = vmatprep.subr.mxu0 0.0
    %3727 = vmatpush1.msra.mxu0 0.0
    %3728 = vmatprep.subr.mxu0 0.0
    %3729 = vmatpush1.msra.mxu0 0.0
    %3730 = vmatprep.subr.mxu0 0.0
    %3731 = vmatpush1.msra.mxu0 0.0
    %3732 = vmatprep.subr.mxu0 0.0
    %3733 = vmatpush1.msra.mxu0 0.0
    %3734 = vmatprep.subr.mxu0 0.0
    %3735 = vmatpush1.msra.mxu0 0.0
    %3736 = vmatprep.subr.mxu0 0.0
    %3737 = vmatpush1.msra.mxu0 0.0
    %3738 = vmatprep.subr.mxu0 0.0
    %3739 = vmatpush1.msra.mxu0 0.0
    %3740 = vmatprep.subr.mxu0 0.0
    %3741 = vmatpush1.msra.mxu0 0.0
    %3742 = vmatprep.subr.mxu0 0.0
    %3743 = vmatpush1.msra.mxu0 0.0
    %3744 = vmatprep.subr.mxu0 0.0
    %3745 = vmatpush1.msra.mxu0 0.0
    %3746 = vmatprep.subr.mxu0 0.0
    %3747 = vmatpush1.msra.mxu0 0.0
    %3748 = vmatprep.subr.mxu0 0.0
    %3749 = vmatpush1.msra.mxu0 0.0
    %3750 = vmatprep.subr.mxu0 0.0
    %3751 = vmatpush1.msra.mxu0 0.0
    %3752 = vmatprep.subr.mxu0 0.0
    %3753 = vmatpush1.msra.mxu0 0.0
    %3754 = vmatprep.mubr.f32.mxu0 0.0
    %3755 = vmatmul.mubr.f32.gmra.mrb[0].mxu0 %v3688
    %v3756 = vpop.f32.mrb[0].mxu0
    %v3757 = vadd.f32 %v3686, %v3756
    %v3758 = vpop.f32.mrb[0].mxu0
    %3759 = vdwg.mxu0
    %3761 = vrot.lane.b32.xlu0 %v3274, 5
    %v3762 = vpop.permute.xlu0 %3761
    %v3764 = vsel %vm2484, %v3757, %v3762
    %v3766 = vsel %vm3164, %v3764, 0
    %3768 = vmatprep.subr.mxu0 %v1975
    %3769 = vmatpush1.msra.mxu0 %v1974
    %3770 = vmatprep.subr.mxu0 %v1977
    %3771 = vmatpush1.msra.mxu0 %v1976
    %3772 = vmatprep.subr.mxu0 %v1979
    %3773 = vmatpush1.msra.mxu0 %v1978
    %3774 = vmatprep.subr.mxu0 %v1981
    %3775 = vmatpush1.msra.mxu0 %v1980
    %3776 = vmatprep.subr.mxu0 %v1983
    %3777 = vmatpush1.msra.mxu0 %v1982
    %3778 = vmatprep.subr.mxu0 %v1985
    %3779 = vmatpush1.msra.mxu0 %v1984
    %3780 = vmatprep.subr.mxu0 %v1987
    %3781 = vmatpush1.msra.mxu0 %v1986
    %3782 = vmatprep.subr.mxu0 %v1989
    %3783 = vmatpush1.msra.mxu0 %v1988
    %3784 = vmatprep.subr.mxu0 %v3172
    %3785 = vmatpush1.msra.mxu0 %v3169
    %3786 = vmatprep.subr.mxu0 0.0
    %3787 = vmatpush1.msra.mxu0 0.0
    %3788 = vmatprep.subr.mxu0 0.0
    %3789 = vmatpush1.msra.mxu0 0.0
    %3790 = vmatprep.subr.mxu0 0.0
    %3791 = vmatpush1.msra.mxu0 0.0
    %3792 = vmatprep.subr.mxu0 0.0
    %3793 = vmatpush1.msra.mxu0 0.0
    %3794 = vmatprep.subr.mxu0 0.0
    %3795 = vmatpush1.msra.mxu0 0.0
    %3796 = vmatprep.subr.mxu0 0.0
    %3797 = vmatpush1.msra.mxu0 0.0
    %3798 = vmatprep.subr.mxu0 0.0
    %3799 = vmatpush1.msra.mxu0 0.0
    %3800 = vmatprep.subr.mxu0 0.0
    %3801 = vmatpush1.msra.mxu0 0.0
    %3802 = vmatprep.subr.mxu0 0.0
    %3803 = vmatpush1.msra.mxu0 0.0
    %3804 = vmatprep.subr.mxu0 0.0
    %3805 = vmatpush1.msra.mxu0 0.0
    %3806 = vmatprep.subr.mxu0 0.0
    %3807 = vmatpush1.msra.mxu0 0.0
    %3808 = vmatprep.subr.mxu0 0.0
    %3809 = vmatpush1.msra.mxu0 0.0
    %3810 = vmatprep.subr.mxu0 0.0
    %3811 = vmatpush1.msra.mxu0 0.0
    %3812 = vmatprep.subr.mxu0 0.0
    %3813 = vmatpush1.msra.mxu0 0.0
    %3814 = vmatprep.subr.mxu0 0.0
    %3815 = vmatpush1.msra.mxu0 0.0
    %3816 = vmatprep.subr.mxu0 0.0
    %3817 = vmatpush1.msra.mxu0 0.0
    %3818 = vmatprep.subr.mxu0 0.0
    %3819 = vmatpush1.msra.mxu0 0.0
    %3820 = vmatprep.subr.mxu0 0.0
    %3821 = vmatpush1.msra.mxu0 0.0
    %3822 = vmatprep.subr.mxu0 0.0
    %3823 = vmatpush1.msra.mxu0 0.0
    %3824 = vmatprep.subr.mxu0 0.0
    %3825 = vmatpush1.msra.mxu0 0.0
    %3826 = vmatprep.subr.mxu0 0.0
    %3827 = vmatpush1.msra.mxu0 0.0
    %3828 = vmatprep.subr.mxu0 0.0
    %3829 = vmatpush1.msra.mxu0 0.0
    %3830 = vmatprep.subr.mxu0 0.0
    %3831 = vmatpush1.msra.mxu0 0.0
    %3832 = vmatprep.mubr.f32.mxu0 0.0
    %3833 = vmatmul.mubr.f32.gmra.mrb[0].mxu0 %v3766
    %v3834 = vpop.f32.mrb[0].mxu0
    %v3835 = vadd.f32 %v3157, %v3834
    %v3836 = vpop.f32.mrb[0].mxu0
    %v3837 = vadd.f32 %v3161, %v3836
    %3838 = vdwg.mxu0
    %v3839 = vxor.u32 %v3835, 2147483648
    %v3840 = vmul.f32 %v3839, 1.442695
    %v3841 = vpow.pop %v3840
    %v3842 = vadd.f32 %v3841, 1.0
    %v3843 = vrcp.pop %v3842
    %v3844 = vmul.f32 1.0, %v3843
    %v3845 = vxor.u32 %v3837, 2147483648
    %v3846 = vmul.f32 %v3845, 1.442695
    %v3847 = vpow.pop %v3846
    %v3848 = vadd.f32 %v3847, 1.0
    %v3849 = vrcp.pop %v3848
    %v3850 = vmul.f32 1.0, %v3849
    %v3851 = vtanh.pop %v3837
    %v3852 = vmul.f32 %v3844, %v3268
    %3854 = vrot.lane.b32.xlu0 %v3851, 64
    %v3855 = vpop.permute.xlu0 %3854
    %v3857 = vmul.f32 %v3844, %v3855
    %3859 = vrot.lane.b32.xlu0 %v3857, 64
    %v3860 = vpop.permute.xlu0 %3859
    %v3862 = vadd.f32 %v3852, %v3860
    %v3863 = vtanh.pop %v3862
    %3865 = vrot.lane.b32.xlu0 %v3863, 64
    %v3866 = vpop.permute.xlu0 %3865
    %v3868 = vmul.f32 %v3850, %v3866
    %v3869 = vsel %vm2181, %v3868, %v3862
    %3870 = vmatprep.subr.mxu0 0.0
    %3871 = vmatpush1.msra.mxu0 %v1947
    %3872 = vmatprep.subr.mxu0 0.0
    %3873 = vmatpush1.msra.mxu0 %v1948
    %3874 = vmatprep.subr.mxu0 0.0
    %3875 = vmatpush1.msra.mxu0 %v1949
    %3876 = vmatprep.subr.mxu0 0.0
    %3877 = vmatpush1.msra.mxu0 %v1950
    %3878 = vmatprep.subr.mxu0 0.0
    %3879 = vmatpush1.msra.mxu0 %v1951
    %3880 = vmatprep.subr.mxu0 0.0
    %3881 = vmatpush1.msra.mxu0 %v1952
    %3882 = vmatprep.subr.mxu0 0.0
    %3883 = vmatpush1.msra.mxu0 %v1953
    %3884 = vmatprep.subr.mxu0 0.0
    %3885 = vmatpush1.msra.mxu0 %v1954
    %3886 = vmatprep.subr.mxu0 0.0
    %3887 = vmatpush1.msra.mxu0 %v1955
    %3888 = vmatprep.subr.mxu0 0.0
    %3889 = vmatpush1.msra.mxu0 %v1956
    %3890 = vmatprep.subr.mxu0 0.0
    %3891 = vmatpush1.msra.mxu0 %v1957
    %3892 = vmatprep.subr.mxu0 0.0
    %3893 = vmatpush1.msra.mxu0 %v1958
    %3894 = vmatprep.subr.mxu0 0.0
    %3895 = vmatpush1.msra.mxu0 %v1959
    %3896 = vmatprep.subr.mxu0 0.0
    %3897 = vmatpush1.msra.mxu0 %v1960
    %3898 = vmatprep.subr.mxu0 0.0
    %3899 = vmatpush1.msra.mxu0 %v1961
    %3900 = vmatprep.subr.mxu0 0.0
    %3901 = vmatpush1.msra.mxu0 %v1962
    %3902 = vmatprep.subr.mxu0 0.0
    %3903 = vmatpush1.msra.mxu0 0.0
    %3904 = vmatprep.subr.mxu0 0.0
    %3905 = vmatpush1.msra.mxu0 0.0
    %3906 = vmatprep.subr.mxu0 0.0
    %3907 = vmatpush1.msra.mxu0 0.0
    %3908 = vmatprep.subr.mxu0 0.0
    %3909 = vmatpush1.msra.mxu0 0.0
    %3910 = vmatprep.subr.mxu0 0.0
    %3911 = vmatpush1.msra.mxu0 0.0
    %3912 = vmatprep.subr.mxu0 0.0
    %3913 = vmatpush1.msra.mxu0 0.0
    %3914 = vmatprep.subr.mxu0 0.0
    %3915 = vmatpush1.msra.mxu0 0.0
    %3916 = vmatprep.subr.mxu0 0.0
    %3917 = vmatpush1.msra.mxu0 0.0
    %3918 = vmatprep.subr.mxu0 0.0
    %3919 = vmatpush1.msra.mxu0 0.0
    %3920 = vmatprep.subr.mxu0 0.0
    %3921 = vmatpush1.msra.mxu0 0.0
    %3922 = vmatprep.subr.mxu0 0.0
    %3923 = vmatpush1.msra.mxu0 0.0
    %3924 = vmatprep.subr.mxu0 0.0
    %3925 = vmatpush1.msra.mxu0 0.0
    %3926 = vmatprep.subr.mxu0 0.0
    %3927 = vmatpush1.msra.mxu0 0.0
    %3928 = vmatprep.subr.mxu0 0.0
    %3929 = vmatpush1.msra.mxu0 0.0
    %3930 = vmatprep.subr.mxu0 0.0
    %3931 = vmatpush1.msra.mxu0 0.0
    %3932 = vmatprep.subr.mxu0 0.0
    %3933 = vmatpush1.msra.mxu0 0.0
    %3934 = vmatprep.mubr.f32.mxu0 0.0
    %3935 = vmatmul.mubr.f32.gmra.mrb[0].mxu0 %v3869
    %v3936 = vpop.f32.mrb[0].mxu0
    %v3937 = vadd.f32 0.0, %v3936
    %v3938 = vpop.f32.mrb[0].mxu0
    %3939 = vdwg.mxu0
    %v3942 = vunpack.c.l.s4 1966171168
    %v3943 = vunpack.c.0.s8 %v3942
    %v3944 = vlaneseq
    %v3945 = vshrl.u32 %v3944, 7
    %v3946 = vsub.s32 %v3943, %v3945
    %v3947 = vrot.slane %v3937, %v3946
    %v3948 = vcombine.high %v3947, %v3947
    %v3950 = vunpack.c.l.s4 1966171168
    %v3951 = vunpack.c.0.s8 %v3950
    %v3952 = vlaneseq
    %v3953 = vshrl.u32 %v3952, 7
    %v3954 = vsub.s32 %v3951, %v3953
    %v3955 = vrot.slane %v3947, %v3954
    %v3957 = vunpack.c.l.s4 1966171168
    %v3958 = vunpack.c.0.s8 %v3957
    %v3959 = vlaneseq
    %v3960 = vshrl.u32 %v3959, 7
    %v3961 = vsub.s32 %v3958, %v3960
    %v3962 = vrot.slane %v3948, %v3961
    %v3963 = vlaneseq
    %v3964 = vshrl.u32 %v3963, 7
    %v3965 = vsub.s32 0, %v3964
    %v3966 = vrot.slane %v3955, %v3965
    %v3967 = vlaneseq
    %v3968 = vshrl.u32 %v3967, 7
    %v3969 = vsub.s32 0, %v3968
    %v3970 = vrot.slane %v3962, %v3969
    %v3971 = vcombine.high %v3966, %v3966
    %v3973 = vunpack.c.l.s4 1983009808
    %v3974 = vunpack.c.0.s8 %v3973
    %v3975 = vlaneseq
    %v3976 = vshrl.u32 %v3975, 7
    %v3977 = vsub.s32 %v3974, %v3976
    %v3978 = vrot.slane %v3966, %v3977
    %v3980 = vunpack.c.l.s4 1983009808
    %v3981 = vunpack.c.0.s8 %v3980
    %v3982 = vlaneseq
    %v3983 = vshrl.u32 %v3982, 7
    %v3984 = vsub.s32 %v3981, %v3983
    %v3985 = vrot.slane %v3971, %v3984
    %v3986 = vcombine.high %v3978, %v3978
    %v3987 = vcombine.high %v3985, %v3985
    %v3988 = vcombine.high %v3970, %v3970
    %v3990 = vunpack.c.l.s4 1983009808
    %v3991 = vunpack.c.0.s8 %v3990
    %v3992 = vlaneseq
    %v3993 = vshrl.u32 %v3992, 7
    %v3994 = vsub.s32 %v3991, %v3993
    %v3995 = vrot.slane %v3970, %v3994
    %v3997 = vunpack.c.l.s4 1983009808
    %v3998 = vunpack.c.0.s8 %v3997
    %v3999 = vlaneseq
    %v4000 = vshrl.u32 %v3999, 7
    %v4001 = vsub.s32 %v3998, %v4000
    %v4002 = vrot.slane %v3988, %v4001
    %v4003 = vcombine.high %v3995, %v3995
    %v4004 = vcombine.high %v4002, %v4002
    %v4013 = vadd.f32 %v2278, %v3978
    %v4014 = vadd.f32 %v2286, %v3986
    %v4015 = vadd.f32 %v2285, %v3985
    %v4016 = vadd.f32 %v2287, %v3987
    %v4017 = vadd.f32 %v2295, %v3978
    %v4018 = vadd.f32 %v2303, %v3995
    %v4019 = vadd.f32 %v2302, %v4003
    %v4020 = vadd.f32 %v2304, %v4002
    %v4021 = vadd.f32 %v2311, %v4004
    %v4022 = vadd.f32 %v2312, %v3995
    %v4023 = vtanh.pop %v4013
    %v4024 = vtanh.pop %v4014
    %v4025 = vtanh.pop %v4015
    %v4026 = vtanh.pop %v4016
    %v4027 = vtanh.pop %v4017
    %v4028 = vtanh.pop %v4018
    %v4029 = vtanh.pop %v4019
    %v4030 = vtanh.pop %v4020
    %v4031 = vtanh.pop %v4021
    %v4032 = vtanh.pop %v4022
    %v4033 = vmul.f32 %v4023, %v2799
    %v4034 = vmul.f32 %v4024, %v2807
    %v4035 = vmul.f32 %v4025, %v2806
    %v4036 = vmul.f32 %v4026, %v2808
    %v4037 = vmul.f32 %v4027, %v2799
    %v4038 = vmul.f32 %v4028, %v2799
    %v4039 = vmul.f32 %v4029, %v2807
    %v4040 = vmul.f32 %v4030, %v2806
    %v4041 = vmul.f32 %v4031, %v2808
    %v4042 = vmul.f32 %v4032, %v2799
    %v4053 = vcombine.low %v4033, %v4034
    %v4054 = vcombine.low %v4035, %v4036
    %v4056 = vunpack.c.l.s4 1983009808
    %v4057 = vunpack.c.0.s8 %v4056
    %v4058 = vlaneseq
    %v4059 = vshrl.u32 %v4058, 7
    %v4060 = vsub.s32 %v4057, %v4059
    %v4061 = vrot.slane %v4053, %v4060
    %v4063 = vunpack.c.l.s4 1983009808
    %v4064 = vunpack.c.0.s8 %v4063
    %v4065 = vlaneseq
    %v4066 = vshrl.u32 %v4065, 7
    %v4067 = vsub.s32 %v4064, %v4066
    %v4068 = vrot.slane %v4054, %v4067
    %v4069 = vcombine.low %v4061, %v4068
    %v4071 = vunpack.c.l.s4 1983009808
    %v4072 = vunpack.c.0.s8 %v4071
    %v4073 = vlaneseq
    %v4074 = vshrl.u32 %v4073, 7
    %v4075 = vsub.s32 %v4072, %v4074
    %v4076 = vrot.slane %v4037, %v4075
    %v4077 = vcombine.low %v4038, %v4039
    %v4078 = vcombine.low %v4040, %v4041
    %v4080 = vunpack.c.l.s4 1983009808
    %v4081 = vunpack.c.0.s8 %v4080
    %v4082 = vlaneseq
    %v4083 = vshrl.u32 %v4082, 7
    %v4084 = vsub.s32 %v4081, %v4083
    %v4085 = vrot.slane %v4077, %v4084
    %v4087 = vunpack.c.l.s4 1983009808
    %v4088 = vunpack.c.0.s8 %v4087
    %v4089 = vlaneseq
    %v4090 = vshrl.u32 %v4089, 7
    %v4091 = vsub.s32 %v4088, %v4090
    %v4092 = vrot.slane %v4078, %v4091
    %v4093 = vcombine.low %v4085, %v4092
    %v4095 = vunpack.c.l.s4 1983009808
    %v4096 = vunpack.c.0.s8 %v4095
    %v4097 = vlaneseq
    %v4098 = vshrl.u32 %v4097, 7
    %v4099 = vsub.s32 %v4096, %v4098
    %v4100 = vrot.slane %v4042, %v4099
    %v4105 = vsel %vm2181, %v4069, 0.0
    %4106 = vadd.xlane.f32.xlu0 %v4105
    %v4107 = vpop.xlane.xlu0 %4106
    %v4108 = vsel %vm167, %v4076, 0.0
    %4109 = vadd.xlane.f32.xlu0 %v4108
    %v4110 = vpop.xlane.xlu0 %4109
    %v4111 = vsel %vm2181, %v4093, 0.0
    %4112 = vadd.xlane.f32.xlu0 %v4111
    %v4113 = vpop.xlane.xlu0 %4112
    %v4114 = vsel %vm167, %v4100, 0.0
    %4115 = vadd.xlane.f32.xlu0 %v4114
    %v4116 = vpop.xlane.xlu0 %4115
    %v4117 = vadd.f32 %v4107, %v2904
    %v4118 = vadd.f32 %v4110, %v2904
    %v4119 = vadd.f32 %v4113, %v2904
    %v4120 = vadd.f32 %v4116, %v2904
    %v4125 = vlaneseq
    %v4126 = vshrl.u32 %v4125, 7
    %v4127 = vsub.s32 %v2915, %v4126
    %v4128 = vrot.slane %v4117, %v4127
    %v4129 = vlaneseq
    %v4130 = vshrl.u32 %v4129, 7
    %v4131 = vsub.s32 %v2920, %v4130
    %v4132 = vrot.slane %v4118, %v4131
    %v4133 = vsel %vm2925, %v4132, %v4128
    %v4134 = vlaneseq
    %v4135 = vshrl.u32 %v4134, 7
    %v4136 = vsub.s32 %v2915, %v4135
    %v4137 = vrot.slane %v4119, %v4136
    %v4138 = vlaneseq
    %v4139 = vshrl.u32 %v4138, 7
    %v4140 = vsub.s32 %v2920, %v4139
    %v4141 = vrot.slane %v4120, %v4140
    %v4142 = vsel %vm2925, %v4141, %v4137
    %v4143 = vsel %vm185, %v4142, %v4133
    %v4145 = vsel %vm2938, %v4143, -inf
    %4146 = vmax.xlane.f32.xlu0 %v4145
    %v4147 = vpop.xlane.xlu0 %4146
    %v4149 = vlaneseq
    %v4150 = vshrl.u32 %v4149, 7
    %v4151 = vsub.s32 0, %v4150
    %v4152 = vrot.slane %v4147, %v4151
    %v4153 = vlaneseq
    %v4154 = vshrl.u32 %v4153, 7
    %v4155 = vsub.s32 1, %v4154
    %v4156 = vrot.slane %v4147, %v4155
    %v4159 = vsub.f32 %v4117, %v4152
    %v4160 = vsub.f32 %v4118, %v4152
    %v4161 = vsub.f32 %v4119, %v4156
    %v4162 = vsub.f32 %v4120, %v4156
    %v4163 = vmul.f32 %v4159, 1.442695
    %v4164 = vpow.pop %v4163
    %v4165 = vmul.f32 %v4160, 1.442695
    %v4166 = vpow.pop %v4165
    %v4167 = vmul.f32 %v4161, 1.442695
    %v4168 = vpow.pop %v4167
    %v4169 = vmul.f32 %v4162, 1.442695
    %v4170 = vpow.pop %v4169
    %4175 = vset.pattern.permute.xlu0 0
    %4176 = vperm.xlu0 %4175, %v4164
    %v4177 = vpop.permute.xlu0 %4176
    %4178 = vset.pattern.permute.xlu0 0
    %4179 = vperm.xlu0 %4178, %v4166
    %v4180 = vpop.permute.xlu0 %4179
    %4181 = vset.pattern.permute.xlu0 0
    %4182 = vperm.xlu0 %4181, %v4168
    %v4183 = vpop.permute.xlu0 %4182
    %4184 = vset.pattern.permute.xlu0 0
    %4185 = vperm.xlu0 %4184, %v4170
    %v4186 = vpop.permute.xlu0 %4185
    %v4187 = vlaneseq
    %v4188 = vshrl.u32 %v4187, 7
    %v4189 = vsub.s32 %v2915, %v4188
    %v4190 = vrot.slane %v4177, %v4189
    %v4191 = vlaneseq
    %v4192 = vshrl.u32 %v4191, 7
    %v4193 = vsub.s32 %v2920, %v4192
    %v4194 = vrot.slane %v4180, %v4193
    %v4195 = vsel %vm2925, %v4194, %v4190
    %v4196 = vlaneseq
    %v4197 = vshrl.u32 %v4196, 7
    %v4198 = vsub.s32 %v2915, %v4197
    %v4199 = vrot.slane %v4183, %v4198
    %v4200 = vlaneseq
    %v4201 = vshrl.u32 %v4200, 7
    %v4202 = vsub.s32 %v2920, %v4201
    %v4203 = vrot.slane %v4186, %v4202
    %v4204 = vsel %vm2925, %v4203, %v4199
    %v4205 = vsel %vm185, %v4204, %v4195
    %v4207 = vsel %vm2938, %v4205, 0.0
    %4208 = vadd.xlane.f32.xlu0 %v4207
    %v4209 = vpop.xlane.xlu0 %4208
    %v4211 = vlaneseq
    %v4212 = vshrl.u32 %v4211, 7
    %v4213 = vsub.s32 0, %v4212
    %v4214 = vrot.slane %v4209, %v4213
    %v4215 = vlaneseq
    %v4216 = vshrl.u32 %v4215, 7
    %v4217 = vsub.s32 1, %v4216
    %v4218 = vrot.slane %v4209, %v4217
    %v4221 = vrcp.pop %v4214
    %v4222 = vmul.f32 %v4164, %v4221
    %v4223 = vmul.f32 %v4166, %v4221
    %v4224 = vrcp.pop %v4218
    %v4225 = vmul.f32 %v4168, %v4224
    %v4226 = vmul.f32 %v4170, %v4224
    %4228 = vset.pattern.permute.xlu0 0
    %4229 = vperm.xlu0 %4228, %v4222
    %v4230 = vpop.permute.xlu0 %4229
    %4233 = vset.pattern.permute.xlu0 0
    %4234 = vperm.xlu0 %4233, %v4223
    %v4235 = vpop.permute.xlu0 %4234
    %4238 = vset.pattern.permute.xlu0 0
    %4239 = vperm.xlu0 %4238, %v4225
    %v4240 = vpop.permute.xlu0 %4239
    %4243 = vset.pattern.permute.xlu0 0
    %4244 = vperm.xlu0 %4243, %v4226
    %v4245 = vpop.permute.xlu0 %4244
    %v4247 = vmul.f32 %v4230, %v1941
    %v4248 = vmul.f32 %v4235, %v1943
    %v4249 = vmul.f32 %v4240, %v1942
    %v4250 = vmul.f32 %v4245, %v1944
    %v4251 = vsel %vm2181, %v4247, 0.0
    %v4252 = vsel %vm167, %v4248, 0.0
    %v4253 = vadd.f32 %v4251, %v4252
    %v4254 = vrot.slane %v4253, 4
    %v4255 = vadd.f32 %v4253, %v4254
    %v4256 = vrot.slane %v4255, 2
    %v4257 = vadd.f32 %v4255, %v4256
    %v4258 = vrot.slane %v4257, 1
    %v4259 = vadd.f32 %v4257, %v4258
    %v4260 = vsel %vm2181, %v4249, 0.0
    %v4261 = vsel %vm167, %v4250, 0.0
    %v4262 = vadd.f32 %v4260, %v4261
    %v4263 = vrot.slane %v4262, 4
    %v4264 = vadd.f32 %v4262, %v4263
    %v4265 = vrot.slane %v4264, 2
    %v4266 = vadd.f32 %v4264, %v4265
    %v4267 = vrot.slane %v4266, 1
    %v4268 = vadd.f32 %v4266, %v4267
    %v4271 = vsel %vm185, %v4268, %v4259
    %v4272 = vlaneseq
    %v4273 = vshrl.u32 %v4272, 7
    %v4274 = vsub.s32 0, %v4273
    %v4275 = vrot.slane %v2592, %v4274
    %v4276 = vlaneseq
    %v4277 = vshrl.u32 %v4276, 7
    %v4278 = vsub.s32 0, %v4277
    %v4279 = vrot.slane %v2608, %v4278
    %v4280 = vsel %vm185, %v4279, %v4275
    %v4282 = vsel %vm2181, %v4271, 0
    %4284 = vmatprep.subr.mxu0 0.0
    %4285 = vmatpush1.msra.mxu0 %v1993
    %4286 = vmatprep.subr.mxu0 0.0
    %4287 = vmatpush1.msra.mxu0 %v1994
    %4288 = vmatprep.subr.mxu0 0.0
    %4289 = vmatpush1.msra.mxu0 %v1995
    %4290 = vmatprep.subr.mxu0 0.0
    %4291 = vmatpush1.msra.mxu0 %v1996
    %4292 = vmatprep.subr.mxu0 0.0
    %4293 = vmatpush1.msra.mxu0 %v1997
    %4294 = vmatprep.subr.mxu0 0.0
    %4295 = vmatpush1.msra.mxu0 %v1998
    %4296 = vmatprep.subr.mxu0 0.0
    %4297 = vmatpush1.msra.mxu0 %v1999
    %4298 = vmatprep.subr.mxu0 0.0
    %4299 = vmatpush1.msra.mxu0 %v2000
    %4300 = vmatprep.subr.mxu0 0.0
    %4301 = vmatpush1.msra.mxu0 0.0
    %4302 = vmatprep.subr.mxu0 0.0
    %4303 = vmatpush1.msra.mxu0 0.0
    %4304 = vmatprep.subr.mxu0 0.0
    %4305 = vmatpush1.msra.mxu0 0.0
    %4306 = vmatprep.subr.mxu0 0.0
    %4307 = vmatpush1.msra.mxu0 0.0
    %4308 = vmatprep.subr.mxu0 0.0
    %4309 = vmatpush1.msra.mxu0 0.0
    %4310 = vmatprep.subr.mxu0 0.0
    %4311 = vmatpush1.msra.mxu0 0.0
    %4312 = vmatprep.subr.mxu0 0.0
    %4313 = vmatpush1.msra.mxu0 0.0
    %4314 = vmatprep.subr.mxu0 0.0
    %4315 = vmatpush1.msra.mxu0 0.0
    %4316 = vmatprep.subr.mxu0 0.0
    %4317 = vmatpush1.msra.mxu0 0.0
    %4318 = vmatprep.subr.mxu0 0.0
    %4319 = vmatpush1.msra.mxu0 0.0
    %4320 = vmatprep.subr.mxu0 0.0
    %4321 = vmatpush1.msra.mxu0 0.0
    %4322 = vmatprep.subr.mxu0 0.0
    %4323 = vmatpush1.msra.mxu0 0.0
    %4324 = vmatprep.subr.mxu0 0.0
    %4325 = vmatpush1.msra.mxu0 0.0
    %4326 = vmatprep.subr.mxu0 0.0
    %4327 = vmatpush1.msra.mxu0 0.0
    %4328 = vmatprep.subr.mxu0 0.0
    %4329 = vmatpush1.msra.mxu0 0.0
    %4330 = vmatprep.subr.mxu0 0.0
    %4331 = vmatpush1.msra.mxu0 0.0
    %4332 = vmatprep.subr.mxu0 0.0
    %4333 = vmatpush1.msra.mxu0 0.0
    %4334 = vmatprep.subr.mxu0 0.0
    %4335 = vmatpush1.msra.mxu0 0.0
    %4336 = vmatprep.subr.mxu0 0.0
    %4337 = vmatpush1.msra.mxu0 0.0
    %4338 = vmatprep.subr.mxu0 0.0
    %4339 = vmatpush1.msra.mxu0 0.0
    %4340 = vmatprep.subr.mxu0 0.0
    %4341 = vmatpush1.msra.mxu0 0.0
    %4342 = vmatprep.subr.mxu0 0.0
    %4343 = vmatpush1.msra.mxu0 0.0
    %4344 = vmatprep.subr.mxu0 0.0
    %4345 = vmatpush1.msra.mxu0 0.0
    %4346 = vmatprep.subr.mxu0 0.0
    %4347 = vmatpush1.msra.mxu0 0.0
    %4348 = vmatprep.mubr.f32.mxu0 0.0
    %4349 = vmatmul.mubr.f32.gmra.mrb[0].mxu0 %v4282
    %v4350 = vpop.f32.mrb[0].mxu0
    %v4351 = vadd.f32 %v4280, %v4350
    %v4352 = vpop.f32.mrb[0].mxu0
    %4353 = vdwg.mxu0
    %4355 = vrot.lane.b32.xlu0 %v3868, 5
    %v4356 = vpop.permute.xlu0 %4355
    %v4358 = vsel %vm2484, %v4351, %v4356
    %v4360 = vsel %vm3164, %v4358, 0
    %4362 = vmatprep.subr.mxu0 %v1975
    %4363 = vmatpush1.msra.mxu0 %v1974
    %4364 = vmatprep.subr.mxu0 %v1977
    %4365 = vmatpush1.msra.mxu0 %v1976
    %4366 = vmatprep.subr.mxu0 %v1979
    %4367 = vmatpush1.msra.mxu0 %v1978
    %4368 = vmatprep.subr.mxu0 %v1981
    %4369 = vmatpush1.msra.mxu0 %v1980
    %4370 = vmatprep.subr.mxu0 %v1983
    %4371 = vmatpush1.msra.mxu0 %v1982
    %4372 = vmatprep.subr.mxu0 %v1985
    %4373 = vmatpush1.msra.mxu0 %v1984
    %4374 = vmatprep.subr.mxu0 %v1987
    %4375 = vmatpush1.msra.mxu0 %v1986
    %4376 = vmatprep.subr.mxu0 %v1989
    %4377 = vmatpush1.msra.mxu0 %v1988
    %4378 = vmatprep.subr.mxu0 %v3172
    %4379 = vmatpush1.msra.mxu0 %v3169
    %4380 = vmatprep.subr.mxu0 0.0
    %4381 = vmatpush1.msra.mxu0 0.0
    %4382 = vmatprep.subr.mxu0 0.0
    %4383 = vmatpush1.msra.mxu0 0.0
    %4384 = vmatprep.subr.mxu0 0.0
    %4385 = vmatpush1.msra.mxu0 0.0
    %4386 = vmatprep.subr.mxu0 0.0
    %4387 = vmatpush1.msra.mxu0 0.0
    %4388 = vmatprep.subr.mxu0 0.0
    %4389 = vmatpush1.msra.mxu0 0.0
    %4390 = vmatprep.subr.mxu0 0.0
    %4391 = vmatpush1.msra.mxu0 0.0
    %4392 = vmatprep.subr.mxu0 0.0
    %4393 = vmatpush1.msra.mxu0 0.0
    %4394 = vmatprep.subr.mxu0 0.0
    %4395 = vmatpush1.msra.mxu0 0.0
    %4396 = vmatprep.subr.mxu0 0.0
    %4397 = vmatpush1.msra.mxu0 0.0
    %4398 = vmatprep.subr.mxu0 0.0
    %4399 = vmatpush1.msra.mxu0 0.0
    %4400 = vmatprep.subr.mxu0 0.0
    %4401 = vmatpush1.msra.mxu0 0.0
    %4402 = vmatprep.subr.mxu0 0.0
    %4403 = vmatpush1.msra.mxu0 0.0
    %4404 = vmatprep.subr.mxu0 0.0
    %4405 = vmatpush1.msra.mxu0 0.0
    %4406 = vmatprep.subr.mxu0 0.0
    %4407 = vmatpush1.msra.mxu0 0.0
    %4408 = vmatprep.subr.mxu0 0.0
    %4409 = vmatpush1.msra.mxu0 0.0
    %4410 = vmatprep.subr.mxu0 0.0
    %4411 = vmatpush1.msra.mxu0 0.0
    %4412 = vmatprep.subr.mxu0 0.0
    %4413 = vmatpush1.msra.mxu0 0.0
    %4414 = vmatprep.subr.mxu0 0.0
    %4415 = vmatpush1.msra.mxu0 0.0
    %4416 = vmatprep.subr.mxu0 0.0
    %4417 = vmatpush1.msra.mxu0 0.0
    %4418 = vmatprep.subr.mxu0 0.0
    %4419 = vmatpush1.msra.mxu0 0.0
    %4420 = vmatprep.subr.mxu0 0.0
    %4421 = vmatpush1.msra.mxu0 0.0
    %4422 = vmatprep.subr.mxu0 0.0
    %4423 = vmatpush1.msra.mxu0 0.0
    %4424 = vmatprep.subr.mxu0 0.0
    %4425 = vmatpush1.msra.mxu0 0.0
    %4426 = vmatprep.mubr.f32.mxu0 0.0
    %4427 = vmatmul.mubr.f32.gmra.mrb[0].mxu0 %v4360
    %v4428 = vpop.f32.mrb[0].mxu0
    %v4429 = vadd.f32 %v3157, %v4428
    %v4430 = vpop.f32.mrb[0].mxu0
    %v4431 = vadd.f32 %v3161, %v4430
    %4432 = vdwg.mxu0
    %v4433 = vxor.u32 %v4429, 2147483648
    %v4434 = vmul.f32 %v4433, 1.442695
    %v4435 = vpow.pop %v4434
    %v4436 = vadd.f32 %v4435, 1.0
    %v4437 = vrcp.pop %v4436
    %v4438 = vmul.f32 1.0, %v4437
    %v4439 = vxor.u32 %v4431, 2147483648
    %v4440 = vmul.f32 %v4439, 1.442695
    %v4441 = vpow.pop %v4440
    %v4442 = vadd.f32 %v4441, 1.0
    %v4443 = vrcp.pop %v4442
    %v4444 = vmul.f32 1.0, %v4443
    %v4445 = vtanh.pop %v4431
    %v4446 = vmul.f32 %v4438, %v3862
    %4448 = vrot.lane.b32.xlu0 %v4445, 64
    %v4449 = vpop.permute.xlu0 %4448
    %v4451 = vmul.f32 %v4438, %v4449
    %4453 = vrot.lane.b32.xlu0 %v4451, 64
    %v4454 = vpop.permute.xlu0 %4453
    %v4456 = vadd.f32 %v4446, %v4454
    %v4457 = vtanh.pop %v4456
    %4459 = vrot.lane.b32.xlu0 %v4457, 64
    %v4460 = vpop.permute.xlu0 %4459
    %v4462 = vmul.f32 %v4444, %v4460
    %v4463 = vsel %vm2181, %v4462, %v4456
    %4464 = vmatprep.subr.mxu0 0.0
    %4465 = vmatpush1.msra.mxu0 %v1947
    %4466 = vmatprep.subr.mxu0 0.0
    %4467 = vmatpush1.msra.mxu0 %v1948
    %4468 = vmatprep.subr.mxu0 0.0
    %4469 = vmatpush1.msra.mxu0 %v1949
    %4470 = vmatprep.subr.mxu0 0.0
    %4471 = vmatpush1.msra.mxu0 %v1950
    %4472 = vmatprep.subr.mxu0 0.0
    %4473 = vmatpush1.msra.mxu0 %v1951
    %4474 = vmatprep.subr.mxu0 0.0
    %4475 = vmatpush1.msra.mxu0 %v1952
    %4476 = vmatprep.subr.mxu0 0.0
    %4477 = vmatpush1.msra.mxu0 %v1953
    %4478 = vmatprep.subr.mxu0 0.0
    %4479 = vmatpush1.msra.mxu0 %v1954
    %4480 = vmatprep.subr.mxu0 0.0
    %4481 = vmatpush1.msra.mxu0 %v1955
    %4482 = vmatprep.subr.mxu0 0.0
    %4483 = vmatpush1.msra.mxu0 %v1956
    %4484 = vmatprep.subr.mxu0 0.0
    %4485 = vmatpush1.msra.mxu0 %v1957
    %4486 = vmatprep.subr.mxu0 0.0
    %4487 = vmatpush1.msra.mxu0 %v1958
    %4488 = vmatprep.subr.mxu0 0.0
    %4489 = vmatpush1.msra.mxu0 %v1959
    %4490 = vmatprep.subr.mxu0 0.0
    %4491 = vmatpush1.msra.mxu0 %v1960
    %4492 = vmatprep.subr.mxu0 0.0
    %4493 = vmatpush1.msra.mxu0 %v1961
    %4494 = vmatprep.subr.mxu0 0.0
    %4495 = vmatpush1.msra.mxu0 %v1962
    %4496 = vmatprep.subr.mxu0 0.0
    %4497 = vmatpush1.msra.mxu0 0.0
    %4498 = vmatprep.subr.mxu0 0.0
    %4499 = vmatpush1.msra.mxu0 0.0
    %4500 = vmatprep.subr.mxu0 0.0
    %4501 = vmatpush1.msra.mxu0 0.0
    %4502 = vmatprep.subr.mxu0 0.0
    %4503 = vmatpush1.msra.mxu0 0.0
    %4504 = vmatprep.subr.mxu0 0.0
    %4505 = vmatpush1.msra.mxu0 0.0
    %4506 = vmatprep.subr.mxu0 0.0
    %4507 = vmatpush1.msra.mxu0 0.0
    %4508 = vmatprep.subr.mxu0 0.0
    %4509 = vmatpush1.msra.mxu0 0.0
    %4510 = vmatprep.subr.mxu0 0.0
    %4511 = vmatpush1.msra.mxu0 0.0
    %4512 = vmatprep.subr.mxu0 0.0
    %4513 = vmatpush1.msra.mxu0 0.0
    %4514 = vmatprep.subr.mxu0 0.0
    %4515 = vmatpush1.msra.mxu0 0.0
    %4516 = vmatprep.subr.mxu0 0.0
    %4517 = vmatpush1.msra.mxu0 0.0
    %4518 = vmatprep.subr.mxu0 0.0
    %4519 = vmatpush1.msra.mxu0 0.0
    %4520 = vmatprep.subr.mxu0 0.0
    %4521 = vmatpush1.msra.mxu0 0.0
    %4522 = vmatprep.subr.mxu0 0.0
    %4523 = vmatpush1.msra.mxu0 0.0
    %4524 = vmatprep.subr.mxu0 0.0
    %4525 = vmatpush1.msra.mxu0 0.0
    %4526 = vmatprep.subr.mxu0 0.0
    %4527 = vmatpush1.msra.mxu0 0.0
    %4528 = vmatprep.mubr.f32.mxu0 0.0
    %4529 = vmatmul.mubr.f32.gmra.mrb[0].mxu0 %v4463
    %v4530 = vpop.f32.mrb[0].mxu0
    %v4531 = vadd.f32 0.0, %v4530
    %v4532 = vpop.f32.mrb[0].mxu0
    %4533 = vdwg.mxu0
    %v4536 = vunpack.c.l.s4 1966171168
    %v4537 = vunpack.c.0.s8 %v4536
    %v4538 = vlaneseq
    %v4539 = vshrl.u32 %v4538, 7
    %v4540 = vsub.s32 %v4537, %v4539
    %v4541 = vrot.slane %v4531, %v4540
    %v4542 = vcombine.high %v4541, %v4541
    %v4544 = vunpack.c.l.s4 1966171168
    %v4545 = vunpack.c.0.s8 %v4544
    %v4546 = vlaneseq
    %v4547 = vshrl.u32 %v4546, 7
    %v4548 = vsub.s32 %v4545, %v4547
    %v4549 = vrot.slane %v4541, %v4548
    %v4551 = vunpack.c.l.s4 1966171168
    %v4552 = vunpack.c.0.s8 %v4551
    %v4553 = vlaneseq
    %v4554 = vshrl.u32 %v4553, 7
    %v4555 = vsub.s32 %v4552, %v4554
    %v4556 = vrot.slane %v4542, %v4555
    %v4557 = vlaneseq
    %v4558 = vshrl.u32 %v4557, 7
    %v4559 = vsub.s32 0, %v4558
    %v4560 = vrot.slane %v4549, %v4559
    %v4561 = vlaneseq
    %v4562 = vshrl.u32 %v4561, 7
    %v4563 = vsub.s32 0, %v4562
    %v4564 = vrot.slane %v4556, %v4563
    %v4565 = vcombine.high %v4560, %v4560
    %v4567 = vunpack.c.l.s4 1983009808
    %v4568 = vunpack.c.0.s8 %v4567
    %v4569 = vlaneseq
    %v4570 = vshrl.u32 %v4569, 7
    %v4571 = vsub.s32 %v4568, %v4570
    %v4572 = vrot.slane %v4560, %v4571
    %v4574 = vunpack.c.l.s4 1983009808
    %v4575 = vunpack.c.0.s8 %v4574
    %v4576 = vlaneseq
    %v4577 = vshrl.u32 %v4576, 7
    %v4578 = vsub.s32 %v4575, %v4577
    %v4579 = vrot.slane %v4565, %v4578
    %v4580 = vcombine.high %v4572, %v4572
    %v4581 = vcombine.high %v4579, %v4579
    %v4582 = vcombine.high %v4564, %v4564
    %v4584 = vunpack.c.l.s4 1983009808
    %v4585 = vunpack.c.0.s8 %v4584
    %v4586 = vlaneseq
    %v4587 = vshrl.u32 %v4586, 7
    %v4588 = vsub.s32 %v4585, %v4587
    %v4589 = vrot.slane %v4564, %v4588
    %v4591 = vunpack.c.l.s4 1983009808
    %v4592 = vunpack.c.0.s8 %v4591
    %v4593 = vlaneseq
    %v4594 = vshrl.u32 %v4593, 7
    %v4595 = vsub.s32 %v4592, %v4594
    %v4596 = vrot.slane %v4582, %v4595
    %v4597 = vcombine.high %v4589, %v4589
    %v4598 = vcombine.high %v4596, %v4596
    %v4607 = vadd.f32 %v2278, %v4572
    %v4608 = vadd.f32 %v2286, %v4580
    %v4609 = vadd.f32 %v2285, %v4579
    %v4610 = vadd.f32 %v2287, %v4581
    %v4611 = vadd.f32 %v2295, %v4572
    %v4612 = vadd.f32 %v2303, %v4589
    %v4613 = vadd.f32 %v2302, %v4597
    %v4614 = vadd.f32 %v2304, %v4596
    %v4615 = vadd.f32 %v2311, %v4598
    %v4616 = vadd.f32 %v2312, %v4589
    %v4617 = vtanh.pop %v4607
    %v4618 = vtanh.pop %v4608
    %v4619 = vtanh.pop %v4609
    %v4620 = vtanh.pop %v4610
    %v4621 = vtanh.pop %v4611
    %v4622 = vtanh.pop %v4612
    %v4623 = vtanh.pop %v4613
    %v4624 = vtanh.pop %v4614
    %v4625 = vtanh.pop %v4615
    %v4626 = vtanh.pop %v4616
    %v4627 = vmul.f32 %v4617, %v2799
    %v4628 = vmul.f32 %v4618, %v2807
    %v4629 = vmul.f32 %v4619, %v2806
    %v4630 = vmul.f32 %v4620, %v2808
    %v4631 = vmul.f32 %v4621, %v2799
    %v4632 = vmul.f32 %v4622, %v2799
    %v4633 = vmul.f32 %v4623, %v2807
    %v4634 = vmul.f32 %v4624, %v2806
    %v4635 = vmul.f32 %v4625, %v2808
    %v4636 = vmul.f32 %v4626, %v2799
    %v4647 = vcombine.low %v4627, %v4628
    %v4648 = vcombine.low %v4629, %v4630
    %v4650 = vunpack.c.l.s4 1983009808
    %v4651 = vunpack.c.0.s8 %v4650
    %v4652 = vlaneseq
    %v4653 = vshrl.u32 %v4652, 7
    %v4654 = vsub.s32 %v4651, %v4653
    %v4655 = vrot.slane %v4647, %v4654
    %v4657 = vunpack.c.l.s4 1983009808
    %v4658 = vunpack.c.0.s8 %v4657
    %v4659 = vlaneseq
    %v4660 = vshrl.u32 %v4659, 7
    %v4661 = vsub.s32 %v4658, %v4660
    %v4662 = vrot.slane %v4648, %v4661
    %v4663 = vcombine.low %v4655, %v4662
    %v4665 = vunpack.c.l.s4 1983009808
    %v4666 = vunpack.c.0.s8 %v4665
    %v4667 = vlaneseq
    %v4668 = vshrl.u32 %v4667, 7
    %v4669 = vsub.s32 %v4666, %v4668
    %v4670 = vrot.slane %v4631, %v4669
    %v4671 = vcombine.low %v4632, %v4633
    %v4672 = vcombine.low %v4634, %v4635
    %v4674 = vunpack.c.l.s4 1983009808
    %v4675 = vunpack.c.0.s8 %v4674
    %v4676 = vlaneseq
    %v4677 = vshrl.u32 %v4676, 7
    %v4678 = vsub.s32 %v4675, %v4677
    %v4679 = vrot.slane %v4671, %v4678
    %v4681 = vunpack.c.l.s4 1983009808
    %v4682 = vunpack.c.0.s8 %v4681
    %v4683 = vlaneseq
    %v4684 = vshrl.u32 %v4683, 7
    %v4685 = vsub.s32 %v4682, %v4684
    %v4686 = vrot.slane %v4672, %v4685
    %v4687 = vcombine.low %v4679, %v4686
    %v4689 = vunpack.c.l.s4 1983009808
    %v4690 = vunpack.c.0.s8 %v4689
    %v4691 = vlaneseq
    %v4692 = vshrl.u32 %v4691, 7
    %v4693 = vsub.s32 %v4690, %v4692
    %v4694 = vrot.slane %v4636, %v4693
    %v4699 = vsel %vm2181, %v4663, 0.0
    %4700 = vadd.xlane.f32.xlu0 %v4699
    %v4701 = vpop.xlane.xlu0 %4700
    %v4702 = vsel %vm167, %v4670, 0.0
    %4703 = vadd.xlane.f32.xlu0 %v4702
    %v4704 = vpop.xlane.xlu0 %4703
    %v4705 = vsel %vm2181, %v4687, 0.0
    %4706 = vadd.xlane.f32.xlu0 %v4705
    %v4707 = vpop.xlane.xlu0 %4706
    %v4708 = vsel %vm167, %v4694, 0.0
    %4709 = vadd.xlane.f32.xlu0 %v4708
    %v4710 = vpop.xlane.xlu0 %4709
    %v4711 = vadd.f32 %v4701, %v2904
    %v4712 = vadd.f32 %v4704, %v2904
    %v4713 = vadd.f32 %v4707, %v2904
    %v4714 = vadd.f32 %v4710, %v2904
    %v4719 = vlaneseq
    %v4720 = vshrl.u32 %v4719, 7
    %v4721 = vsub.s32 %v2915, %v4720
    %v4722 = vrot.slane %v4711, %v4721
    %v4723 = vlaneseq
    %v4724 = vshrl.u32 %v4723, 7
    %v4725 = vsub.s32 %v2920, %v4724
    %v4726 = vrot.slane %v4712, %v4725
    %v4727 = vsel %vm2925, %v4726, %v4722
    %v4728 = vlaneseq
    %v4729 = vshrl.u32 %v4728, 7
    %v4730 = vsub.s32 %v2915, %v4729
    %v4731 = vrot.slane %v4713, %v4730
    %v4732 = vlaneseq
    %v4733 = vshrl.u32 %v4732, 7
    %v4734 = vsub.s32 %v2920, %v4733
    %v4735 = vrot.slane %v4714, %v4734
    %v4736 = vsel %vm2925, %v4735, %v4731
    %v4737 = vsel %vm185, %v4736, %v4727
    %v4739 = vsel %vm2938, %v4737, -inf
    %4740 = vmax.xlane.f32.xlu0 %v4739
    %v4741 = vpop.xlane.xlu0 %4740
    %v4743 = vlaneseq
    %v4744 = vshrl.u32 %v4743, 7
    %v4745 = vsub.s32 0, %v4744
    %v4746 = vrot.slane %v4741, %v4745
    %v4747 = vlaneseq
    %v4748 = vshrl.u32 %v4747, 7
    %v4749 = vsub.s32 1, %v4748
    %v4750 = vrot.slane %v4741, %v4749
    %v4753 = vsub.f32 %v4711, %v4746
    %v4754 = vsub.f32 %v4712, %v4746
    %v4755 = vsub.f32 %v4713, %v4750
    %v4756 = vsub.f32 %v4714, %v4750
    %v4757 = vmul.f32 %v4753, 1.442695
    %v4758 = vpow.pop %v4757
    %v4759 = vmul.f32 %v4754, 1.442695
    %v4760 = vpow.pop %v4759
    %v4761 = vmul.f32 %v4755, 1.442695
    %v4762 = vpow.pop %v4761
    %v4763 = vmul.f32 %v4756, 1.442695
    %v4764 = vpow.pop %v4763
    %4769 = vset.pattern.permute.xlu0 0
    %4770 = vperm.xlu0 %4769, %v4758
    %v4771 = vpop.permute.xlu0 %4770
    %4772 = vset.pattern.permute.xlu0 0
    %4773 = vperm.xlu0 %4772, %v4760
    %v4774 = vpop.permute.xlu0 %4773
    %4775 = vset.pattern.permute.xlu0 0
    %4776 = vperm.xlu0 %4775, %v4762
    %v4777 = vpop.permute.xlu0 %4776
    %4778 = vset.pattern.permute.xlu0 0
    %4779 = vperm.xlu0 %4778, %v4764
    %v4780 = vpop.permute.xlu0 %4779
    %v4781 = vlaneseq
    %v4782 = vshrl.u32 %v4781, 7
    %v4783 = vsub.s32 %v2915, %v4782
    %v4784 = vrot.slane %v4771, %v4783
    %v4785 = vlaneseq
    %v4786 = vshrl.u32 %v4785, 7
    %v4787 = vsub.s32 %v2920, %v4786
    %v4788 = vrot.slane %v4774, %v4787
    %v4789 = vsel %vm2925, %v4788, %v4784
    %v4790 = vlaneseq
    %v4791 = vshrl.u32 %v4790, 7
    %v4792 = vsub.s32 %v2915, %v4791
    %v4793 = vrot.slane %v4777, %v4792
    %v4794 = vlaneseq
    %v4795 = vshrl.u32 %v4794, 7
    %v4796 = vsub.s32 %v2920, %v4795
    %v4797 = vrot.slane %v4780, %v4796
    %v4798 = vsel %vm2925, %v4797, %v4793
    %v4799 = vsel %vm185, %v4798, %v4789
    %v4801 = vsel %vm2938, %v4799, 0.0
    %4802 = vadd.xlane.f32.xlu0 %v4801
    %v4803 = vpop.xlane.xlu0 %4802
    %v4805 = vlaneseq
    %v4806 = vshrl.u32 %v4805, 7
    %v4807 = vsub.s32 0, %v4806
    %v4808 = vrot.slane %v4803, %v4807
    %v4809 = vlaneseq
    %v4810 = vshrl.u32 %v4809, 7
    %v4811 = vsub.s32 1, %v4810
    %v4812 = vrot.slane %v4803, %v4811
    %v4815 = vrcp.pop %v4808
    %v4816 = vmul.f32 %v4758, %v4815
    %v4817 = vmul.f32 %v4760, %v4815
    %v4818 = vrcp.pop %v4812
    %v4819 = vmul.f32 %v4762, %v4818
    %v4820 = vmul.f32 %v4764, %v4818
    %4822 = vset.pattern.permute.xlu0 0
    %4823 = vperm.xlu0 %4822, %v4816
    %v4824 = vpop.permute.xlu0 %4823
    %4827 = vset.pattern.permute.xlu0 0
    %4828 = vperm.xlu0 %4827, %v4817
    %v4829 = vpop.permute.xlu0 %4828
    %4832 = vset.pattern.permute.xlu0 0
    %4833 = vperm.xlu0 %4832, %v4819
    %v4834 = vpop.permute.xlu0 %4833
    %4837 = vset.pattern.permute.xlu0 0
    %4838 = vperm.xlu0 %4837, %v4820
    %v4839 = vpop.permute.xlu0 %4838
    %v4841 = vmul.f32 %v4824, %v1941
    %v4842 = vmul.f32 %v4829, %v1943
    %v4843 = vmul.f32 %v4834, %v1942
    %v4844 = vmul.f32 %v4839, %v1944
    %v4845 = vsel %vm2181, %v4841, 0.0
    %v4846 = vsel %vm167, %v4842, 0.0
    %v4847 = vadd.f32 %v4845, %v4846
    %v4848 = vrot.slane %v4847, 4
    %v4849 = vadd.f32 %v4847, %v4848
    %v4850 = vrot.slane %v4849, 2
    %v4851 = vadd.f32 %v4849, %v4850
    %v4852 = vrot.slane %v4851, 1
    %v4853 = vadd.f32 %v4851, %v4852
    %v4854 = vsel %vm2181, %v4843, 0.0
    %v4855 = vsel %vm167, %v4844, 0.0
    %v4856 = vadd.f32 %v4854, %v4855
    %v4857 = vrot.slane %v4856, 4
    %v4858 = vadd.f32 %v4856, %v4857
    %v4859 = vrot.slane %v4858, 2
    %v4860 = vadd.f32 %v4858, %v4859
    %v4861 = vrot.slane %v4860, 1
    %v4862 = vadd.f32 %v4860, %v4861
    %v4865 = vsel %vm185, %v4862, %v4853
    %v4866 = vlaneseq
    %v4867 = vshrl.u32 %v4866, 7
    %v4868 = vsub.s32 1, %v4867
    %v4869 = vrot.slane %v2592, %v4868
    %v4870 = vlaneseq
    %v4871 = vshrl.u32 %v4870, 7
    %v4872 = vsub.s32 1, %v4871
    %v4873 = vrot.slane %v2608, %v4872
    %v4874 = vsel %vm185, %v4873, %v4869
    %v4876 = vsel %vm2181, %v4865, 0
    %4878 = vmatprep.subr.mxu0 0.0
    %4879 = vmatpush1.msra.mxu0 %v1993
    %4880 = vmatprep.subr.mxu0 0.0
    %4881 = vmatpush1.msra.mxu0 %v1994
    %4882 = vmatprep.subr.mxu0 0.0
    %4883 = vmatpush1.msra.mxu0 %v1995
    %4884 = vmatprep.subr.mxu0 0.0
    %4885 = vmatpush1.msra.mxu0 %v1996
    %4886 = vmatprep.subr.mxu0 0.0
    %4887 = vmatpush1.msra.mxu0 %v1997
    %4888 = vmatprep.subr.mxu0 0.0
    %4889 = vmatpush1.msra.mxu0 %v1998
    %4890 = vmatprep.subr.mxu0 0.0
    %4891 = vmatpush1.msra.mxu0 %v1999
    %4892 = vmatprep.subr.mxu0 0.0
    %4893 = vmatpush1.msra.mxu0 %v2000
    %4894 = vmatprep.subr.mxu0 0.0
    %4895 = vmatpush1.msra.mxu0 0.0
    %4896 = vmatprep.subr.mxu0 0.0
    %4897 = vmatpush1.msra.mxu0 0.0
    %4898 = vmatprep.subr.mxu0 0.0
    %4899 = vmatpush1.msra.mxu0 0.0
    %4900 = vmatprep.subr.mxu0 0.0
    %4901 = vmatpush1.msra.mxu0 0.0
    %4902 = vmatprep.subr.mxu0 0.0
    %4903 = vmatpush1.msra.mxu0 0.0
    %4904 = vmatprep.subr.mxu0 0.0
    %4905 = vmatpush1.msra.mxu0 0.0
    %4906 = vmatprep.subr.mxu0 0.0
    %4907 = vmatpush1.msra.mxu0 0.0
    %4908 = vmatprep.subr.mxu0 0.0
    %4909 = vmatpush1.msra.mxu0 0.0
    %4910 = vmatprep.subr.mxu0 0.0
    %4911 = vmatpush1.msra.mxu0 0.0
    %4912 = vmatprep.subr.mxu0 0.0
    %4913 = vmatpush1.msra.mxu0 0.0
    %4914 = vmatprep.subr.mxu0 0.0
    %4915 = vmatpush1.msra.mxu0 0.0
    %4916 = vmatprep.subr.mxu0 0.0
    %4917 = vmatpush1.msra.mxu0 0.0
    %4918 = vmatprep.subr.mxu0 0.0
    %4919 = vmatpush1.msra.mxu0 0.0
    %4920 = vmatprep.subr.mxu0 0.0
    %4921 = vmatpush1.msra.mxu0 0.0
    %4922 = vmatprep.subr.mxu0 0.0
    %4923 = vmatpush1.msra.mxu0 0.0
    %4924 = vmatprep.subr.mxu0 0.0
    %4925 = vmatpush1.msra.mxu0 0.0
    %4926 = vmatprep.subr.mxu0 0.0
    %4927 = vmatpush1.msra.mxu0 0.0
    %4928 = vmatprep.subr.mxu0 0.0
    %4929 = vmatpush1.msra.mxu0 0.0
    %4930 = vmatprep.subr.mxu0 0.0
    %4931 = vmatpush1.msra.mxu0 0.0
    %4932 = vmatprep.subr.mxu0 0.0
    %4933 = vmatpush1.msra.mxu0 0.0
    %4934 = vmatprep.subr.mxu0 0.0
    %4935 = vmatpush1.msra.mxu0 0.0
    %4936 = vmatprep.subr.mxu0 0.0
    %4937 = vmatpush1.msra.mxu0 0.0
    %4938 = vmatprep.subr.mxu0 0.0
    %4939 = vmatpush1.msra.mxu0 0.0
    %4940 = vmatprep.subr.mxu0 0.0
    %4941 = vmatpush1.msra.mxu0 0.0
    %4942 = vmatprep.mubr.f32.mxu0 0.0
    %4943 = vmatmul.mubr.f32.gmra.mrb[0].mxu0 %v4876
    %v4944 = vpop.f32.mrb[0].mxu0
    %v4945 = vadd.f32 %v4874, %v4944
    %v4946 = vpop.f32.mrb[0].mxu0
    %4947 = vdwg.mxu0
    %4949 = vrot.lane.b32.xlu0 %v4462, 5
    %v4950 = vpop.permute.xlu0 %4949
    %v4952 = vsel %vm2484, %v4945, %v4950
    %v4954 = vsel %vm3164, %v4952, 0
    %4956 = vmatprep.subr.mxu0 %v1975
    %4957 = vmatpush1.msra.mxu0 %v1974
    %4958 = vmatprep.subr.mxu0 %v1977
    %4959 = vmatpush1.msra.mxu0 %v1976
    %4960 = vmatprep.subr.mxu0 %v1979
    %4961 = vmatpush1.msra.mxu0 %v1978
    %4962 = vmatprep.subr.mxu0 %v1981
    %4963 = vmatpush1.msra.mxu0 %v1980
    %4964 = vmatprep.subr.mxu0 %v1983
    %4965 = vmatpush1.msra.mxu0 %v1982
    %4966 = vmatprep.subr.mxu0 %v1985
    %4967 = vmatpush1.msra.mxu0 %v1984
    %4968 = vmatprep.subr.mxu0 %v1987
    %4969 = vmatpush1.msra.mxu0 %v1986
    %4970 = vmatprep.subr.mxu0 %v1989
    %4971 = vmatpush1.msra.mxu0 %v1988
    %4972 = vmatprep.subr.mxu0 %v3172
    %4973 = vmatpush1.msra.mxu0 %v3169
    %4974 = vmatprep.subr.mxu0 0.0
    %4975 = vmatpush1.msra.mxu0 0.0
    %4976 = vmatprep.subr.mxu0 0.0
    %4977 = vmatpush1.msra.mxu0 0.0
    %4978 = vmatprep.subr.mxu0 0.0
    %4979 = vmatpush1.msra.mxu0 0.0
    %4980 = vmatprep.subr.mxu0 0.0
    %4981 = vmatpush1.msra.mxu0 0.0
    %4982 = vmatprep.subr.mxu0 0.0
    %4983 = vmatpush1.msra.mxu0 0.0
    %4984 = vmatprep.subr.mxu0 0.0
    %4985 = vmatpush1.msra.mxu0 0.0
    %4986 = vmatprep.subr.mxu0 0.0
    %4987 = vmatpush1.msra.mxu0 0.0
    %4988 = vmatprep.subr.mxu0 0.0
    %4989 = vmatpush1.msra.mxu0 0.0
    %4990 = vmatprep.subr.mxu0 0.0
    %4991 = vmatpush1.msra.mxu0 0.0
    %4992 = vmatprep.subr.mxu0 0.0
    %4993 = vmatpush1.msra.mxu0 0.0
    %4994 = vmatprep.subr.mxu0 0.0
    %4995 = vmatpush1.msra.mxu0 0.0
    %4996 = vmatprep.subr.mxu0 0.0
    %4997 = vmatpush1.msra.mxu0 0.0
    %4998 = vmatprep.subr.mxu0 0.0
    %4999 = vmatpush1.msra.mxu0 0.0
    %5000 = vmatprep.subr.mxu0 0.0
    %5001 = vmatpush1.msra.mxu0 0.0
    %5002 = vmatprep.subr.mxu0 0.0
    %5003 = vmatpush1.msra.mxu0 0.0
    %5004 = vmatprep.subr.mxu0 0.0
    %5005 = vmatpush1.msra.mxu0 0.0
    %5006 = vmatprep.subr.mxu0 0.0
    %5007 = vmatpush1.msra.mxu0 0.0
    %5008 = vmatprep.subr.mxu0 0.0
    %5009 = vmatpush1.msra.mxu0 0.0
    %5010 = vmatprep.subr.mxu0 0.0
    %5011 = vmatpush1.msra.mxu0 0.0
    %5012 = vmatprep.subr.mxu0 0.0
    %5013 = vmatpush1.msra.mxu0 0.0
    %5014 = vmatprep.subr.mxu0 0.0
    %5015 = vmatpush1.msra.mxu0 0.0
    %5016 = vmatprep.subr.mxu0 0.0
    %5017 = vmatpush1.msra.mxu0 0.0
    %5018 = vmatprep.subr.mxu0 0.0
    %5019 = vmatpush1.msra.mxu0 0.0
    %5020 = vmatprep.mubr.f32.mxu0 0.0
    %5021 = vmatmul.mubr.f32.gmra.mrb[0].mxu0 %v4954
    %v5022 = vpop.f32.mrb[0].mxu0
    %v5023 = vadd.f32 %v3157, %v5022
    %v5024 = vpop.f32.mrb[0].mxu0
    %v5025 = vadd.f32 %v3161, %v5024
    %5026 = vdwg.mxu0
    %v5027 = vxor.u32 %v5023, 2147483648
    %v5028 = vmul.f32 %v5027, 1.442695
    %v5029 = vpow.pop %v5028
    %v5030 = vadd.f32 %v5029, 1.0
    %v5031 = vrcp.pop %v5030
    %v5032 = vmul.f32 1.0, %v5031
    %v5033 = vxor.u32 %v5025, 2147483648
    %v5034 = vmul.f32 %v5033, 1.442695
    %v5035 = vpow.pop %v5034
    %v5036 = vadd.f32 %v5035, 1.0
    %v5037 = vrcp.pop %v5036
    %v5038 = vmul.f32 1.0, %v5037
    %v5039 = vtanh.pop %v5025
    %v5040 = vmul.f32 %v5032, %v4456
    %5042 = vrot.lane.b32.xlu0 %v5039, 64
    %v5043 = vpop.permute.xlu0 %5042
    %v5045 = vmul.f32 %v5032, %v5043
    %5047 = vrot.lane.b32.xlu0 %v5045, 64
    %v5048 = vpop.permute.xlu0 %5047
    %v5050 = vadd.f32 %v5040, %v5048
    %v5051 = vtanh.pop %v5050
    %5053 = vrot.lane.b32.xlu0 %v5051, 64
    %v5054 = vpop.permute.xlu0 %5053
    %v5056 = vmul.f32 %v5038, %v5054
    %v5057 = vsel %vm2181, %v5056, %v5050
    %5058 = vmatprep.subr.mxu0 0.0
    %5059 = vmatpush1.msra.mxu0 %v1947
    %5060 = vmatprep.subr.mxu0 0.0
    %5061 = vmatpush1.msra.mxu0 %v1948
    %5062 = vmatprep.subr.mxu0 0.0
    %5063 = vmatpush1.msra.mxu0 %v1949
    %5064 = vmatprep.subr.mxu0 0.0
    %5065 = vmatpush1.msra.mxu0 %v1950
    %5066 = vmatprep.subr.mxu0 0.0
    %5067 = vmatpush1.msra.mxu0 %v1951
    %5068 = vmatprep.subr.mxu0 0.0
    %5069 = vmatpush1.msra.mxu0 %v1952
    %5070 = vmatprep.subr.mxu0 0.0
    %5071 = vmatpush1.msra.mxu0 %v1953
    %5072 = vmatprep.subr.mxu0 0.0
    %5073 = vmatpush1.msra.mxu0 %v1954
    %5074 = vmatprep.subr.mxu0 0.0
    %5075 = vmatpush1.msra.mxu0 %v1955
    %5076 = vmatprep.subr.mxu0 0.0
    %5077 = vmatpush1.msra.mxu0 %v1956
    %5078 = vmatprep.subr.mxu0 0.0
    %5079 = vmatpush1.msra.mxu0 %v1957
    %5080 = vmatprep.subr.mxu0 0.0
    %5081 = vmatpush1.msra.mxu0 %v1958
    %5082 = vmatprep.subr.mxu0 0.0
    %5083 = vmatpush1.msra.mxu0 %v1959
    %5084 = vmatprep.subr.mxu0 0.0
    %5085 = vmatpush1.msra.mxu0 %v1960
    %5086 = vmatprep.subr.mxu0 0.0
    %5087 = vmatpush1.msra.mxu0 %v1961
    %5088 = vmatprep.subr.mxu0 0.0
    %5089 = vmatpush1.msra.mxu0 %v1962
    %5090 = vmatprep.subr.mxu0 0.0
    %5091 = vmatpush1.msra.mxu0 0.0
    %5092 = vmatprep.subr.mxu0 0.0
    %5093 = vmatpush1.msra.mxu0 0.0
    %5094 = vmatprep.subr.mxu0 0.0
    %5095 = vmatpush1.msra.mxu0 0.0
    %5096 = vmatprep.subr.mxu0 0.0
    %5097 = vmatpush1.msra.mxu0 0.0
    %5098 = vmatprep.subr.mxu0 0.0
    %5099 = vmatpush1.msra.mxu0 0.0
    %5100 = vmatprep.subr.mxu0 0.0
    %5101 = vmatpush1.msra.mxu0 0.0
    %5102 = vmatprep.subr.mxu0 0.0
    %5103 = vmatpush1.msra.mxu0 0.0
    %5104 = vmatprep.subr.mxu0 0.0
    %5105 = vmatpush1.msra.mxu0 0.0
    %5106 = vmatprep.subr.mxu0 0.0
    %5107 = vmatpush1.msra.mxu0 0.0
    %5108 = vmatprep.subr.mxu0 0.0
    %5109 = vmatpush1.msra.mxu0 0.0
    %5110 = vmatprep.subr.mxu0 0.0
    %5111 = vmatpush1.msra.mxu0 0.0
    %5112 = vmatprep.subr.mxu0 0.0
    %5113 = vmatpush1.msra.mxu0 0.0
    %5114 = vmatprep.subr.mxu0 0.0
    %5115 = vmatpush1.msra.mxu0 0.0
    %5116 = vmatprep.subr.mxu0 0.0
    %5117 = vmatpush1.msra.mxu0 0.0
    %5118 = vmatprep.subr.mxu0 0.0
    %5119 = vmatpush1.msra.mxu0 0.0
    %5120 = vmatprep.subr.mxu0 0.0
    %5121 = vmatpush1.msra.mxu0 0.0
    %5122 = vmatprep.mubr.f32.mxu0 0.0
    %5123 = vmatmul.mubr.f32.gmra.mrb[0].mxu0 %v5057
    %v5124 = vpop.f32.mrb[0].mxu0
    %v5125 = vadd.f32 0.0, %v5124
    %v5126 = vpop.f32.mrb[0].mxu0
    %5127 = vdwg.mxu0
    %v5130 = vunpack.c.l.s4 1966171168
    %v5131 = vunpack.c.0.s8 %v5130
    %v5132 = vlaneseq
    %v5133 = vshrl.u32 %v5132, 7
    %v5134 = vsub.s32 %v5131, %v5133
    %v5135 = vrot.slane %v5125, %v5134
    %v5136 = vcombine.high %v5135, %v5135
    %v5138 = vunpack.c.l.s4 1966171168
    %v5139 = vunpack.c.0.s8 %v5138
    %v5140 = vlaneseq
    %v5141 = vshrl.u32 %v5140, 7
    %v5142 = vsub.s32 %v5139, %v5141
    %v5143 = vrot.slane %v5135, %v5142
    %v5145 = vunpack.c.l.s4 1966171168
    %v5146 = vunpack.c.0.s8 %v5145
    %v5147 = vlaneseq
    %v5148 = vshrl.u32 %v5147, 7
    %v5149 = vsub.s32 %v5146, %v5148
    %v5150 = vrot.slane %v5136, %v5149
    %v5151 = vlaneseq
    %v5152 = vshrl.u32 %v5151, 7
    %v5153 = vsub.s32 0, %v5152
    %v5154 = vrot.slane %v5143, %v5153
    %v5155 = vlaneseq
    %v5156 = vshrl.u32 %v5155, 7
    %v5157 = vsub.s32 0, %v5156
    %v5158 = vrot.slane %v5150, %v5157
    %v5159 = vcombine.high %v5154, %v5154
    %v5161 = vunpack.c.l.s4 1983009808
    %v5162 = vunpack.c.0.s8 %v5161
    %v5163 = vlaneseq
    %v5164 = vshrl.u32 %v5163, 7
    %v5165 = vsub.s32 %v5162, %v5164
    %v5166 = vrot.slane %v5154, %v5165
    %v5168 = vunpack.c.l.s4 1983009808
    %v5169 = vunpack.c.0.s8 %v5168
    %v5170 = vlaneseq
    %v5171 = vshrl.u32 %v5170, 7
    %v5172 = vsub.s32 %v5169, %v5171
    %v5173 = vrot.slane %v5159, %v5172
    %v5174 = vcombine.high %v5166, %v5166
    %v5175 = vcombine.high %v5173, %v5173
    %v5176 = vcombine.high %v5158, %v5158
    %v5178 = vunpack.c.l.s4 1983009808
    %v5179 = vunpack.c.0.s8 %v5178
    %v5180 = vlaneseq
    %v5181 = vshrl.u32 %v5180, 7
    %v5182 = vsub.s32 %v5179, %v5181
    %v5183 = vrot.slane %v5158, %v5182
    %v5185 = vunpack.c.l.s4 1983009808
    %v5186 = vunpack.c.0.s8 %v5185
    %v5187 = vlaneseq
    %v5188 = vshrl.u32 %v5187, 7
    %v5189 = vsub.s32 %v5186, %v5188
    %v5190 = vrot.slane %v5176, %v5189
    %v5191 = vcombine.high %v5183, %v5183
    %v5192 = vcombine.high %v5190, %v5190
    %v5201 = vadd.f32 %v2278, %v5166
    %v5202 = vadd.f32 %v2286, %v5174
    %v5203 = vadd.f32 %v2285, %v5173
    %v5204 = vadd.f32 %v2287, %v5175
    %v5205 = vadd.f32 %v2295, %v5166
    %v5206 = vadd.f32 %v2303, %v5183
    %v5207 = vadd.f32 %v2302, %v5191
    %v5208 = vadd.f32 %v2304, %v5190
    %v5209 = vadd.f32 %v2311, %v5192
    %v5210 = vadd.f32 %v2312, %v5183
    %v5211 = vtanh.pop %v5201
    %v5212 = vtanh.pop %v5202
    %v5213 = vtanh.pop %v5203
    %v5214 = vtanh.pop %v5204
    %v5215 = vtanh.pop %v5205
    %v5216 = vtanh.pop %v5206
    %v5217 = vtanh.pop %v5207
    %v5218 = vtanh.pop %v5208
    %v5219 = vtanh.pop %v5209
    %v5220 = vtanh.pop %v5210
    %v5221 = vmul.f32 %v5211, %v2799
    %v5222 = vmul.f32 %v5212, %v2807
    %v5223 = vmul.f32 %v5213, %v2806
    %v5224 = vmul.f32 %v5214, %v2808
    %v5225 = vmul.f32 %v5215, %v2799
    %v5226 = vmul.f32 %v5216, %v2799
    %v5227 = vmul.f32 %v5217, %v2807
    %v5228 = vmul.f32 %v5218, %v2806
    %v5229 = vmul.f32 %v5219, %v2808
    %v5230 = vmul.f32 %v5220, %v2799
    %v5241 = vcombine.low %v5221, %v5222
    %v5242 = vcombine.low %v5223, %v5224
    %v5244 = vunpack.c.l.s4 1983009808
    %v5245 = vunpack.c.0.s8 %v5244
    %v5246 = vlaneseq
    %v5247 = vshrl.u32 %v5246, 7
    %v5248 = vsub.s32 %v5245, %v5247
    %v5249 = vrot.slane %v5241, %v5248
    %v5251 = vunpack.c.l.s4 1983009808
    %v5252 = vunpack.c.0.s8 %v5251
    %v5253 = vlaneseq
    %v5254 = vshrl.u32 %v5253, 7
    %v5255 = vsub.s32 %v5252, %v5254
    %v5256 = vrot.slane %v5242, %v5255
    %v5257 = vcombine.low %v5249, %v5256
    %v5259 = vunpack.c.l.s4 1983009808
    %v5260 = vunpack.c.0.s8 %v5259
    %v5261 = vlaneseq
    %v5262 = vshrl.u32 %v5261, 7
    %v5263 = vsub.s32 %v5260, %v5262
    %v5264 = vrot.slane %v5225, %v5263
    %v5265 = vcombine.low %v5226, %v5227
    %v5266 = vcombine.low %v5228, %v5229
    %v5268 = vunpack.c.l.s4 1983009808
    %v5269 = vunpack.c.0.s8 %v5268
    %v5270 = vlaneseq
    %v5271 = vshrl.u32 %v5270, 7
    %v5272 = vsub.s32 %v5269, %v5271
    %v5273 = vrot.slane %v5265, %v5272
    %v5275 = vunpack.c.l.s4 1983009808
    %v5276 = vunpack.c.0.s8 %v5275
    %v5277 = vlaneseq
    %v5278 = vshrl.u32 %v5277, 7
    %v5279 = vsub.s32 %v5276, %v5278
    %v5280 = vrot.slane %v5266, %v5279
    %v5281 = vcombine.low %v5273, %v5280
    %v5283 = vunpack.c.l.s4 1983009808
    %v5284 = vunpack.c.0.s8 %v5283
    %v5285 = vlaneseq
    %v5286 = vshrl.u32 %v5285, 7
    %v5287 = vsub.s32 %v5284, %v5286
    %v5288 = vrot.slane %v5230, %v5287
    %v5293 = vsel %vm2181, %v5257, 0.0
    %5294 = vadd.xlane.f32.xlu0 %v5293
    %v5295 = vpop.xlane.xlu0 %5294
    %v5296 = vsel %vm167, %v5264, 0.0
    %5297 = vadd.xlane.f32.xlu0 %v5296
    %v5298 = vpop.xlane.xlu0 %5297
    %v5299 = vsel %vm2181, %v5281, 0.0
    %5300 = vadd.xlane.f32.xlu0 %v5299
    %v5301 = vpop.xlane.xlu0 %5300
    %v5302 = vsel %vm167, %v5288, 0.0
    %5303 = vadd.xlane.f32.xlu0 %v5302
    %v5304 = vpop.xlane.xlu0 %5303
    %v5305 = vadd.f32 %v5295, %v2904
    %v5306 = vadd.f32 %v5298, %v2904
    %v5307 = vadd.f32 %v5301, %v2904
    %v5308 = vadd.f32 %v5304, %v2904
    %v5313 = vlaneseq
    %v5314 = vshrl.u32 %v5313, 7
    %v5315 = vsub.s32 %v2915, %v5314
    %v5316 = vrot.slane %v5305, %v5315
    %v5317 = vlaneseq
    %v5318 = vshrl.u32 %v5317, 7
    %v5319 = vsub.s32 %v2920, %v5318
    %v5320 = vrot.slane %v5306, %v5319
    %v5321 = vsel %vm2925, %v5320, %v5316
    %v5322 = vlaneseq
    %v5323 = vshrl.u32 %v5322, 7
    %v5324 = vsub.s32 %v2915, %v5323
    %v5325 = vrot.slane %v5307, %v5324
    %v5326 = vlaneseq
    %v5327 = vshrl.u32 %v5326, 7
    %v5328 = vsub.s32 %v2920, %v5327
    %v5329 = vrot.slane %v5308, %v5328
    %v5330 = vsel %vm2925, %v5329, %v5325
    %v5331 = vsel %vm185, %v5330, %v5321
    %v5333 = vsel %vm2938, %v5331, -inf
    %5334 = vmax.xlane.f32.xlu0 %v5333
    %v5335 = vpop.xlane.xlu0 %5334
    %v5337 = vlaneseq
    %v5338 = vshrl.u32 %v5337, 7
    %v5339 = vsub.s32 0, %v5338
    %v5340 = vrot.slane %v5335, %v5339
    %v5341 = vlaneseq
    %v5342 = vshrl.u32 %v5341, 7
    %v5343 = vsub.s32 1, %v5342
    %v5344 = vrot.slane %v5335, %v5343
    %v5347 = vsub.f32 %v5305, %v5340
    %v5348 = vsub.f32 %v5306, %v5340
    %v5349 = vsub.f32 %v5307, %v5344
    %v5350 = vsub.f32 %v5308, %v5344
    %v5351 = vmul.f32 %v5347, 1.442695
    %v5352 = vpow.pop %v5351
    %v5353 = vmul.f32 %v5348, 1.442695
    %v5354 = vpow.pop %v5353
    %v5355 = vmul.f32 %v5349, 1.442695
    %v5356 = vpow.pop %v5355
    %v5357 = vmul.f32 %v5350, 1.442695
    %v5358 = vpow.pop %v5357
    %5363 = vset.pattern.permute.xlu0 0
    %5364 = vperm.xlu0 %5363, %v5352
    %v5365 = vpop.permute.xlu0 %5364
    %5366 = vset.pattern.permute.xlu0 0
    %5367 = vperm.xlu0 %5366, %v5354
    %v5368 = vpop.permute.xlu0 %5367
    %5369 = vset.pattern.permute.xlu0 0
    %5370 = vperm.xlu0 %5369, %v5356
    %v5371 = vpop.permute.xlu0 %5370
    %5372 = vset.pattern.permute.xlu0 0
    %5373 = vperm.xlu0 %5372, %v5358
    %v5374 = vpop.permute.xlu0 %5373
    %v5375 = vlaneseq
    %v5376 = vshrl.u32 %v5375, 7
    %v5377 = vsub.s32 %v2915, %v5376
    %v5378 = vrot.slane %v5365, %v5377
    %v5379 = vlaneseq
    %v5380 = vshrl.u32 %v5379, 7
    %v5381 = vsub.s32 %v2920, %v5380
    %v5382 = vrot.slane %v5368, %v5381
    %v5383 = vsel %vm2925, %v5382, %v5378
    %v5384 = vlaneseq
    %v5385 = vshrl.u32 %v5384, 7
    %v5386 = vsub.s32 %v2915, %v5385
    %v5387 = vrot.slane %v5371, %v5386
    %v5388 = vlaneseq
    %v5389 = vshrl.u32 %v5388, 7
    %v5390 = vsub.s32 %v2920, %v5389
    %v5391 = vrot.slane %v5374, %v5390
    %v5392 = vsel %vm2925, %v5391, %v5387
    %v5393 = vsel %vm185, %v5392, %v5383
    %v5395 = vsel %vm2938, %v5393, 0.0
    %5396 = vadd.xlane.f32.xlu0 %v5395
    %v5397 = vpop.xlane.xlu0 %5396
    %v5399 = vlaneseq
    %v5400 = vshrl.u32 %v5399, 7
    %v5401 = vsub.s32 0, %v5400
    %v5402 = vrot.slane %v5397, %v5401
    %v5403 = vlaneseq
    %v5404 = vshrl.u32 %v5403, 7
    %v5405 = vsub.s32 1, %v5404
    %v5406 = vrot.slane %v5397, %v5405
    %v5409 = vrcp.pop %v5402
    %v5410 = vmul.f32 %v5352, %v5409
    %v5411 = vmul.f32 %v5354, %v5409
    %v5412 = vrcp.pop %v5406
    %v5413 = vmul.f32 %v5356, %v5412
    %v5414 = vmul.f32 %v5358, %v5412
    %5416 = vset.pattern.permute.xlu0 0
    %5417 = vperm.xlu0 %5416, %v5410
    %v5418 = vpop.permute.xlu0 %5417
    %5421 = vset.pattern.permute.xlu0 0
    %5422 = vperm.xlu0 %5421, %v5411
    %v5423 = vpop.permute.xlu0 %5422
    %5426 = vset.pattern.permute.xlu0 0
    %5427 = vperm.xlu0 %5426, %v5413
    %v5428 = vpop.permute.xlu0 %5427
    %5431 = vset.pattern.permute.xlu0 0
    %5432 = vperm.xlu0 %5431, %v5414
    %v5433 = vpop.permute.xlu0 %5432
    %v5435 = vmul.f32 %v5418, %v1941
    %v5436 = vmul.f32 %v5423, %v1943
    %v5437 = vmul.f32 %v5428, %v1942
    %v5438 = vmul.f32 %v5433, %v1944
    %v5439 = vsel %vm2181, %v5435, 0.0
    %v5440 = vsel %vm167, %v5436, 0.0
    %v5441 = vadd.f32 %v5439, %v5440
    %v5442 = vrot.slane %v5441, 4
    %v5443 = vadd.f32 %v5441, %v5442
    %v5444 = vrot.slane %v5443, 2
    %v5445 = vadd.f32 %v5443, %v5444
    %v5446 = vrot.slane %v5445, 1
    %v5447 = vadd.f32 %v5445, %v5446
    %v5448 = vsel %vm2181, %v5437, 0.0
    %v5449 = vsel %vm167, %v5438, 0.0
    %v5450 = vadd.f32 %v5448, %v5449
    %v5451 = vrot.slane %v5450, 4
    %v5452 = vadd.f32 %v5450, %v5451
    %v5453 = vrot.slane %v5452, 2
    %v5454 = vadd.f32 %v5452, %v5453
    %v5455 = vrot.slane %v5454, 1
    %v5456 = vadd.f32 %v5454, %v5455
    %v5459 = vsel %vm185, %v5456, %v5447
    %v5460 = vlaneseq
    %v5461 = vshrl.u32 %v5460, 7
    %v5462 = vsub.s32 0, %v5461
    %v5463 = vrot.slane %v2591, %v5462
    %v5464 = vlaneseq
    %v5465 = vshrl.u32 %v5464, 7
    %v5466 = vsub.s32 0, %v5465
    %v5467 = vrot.slane %v2610, %v5466
    %v5468 = vsel %vm185, %v5467, %v5463
    %v5470 = vsel %vm2181, %v5459, 0
    %5472 = vmatprep.subr.mxu0 0.0
    %5473 = vmatpush1.msra.mxu0 %v1993
    %5474 = vmatprep.subr.mxu0 0.0
    %5475 = vmatpush1.msra.mxu0 %v1994
    %5476 = vmatprep.subr.mxu0 0.0
    %5477 = vmatpush1.msra.mxu0 %v1995
    %5478 = vmatprep.subr.mxu0 0.0
    %5479 = vmatpush1.msra.mxu0 %v1996
    %5480 = vmatprep.subr.mxu0 0.0
    %5481 = vmatpush1.msra.mxu0 %v1997
    %5482 = vmatprep.subr.mxu0 0.0
    %5483 = vmatpush1.msra.mxu0 %v1998
    %5484 = vmatprep.subr.mxu0 0.0
    %5485 = vmatpush1.msra.mxu0 %v1999
    %5486 = vmatprep.subr.mxu0 0.0
    %5487 = vmatpush1.msra.mxu0 %v2000
    %5488 = vmatprep.subr.mxu0 0.0
    %5489 = vmatpush1.msra.mxu0 0.0
    %5490 = vmatprep.subr.mxu0 0.0
    %5491 = vmatpush1.msra.mxu0 0.0
    %5492 = vmatprep.subr.mxu0 0.0
    %5493 = vmatpush1.msra.mxu0 0.0
    %5494 = vmatprep.subr.mxu0 0.0
    %5495 = vmatpush1.msra.mxu0 0.0
    %5496 = vmatprep.subr.mxu0 0.0
    %5497 = vmatpush1.msra.mxu0 0.0
    %5498 = vmatprep.subr.mxu0 0.0
    %5499 = vmatpush1.msra.mxu0 0.0
    %5500 = vmatprep.subr.mxu0 0.0
    %5501 = vmatpush1.msra.mxu0 0.0
    %5502 = vmatprep.subr.mxu0 0.0
    %5503 = vmatpush1.msra.mxu0 0.0
    %5504 = vmatprep.subr.mxu0 0.0
    %5505 = vmatpush1.msra.mxu0 0.0
    %5506 = vmatprep.subr.mxu0 0.0
    %5507 = vmatpush1.msra.mxu0 0.0
    %5508 = vmatprep.subr.mxu0 0.0
    %5509 = vmatpush1.msra.mxu0 0.0
    %5510 = vmatprep.subr.mxu0 0.0
    %5511 = vmatpush1.msra.mxu0 0.0
    %5512 = vmatprep.subr.mxu0 0.0
    %5513 = vmatpush1.msra.mxu0 0.0
    %5514 = vmatprep.subr.mxu0 0.0
    %5515 = vmatpush1.msra.mxu0 0.0
    %5516 = vmatprep.subr.mxu0 0.0
    %5517 = vmatpush1.msra.mxu0 0.0
    %5518 = vmatprep.subr.mxu0 0.0
    %5519 = vmatpush1.msra.mxu0 0.0
    %5520 = vmatprep.subr.mxu0 0.0
    %5521 = vmatpush1.msra.mxu0 0.0
    %5522 = vmatprep.subr.mxu0 0.0
    %5523 = vmatpush1.msra.mxu0 0.0
    %5524 = vmatprep.subr.mxu0 0.0
    %5525 = vmatpush1.msra.mxu0 0.0
    %5526 = vmatprep.subr.mxu0 0.0
    %5527 = vmatpush1.msra.mxu0 0.0
    %5528 = vmatprep.subr.mxu0 0.0
    %5529 = vmatpush1.msra.mxu0 0.0
    %5530 = vmatprep.subr.mxu0 0.0
    %5531 = vmatpush1.msra.mxu0 0.0
    %5532 = vmatprep.subr.mxu0 0.0
    %5533 = vmatpush1.msra.mxu0 0.0
    %5534 = vmatprep.subr.mxu0 0.0
    %5535 = vmatpush1.msra.mxu0 0.0
    %5536 = vmatprep.mubr.f32.mxu0 0.0
    %5537 = vmatmul.mubr.f32.gmra.mrb[0].mxu0 %v5470
    %v5538 = vpop.f32.mrb[0].mxu0
    %v5539 = vadd.f32 %v5468, %v5538
    %v5540 = vpop.f32.mrb[0].mxu0
    %5541 = vdwg.mxu0
    %5543 = vrot.lane.b32.xlu0 %v5056, 5
    %v5544 = vpop.permute.xlu0 %5543
    %v5546 = vsel %vm2484, %v5539, %v5544
    %v5548 = vsel %vm3164, %v5546, 0
    %5550 = vmatprep.subr.mxu0 %v1975
    %5551 = vmatpush1.msra.mxu0 %v1974
    %5552 = vmatprep.subr.mxu0 %v1977
    %5553 = vmatpush1.msra.mxu0 %v1976
    %5554 = vmatprep.subr.mxu0 %v1979
    %5555 = vmatpush1.msra.mxu0 %v1978
    %5556 = vmatprep.subr.mxu0 %v1981
    %5557 = vmatpush1.msra.mxu0 %v1980
    %5558 = vmatprep.subr.mxu0 %v1983
    %5559 = vmatpush1.msra.mxu0 %v1982
    %5560 = vmatprep.subr.mxu0 %v1985
    %5561 = vmatpush1.msra.mxu0 %v1984
    %5562 = vmatprep.subr.mxu0 %v1987
    %5563 = vmatpush1.msra.mxu0 %v1986
    %5564 = vmatprep.subr.mxu0 %v1989
    %5565 = vmatpush1.msra.mxu0 %v1988
    %5566 = vmatprep.subr.mxu0 %v3172
    %5567 = vmatpush1.msra.mxu0 %v3169
    %5568 = vmatprep.subr.mxu0 0.0
    %5569 = vmatpush1.msra.mxu0 0.0
    %5570 = vmatprep.subr.mxu0 0.0
    %5571 = vmatpush1.msra.mxu0 0.0
    %5572 = vmatprep.subr.mxu0 0.0
    %5573 = vmatpush1.msra.mxu0 0.0
    %5574 = vmatprep.subr.mxu0 0.0
    %5575 = vmatpush1.msra.mxu0 0.0
    %5576 = vmatprep.subr.mxu0 0.0
    %5577 = vmatpush1.msra.mxu0 0.0
    %5578 = vmatprep.subr.mxu0 0.0
    %5579 = vmatpush1.msra.mxu0 0.0
    %5580 = vmatprep.subr.mxu0 0.0
    %5581 = vmatpush1.msra.mxu0 0.0
    %5582 = vmatprep.subr.mxu0 0.0
    %5583 = vmatpush1.msra.mxu0 0.0
    %5584 = vmatprep.subr.mxu0 0.0
    %5585 = vmatpush1.msra.mxu0 0.0
    %5586 = vmatprep.subr.mxu0 0.0
    %5587 = vmatpush1.msra.mxu0 0.0
    %5588 = vmatprep.subr.mxu0 0.0
    %5589 = vmatpush1.msra.mxu0 0.0
    %5590 = vmatprep.subr.mxu0 0.0
    %5591 = vmatpush1.msra.mxu0 0.0
    %5592 = vmatprep.subr.mxu0 0.0
    %5593 = vmatpush1.msra.mxu0 0.0
    %5594 = vmatprep.subr.mxu0 0.0
    %5595 = vmatpush1.msra.mxu0 0.0
    %5596 = vmatprep.subr.mxu0 0.0
    %5597 = vmatpush1.msra.mxu0 0.0
    %5598 = vmatprep.subr.mxu0 0.0
    %5599 = vmatpush1.msra.mxu0 0.0
    %5600 = vmatprep.subr.mxu0 0.0
    %5601 = vmatpush1.msra.mxu0 0.0
    %5602 = vmatprep.subr.mxu0 0.0
    %5603 = vmatpush1.msra.mxu0 0.0
    %5604 = vmatprep.subr.mxu0 0.0
    %5605 = vmatpush1.msra.mxu0 0.0
    %5606 = vmatprep.subr.mxu0 0.0
    %5607 = vmatpush1.msra.mxu0 0.0
    %5608 = vmatprep.subr.mxu0 0.0
    %5609 = vmatpush1.msra.mxu0 0.0
    %5610 = vmatprep.subr.mxu0 0.0
    %5611 = vmatpush1.msra.mxu0 0.0
    %5612 = vmatprep.subr.mxu0 0.0
    %5613 = vmatpush1.msra.mxu0 0.0
    %5614 = vmatprep.mubr.f32.mxu0 0.0
    %5615 = vmatmul.mubr.f32.gmra.mrb[0].mxu0 %v5548
    %v5616 = vpop.f32.mrb[0].mxu0
    %v5617 = vadd.f32 %v3157, %v5616
    %v5618 = vpop.f32.mrb[0].mxu0
    %v5619 = vadd.f32 %v3161, %v5618
    %5620 = vdwg.mxu0
    %v5621 = vxor.u32 %v5617, 2147483648
    %v5622 = vmul.f32 %v5621, 1.442695
    %v5623 = vpow.pop %v5622
    %v5624 = vadd.f32 %v5623, 1.0
    %v5625 = vrcp.pop %v5624
    %v5626 = vmul.f32 1.0, %v5625
    %v5627 = vxor.u32 %v5619, 2147483648
    %v5628 = vmul.f32 %v5627, 1.442695
    %v5629 = vpow.pop %v5628
    %v5630 = vadd.f32 %v5629, 1.0
    %v5631 = vrcp.pop %v5630
    %v5632 = vmul.f32 1.0, %v5631
    %v5633 = vtanh.pop %v5619
    %v5634 = vmul.f32 %v5626, %v5050
    %5636 = vrot.lane.b32.xlu0 %v5633, 64
    %v5637 = vpop.permute.xlu0 %5636
    %v5639 = vmul.f32 %v5626, %v5637
    %5641 = vrot.lane.b32.xlu0 %v5639, 64
    %v5642 = vpop.permute.xlu0 %5641
    %v5644 = vadd.f32 %v5634, %v5642
    %v5645 = vtanh.pop %v5644
    %5647 = vrot.lane.b32.xlu0 %v5645, 64
    %v5648 = vpop.permute.xlu0 %5647
    %v5650 = vmul.f32 %v5632, %v5648
    %v5651 = vsel %vm2181, %v5650, %v5644
    %5652 = vmatprep.subr.mxu0 0.0
    %5653 = vmatpush1.msra.mxu0 %v1947
    %5654 = vmatprep.subr.mxu0 0.0
    %5655 = vmatpush1.msra.mxu0 %v1948
    %5656 = vmatprep.subr.mxu0 0.0
    %5657 = vmatpush1.msra.mxu0 %v1949
    %5658 = vmatprep.subr.mxu0 0.0
    %5659 = vmatpush1.msra.mxu0 %v1950
    %5660 = vmatprep.subr.mxu0 0.0
    %5661 = vmatpush1.msra.mxu0 %v1951
    %5662 = vmatprep.subr.mxu0 0.0
    %5663 = vmatpush1.msra.mxu0 %v1952
    %5664 = vmatprep.subr.mxu0 0.0
    %5665 = vmatpush1.msra.mxu0 %v1953
    %5666 = vmatprep.subr.mxu0 0.0
    %5667 = vmatpush1.msra.mxu0 %v1954
    %5668 = vmatprep.subr.mxu0 0.0
    %5669 = vmatpush1.msra.mxu0 %v1955
    %5670 = vmatprep.subr.mxu0 0.0
    %5671 = vmatpush1.msra.mxu0 %v1956
    %5672 = vmatprep.subr.mxu0 0.0
    %5673 = vmatpush1.msra.mxu0 %v1957
    %5674 = vmatprep.subr.mxu0 0.0
    %5675 = vmatpush1.msra.mxu0 %v1958
    %5676 = vmatprep.subr.mxu0 0.0
    %5677 = vmatpush1.msra.mxu0 %v1959
    %5678 = vmatprep.subr.mxu0 0.0
    %5679 = vmatpush1.msra.mxu0 %v1960
    %5680 = vmatprep.subr.mxu0 0.0
    %5681 = vmatpush1.msra.mxu0 %v1961
    %5682 = vmatprep.subr.mxu0 0.0
    %5683 = vmatpush1.msra.mxu0 %v1962
    %5684 = vmatprep.subr.mxu0 0.0
    %5685 = vmatpush1.msra.mxu0 0.0
    %5686 = vmatprep.subr.mxu0 0.0
    %5687 = vmatpush1.msra.mxu0 0.0
    %5688 = vmatprep.subr.mxu0 0.0
    %5689 = vmatpush1.msra.mxu0 0.0
    %5690 = vmatprep.subr.mxu0 0.0
    %5691 = vmatpush1.msra.mxu0 0.0
    %5692 = vmatprep.subr.mxu0 0.0
    %5693 = vmatpush1.msra.mxu0 0.0
    %5694 = vmatprep.subr.mxu0 0.0
    %5695 = vmatpush1.msra.mxu0 0.0
    %5696 = vmatprep.subr.mxu0 0.0
    %5697 = vmatpush1.msra.mxu0 0.0
    %5698 = vmatprep.subr.mxu0 0.0
    %5699 = vmatpush1.msra.mxu0 0.0
    %5700 = vmatprep.subr.mxu0 0.0
    %5701 = vmatpush1.msra.mxu0 0.0
    %5702 = vmatprep.subr.mxu0 0.0
    %5703 = vmatpush1.msra.mxu0 0.0
    %5704 = vmatprep.subr.mxu0 0.0
    %5705 = vmatpush1.msra.mxu0 0.0
    %5706 = vmatprep.subr.mxu0 0.0
    %5707 = vmatpush1.msra.mxu0 0.0
    %5708 = vmatprep.subr.mxu0 0.0
    %5709 = vmatpush1.msra.mxu0 0.0
    %5710 = vmatprep.subr.mxu0 0.0
    %5711 = vmatpush1.msra.mxu0 0.0
    %5712 = vmatprep.subr.mxu0 0.0
    %5713 = vmatpush1.msra.mxu0 0.0
    %5714 = vmatprep.subr.mxu0 0.0
    %5715 = vmatpush1.msra.mxu0 0.0
    %5716 = vmatprep.mubr.f32.mxu0 0.0
    %5717 = vmatmul.mubr.f32.gmra.mrb[0].mxu0 %v5651
    %v5718 = vpop.f32.mrb[0].mxu0
    %v5719 = vadd.f32 0.0, %v5718
    %v5720 = vpop.f32.mrb[0].mxu0
    %5721 = vdwg.mxu0
    %v5724 = vunpack.c.l.s4 1966171168
    %v5725 = vunpack.c.0.s8 %v5724
    %v5726 = vlaneseq
    %v5727 = vshrl.u32 %v5726, 7
    %v5728 = vsub.s32 %v5725, %v5727
    %v5729 = vrot.slane %v5719, %v5728
    %v5730 = vcombine.high %v5729, %v5729
    %v5732 = vunpack.c.l.s4 1966171168
    %v5733 = vunpack.c.0.s8 %v5732
    %v5734 = vlaneseq
    %v5735 = vshrl.u32 %v5734, 7
    %v5736 = vsub.s32 %v5733, %v5735
    %v5737 = vrot.slane %v5729, %v5736
    %v5739 = vunpack.c.l.s4 1966171168
    %v5740 = vunpack.c.0.s8 %v5739
    %v5741 = vlaneseq
    %v5742 = vshrl.u32 %v5741, 7
    %v5743 = vsub.s32 %v5740, %v5742
    %v5744 = vrot.slane %v5730, %v5743
    %v5745 = vlaneseq
    %v5746 = vshrl.u32 %v5745, 7
    %v5747 = vsub.s32 0, %v5746
    %v5748 = vrot.slane %v5737, %v5747
    %v5749 = vlaneseq
    %v5750 = vshrl.u32 %v5749, 7
    %v5751 = vsub.s32 0, %v5750
    %v5752 = vrot.slane %v5744, %v5751
    %v5753 = vcombine.high %v5748, %v5748
    %v5755 = vunpack.c.l.s4 1983009808
    %v5756 = vunpack.c.0.s8 %v5755
    %v5757 = vlaneseq
    %v5758 = vshrl.u32 %v5757, 7
    %v5759 = vsub.s32 %v5756, %v5758
    %v5760 = vrot.slane %v5748, %v5759
    %v5762 = vunpack.c.l.s4 1983009808
    %v5763 = vunpack.c.0.s8 %v5762
    %v5764 = vlaneseq
    %v5765 = vshrl.u32 %v5764, 7
    %v5766 = vsub.s32 %v5763, %v5765
    %v5767 = vrot.slane %v5753, %v5766
    %v5768 = vcombine.high %v5760, %v5760
    %v5769 = vcombine.high %v5767, %v5767
    %v5770 = vcombine.high %v5752, %v5752
    %v5772 = vunpack.c.l.s4 1983009808
    %v5773 = vunpack.c.0.s8 %v5772
    %v5774 = vlaneseq
    %v5775 = vshrl.u32 %v5774, 7
    %v5776 = vsub.s32 %v5773, %v5775
    %v5777 = vrot.slane %v5752, %v5776
    %v5779 = vunpack.c.l.s4 1983009808
    %v5780 = vunpack.c.0.s8 %v5779
    %v5781 = vlaneseq
    %v5782 = vshrl.u32 %v5781, 7
    %v5783 = vsub.s32 %v5780, %v5782
    %v5784 = vrot.slane %v5770, %v5783
    %v5785 = vcombine.high %v5777, %v5777
    %v5786 = vcombine.high %v5784, %v5784
    %v5795 = vadd.f32 %v2278, %v5760
    %v5796 = vadd.f32 %v2286, %v5768
    %v5797 = vadd.f32 %v2285, %v5767
    %v5798 = vadd.f32 %v2287, %v5769
    %v5799 = vadd.f32 %v2295, %v5760
    %v5800 = vadd.f32 %v2303, %v5777
    %v5801 = vadd.f32 %v2302, %v5785
    %v5802 = vadd.f32 %v2304, %v5784
    %v5803 = vadd.f32 %v2311, %v5786
    %v5804 = vadd.f32 %v2312, %v5777
    %v5805 = vtanh.pop %v5795
    %v5806 = vtanh.pop %v5796
    %v5807 = vtanh.pop %v5797
    %v5808 = vtanh.pop %v5798
    %v5809 = vtanh.pop %v5799
    %v5810 = vtanh.pop %v5800
    %v5811 = vtanh.pop %v5801
    %v5812 = vtanh.pop %v5802
    %v5813 = vtanh.pop %v5803
    %v5814 = vtanh.pop %v5804
    %v5815 = vmul.f32 %v5805, %v2799
    %v5816 = vmul.f32 %v5806, %v2807
    %v5817 = vmul.f32 %v5807, %v2806
    %v5818 = vmul.f32 %v5808, %v2808
    %v5819 = vmul.f32 %v5809, %v2799
    %v5820 = vmul.f32 %v5810, %v2799
    %v5821 = vmul.f32 %v5811, %v2807
    %v5822 = vmul.f32 %v5812, %v2806
    %v5823 = vmul.f32 %v5813, %v2808
    %v5824 = vmul.f32 %v5814, %v2799
    %v5835 = vcombine.low %v5815, %v5816
    %v5836 = vcombine.low %v5817, %v5818
    %v5838 = vunpack.c.l.s4 1983009808
    %v5839 = vunpack.c.0.s8 %v5838
    %v5840 = vlaneseq
    %v5841 = vshrl.u32 %v5840, 7
    %v5842 = vsub.s32 %v5839, %v5841
    %v5843 = vrot.slane %v5835, %v5842
    %v5845 = vunpack.c.l.s4 1983009808
    %v5846 = vunpack.c.0.s8 %v5845
    %v5847 = vlaneseq
    %v5848 = vshrl.u32 %v5847, 7
    %v5849 = vsub.s32 %v5846, %v5848
    %v5850 = vrot.slane %v5836, %v5849
    %v5851 = vcombine.low %v5843, %v5850
    %v5853 = vunpack.c.l.s4 1983009808
    %v5854 = vunpack.c.0.s8 %v5853
    %v5855 = vlaneseq
    %v5856 = vshrl.u32 %v5855, 7
    %v5857 = vsub.s32 %v5854, %v5856
    %v5858 = vrot.slane %v5819, %v5857
    %v5859 = vcombine.low %v5820, %v5821
    %v5860 = vcombine.low %v5822, %v5823
    %v5862 = vunpack.c.l.s4 1983009808
    %v5863 = vunpack.c.0.s8 %v5862
    %v5864 = vlaneseq
    %v5865 = vshrl.u32 %v5864, 7
    %v5866 = vsub.s32 %v5863, %v5865
    %v5867 = vrot.slane %v5859, %v5866
    %v5869 = vunpack.c.l.s4 1983009808
    %v5870 = vunpack.c.0.s8 %v5869
    %v5871 = vlaneseq
    %v5872 = vshrl.u32 %v5871, 7
    %v5873 = vsub.s32 %v5870, %v5872
    %v5874 = vrot.slane %v5860, %v5873
    %v5875 = vcombine.low %v5867, %v5874
    %v5877 = vunpack.c.l.s4 1983009808
    %v5878 = vunpack.c.0.s8 %v5877
    %v5879 = vlaneseq
    %v5880 = vshrl.u32 %v5879, 7
    %v5881 = vsub.s32 %v5878, %v5880
    %v5882 = vrot.slane %v5824, %v5881
    %v5887 = vsel %vm2181, %v5851, 0.0
    %5888 = vadd.xlane.f32.xlu0 %v5887
    %v5889 = vpop.xlane.xlu0 %5888
    %v5890 = vsel %vm167, %v5858, 0.0
    %5891 = vadd.xlane.f32.xlu0 %v5890
    %v5892 = vpop.xlane.xlu0 %5891
    %v5893 = vsel %vm2181, %v5875, 0.0
    %5894 = vadd.xlane.f32.xlu0 %v5893
    %v5895 = vpop.xlane.xlu0 %5894
    %v5896 = vsel %vm167, %v5882, 0.0
    %5897 = vadd.xlane.f32.xlu0 %v5896
    %v5898 = vpop.xlane.xlu0 %5897
    %v5899 = vadd.f32 %v5889, %v2904
    %v5900 = vadd.f32 %v5892, %v2904
    %v5901 = vadd.f32 %v5895, %v2904
    %v5902 = vadd.f32 %v5898, %v2904
    %v5907 = vlaneseq
    %v5908 = vshrl.u32 %v5907, 7
    %v5909 = vsub.s32 %v2915, %v5908
    %v5910 = vrot.slane %v5899, %v5909
    %v5911 = vlaneseq
    %v5912 = vshrl.u32 %v5911, 7
    %v5913 = vsub.s32 %v2920, %v5912
    %v5914 = vrot.slane %v5900, %v5913
    %v5915 = vsel %vm2925, %v5914, %v5910
    %v5916 = vlaneseq
    %v5917 = vshrl.u32 %v5916, 7
    %v5918 = vsub.s32 %v2915, %v5917
    %v5919 = vrot.slane %v5901, %v5918
    %v5920 = vlaneseq
    %v5921 = vshrl.u32 %v5920, 7
    %v5922 = vsub.s32 %v2920, %v5921
    %v5923 = vrot.slane %v5902, %v5922
    %v5924 = vsel %vm2925, %v5923, %v5919
    %v5925 = vsel %vm185, %v5924, %v5915
    %v5927 = vsel %vm2938, %v5925, -inf
    %5928 = vmax.xlane.f32.xlu0 %v5927
    %v5929 = vpop.xlane.xlu0 %5928
    %v5931 = vlaneseq
    %v5932 = vshrl.u32 %v5931, 7
    %v5933 = vsub.s32 0, %v5932
    %v5934 = vrot.slane %v5929, %v5933
    %v5935 = vlaneseq
    %v5936 = vshrl.u32 %v5935, 7
    %v5937 = vsub.s32 1, %v5936
    %v5938 = vrot.slane %v5929, %v5937
    %v5941 = vsub.f32 %v5899, %v5934
    %v5942 = vsub.f32 %v5900, %v5934
    %v5943 = vsub.f32 %v5901, %v5938
    %v5944 = vsub.f32 %v5902, %v5938
    %v5945 = vmul.f32 %v5941, 1.442695
    %v5946 = vpow.pop %v5945
    %v5947 = vmul.f32 %v5942, 1.442695
    %v5948 = vpow.pop %v5947
    %v5949 = vmul.f32 %v5943, 1.442695
    %v5950 = vpow.pop %v5949
    %v5951 = vmul.f32 %v5944, 1.442695
    %v5952 = vpow.pop %v5951
    %5957 = vset.pattern.permute.xlu0 0
    %5958 = vperm.xlu0 %5957, %v5946
    %v5959 = vpop.permute.xlu0 %5958
    %5960 = vset.pattern.permute.xlu0 0
    %5961 = vperm.xlu0 %5960, %v5948
    %v5962 = vpop.permute.xlu0 %5961
    %5963 = vset.pattern.permute.xlu0 0
    %5964 = vperm.xlu0 %5963, %v5950
    %v5965 = vpop.permute.xlu0 %5964
    %5966 = vset.pattern.permute.xlu0 0
    %5967 = vperm.xlu0 %5966, %v5952
    %v5968 = vpop.permute.xlu0 %5967
    %v5969 = vlaneseq
    %v5970 = vshrl.u32 %v5969, 7
    %v5971 = vsub.s32 %v2915, %v5970
    %v5972 = vrot.slane %v5959, %v5971
    %v5973 = vlaneseq
    %v5974 = vshrl.u32 %v5973, 7
    %v5975 = vsub.s32 %v2920, %v5974
    %v5976 = vrot.slane %v5962, %v5975
    %v5977 = vsel %vm2925, %v5976, %v5972
    %v5978 = vlaneseq
    %v5979 = vshrl.u32 %v5978, 7
    %v5980 = vsub.s32 %v2915, %v5979
    %v5981 = vrot.slane %v5965, %v5980
    %v5982 = vlaneseq
    %v5983 = vshrl.u32 %v5982, 7
    %v5984 = vsub.s32 %v2920, %v5983
    %v5985 = vrot.slane %v5968, %v5984
    %v5986 = vsel %vm2925, %v5985, %v5981
    %v5987 = vsel %vm185, %v5986, %v5977
    %v5989 = vsel %vm2938, %v5987, 0.0
    %5990 = vadd.xlane.f32.xlu0 %v5989
    %v5991 = vpop.xlane.xlu0 %5990
    %v5993 = vlaneseq
    %v5994 = vshrl.u32 %v5993, 7
    %v5995 = vsub.s32 0, %v5994
    %v5996 = vrot.slane %v5991, %v5995
    %v5997 = vlaneseq
    %v5998 = vshrl.u32 %v5997, 7
    %v5999 = vsub.s32 1, %v5998
    %v6000 = vrot.slane %v5991, %v5999
    %v6003 = vrcp.pop %v5996
    %v6004 = vmul.f32 %v5946, %v6003
    %v6005 = vmul.f32 %v5948, %v6003
    %v6006 = vrcp.pop %v6000
    %v6007 = vmul.f32 %v5950, %v6006
    %v6008 = vmul.f32 %v5952, %v6006
    %6010 = vset.pattern.permute.xlu0 0
    %6011 = vperm.xlu0 %6010, %v6004
    %v6012 = vpop.permute.xlu0 %6011
    %6015 = vset.pattern.permute.xlu0 0
    %6016 = vperm.xlu0 %6015, %v6005
    %v6017 = vpop.permute.xlu0 %6016
    %6020 = vset.pattern.permute.xlu0 0
    %6021 = vperm.xlu0 %6020, %v6007
    %v6022 = vpop.permute.xlu0 %6021
    %6025 = vset.pattern.permute.xlu0 0
    %6026 = vperm.xlu0 %6025, %v6008
    %v6027 = vpop.permute.xlu0 %6026
    %v6029 = vmul.f32 %v6012, %v1941
    %v6030 = vmul.f32 %v6017, %v1943
    %v6031 = vmul.f32 %v6022, %v1942
    %v6032 = vmul.f32 %v6027, %v1944
    %v6033 = vsel %vm2181, %v6029, 0.0
    %v6034 = vsel %vm167, %v6030, 0.0
    %v6035 = vadd.f32 %v6033, %v6034
    %v6036 = vrot.slane %v6035, 4
    %v6037 = vadd.f32 %v6035, %v6036
    %v6038 = vrot.slane %v6037, 2
    %v6039 = vadd.f32 %v6037, %v6038
    %v6040 = vrot.slane %v6039, 1
    %v6041 = vadd.f32 %v6039, %v6040
    %v6042 = vsel %vm2181, %v6031, 0.0
    %v6043 = vsel %vm167, %v6032, 0.0
    %v6044 = vadd.f32 %v6042, %v6043
    %v6045 = vrot.slane %v6044, 4
    %v6046 = vadd.f32 %v6044, %v6045
    %v6047 = vrot.slane %v6046, 2
    %v6048 = vadd.f32 %v6046, %v6047
    %v6049 = vrot.slane %v6048, 1
    %v6050 = vadd.f32 %v6048, %v6049
    %v6053 = vsel %vm185, %v6050, %v6041
    %v6054 = vlaneseq
    %v6055 = vshrl.u32 %v6054, 7
    %v6056 = vsub.s32 1, %v6055
    %v6057 = vrot.slane %v2591, %v6056
    %v6058 = vlaneseq
    %v6059 = vshrl.u32 %v6058, 7
    %v6060 = vsub.s32 1, %v6059
    %v6061 = vrot.slane %v2610, %v6060
    %v6062 = vsel %vm185, %v6061, %v6057
    %v6064 = vsel %vm2181, %v6053, 0
    %6066 = vmatprep.subr.mxu0 0.0
    %6067 = vmatpush1.msra.mxu0 %v1993
    %6068 = vmatprep.subr.mxu0 0.0
    %6069 = vmatpush1.msra.mxu0 %v1994
    %6070 = vmatprep.subr.mxu0 0.0
    %6071 = vmatpush1.msra.mxu0 %v1995
    %6072 = vmatprep.subr.mxu0 0.0
    %6073 = vmatpush1.msra.mxu0 %v1996
    %6074 = vmatprep.subr.mxu0 0.0
    %6075 = vmatpush1.msra.mxu0 %v1997
    %6076 = vmatprep.subr.mxu0 0.0
    %6077 = vmatpush1.msra.mxu0 %v1998
    %6078 = vmatprep.subr.mxu0 0.0
    %6079 = vmatpush1.msra.mxu0 %v1999
    %6080 = vmatprep.subr.mxu0 0.0
    %6081 = vmatpush1.msra.mxu0 %v2000
    %6082 = vmatprep.subr.mxu0 0.0
    %6083 = vmatpush1.msra.mxu0 0.0
    %6084 = vmatprep.subr.mxu0 0.0
    %6085 = vmatpush1.msra.mxu0 0.0
    %6086 = vmatprep.subr.mxu0 0.0
    %6087 = vmatpush1.msra.mxu0 0.0
    %6088 = vmatprep.subr.mxu0 0.0
    %6089 = vmatpush1.msra.mxu0 0.0
    %6090 = vmatprep.subr.mxu0 0.0
    %6091 = vmatpush1.msra.mxu0 0.0
    %6092 = vmatprep.subr.mxu0 0.0
    %6093 = vmatpush1.msra.mxu0 0.0
    %6094 = vmatprep.subr.mxu0 0.0
    %6095 = vmatpush1.msra.mxu0 0.0
    %6096 = vmatprep.subr.mxu0 0.0
    %6097 = vmatpush1.msra.mxu0 0.0
    %6098 = vmatprep.subr.mxu0 0.0
    %6099 = vmatpush1.msra.mxu0 0.0
    %6100 = vmatprep.subr.mxu0 0.0
    %6101 = vmatpush1.msra.mxu0 0.0
    %6102 = vmatprep.subr.mxu0 0.0
    %6103 = vmatpush1.msra.mxu0 0.0
    %6104 = vmatprep.subr.mxu0 0.0
    %6105 = vmatpush1.msra.mxu0 0.0
    %6106 = vmatprep.subr.mxu0 0.0
    %6107 = vmatpush1.msra.mxu0 0.0
    %6108 = vmatprep.subr.mxu0 0.0
    %6109 = vmatpush1.msra.mxu0 0.0
    %6110 = vmatprep.subr.mxu0 0.0
    %6111 = vmatpush1.msra.mxu0 0.0
    %6112 = vmatprep.subr.mxu0 0.0
    %6113 = vmatpush1.msra.mxu0 0.0
    %6114 = vmatprep.subr.mxu0 0.0
    %6115 = vmatpush1.msra.mxu0 0.0
    %6116 = vmatprep.subr.mxu0 0.0
    %6117 = vmatpush1.msra.mxu0 0.0
    %6118 = vmatprep.subr.mxu0 0.0
    %6119 = vmatpush1.msra.mxu0 0.0
    %6120 = vmatprep.subr.mxu0 0.0
    %6121 = vmatpush1.msra.mxu0 0.0
    %6122 = vmatprep.subr.mxu0 0.0
    %6123 = vmatpush1.msra.mxu0 0.0
    %6124 = vmatprep.subr.mxu0 0.0
    %6125 = vmatpush1.msra.mxu0 0.0
    %6126 = vmatprep.subr.mxu0 0.0
    %6127 = vmatpush1.msra.mxu0 0.0
    %6128 = vmatprep.subr.mxu0 0.0
    %6129 = vmatpush1.msra.mxu0 0.0
    %6130 = vmatprep.mubr.f32.mxu0 0.0
    %6131 = vmatmul.mubr.f32.gmra.mrb[0].mxu0 %v6064
    %v6132 = vpop.f32.mrb[0].mxu0
    %v6133 = vadd.f32 %v6062, %v6132
    %v6134 = vpop.f32.mrb[0].mxu0
    %6135 = vdwg.mxu0
    %6137 = vrot.lane.b32.xlu0 %v5650, 5
    %v6138 = vpop.permute.xlu0 %6137
    %v6140 = vsel %vm2484, %v6133, %v6138
    %v6142 = vsel %vm3164, %v6140, 0
    %6144 = vmatprep.subr.mxu0 %v1975
    %6145 = vmatpush1.msra.mxu0 %v1974
    %6146 = vmatprep.subr.mxu0 %v1977
    %6147 = vmatpush1.msra.mxu0 %v1976
    %6148 = vmatprep.subr.mxu0 %v1979
    %6149 = vmatpush1.msra.mxu0 %v1978
    %6150 = vmatprep.subr.mxu0 %v1981
    %6151 = vmatpush1.msra.mxu0 %v1980
    %6152 = vmatprep.subr.mxu0 %v1983
    %6153 = vmatpush1.msra.mxu0 %v1982
    %6154 = vmatprep.subr.mxu0 %v1985
    %6155 = vmatpush1.msra.mxu0 %v1984
    %6156 = vmatprep.subr.mxu0 %v1987
    %6157 = vmatpush1.msra.mxu0 %v1986
    %6158 = vmatprep.subr.mxu0 %v1989
    %6159 = vmatpush1.msra.mxu0 %v1988
    %6160 = vmatprep.subr.mxu0 %v3172
    %6161 = vmatpush1.msra.mxu0 %v3169
    %6162 = vmatprep.subr.mxu0 0.0
    %6163 = vmatpush1.msra.mxu0 0.0
    %6164 = vmatprep.subr.mxu0 0.0
    %6165 = vmatpush1.msra.mxu0 0.0
    %6166 = vmatprep.subr.mxu0 0.0
    %6167 = vmatpush1.msra.mxu0 0.0
    %6168 = vmatprep.subr.mxu0 0.0
    %6169 = vmatpush1.msra.mxu0 0.0
    %6170 = vmatprep.subr.mxu0 0.0
    %6171 = vmatpush1.msra.mxu0 0.0
    %6172 = vmatprep.subr.mxu0 0.0
    %6173 = vmatpush1.msra.mxu0 0.0
    %6174 = vmatprep.subr.mxu0 0.0
    %6175 = vmatpush1.msra.mxu0 0.0
    %6176 = vmatprep.subr.mxu0 0.0
    %6177 = vmatpush1.msra.mxu0 0.0
    %6178 = vmatprep.subr.mxu0 0.0
    %6179 = vmatpush1.msra.mxu0 0.0
    %6180 = vmatprep.subr.mxu0 0.0
    %6181 = vmatpush1.msra.mxu0 0.0
    %6182 = vmatprep.subr.mxu0 0.0
    %6183 = vmatpush1.msra.mxu0 0.0
    %6184 = vmatprep.subr.mxu0 0.0
    %6185 = vmatpush1.msra.mxu0 0.0
    %6186 = vmatprep.subr.mxu0 0.0
    %6187 = vmatpush1.msra.mxu0 0.0
    %6188 = vmatprep.subr.mxu0 0.0
    %6189 = vmatpush1.msra.mxu0 0.0
    %6190 = vmatprep.subr.mxu0 0.0
    %6191 = vmatpush1.msra.mxu0 0.0
    %6192 = vmatprep.subr.mxu0 0.0
    %6193 = vmatpush1.msra.mxu0 0.0
    %6194 = vmatprep.subr.mxu0 0.0
    %6195 = vmatpush1.msra.mxu0 0.0
    %6196 = vmatprep.subr.mxu0 0.0
    %6197 = vmatpush1.msra.mxu0 0.0
    %6198 = vmatprep.subr.mxu0 0.0
    %6199 = vmatpush1.msra.mxu0 0.0
    %6200 = vmatprep.subr.mxu0 0.0
    %6201 = vmatpush1.msra.mxu0 0.0
    %6202 = vmatprep.subr.mxu0 0.0
    %6203 = vmatpush1.msra.mxu0 0.0
    %6204 = vmatprep.subr.mxu0 0.0
    %6205 = vmatpush1.msra.mxu0 0.0
    %6206 = vmatprep.subr.mxu0 0.0
    %6207 = vmatpush1.msra.mxu0 0.0
    %6208 = vmatprep.mubr.f32.mxu0 0.0
    %6209 = vmatmul.mubr.f32.gmra.mrb[0].mxu0 %v6142
    %v6210 = vpop.f32.mrb[0].mxu0
    %v6211 = vadd.f32 %v3157, %v6210
    %v6212 = vpop.f32.mrb[0].mxu0
    %v6213 = vadd.f32 %v3161, %v6212
    %6214 = vdwg.mxu0
    %v6215 = vxor.u32 %v6211, 2147483648
    %v6216 = vmul.f32 %v6215, 1.442695
    %v6217 = vpow.pop %v6216
    %v6218 = vadd.f32 %v6217, 1.0
    %v6219 = vrcp.pop %v6218
    %v6220 = vmul.f32 1.0, %v6219
    %v6221 = vxor.u32 %v6213, 2147483648
    %v6222 = vmul.f32 %v6221, 1.442695
    %v6223 = vpow.pop %v6222
    %v6224 = vadd.f32 %v6223, 1.0
    %v6225 = vrcp.pop %v6224
    %v6226 = vmul.f32 1.0, %v6225
    %v6227 = vtanh.pop %v6213
    %v6228 = vmul.f32 %v6220, %v5644
    %6230 = vrot.lane.b32.xlu0 %v6227, 64
    %v6231 = vpop.permute.xlu0 %6230
    %v6233 = vmul.f32 %v6220, %v6231
    %6235 = vrot.lane.b32.xlu0 %v6233, 64
    %v6236 = vpop.permute.xlu0 %6235
    %v6238 = vadd.f32 %v6228, %v6236
    %v6239 = vtanh.pop %v6238
    %6241 = vrot.lane.b32.xlu0 %v6239, 64
    %v6242 = vpop.permute.xlu0 %6241
    %v6244 = vmul.f32 %v6226, %v6242
    %v6245 = vsel %vm2181, %v6244, %v6238
    %6246 = vmatprep.subr.mxu0 0.0
    %6247 = vmatpush1.msra.mxu0 %v1947
    %6248 = vmatprep.subr.mxu0 0.0
    %6249 = vmatpush1.msra.mxu0 %v1948
    %6250 = vmatprep.subr.mxu0 0.0
    %6251 = vmatpush1.msra.mxu0 %v1949
    %6252 = vmatprep.subr.mxu0 0.0
    %6253 = vmatpush1.msra.mxu0 %v1950
    %6254 = vmatprep.subr.mxu0 0.0
    %6255 = vmatpush1.msra.mxu0 %v1951
    %6256 = vmatprep.subr.mxu0 0.0
    %6257 = vmatpush1.msra.mxu0 %v1952
    %6258 = vmatprep.subr.mxu0 0.0
    %6259 = vmatpush1.msra.mxu0 %v1953
    %6260 = vmatprep.subr.mxu0 0.0
    %6261 = vmatpush1.msra.mxu0 %v1954
    %6262 = vmatprep.subr.mxu0 0.0
    %6263 = vmatpush1.msra.mxu0 %v1955
    %6264 = vmatprep.subr.mxu0 0.0
    %6265 = vmatpush1.msra.mxu0 %v1956
    %6266 = vmatprep.subr.mxu0 0.0
    %6267 = vmatpush1.msra.mxu0 %v1957
    %6268 = vmatprep.subr.mxu0 0.0
    %6269 = vmatpush1.msra.mxu0 %v1958
    %6270 = vmatprep.subr.mxu0 0.0
    %6271 = vmatpush1.msra.mxu0 %v1959
    %6272 = vmatprep.subr.mxu0 0.0
    %6273 = vmatpush1.msra.mxu0 %v1960
    %6274 = vmatprep.subr.mxu0 0.0
    %6275 = vmatpush1.msra.mxu0 %v1961
    %6276 = vmatprep.subr.mxu0 0.0
    %6277 = vmatpush1.msra.mxu0 %v1962
    %6278 = vmatprep.subr.mxu0 0.0
    %6279 = vmatpush1.msra.mxu0 0.0
    %6280 = vmatprep.subr.mxu0 0.0
    %6281 = vmatpush1.msra.mxu0 0.0
    %6282 = vmatprep.subr.mxu0 0.0
    %6283 = vmatpush1.msra.mxu0 0.0
    %6284 = vmatprep.subr.mxu0 0.0
    %6285 = vmatpush1.msra.mxu0 0.0
    %6286 = vmatprep.subr.mxu0 0.0
    %6287 = vmatpush1.msra.mxu0 0.0
    %6288 = vmatprep.subr.mxu0 0.0
    %6289 = vmatpush1.msra.mxu0 0.0
    %6290 = vmatprep.subr.mxu0 0.0
    %6291 = vmatpush1.msra.mxu0 0.0
    %6292 = vmatprep.subr.mxu0 0.0
    %6293 = vmatpush1.msra.mxu0 0.0
    %6294 = vmatprep.subr.mxu0 0.0
    %6295 = vmatpush1.msra.mxu0 0.0
    %6296 = vmatprep.subr.mxu0 0.0
    %6297 = vmatpush1.msra.mxu0 0.0
    %6298 = vmatprep.subr.mxu0 0.0
    %6299 = vmatpush1.msra.mxu0 0.0
    %6300 = vmatprep.subr.mxu0 0.0
    %6301 = vmatpush1.msra.mxu0 0.0
    %6302 = vmatprep.subr.mxu0 0.0
    %6303 = vmatpush1.msra.mxu0 0.0
    %6304 = vmatprep.subr.mxu0 0.0
    %6305 = vmatpush1.msra.mxu0 0.0
    %6306 = vmatprep.subr.mxu0 0.0
    %6307 = vmatpush1.msra.mxu0 0.0
    %6308 = vmatprep.subr.mxu0 0.0
    %6309 = vmatpush1.msra.mxu0 0.0
    %6310 = vmatprep.mubr.f32.mxu0 0.0
    %6311 = vmatmul.mubr.f32.gmra.mrb[0].mxu0 %v6245
    %v6312 = vpop.f32.mrb[0].mxu0
    %v6313 = vadd.f32 0.0, %v6312
    %v6314 = vpop.f32.mrb[0].mxu0
    %6315 = vdwg.mxu0
    %v6318 = vunpack.c.l.s4 1966171168
    %v6319 = vunpack.c.0.s8 %v6318
    %v6320 = vlaneseq
    %v6321 = vshrl.u32 %v6320, 7
    %v6322 = vsub.s32 %v6319, %v6321
    %v6323 = vrot.slane %v6313, %v6322
    %v6324 = vcombine.high %v6323, %v6323
    %v6326 = vunpack.c.l.s4 1966171168
    %v6327 = vunpack.c.0.s8 %v6326
    %v6328 = vlaneseq
    %v6329 = vshrl.u32 %v6328, 7
    %v6330 = vsub.s32 %v6327, %v6329
    %v6331 = vrot.slane %v6323, %v6330
    %v6333 = vunpack.c.l.s4 1966171168
    %v6334 = vunpack.c.0.s8 %v6333
    %v6335 = vlaneseq
    %v6336 = vshrl.u32 %v6335, 7
    %v6337 = vsub.s32 %v6334, %v6336
    %v6338 = vrot.slane %v6324, %v6337
    %v6339 = vlaneseq
    %v6340 = vshrl.u32 %v6339, 7
    %v6341 = vsub.s32 0, %v6340
    %v6342 = vrot.slane %v6331, %v6341
    %v6343 = vlaneseq
    %v6344 = vshrl.u32 %v6343, 7
    %v6345 = vsub.s32 0, %v6344
    %v6346 = vrot.slane %v6338, %v6345
    %v6347 = vcombine.high %v6342, %v6342
    %v6349 = vunpack.c.l.s4 1983009808
    %v6350 = vunpack.c.0.s8 %v6349
    %v6351 = vlaneseq
    %v6352 = vshrl.u32 %v6351, 7
    %v6353 = vsub.s32 %v6350, %v6352
    %v6354 = vrot.slane %v6342, %v6353
    %v6356 = vunpack.c.l.s4 1983009808
    %v6357 = vunpack.c.0.s8 %v6356
    %v6358 = vlaneseq
    %v6359 = vshrl.u32 %v6358, 7
    %v6360 = vsub.s32 %v6357, %v6359
    %v6361 = vrot.slane %v6347, %v6360
    %v6362 = vcombine.high %v6354, %v6354
    %v6363 = vcombine.high %v6361, %v6361
    %v6364 = vcombine.high %v6346, %v6346
    %v6366 = vunpack.c.l.s4 1983009808
    %v6367 = vunpack.c.0.s8 %v6366
    %v6368 = vlaneseq
    %v6369 = vshrl.u32 %v6368, 7
    %v6370 = vsub.s32 %v6367, %v6369
    %v6371 = vrot.slane %v6346, %v6370
    %v6373 = vunpack.c.l.s4 1983009808
    %v6374 = vunpack.c.0.s8 %v6373
    %v6375 = vlaneseq
    %v6376 = vshrl.u32 %v6375, 7
    %v6377 = vsub.s32 %v6374, %v6376
    %v6378 = vrot.slane %v6364, %v6377
    %v6379 = vcombine.high %v6371, %v6371
    %v6380 = vcombine.high %v6378, %v6378
    %v6389 = vadd.f32 %v2278, %v6354
    %v6390 = vadd.f32 %v2286, %v6362
    %v6391 = vadd.f32 %v2285, %v6361
    %v6392 = vadd.f32 %v2287, %v6363
    %v6393 = vadd.f32 %v2295, %v6354
    %v6394 = vadd.f32 %v2303, %v6371
    %v6395 = vadd.f32 %v2302, %v6379
    %v6396 = vadd.f32 %v2304, %v6378
    %v6397 = vadd.f32 %v2311, %v6380
    %v6398 = vadd.f32 %v2312, %v6371
    %v6399 = vtanh.pop %v6389
    %v6400 = vtanh.pop %v6390
    %v6401 = vtanh.pop %v6391
    %v6402 = vtanh.pop %v6392
    %v6403 = vtanh.pop %v6393
    %v6404 = vtanh.pop %v6394
    %v6405 = vtanh.pop %v6395
    %v6406 = vtanh.pop %v6396
    %v6407 = vtanh.pop %v6397
    %v6408 = vtanh.pop %v6398
    %v6409 = vmul.f32 %v6399, %v2799
    %v6410 = vmul.f32 %v6400, %v2807
    %v6411 = vmul.f32 %v6401, %v2806
    %v6412 = vmul.f32 %v6402, %v2808
    %v6413 = vmul.f32 %v6403, %v2799
    %v6414 = vmul.f32 %v6404, %v2799
    %v6415 = vmul.f32 %v6405, %v2807
    %v6416 = vmul.f32 %v6406, %v2806
    %v6417 = vmul.f32 %v6407, %v2808
    %v6418 = vmul.f32 %v6408, %v2799
    %v6429 = vcombine.low %v6409, %v6410
    %v6430 = vcombine.low %v6411, %v6412
    %v6432 = vunpack.c.l.s4 1983009808
    %v6433 = vunpack.c.0.s8 %v6432
    %v6434 = vlaneseq
    %v6435 = vshrl.u32 %v6434, 7
    %v6436 = vsub.s32 %v6433, %v6435
    %v6437 = vrot.slane %v6429, %v6436
    %v6439 = vunpack.c.l.s4 1983009808
    %v6440 = vunpack.c.0.s8 %v6439
    %v6441 = vlaneseq
    %v6442 = vshrl.u32 %v6441, 7
    %v6443 = vsub.s32 %v6440, %v6442
    %v6444 = vrot.slane %v6430, %v6443
    %v6445 = vcombine.low %v6437, %v6444
    %v6447 = vunpack.c.l.s4 1983009808
    %v6448 = vunpack.c.0.s8 %v6447
    %v6449 = vlaneseq
    %v6450 = vshrl.u32 %v6449, 7
    %v6451 = vsub.s32 %v6448, %v6450
    %v6452 = vrot.slane %v6413, %v6451
    %v6453 = vcombine.low %v6414, %v6415
    %v6454 = vcombine.low %v6416, %v6417
    %v6456 = vunpack.c.l.s4 1983009808
    %v6457 = vunpack.c.0.s8 %v6456
    %v6458 = vlaneseq
    %v6459 = vshrl.u32 %v6458, 7
    %v6460 = vsub.s32 %v6457, %v6459
    %v6461 = vrot.slane %v6453, %v6460
    %v6463 = vunpack.c.l.s4 1983009808
    %v6464 = vunpack.c.0.s8 %v6463
    %v6465 = vlaneseq
    %v6466 = vshrl.u32 %v6465, 7
    %v6467 = vsub.s32 %v6464, %v6466
    %v6468 = vrot.slane %v6454, %v6467
    %v6469 = vcombine.low %v6461, %v6468
    %v6471 = vunpack.c.l.s4 1983009808
    %v6472 = vunpack.c.0.s8 %v6471
    %v6473 = vlaneseq
    %v6474 = vshrl.u32 %v6473, 7
    %v6475 = vsub.s32 %v6472, %v6474
    %v6476 = vrot.slane %v6418, %v6475
    %v6481 = vsel %vm2181, %v6445, 0.0
    %6482 = vadd.xlane.f32.xlu0 %v6481
    %v6483 = vpop.xlane.xlu0 %6482
    %v6484 = vsel %vm167, %v6452, 0.0
    %6485 = vadd.xlane.f32.xlu0 %v6484
    %v6486 = vpop.xlane.xlu0 %6485
    %v6487 = vsel %vm2181, %v6469, 0.0
    %6488 = vadd.xlane.f32.xlu0 %v6487
    %v6489 = vpop.xlane.xlu0 %6488
    %v6490 = vsel %vm167, %v6476, 0.0
    %6491 = vadd.xlane.f32.xlu0 %v6490
    %v6492 = vpop.xlane.xlu0 %6491
    %v6493 = vadd.f32 %v6483, %v2904
    %v6494 = vadd.f32 %v6486, %v2904
    %v6495 = vadd.f32 %v6489, %v2904
    %v6496 = vadd.f32 %v6492, %v2904
    %v6501 = vlaneseq
    %v6502 = vshrl.u32 %v6501, 7
    %v6503 = vsub.s32 %v2915, %v6502
    %v6504 = vrot.slane %v6493, %v6503
    %v6505 = vlaneseq
    %v6506 = vshrl.u32 %v6505, 7
    %v6507 = vsub.s32 %v2920, %v6506
    %v6508 = vrot.slane %v6494, %v6507
    %v6509 = vsel %vm2925, %v6508, %v6504
    %v6510 = vlaneseq
    %v6511 = vshrl.u32 %v6510, 7
    %v6512 = vsub.s32 %v2915, %v6511
    %v6513 = vrot.slane %v6495, %v6512
    %v6514 = vlaneseq
    %v6515 = vshrl.u32 %v6514, 7
    %v6516 = vsub.s32 %v2920, %v6515
    %v6517 = vrot.slane %v6496, %v6516
    %v6518 = vsel %vm2925, %v6517, %v6513
    %v6519 = vsel %vm185, %v6518, %v6509
    %v6521 = vsel %vm2938, %v6519, -inf
    %6522 = vmax.xlane.f32.xlu0 %v6521
    %v6523 = vpop.xlane.xlu0 %6522
    %v6525 = vlaneseq
    %v6526 = vshrl.u32 %v6525, 7
    %v6527 = vsub.s32 0, %v6526
    %v6528 = vrot.slane %v6523, %v6527
    %v6529 = vlaneseq
    %v6530 = vshrl.u32 %v6529, 7
    %v6531 = vsub.s32 1, %v6530
    %v6532 = vrot.slane %v6523, %v6531
    %v6535 = vsub.f32 %v6493, %v6528
    %v6536 = vsub.f32 %v6494, %v6528
    %v6537 = vsub.f32 %v6495, %v6532
    %v6538 = vsub.f32 %v6496, %v6532
    %v6539 = vmul.f32 %v6535, 1.442695
    %v6540 = vpow.pop %v6539
    %v6541 = vmul.f32 %v6536, 1.442695
    %v6542 = vpow.pop %v6541
    %v6543 = vmul.f32 %v6537, 1.442695
    %v6544 = vpow.pop %v6543
    %v6545 = vmul.f32 %v6538, 1.442695
    %v6546 = vpow.pop %v6545
    %6551 = vset.pattern.permute.xlu0 0
    %6552 = vperm.xlu0 %6551, %v6540
    %v6553 = vpop.permute.xlu0 %6552
    %6554 = vset.pattern.permute.xlu0 0
    %6555 = vperm.xlu0 %6554, %v6542
    %v6556 = vpop.permute.xlu0 %6555
    %6557 = vset.pattern.permute.xlu0 0
    %6558 = vperm.xlu0 %6557, %v6544
    %v6559 = vpop.permute.xlu0 %6558
    %6560 = vset.pattern.permute.xlu0 0
    %6561 = vperm.xlu0 %6560, %v6546
    %v6562 = vpop.permute.xlu0 %6561
    %v6563 = vlaneseq
    %v6564 = vshrl.u32 %v6563, 7
    %v6565 = vsub.s32 %v2915, %v6564
    %v6566 = vrot.slane %v6553, %v6565
    %v6567 = vlaneseq
    %v6568 = vshrl.u32 %v6567, 7
    %v6569 = vsub.s32 %v2920, %v6568
    %v6570 = vrot.slane %v6556, %v6569
    %v6571 = vsel %vm2925, %v6570, %v6566
    %v6572 = vlaneseq
    %v6573 = vshrl.u32 %v6572, 7
    %v6574 = vsub.s32 %v2915, %v6573
    %v6575 = vrot.slane %v6559, %v6574
    %v6576 = vlaneseq
    %v6577 = vshrl.u32 %v6576, 7
    %v6578 = vsub.s32 %v2920, %v6577
    %v6579 = vrot.slane %v6562, %v6578
    %v6580 = vsel %vm2925, %v6579, %v6575
    %v6581 = vsel %vm185, %v6580, %v6571
    %v6583 = vsel %vm2938, %v6581, 0.0
    %6584 = vadd.xlane.f32.xlu0 %v6583
    %v6585 = vpop.xlane.xlu0 %6584
    %v6587 = vlaneseq
    %v6588 = vshrl.u32 %v6587, 7
    %v6589 = vsub.s32 0, %v6588
    %v6590 = vrot.slane %v6585, %v6589
    %v6591 = vlaneseq
    %v6592 = vshrl.u32 %v6591, 7
    %v6593 = vsub.s32 1, %v6592
    %v6594 = vrot.slane %v6585, %v6593
    %v6597 = vrcp.pop %v6590
    %v6598 = vmul.f32 %v6540, %v6597
    %v6599 = vmul.f32 %v6542, %v6597
    %v6600 = vrcp.pop %v6594
    %v6601 = vmul.f32 %v6544, %v6600
    %v6602 = vmul.f32 %v6546, %v6600
    %6604 = vset.pattern.permute.xlu0 0
    %6605 = vperm.xlu0 %6604, %v6598
    %v6606 = vpop.permute.xlu0 %6605
    %6609 = vset.pattern.permute.xlu0 0
    %6610 = vperm.xlu0 %6609, %v6599
    %v6611 = vpop.permute.xlu0 %6610
    %6614 = vset.pattern.permute.xlu0 0
    %6615 = vperm.xlu0 %6614, %v6601
    %v6616 = vpop.permute.xlu0 %6615
    %6619 = vset.pattern.permute.xlu0 0
    %6620 = vperm.xlu0 %6619, %v6602
    %v6621 = vpop.permute.xlu0 %6620
    %v6623 = vmul.f32 %v6606, %v1941
    %v6624 = vmul.f32 %v6611, %v1943
    %v6625 = vmul.f32 %v6616, %v1942
    %v6626 = vmul.f32 %v6621, %v1944
    %v6627 = vsel %vm2181, %v6623, 0.0
    %v6628 = vsel %vm167, %v6624, 0.0
    %v6629 = vadd.f32 %v6627, %v6628
    %v6630 = vrot.slane %v6629, 4
    %v6631 = vadd.f32 %v6629, %v6630
    %v6632 = vrot.slane %v6631, 2
    %v6633 = vadd.f32 %v6631, %v6632
    %v6634 = vrot.slane %v6633, 1
    %v6635 = vadd.f32 %v6633, %v6634
    %v6636 = vsel %vm2181, %v6625, 0.0
    %v6637 = vsel %vm167, %v6626, 0.0
    %v6638 = vadd.f32 %v6636, %v6637
    %v6639 = vrot.slane %v6638, 4
    %v6640 = vadd.f32 %v6638, %v6639
    %v6641 = vrot.slane %v6640, 2
    %v6642 = vadd.f32 %v6640, %v6641
    %v6643 = vrot.slane %v6642, 1
    %v6644 = vadd.f32 %v6642, %v6643
    %v6647 = vsel %vm185, %v6644, %v6635
    %v6648 = vlaneseq
    %v6649 = vshrl.u32 %v6648, 7
    %v6650 = vsub.s32 0, %v6649
    %v6651 = vrot.slane %v2593, %v6650
    %v6652 = vlaneseq
    %v6653 = vshrl.u32 %v6652, 7
    %v6654 = vsub.s32 0, %v6653
    %v6655 = vrot.slane %v2617, %v6654
    %v6656 = vsel %vm185, %v6655, %v6651
    %v6658 = vsel %vm2181, %v6647, 0
    %6660 = vmatprep.subr.mxu0 0.0
    %6661 = vmatpush1.msra.mxu0 %v1993
    %6662 = vmatprep.subr.mxu0 0.0
    %6663 = vmatpush1.msra.mxu0 %v1994
    %6664 = vmatprep.subr.mxu0 0.0
    %6665 = vmatpush1.msra.mxu0 %v1995
    %6666 = vmatprep.subr.mxu0 0.0
    %6667 = vmatpush1.msra.mxu0 %v1996
    %6668 = vmatprep.subr.mxu0 0.0
    %6669 = vmatpush1.msra.mxu0 %v1997
    %6670 = vmatprep.subr.mxu0 0.0
    %6671 = vmatpush1.msra.mxu0 %v1998
    %6672 = vmatprep.subr.mxu0 0.0
    %6673 = vmatpush1.msra.mxu0 %v1999
    %6674 = vmatprep.subr.mxu0 0.0
    %6675 = vmatpush1.msra.mxu0 %v2000
    %6676 = vmatprep.subr.mxu0 0.0
    %6677 = vmatpush1.msra.mxu0 0.0
    %6678 = vmatprep.subr.mxu0 0.0
    %6679 = vmatpush1.msra.mxu0 0.0
    %6680 = vmatprep.subr.mxu0 0.0
    %6681 = vmatpush1.msra.mxu0 0.0
    %6682 = vmatprep.subr.mxu0 0.0
    %6683 = vmatpush1.msra.mxu0 0.0
    %6684 = vmatprep.subr.mxu0 0.0
    %6685 = vmatpush1.msra.mxu0 0.0
    %6686 = vmatprep.subr.mxu0 0.0
    %6687 = vmatpush1.msra.mxu0 0.0
    %6688 = vmatprep.subr.mxu0 0.0
    %6689 = vmatpush1.msra.mxu0 0.0
    %6690 = vmatprep.subr.mxu0 0.0
    %6691 = vmatpush1.msra.mxu0 0.0
    %6692 = vmatprep.subr.mxu0 0.0
    %6693 = vmatpush1.msra.mxu0 0.0
    %6694 = vmatprep.subr.mxu0 0.0
    %6695 = vmatpush1.msra.mxu0 0.0
    %6696 = vmatprep.subr.mxu0 0.0
    %6697 = vmatpush1.msra.mxu0 0.0
    %6698 = vmatprep.subr.mxu0 0.0
    %6699 = vmatpush1.msra.mxu0 0.0
    %6700 = vmatprep.subr.mxu0 0.0
    %6701 = vmatpush1.msra.mxu0 0.0
    %6702 = vmatprep.subr.mxu0 0.0
    %6703 = vmatpush1.msra.mxu0 0.0
    %6704 = vmatprep.subr.mxu0 0.0
    %6705 = vmatpush1.msra.mxu0 0.0
    %6706 = vmatprep.subr.mxu0 0.0
    %6707 = vmatpush1.msra.mxu0 0.0
    %6708 = vmatprep.subr.mxu0 0.0
    %6709 = vmatpush1.msra.mxu0 0.0
    %6710 = vmatprep.subr.mxu0 0.0
    %6711 = vmatpush1.msra.mxu0 0.0
    %6712 = vmatprep.subr.mxu0 0.0
    %6713 = vmatpush1.msra.mxu0 0.0
    %6714 = vmatprep.subr.mxu0 0.0
    %6715 = vmatpush1.msra.mxu0 0.0
    %6716 = vmatprep.subr.mxu0 0.0
    %6717 = vmatpush1.msra.mxu0 0.0
    %6718 = vmatprep.subr.mxu0 0.0
    %6719 = vmatpush1.msra.mxu0 0.0
    %6720 = vmatprep.subr.mxu0 0.0
    %6721 = vmatpush1.msra.mxu0 0.0
    %6722 = vmatprep.subr.mxu0 0.0
    %6723 = vmatpush1.msra.mxu0 0.0
    %6724 = vmatprep.mubr.f32.mxu0 0.0
    %6725 = vmatmul.mubr.f32.gmra.mrb[0].mxu0 %v6658
    %v6726 = vpop.f32.mrb[0].mxu0
    %v6727 = vadd.f32 %v6656, %v6726
    %v6728 = vpop.f32.mrb[0].mxu0
    %6729 = vdwg.mxu0
    %6731 = vrot.lane.b32.xlu0 %v6244, 5
    %v6732 = vpop.permute.xlu0 %6731
    %v6734 = vsel %vm2484, %v6727, %v6732
    %v6736 = vsel %vm3164, %v6734, 0
    %6738 = vmatprep.subr.mxu0 %v1975
    %6739 = vmatpush1.msra.mxu0 %v1974
    %6740 = vmatprep.subr.mxu0 %v1977
    %6741 = vmatpush1.msra.mxu0 %v1976
    %6742 = vmatprep.subr.mxu0 %v1979
    %6743 = vmatpush1.msra.mxu0 %v1978
    %6744 = vmatprep.subr.mxu0 %v1981
    %6745 = vmatpush1.msra.mxu0 %v1980
    %6746 = vmatprep.subr.mxu0 %v1983
    %6747 = vmatpush1.msra.mxu0 %v1982
    %6748 = vmatprep.subr.mxu0 %v1985
    %6749 = vmatpush1.msra.mxu0 %v1984
    %6750 = vmatprep.subr.mxu0 %v1987
    %6751 = vmatpush1.msra.mxu0 %v1986
    %6752 = vmatprep.subr.mxu0 %v1989
    %6753 = vmatpush1.msra.mxu0 %v1988
    %6754 = vmatprep.subr.mxu0 %v3172
    %6755 = vmatpush1.msra.mxu0 %v3169
    %6756 = vmatprep.subr.mxu0 0.0
    %6757 = vmatpush1.msra.mxu0 0.0
    %6758 = vmatprep.subr.mxu0 0.0
    %6759 = vmatpush1.msra.mxu0 0.0
    %6760 = vmatprep.subr.mxu0 0.0
    %6761 = vmatpush1.msra.mxu0 0.0
    %6762 = vmatprep.subr.mxu0 0.0
    %6763 = vmatpush1.msra.mxu0 0.0
    %6764 = vmatprep.subr.mxu0 0.0
    %6765 = vmatpush1.msra.mxu0 0.0
    %6766 = vmatprep.subr.mxu0 0.0
    %6767 = vmatpush1.msra.mxu0 0.0
    %6768 = vmatprep.subr.mxu0 0.0
    %6769 = vmatpush1.msra.mxu0 0.0
    %6770 = vmatprep.subr.mxu0 0.0
    %6771 = vmatpush1.msra.mxu0 0.0
    %6772 = vmatprep.subr.mxu0 0.0
    %6773 = vmatpush1.msra.mxu0 0.0
    %6774 = vmatprep.subr.mxu0 0.0
    %6775 = vmatpush1.msra.mxu0 0.0
    %6776 = vmatprep.subr.mxu0 0.0
    %6777 = vmatpush1.msra.mxu0 0.0
    %6778 = vmatprep.subr.mxu0 0.0
    %6779 = vmatpush1.msra.mxu0 0.0
    %6780 = vmatprep.subr.mxu0 0.0
    %6781 = vmatpush1.msra.mxu0 0.0
    %6782 = vmatprep.subr.mxu0 0.0
    %6783 = vmatpush1.msra.mxu0 0.0
    %6784 = vmatprep.subr.mxu0 0.0
    %6785 = vmatpush1.msra.mxu0 0.0
    %6786 = vmatprep.subr.mxu0 0.0
    %6787 = vmatpush1.msra.mxu0 0.0
    %6788 = vmatprep.subr.mxu0 0.0
    %6789 = vmatpush1.msra.mxu0 0.0
    %6790 = vmatprep.subr.mxu0 0.0
    %6791 = vmatpush1.msra.mxu0 0.0
    %6792 = vmatprep.subr.mxu0 0.0
    %6793 = vmatpush1.msra.mxu0 0.0
    %6794 = vmatprep.subr.mxu0 0.0
    %6795 = vmatpush1.msra.mxu0 0.0
    %6796 = vmatprep.subr.mxu0 0.0
    %6797 = vmatpush1.msra.mxu0 0.0
    %6798 = vmatprep.subr.mxu0 0.0
    %6799 = vmatpush1.msra.mxu0 0.0
    %6800 = vmatprep.subr.mxu0 0.0
    %6801 = vmatpush1.msra.mxu0 0.0
    %6802 = vmatprep.mubr.f32.mxu0 0.0
    %6803 = vmatmul.mubr.f32.gmra.mrb[0].mxu0 %v6736
    %v6804 = vpop.f32.mrb[0].mxu0
    %v6805 = vadd.f32 %v3157, %v6804
    %v6806 = vpop.f32.mrb[0].mxu0
    %v6807 = vadd.f32 %v3161, %v6806
    %6808 = vdwg.mxu0
    %v6809 = vxor.u32 %v6805, 2147483648
    %v6810 = vmul.f32 %v6809, 1.442695
    %v6811 = vpow.pop %v6810
    %v6812 = vadd.f32 %v6811, 1.0
    %v6813 = vrcp.pop %v6812
    %v6814 = vmul.f32 1.0, %v6813
    %v6815 = vxor.u32 %v6807, 2147483648
    %v6816 = vmul.f32 %v6815, 1.442695
    %v6817 = vpow.pop %v6816
    %v6818 = vadd.f32 %v6817, 1.0
    %v6819 = vrcp.pop %v6818
    %v6820 = vmul.f32 1.0, %v6819
    %v6821 = vtanh.pop %v6807
    %v6822 = vmul.f32 %v6814, %v6238
    %6824 = vrot.lane.b32.xlu0 %v6821, 64
    %v6825 = vpop.permute.xlu0 %6824
    %v6827 = vmul.f32 %v6814, %v6825
    %6829 = vrot.lane.b32.xlu0 %v6827, 64
    %v6830 = vpop.permute.xlu0 %6829
    %v6832 = vadd.f32 %v6822, %v6830
    %v6833 = vtanh.pop %v6832
    %6835 = vrot.lane.b32.xlu0 %v6833, 64
    %v6836 = vpop.permute.xlu0 %6835
    %v6838 = vmul.f32 %v6820, %v6836
    %v6839 = vsel %vm2181, %v6838, %v6832
    %6840 = vmatprep.subr.mxu0 0.0
    %6841 = vmatpush1.msra.mxu0 %v1947
    %6842 = vmatprep.subr.mxu0 0.0
    %6843 = vmatpush1.msra.mxu0 %v1948
    %6844 = vmatprep.subr.mxu0 0.0
    %6845 = vmatpush1.msra.mxu0 %v1949
    %6846 = vmatprep.subr.mxu0 0.0
    %6847 = vmatpush1.msra.mxu0 %v1950
    %6848 = vmatprep.subr.mxu0 0.0
    %6849 = vmatpush1.msra.mxu0 %v1951
    %6850 = vmatprep.subr.mxu0 0.0
    %6851 = vmatpush1.msra.mxu0 %v1952
    %6852 = vmatprep.subr.mxu0 0.0
    %6853 = vmatpush1.msra.mxu0 %v1953
    %6854 = vmatprep.subr.mxu0 0.0
    %6855 = vmatpush1.msra.mxu0 %v1954
    %6856 = vmatprep.subr.mxu0 0.0
    %6857 = vmatpush1.msra.mxu0 %v1955
    %6858 = vmatprep.subr.mxu0 0.0
    %6859 = vmatpush1.msra.mxu0 %v1956
    %6860 = vmatprep.subr.mxu0 0.0
    %6861 = vmatpush1.msra.mxu0 %v1957
    %6862 = vmatprep.subr.mxu0 0.0
    %6863 = vmatpush1.msra.mxu0 %v1958
    %6864 = vmatprep.subr.mxu0 0.0
    %6865 = vmatpush1.msra.mxu0 %v1959
    %6866 = vmatprep.subr.mxu0 0.0
    %6867 = vmatpush1.msra.mxu0 %v1960
    %6868 = vmatprep.subr.mxu0 0.0
    %6869 = vmatpush1.msra.mxu0 %v1961
    %6870 = vmatprep.subr.mxu0 0.0
    %6871 = vmatpush1.msra.mxu0 %v1962
    %6872 = vmatprep.subr.mxu0 0.0
    %6873 = vmatpush1.msra.mxu0 0.0
    %6874 = vmatprep.subr.mxu0 0.0
    %6875 = vmatpush1.msra.mxu0 0.0
    %6876 = vmatprep.subr.mxu0 0.0
    %6877 = vmatpush1.msra.mxu0 0.0
    %6878 = vmatprep.subr.mxu0 0.0
    %6879 = vmatpush1.msra.mxu0 0.0
    %6880 = vmatprep.subr.mxu0 0.0
    %6881 = vmatpush1.msra.mxu0 0.0
    %6882 = vmatprep.subr.mxu0 0.0
    %6883 = vmatpush1.msra.mxu0 0.0
    %6884 = vmatprep.subr.mxu0 0.0
    %6885 = vmatpush1.msra.mxu0 0.0
    %6886 = vmatprep.subr.mxu0 0.0
    %6887 = vmatpush1.msra.mxu0 0.0
    %6888 = vmatprep.subr.mxu0 0.0
    %6889 = vmatpush1.msra.mxu0 0.0
    %6890 = vmatprep.subr.mxu0 0.0
    %6891 = vmatpush1.msra.mxu0 0.0
    %6892 = vmatprep.subr.mxu0 0.0
    %6893 = vmatpush1.msra.mxu0 0.0
    %6894 = vmatprep.subr.mxu0 0.0
    %6895 = vmatpush1.msra.mxu0 0.0
    %6896 = vmatprep.subr.mxu0 0.0
    %6897 = vmatpush1.msra.mxu0 0.0
    %6898 = vmatprep.subr.mxu0 0.0
    %6899 = vmatpush1.msra.mxu0 0.0
    %6900 = vmatprep.subr.mxu0 0.0
    %6901 = vmatpush1.msra.mxu0 0.0
    %6902 = vmatprep.subr.mxu0 0.0
    %6903 = vmatpush1.msra.mxu0 0.0
    %6904 = vmatprep.mubr.f32.mxu0 0.0
    %6905 = vmatmul.mubr.f32.gmra.mrb[0].mxu0 %v6839
    %v6906 = vpop.f32.mrb[0].mxu0
    %v6907 = vadd.f32 0.0, %v6906
    %v6908 = vpop.f32.mrb[0].mxu0
    %6909 = vdwg.mxu0
    %v6912 = vunpack.c.l.s4 1966171168
    %v6913 = vunpack.c.0.s8 %v6912
    %v6914 = vlaneseq
    %v6915 = vshrl.u32 %v6914, 7
    %v6916 = vsub.s32 %v6913, %v6915
    %v6917 = vrot.slane %v6907, %v6916
    %v6918 = vcombine.high %v6917, %v6917
    %v6920 = vunpack.c.l.s4 1966171168
    %v6921 = vunpack.c.0.s8 %v6920
    %v6922 = vlaneseq
    %v6923 = vshrl.u32 %v6922, 7
    %v6924 = vsub.s32 %v6921, %v6923
    %v6925 = vrot.slane %v6917, %v6924
    %v6927 = vunpack.c.l.s4 1966171168
    %v6928 = vunpack.c.0.s8 %v6927
    %v6929 = vlaneseq
    %v6930 = vshrl.u32 %v6929, 7
    %v6931 = vsub.s32 %v6928, %v6930
    %v6932 = vrot.slane %v6918, %v6931
    %v6933 = vlaneseq
    %v6934 = vshrl.u32 %v6933, 7
    %v6935 = vsub.s32 0, %v6934
    %v6936 = vrot.slane %v6925, %v6935
    %v6937 = vlaneseq
    %v6938 = vshrl.u32 %v6937, 7
    %v6939 = vsub.s32 0, %v6938
    %v6940 = vrot.slane %v6932, %v6939
    %v6941 = vcombine.high %v6936, %v6936
    %v6943 = vunpack.c.l.s4 1983009808
    %v6944 = vunpack.c.0.s8 %v6943
    %v6945 = vlaneseq
    %v6946 = vshrl.u32 %v6945, 7
    %v6947 = vsub.s32 %v6944, %v6946
    %v6948 = vrot.slane %v6936, %v6947
    %v6950 = vunpack.c.l.s4 1983009808
    %v6951 = vunpack.c.0.s8 %v6950
    %v6952 = vlaneseq
    %v6953 = vshrl.u32 %v6952, 7
    %v6954 = vsub.s32 %v6951, %v6953
    %v6955 = vrot.slane %v6941, %v6954
    %v6956 = vcombine.high %v6948, %v6948
    %v6957 = vcombine.high %v6955, %v6955
    %v6958 = vcombine.high %v6940, %v6940
    %v6960 = vunpack.c.l.s4 1983009808
    %v6961 = vunpack.c.0.s8 %v6960
    %v6962 = vlaneseq
    %v6963 = vshrl.u32 %v6962, 7
    %v6964 = vsub.s32 %v6961, %v6963
    %v6965 = vrot.slane %v6940, %v6964
    %v6967 = vunpack.c.l.s4 1983009808
    %v6968 = vunpack.c.0.s8 %v6967
    %v6969 = vlaneseq
    %v6970 = vshrl.u32 %v6969, 7
    %v6971 = vsub.s32 %v6968, %v6970
    %v6972 = vrot.slane %v6958, %v6971
    %v6973 = vcombine.high %v6965, %v6965
    %v6974 = vcombine.high %v6972, %v6972
    %v6983 = vadd.f32 %v2278, %v6948
    %v6984 = vadd.f32 %v2286, %v6956
    %v6985 = vadd.f32 %v2285, %v6955
    %v6986 = vadd.f32 %v2287, %v6957
    %v6987 = vadd.f32 %v2295, %v6948
    %v6988 = vadd.f32 %v2303, %v6965
    %v6989 = vadd.f32 %v2302, %v6973
    %v6990 = vadd.f32 %v2304, %v6972
    %v6991 = vadd.f32 %v2311, %v6974
    %v6992 = vadd.f32 %v2312, %v6965
    %v6993 = vtanh.pop %v6983
    %v6994 = vtanh.pop %v6984
    %v6995 = vtanh.pop %v6985
    %v6996 = vtanh.pop %v6986
    %v6997 = vtanh.pop %v6987
    %v6998 = vtanh.pop %v6988
    %v6999 = vtanh.pop %v6989
    %v7000 = vtanh.pop %v6990
    %v7001 = vtanh.pop %v6991
    %v7002 = vtanh.pop %v6992
    %v7003 = vmul.f32 %v6993, %v2799
    %v7004 = vmul.f32 %v6994, %v2807
    %v7005 = vmul.f32 %v6995, %v2806
    %v7006 = vmul.f32 %v6996, %v2808
    %v7007 = vmul.f32 %v6997, %v2799
    %v7008 = vmul.f32 %v6998, %v2799
    %v7009 = vmul.f32 %v6999, %v2807
    %v7010 = vmul.f32 %v7000, %v2806
    %v7011 = vmul.f32 %v7001, %v2808
    %v7012 = vmul.f32 %v7002, %v2799
    %v7023 = vcombine.low %v7003, %v7004
    %v7024 = vcombine.low %v7005, %v7006
    %v7026 = vunpack.c.l.s4 1983009808
    %v7027 = vunpack.c.0.s8 %v7026
    %v7028 = vlaneseq
    %v7029 = vshrl.u32 %v7028, 7
    %v7030 = vsub.s32 %v7027, %v7029
    %v7031 = vrot.slane %v7023, %v7030
    %v7033 = vunpack.c.l.s4 1983009808
    %v7034 = vunpack.c.0.s8 %v7033
    %v7035 = vlaneseq
    %v7036 = vshrl.u32 %v7035, 7
    %v7037 = vsub.s32 %v7034, %v7036
    %v7038 = vrot.slane %v7024, %v7037
    %v7039 = vcombine.low %v7031, %v7038
    %v7041 = vunpack.c.l.s4 1983009808
    %v7042 = vunpack.c.0.s8 %v7041
    %v7043 = vlaneseq
    %v7044 = vshrl.u32 %v7043, 7
    %v7045 = vsub.s32 %v7042, %v7044
    %v7046 = vrot.slane %v7007, %v7045
    %v7047 = vcombine.low %v7008, %v7009
    %v7048 = vcombine.low %v7010, %v7011
    %v7050 = vunpack.c.l.s4 1983009808
    %v7051 = vunpack.c.0.s8 %v7050
    %v7052 = vlaneseq
    %v7053 = vshrl.u32 %v7052, 7
    %v7054 = vsub.s32 %v7051, %v7053
    %v7055 = vrot.slane %v7047, %v7054
    %v7057 = vunpack.c.l.s4 1983009808
    %v7058 = vunpack.c.0.s8 %v7057
    %v7059 = vlaneseq
    %v7060 = vshrl.u32 %v7059, 7
    %v7061 = vsub.s32 %v7058, %v7060
    %v7062 = vrot.slane %v7048, %v7061
    %v7063 = vcombine.low %v7055, %v7062
    %v7065 = vunpack.c.l.s4 1983009808
    %v7066 = vunpack.c.0.s8 %v7065
    %v7067 = vlaneseq
    %v7068 = vshrl.u32 %v7067, 7
    %v7069 = vsub.s32 %v7066, %v7068
    %v7070 = vrot.slane %v7012, %v7069
    %v7075 = vsel %vm2181, %v7039, 0.0
    %7076 = vadd.xlane.f32.xlu0 %v7075
    %v7077 = vpop.xlane.xlu0 %7076
    %v7078 = vsel %vm167, %v7046, 0.0
    %7079 = vadd.xlane.f32.xlu0 %v7078
    %v7080 = vpop.xlane.xlu0 %7079
    %v7081 = vsel %vm2181, %v7063, 0.0
    %7082 = vadd.xlane.f32.xlu0 %v7081
    %v7083 = vpop.xlane.xlu0 %7082
    %v7084 = vsel %vm167, %v7070, 0.0
    %7085 = vadd.xlane.f32.xlu0 %v7084
    %v7086 = vpop.xlane.xlu0 %7085
    %v7087 = vadd.f32 %v7077, %v2904
    %v7088 = vadd.f32 %v7080, %v2904
    %v7089 = vadd.f32 %v7083, %v2904
    %v7090 = vadd.f32 %v7086, %v2904
    %v7095 = vlaneseq
    %v7096 = vshrl.u32 %v7095, 7
    %v7097 = vsub.s32 %v2915, %v7096
    %v7098 = vrot.slane %v7087, %v7097
    %v7099 = vlaneseq
    %v7100 = vshrl.u32 %v7099, 7
    %v7101 = vsub.s32 %v2920, %v7100
    %v7102 = vrot.slane %v7088, %v7101
    %v7103 = vsel %vm2925, %v7102, %v7098
    %v7104 = vlaneseq
    %v7105 = vshrl.u32 %v7104, 7
    %v7106 = vsub.s32 %v2915, %v7105
    %v7107 = vrot.slane %v7089, %v7106
    %v7108 = vlaneseq
    %v7109 = vshrl.u32 %v7108, 7
    %v7110 = vsub.s32 %v2920, %v7109
    %v7111 = vrot.slane %v7090, %v7110
    %v7112 = vsel %vm2925, %v7111, %v7107
    %v7113 = vsel %vm185, %v7112, %v7103
    %v7115 = vsel %vm2938, %v7113, -inf
    %7116 = vmax.xlane.f32.xlu0 %v7115
    %v7117 = vpop.xlane.xlu0 %7116
    %v7119 = vlaneseq
    %v7120 = vshrl.u32 %v7119, 7
    %v7121 = vsub.s32 0, %v7120
    %v7122 = vrot.slane %v7117, %v7121
    %v7123 = vlaneseq
    %v7124 = vshrl.u32 %v7123, 7
    %v7125 = vsub.s32 1, %v7124
    %v7126 = vrot.slane %v7117, %v7125
    %v7129 = vsub.f32 %v7087, %v7122
    %v7130 = vsub.f32 %v7088, %v7122
    %v7131 = vsub.f32 %v7089, %v7126
    %v7132 = vsub.f32 %v7090, %v7126
    %v7133 = vmul.f32 %v7129, 1.442695
    %v7134 = vpow.pop %v7133
    %v7135 = vmul.f32 %v7130, 1.442695
    %v7136 = vpow.pop %v7135
    %v7137 = vmul.f32 %v7131, 1.442695
    %v7138 = vpow.pop %v7137
    %v7139 = vmul.f32 %v7132, 1.442695
    %v7140 = vpow.pop %v7139
    %7145 = vset.pattern.permute.xlu0 0
    %7146 = vperm.xlu0 %7145, %v7134
    %v7147 = vpop.permute.xlu0 %7146
    %7148 = vset.pattern.permute.xlu0 0
    %7149 = vperm.xlu0 %7148, %v7136
    %v7150 = vpop.permute.xlu0 %7149
    %7151 = vset.pattern.permute.xlu0 0
    %7152 = vperm.xlu0 %7151, %v7138
    %v7153 = vpop.permute.xlu0 %7152
    %7154 = vset.pattern.permute.xlu0 0
    %7155 = vperm.xlu0 %7154, %v7140
    %v7156 = vpop.permute.xlu0 %7155
    %v7157 = vlaneseq
    %v7158 = vshrl.u32 %v7157, 7
    %v7159 = vsub.s32 %v2915, %v7158
    %v7160 = vrot.slane %v7147, %v7159
    %v7161 = vlaneseq
    %v7162 = vshrl.u32 %v7161, 7
    %v7163 = vsub.s32 %v2920, %v7162
    %v7164 = vrot.slane %v7150, %v7163
    %v7165 = vsel %vm2925, %v7164, %v7160
    %v7166 = vlaneseq
    %v7167 = vshrl.u32 %v7166, 7
    %v7168 = vsub.s32 %v2915, %v7167
    %v7169 = vrot.slane %v7153, %v7168
    %v7170 = vlaneseq
    %v7171 = vshrl.u32 %v7170, 7
    %v7172 = vsub.s32 %v2920, %v7171
    %v7173 = vrot.slane %v7156, %v7172
    %v7174 = vsel %vm2925, %v7173, %v7169
    %v7175 = vsel %vm185, %v7174, %v7165
    %v7177 = vsel %vm2938, %v7175, 0.0
    %7178 = vadd.xlane.f32.xlu0 %v7177
    %v7179 = vpop.xlane.xlu0 %7178
    %v7181 = vlaneseq
    %v7182 = vshrl.u32 %v7181, 7
    %v7183 = vsub.s32 0, %v7182
    %v7184 = vrot.slane %v7179, %v7183
    %v7185 = vlaneseq
    %v7186 = vshrl.u32 %v7185, 7
    %v7187 = vsub.s32 1, %v7186
    %v7188 = vrot.slane %v7179, %v7187
    %v7191 = vrcp.pop %v7184
    %v7192 = vmul.f32 %v7134, %v7191
    %v7193 = vmul.f32 %v7136, %v7191
    %v7194 = vrcp.pop %v7188
    %v7195 = vmul.f32 %v7138, %v7194
    %v7196 = vmul.f32 %v7140, %v7194
    %7198 = vset.pattern.permute.xlu0 0
    %7199 = vperm.xlu0 %7198, %v7192
    %v7200 = vpop.permute.xlu0 %7199
    %7203 = vset.pattern.permute.xlu0 0
    %7204 = vperm.xlu0 %7203, %v7193
    %v7205 = vpop.permute.xlu0 %7204
    %7208 = vset.pattern.permute.xlu0 0
    %7209 = vperm.xlu0 %7208, %v7195
    %v7210 = vpop.permute.xlu0 %7209
    %7213 = vset.pattern.permute.xlu0 0
    %7214 = vperm.xlu0 %7213, %v7196
    %v7215 = vpop.permute.xlu0 %7214
    %v7217 = vmul.f32 %v7200, %v1941
    %v7218 = vmul.f32 %v7205, %v1943
    %v7219 = vmul.f32 %v7210, %v1942
    %v7220 = vmul.f32 %v7215, %v1944
    %v7221 = vsel %vm2181, %v7217, 0.0
    %v7222 = vsel %vm167, %v7218, 0.0
    %v7223 = vadd.f32 %v7221, %v7222
    %v7224 = vrot.slane %v7223, 4
    %v7225 = vadd.f32 %v7223, %v7224
    %v7226 = vrot.slane %v7225, 2
    %v7227 = vadd.f32 %v7225, %v7226
    %v7228 = vrot.slane %v7227, 1
    %v7229 = vadd.f32 %v7227, %v7228
    %v7230 = vsel %vm2181, %v7219, 0.0
    %v7231 = vsel %vm167, %v7220, 0.0
    %v7232 = vadd.f32 %v7230, %v7231
    %v7233 = vrot.slane %v7232, 4
    %v7234 = vadd.f32 %v7232, %v7233
    %v7235 = vrot.slane %v7234, 2
    %v7236 = vadd.f32 %v7234, %v7235
    %v7237 = vrot.slane %v7236, 1
    %v7238 = vadd.f32 %v7236, %v7237
    %v7241 = vsel %vm185, %v7238, %v7229
    %v7242 = vlaneseq
    %v7243 = vshrl.u32 %v7242, 7
    %v7244 = vsub.s32 1, %v7243
    %v7245 = vrot.slane %v2593, %v7244
    %v7246 = vlaneseq
    %v7247 = vshrl.u32 %v7246, 7
    %v7248 = vsub.s32 1, %v7247
    %v7249 = vrot.slane %v2617, %v7248
    %v7250 = vsel %vm185, %v7249, %v7245
    %v7252 = vsel %vm2181, %v7241, 0
    %7254 = vmatprep.subr.mxu0 0.0
    %7255 = vmatpush1.msra.mxu0 %v1993
    %7256 = vmatprep.subr.mxu0 0.0
    %7257 = vmatpush1.msra.mxu0 %v1994
    %7258 = vmatprep.subr.mxu0 0.0
    %7259 = vmatpush1.msra.mxu0 %v1995
    %7260 = vmatprep.subr.mxu0 0.0
    %7261 = vmatpush1.msra.mxu0 %v1996
    %7262 = vmatprep.subr.mxu0 0.0
    %7263 = vmatpush1.msra.mxu0 %v1997
    %7264 = vmatprep.subr.mxu0 0.0
    %7265 = vmatpush1.msra.mxu0 %v1998
    %7266 = vmatprep.subr.mxu0 0.0
    %7267 = vmatpush1.msra.mxu0 %v1999
    %7268 = vmatprep.subr.mxu0 0.0
    %7269 = vmatpush1.msra.mxu0 %v2000
    %7270 = vmatprep.subr.mxu0 0.0
    %7271 = vmatpush1.msra.mxu0 0.0
    %7272 = vmatprep.subr.mxu0 0.0
    %7273 = vmatpush1.msra.mxu0 0.0
    %7274 = vmatprep.subr.mxu0 0.0
    %7275 = vmatpush1.msra.mxu0 0.0
    %7276 = vmatprep.subr.mxu0 0.0
    %7277 = vmatpush1.msra.mxu0 0.0
    %7278 = vmatprep.subr.mxu0 0.0
    %7279 = vmatpush1.msra.mxu0 0.0
    %7280 = vmatprep.subr.mxu0 0.0
    %7281 = vmatpush1.msra.mxu0 0.0
    %7282 = vmatprep.subr.mxu0 0.0
    %7283 = vmatpush1.msra.mxu0 0.0
    %7284 = vmatprep.subr.mxu0 0.0
    %7285 = vmatpush1.msra.mxu0 0.0
    %7286 = vmatprep.subr.mxu0 0.0
    %7287 = vmatpush1.msra.mxu0 0.0
    %7288 = vmatprep.subr.mxu0 0.0
    %7289 = vmatpush1.msra.mxu0 0.0
    %7290 = vmatprep.subr.mxu0 0.0
    %7291 = vmatpush1.msra.mxu0 0.0
    %7292 = vmatprep.subr.mxu0 0.0
    %7293 = vmatpush1.msra.mxu0 0.0
    %7294 = vmatprep.subr.mxu0 0.0
    %7295 = vmatpush1.msra.mxu0 0.0
    %7296 = vmatprep.subr.mxu0 0.0
    %7297 = vmatpush1.msra.mxu0 0.0
    %7298 = vmatprep.subr.mxu0 0.0
    %7299 = vmatpush1.msra.mxu0 0.0
    %7300 = vmatprep.subr.mxu0 0.0
    %7301 = vmatpush1.msra.mxu0 0.0
    %7302 = vmatprep.subr.mxu0 0.0
    %7303 = vmatpush1.msra.mxu0 0.0
    %7304 = vmatprep.subr.mxu0 0.0
    %7305 = vmatpush1.msra.mxu0 0.0
    %7306 = vmatprep.subr.mxu0 0.0
    %7307 = vmatpush1.msra.mxu0 0.0
    %7308 = vmatprep.subr.mxu0 0.0
    %7309 = vmatpush1.msra.mxu0 0.0
    %7310 = vmatprep.subr.mxu0 0.0
    %7311 = vmatpush1.msra.mxu0 0.0
    %7312 = vmatprep.subr.mxu0 0.0
    %7313 = vmatpush1.msra.mxu0 0.0
    %7314 = vmatprep.subr.mxu0 0.0
    %7315 = vmatpush1.msra.mxu0 0.0
    %7316 = vmatprep.subr.mxu0 0.0
    %7317 = vmatpush1.msra.mxu0 0.0
    %7318 = vmatprep.mubr.f32.mxu0 0.0
    %7319 = vmatmul.mubr.f32.gmra.mrb[0].mxu0 %v7252
    %v7320 = vpop.f32.mrb[0].mxu0
    %v7321 = vadd.f32 %v7250, %v7320
    %v7322 = vpop.f32.mrb[0].mxu0
    %7323 = vdwg.mxu0
    %7325 = vrot.lane.b32.xlu0 %v6838, 5
    %v7326 = vpop.permute.xlu0 %7325
    %v7328 = vsel %vm2484, %v7321, %v7326
    %v7330 = vsel %vm3164, %v7328, 0
    %7332 = vmatprep.subr.mxu0 %v1975
    %7333 = vmatpush1.msra.mxu0 %v1974
    %7334 = vmatprep.subr.mxu0 %v1977
    %7335 = vmatpush1.msra.mxu0 %v1976
    %7336 = vmatprep.subr.mxu0 %v1979
    %7337 = vmatpush1.msra.mxu0 %v1978
    %7338 = vmatprep.subr.mxu0 %v1981
    %7339 = vmatpush1.msra.mxu0 %v1980
    %7340 = vmatprep.subr.mxu0 %v1983
    %7341 = vmatpush1.msra.mxu0 %v1982
    %7342 = vmatprep.subr.mxu0 %v1985
    %7343 = vmatpush1.msra.mxu0 %v1984
    %7344 = vmatprep.subr.mxu0 %v1987
    %7345 = vmatpush1.msra.mxu0 %v1986
    %7346 = vmatprep.subr.mxu0 %v1989
    %7347 = vmatpush1.msra.mxu0 %v1988
    %7348 = vmatprep.subr.mxu0 %v3172
    %7349 = vmatpush1.msra.mxu0 %v3169
    %7350 = vmatprep.subr.mxu0 0.0
    %7351 = vmatpush1.msra.mxu0 0.0
    %7352 = vmatprep.subr.mxu0 0.0
    %7353 = vmatpush1.msra.mxu0 0.0
    %7354 = vmatprep.subr.mxu0 0.0
    %7355 = vmatpush1.msra.mxu0 0.0
    %7356 = vmatprep.subr.mxu0 0.0
    %7357 = vmatpush1.msra.mxu0 0.0
    %7358 = vmatprep.subr.mxu0 0.0
    %7359 = vmatpush1.msra.mxu0 0.0
    %7360 = vmatprep.subr.mxu0 0.0
    %7361 = vmatpush1.msra.mxu0 0.0
    %7362 = vmatprep.subr.mxu0 0.0
    %7363 = vmatpush1.msra.mxu0 0.0
    %7364 = vmatprep.subr.mxu0 0.0
    %7365 = vmatpush1.msra.mxu0 0.0
    %7366 = vmatprep.subr.mxu0 0.0
    %7367 = vmatpush1.msra.mxu0 0.0
    %7368 = vmatprep.subr.mxu0 0.0
    %7369 = vmatpush1.msra.mxu0 0.0
    %7370 = vmatprep.subr.mxu0 0.0
    %7371 = vmatpush1.msra.mxu0 0.0
    %7372 = vmatprep.subr.mxu0 0.0
    %7373 = vmatpush1.msra.mxu0 0.0
    %7374 = vmatprep.subr.mxu0 0.0
    %7375 = vmatpush1.msra.mxu0 0.0
    %7376 = vmatprep.subr.mxu0 0.0
    %7377 = vmatpush1.msra.mxu0 0.0
    %7378 = vmatprep.subr.mxu0 0.0
    %7379 = vmatpush1.msra.mxu0 0.0
    %7380 = vmatprep.subr.mxu0 0.0
    %7381 = vmatpush1.msra.mxu0 0.0
    %7382 = vmatprep.subr.mxu0 0.0
    %7383 = vmatpush1.msra.mxu0 0.0
    %7384 = vmatprep.subr.mxu0 0.0
    %7385 = vmatpush1.msra.mxu0 0.0
    %7386 = vmatprep.subr.mxu0 0.0
    %7387 = vmatpush1.msra.mxu0 0.0
    %7388 = vmatprep.subr.mxu0 0.0
    %7389 = vmatpush1.msra.mxu0 0.0
    %7390 = vmatprep.subr.mxu0 0.0
    %7391 = vmatpush1.msra.mxu0 0.0
    %7392 = vmatprep.subr.mxu0 0.0
    %7393 = vmatpush1.msra.mxu0 0.0
    %7394 = vmatprep.subr.mxu0 0.0
    %7395 = vmatpush1.msra.mxu0 0.0
    %7396 = vmatprep.mubr.f32.mxu0 0.0
    %7397 = vmatmul.mubr.f32.gmra.mrb[0].mxu0 %v7330
    %v7398 = vpop.f32.mrb[0].mxu0
    %v7399 = vadd.f32 %v3157, %v7398
    %v7400 = vpop.f32.mrb[0].mxu0
    %v7401 = vadd.f32 %v3161, %v7400
    %7402 = vdwg.mxu0
    %v7403 = vxor.u32 %v7399, 2147483648
    %v7404 = vmul.f32 %v7403, 1.442695
    %v7405 = vpow.pop %v7404
    %v7406 = vadd.f32 %v7405, 1.0
    %v7407 = vrcp.pop %v7406
    %v7408 = vmul.f32 1.0, %v7407
    %v7409 = vxor.u32 %v7401, 2147483648
    %v7410 = vmul.f32 %v7409, 1.442695
    %v7411 = vpow.pop %v7410
    %v7412 = vadd.f32 %v7411, 1.0
    %v7413 = vrcp.pop %v7412
    %v7414 = vmul.f32 1.0, %v7413
    %v7415 = vtanh.pop %v7401
    %v7416 = vmul.f32 %v7408, %v6832
    %7418 = vrot.lane.b32.xlu0 %v7415, 64
    %v7419 = vpop.permute.xlu0 %7418
    %v7421 = vmul.f32 %v7408, %v7419
    %7423 = vrot.lane.b32.xlu0 %v7421, 64
    %v7424 = vpop.permute.xlu0 %7423
    %v7426 = vadd.f32 %v7416, %v7424
    %v7427 = vtanh.pop %v7426
    %7429 = vrot.lane.b32.xlu0 %v7427, 64
    %v7430 = vpop.permute.xlu0 %7429
    %v7432 = vmul.f32 %v7414, %v7430
    %v7433 = vsel %vm2181, %v7432, %v7426
    %7434 = vmatprep.subr.mxu0 0.0
    %7435 = vmatpush1.msra.mxu0 %v1947
    %7436 = vmatprep.subr.mxu0 0.0
    %7437 = vmatpush1.msra.mxu0 %v1948
    %7438 = vmatprep.subr.mxu0 0.0
    %7439 = vmatpush1.msra.mxu0 %v1949
    %7440 = vmatprep.subr.mxu0 0.0
    %7441 = vmatpush1.msra.mxu0 %v1950
    %7442 = vmatprep.subr.mxu0 0.0
    %7443 = vmatpush1.msra.mxu0 %v1951
    %7444 = vmatprep.subr.mxu0 0.0
    %7445 = vmatpush1.msra.mxu0 %v1952
    %7446 = vmatprep.subr.mxu0 0.0
    %7447 = vmatpush1.msra.mxu0 %v1953
    %7448 = vmatprep.subr.mxu0 0.0
    %7449 = vmatpush1.msra.mxu0 %v1954
    %7450 = vmatprep.subr.mxu0 0.0
    %7451 = vmatpush1.msra.mxu0 %v1955
    %7452 = vmatprep.subr.mxu0 0.0
    %7453 = vmatpush1.msra.mxu0 %v1956
    %7454 = vmatprep.subr.mxu0 0.0
    %7455 = vmatpush1.msra.mxu0 %v1957
    %7456 = vmatprep.subr.mxu0 0.0
    %7457 = vmatpush1.msra.mxu0 %v1958
    %7458 = vmatprep.subr.mxu0 0.0
    %7459 = vmatpush1.msra.mxu0 %v1959
    %7460 = vmatprep.subr.mxu0 0.0
    %7461 = vmatpush1.msra.mxu0 %v1960
    %7462 = vmatprep.subr.mxu0 0.0
    %7463 = vmatpush1.msra.mxu0 %v1961
    %7464 = vmatprep.subr.mxu0 0.0
    %7465 = vmatpush1.msra.mxu0 %v1962
    %7466 = vmatprep.subr.mxu0 0.0
    %7467 = vmatpush1.msra.mxu0 0.0
    %7468 = vmatprep.subr.mxu0 0.0
    %7469 = vmatpush1.msra.mxu0 0.0
    %7470 = vmatprep.subr.mxu0 0.0
    %7471 = vmatpush1.msra.mxu0 0.0
    %7472 = vmatprep.subr.mxu0 0.0
    %7473 = vmatpush1.msra.mxu0 0.0
    %7474 = vmatprep.subr.mxu0 0.0
    %7475 = vmatpush1.msra.mxu0 0.0
    %7476 = vmatprep.subr.mxu0 0.0
    %7477 = vmatpush1.msra.mxu0 0.0
    %7478 = vmatprep.subr.mxu0 0.0
    %7479 = vmatpush1.msra.mxu0 0.0
    %7480 = vmatprep.subr.mxu0 0.0
    %7481 = vmatpush1.msra.mxu0 0.0
    %7482 = vmatprep.subr.mxu0 0.0
    %7483 = vmatpush1.msra.mxu0 0.0
    %7484 = vmatprep.subr.mxu0 0.0
    %7485 = vmatpush1.msra.mxu0 0.0
    %7486 = vmatprep.subr.mxu0 0.0
    %7487 = vmatpush1.msra.mxu0 0.0
    %7488 = vmatprep.subr.mxu0 0.0
    %7489 = vmatpush1.msra.mxu0 0.0
    %7490 = vmatprep.subr.mxu0 0.0
    %7491 = vmatpush1.msra.mxu0 0.0
    %7492 = vmatprep.subr.mxu0 0.0
    %7493 = vmatpush1.msra.mxu0 0.0
    %7494 = vmatprep.subr.mxu0 0.0
    %7495 = vmatpush1.msra.mxu0 0.0
    %7496 = vmatprep.subr.mxu0 0.0
    %7497 = vmatpush1.msra.mxu0 0.0
    %7498 = vmatprep.mubr.f32.mxu0 0.0
    %7499 = vmatmul.mubr.f32.gmra.mrb[0].mxu0 %v7433
    %v7500 = vpop.f32.mrb[0].mxu0
    %v7501 = vadd.f32 0.0, %v7500
    %v7502 = vpop.f32.mrb[0].mxu0
    %7503 = vdwg.mxu0
    %v7506 = vunpack.c.l.s4 1966171168
    %v7507 = vunpack.c.0.s8 %v7506
    %v7508 = vlaneseq
    %v7509 = vshrl.u32 %v7508, 7
    %v7510 = vsub.s32 %v7507, %v7509
    %v7511 = vrot.slane %v7501, %v7510
    %v7512 = vcombine.high %v7511, %v7511
    %v7514 = vunpack.c.l.s4 1966171168
    %v7515 = vunpack.c.0.s8 %v7514
    %v7516 = vlaneseq
    %v7517 = vshrl.u32 %v7516, 7
    %v7518 = vsub.s32 %v7515, %v7517
    %v7519 = vrot.slane %v7511, %v7518
    %v7521 = vunpack.c.l.s4 1966171168
    %v7522 = vunpack.c.0.s8 %v7521
    %v7523 = vlaneseq
    %v7524 = vshrl.u32 %v7523, 7
    %v7525 = vsub.s32 %v7522, %v7524
    %v7526 = vrot.slane %v7512, %v7525
    %v7527 = vlaneseq
    %v7528 = vshrl.u32 %v7527, 7
    %v7529 = vsub.s32 0, %v7528
    %v7530 = vrot.slane %v7519, %v7529
    %v7531 = vlaneseq
    %v7532 = vshrl.u32 %v7531, 7
    %v7533 = vsub.s32 0, %v7532
    %v7534 = vrot.slane %v7526, %v7533
    %v7535 = vcombine.high %v7530, %v7530
    %v7537 = vunpack.c.l.s4 1983009808
    %v7538 = vunpack.c.0.s8 %v7537
    %v7539 = vlaneseq
    %v7540 = vshrl.u32 %v7539, 7
    %v7541 = vsub.s32 %v7538, %v7540
    %v7542 = vrot.slane %v7530, %v7541
    %v7544 = vunpack.c.l.s4 1983009808
    %v7545 = vunpack.c.0.s8 %v7544
    %v7546 = vlaneseq
    %v7547 = vshrl.u32 %v7546, 7
    %v7548 = vsub.s32 %v7545, %v7547
    %v7549 = vrot.slane %v7535, %v7548
    %v7550 = vcombine.high %v7542, %v7542
    %v7551 = vcombine.high %v7549, %v7549
    %v7552 = vcombine.high %v7534, %v7534
    %v7554 = vunpack.c.l.s4 1983009808
    %v7555 = vunpack.c.0.s8 %v7554
    %v7556 = vlaneseq
    %v7557 = vshrl.u32 %v7556, 7
    %v7558 = vsub.s32 %v7555, %v7557
    %v7559 = vrot.slane %v7534, %v7558
    %v7561 = vunpack.c.l.s4 1983009808
    %v7562 = vunpack.c.0.s8 %v7561
    %v7563 = vlaneseq
    %v7564 = vshrl.u32 %v7563, 7
    %v7565 = vsub.s32 %v7562, %v7564
    %v7566 = vrot.slane %v7552, %v7565
    %v7567 = vcombine.high %v7559, %v7559
    %v7568 = vcombine.high %v7566, %v7566
    %v7577 = vadd.f32 %v2278, %v7542
    %v7578 = vadd.f32 %v2286, %v7550
    %v7579 = vadd.f32 %v2285, %v7549
    %v7580 = vadd.f32 %v2287, %v7551
    %v7581 = vadd.f32 %v2295, %v7542
    %v7582 = vadd.f32 %v2303, %v7559
    %v7583 = vadd.f32 %v2302, %v7567
    %v7584 = vadd.f32 %v2304, %v7566
    %v7585 = vadd.f32 %v2311, %v7568
    %v7586 = vadd.f32 %v2312, %v7559
    %v7587 = vtanh.pop %v7577
    %v7588 = vtanh.pop %v7578
    %v7589 = vtanh.pop %v7579
    %v7590 = vtanh.pop %v7580
    %v7591 = vtanh.pop %v7581
    %v7592 = vtanh.pop %v7582
    %v7593 = vtanh.pop %v7583
    %v7594 = vtanh.pop %v7584
    %v7595 = vtanh.pop %v7585
    %v7596 = vtanh.pop %v7586
    %v7597 = vmul.f32 %v7587, %v2799
    %v7598 = vmul.f32 %v7588, %v2807
    %v7599 = vmul.f32 %v7589, %v2806
    %v7600 = vmul.f32 %v7590, %v2808
    %v7601 = vmul.f32 %v7591, %v2799
    %v7602 = vmul.f32 %v7592, %v2799
    %v7603 = vmul.f32 %v7593, %v2807
    %v7604 = vmul.f32 %v7594, %v2806
    %v7605 = vmul.f32 %v7595, %v2808
    %v7606 = vmul.f32 %v7596, %v2799
    %v7617 = vcombine.low %v7597, %v7598
    %v7618 = vcombine.low %v7599, %v7600
    %v7620 = vunpack.c.l.s4 1983009808
    %v7621 = vunpack.c.0.s8 %v7620
    %v7622 = vlaneseq
    %v7623 = vshrl.u32 %v7622, 7
    %v7624 = vsub.s32 %v7621, %v7623
    %v7625 = vrot.slane %v7617, %v7624
    %v7627 = vunpack.c.l.s4 1983009808
    %v7628 = vunpack.c.0.s8 %v7627
    %v7629 = vlaneseq
    %v7630 = vshrl.u32 %v7629, 7
    %v7631 = vsub.s32 %v7628, %v7630
    %v7632 = vrot.slane %v7618, %v7631
    %v7633 = vcombine.low %v7625, %v7632
    %v7635 = vunpack.c.l.s4 1983009808
    %v7636 = vunpack.c.0.s8 %v7635
    %v7637 = vlaneseq
    %v7638 = vshrl.u32 %v7637, 7
    %v7639 = vsub.s32 %v7636, %v7638
    %v7640 = vrot.slane %v7601, %v7639
    %v7641 = vcombine.low %v7602, %v7603
    %v7642 = vcombine.low %v7604, %v7605
    %v7644 = vunpack.c.l.s4 1983009808
    %v7645 = vunpack.c.0.s8 %v7644
    %v7646 = vlaneseq
    %v7647 = vshrl.u32 %v7646, 7
    %v7648 = vsub.s32 %v7645, %v7647
    %v7649 = vrot.slane %v7641, %v7648
    %v7651 = vunpack.c.l.s4 1983009808
    %v7652 = vunpack.c.0.s8 %v7651
    %v7653 = vlaneseq
    %v7654 = vshrl.u32 %v7653, 7
    %v7655 = vsub.s32 %v7652, %v7654
    %v7656 = vrot.slane %v7642, %v7655
    %v7657 = vcombine.low %v7649, %v7656
    %v7659 = vunpack.c.l.s4 1983009808
    %v7660 = vunpack.c.0.s8 %v7659
    %v7661 = vlaneseq
    %v7662 = vshrl.u32 %v7661, 7
    %v7663 = vsub.s32 %v7660, %v7662
    %v7664 = vrot.slane %v7606, %v7663
    %v7669 = vsel %vm2181, %v7633, 0.0
    %7670 = vadd.xlane.f32.xlu0 %v7669
    %v7671 = vpop.xlane.xlu0 %7670
    %v7672 = vsel %vm167, %v7640, 0.0
    %7673 = vadd.xlane.f32.xlu0 %v7672
    %v7674 = vpop.xlane.xlu0 %7673
    %v7675 = vsel %vm2181, %v7657, 0.0
    %7676 = vadd.xlane.f32.xlu0 %v7675
    %v7677 = vpop.xlane.xlu0 %7676
    %v7678 = vsel %vm167, %v7664, 0.0
    %7679 = vadd.xlane.f32.xlu0 %v7678
    %v7680 = vpop.xlane.xlu0 %7679
    %v7681 = vadd.f32 %v7671, %v2904
    %v7682 = vadd.f32 %v7674, %v2904
    %v7683 = vadd.f32 %v7677, %v2904
    %v7684 = vadd.f32 %v7680, %v2904
    %v7689 = vlaneseq
    %v7690 = vshrl.u32 %v7689, 7
    %v7691 = vsub.s32 %v2915, %v7690
    %v7692 = vrot.slane %v7681, %v7691
    %v7693 = vlaneseq
    %v7694 = vshrl.u32 %v7693, 7
    %v7695 = vsub.s32 %v2920, %v7694
    %v7696 = vrot.slane %v7682, %v7695
    %v7697 = vsel %vm2925, %v7696, %v7692
    %v7698 = vlaneseq
    %v7699 = vshrl.u32 %v7698, 7
    %v7700 = vsub.s32 %v2915, %v7699
    %v7701 = vrot.slane %v7683, %v7700
    %v7702 = vlaneseq
    %v7703 = vshrl.u32 %v7702, 7
    %v7704 = vsub.s32 %v2920, %v7703
    %v7705 = vrot.slane %v7684, %v7704
    %v7706 = vsel %vm2925, %v7705, %v7701
    %v7707 = vsel %vm185, %v7706, %v7697
    %v7709 = vsel %vm2938, %v7707, -inf
    %7710 = vmax.xlane.f32.xlu0 %v7709
    %v7711 = vpop.xlane.xlu0 %7710
    %v7713 = vlaneseq
    %v7714 = vshrl.u32 %v7713, 7
    %v7715 = vsub.s32 0, %v7714
    %v7716 = vrot.slane %v7711, %v7715
    %v7717 = vlaneseq
    %v7718 = vshrl.u32 %v7717, 7
    %v7719 = vsub.s32 1, %v7718
    %v7720 = vrot.slane %v7711, %v7719
    %v7723 = vsub.f32 %v7681, %v7716
    %v7724 = vsub.f32 %v7682, %v7716
    %v7725 = vsub.f32 %v7683, %v7720
    %v7726 = vsub.f32 %v7684, %v7720
    %v7727 = vmul.f32 %v7723, 1.442695
    %v7728 = vpow.pop %v7727
    %v7729 = vmul.f32 %v7724, 1.442695
    %v7730 = vpow.pop %v7729
    %v7731 = vmul.f32 %v7725, 1.442695
    %v7732 = vpow.pop %v7731
    %v7733 = vmul.f32 %v7726, 1.442695
    %v7734 = vpow.pop %v7733
    %7739 = vset.pattern.permute.xlu0 0
    %7740 = vperm.xlu0 %7739, %v7728
    %v7741 = vpop.permute.xlu0 %7740
    %7742 = vset.pattern.permute.xlu0 0
    %7743 = vperm.xlu0 %7742, %v7730
    %v7744 = vpop.permute.xlu0 %7743
    %7745 = vset.pattern.permute.xlu0 0
    %7746 = vperm.xlu0 %7745, %v7732
    %v7747 = vpop.permute.xlu0 %7746
    %7748 = vset.pattern.permute.xlu0 0
    %7749 = vperm.xlu0 %7748, %v7734
    %v7750 = vpop.permute.xlu0 %7749
    %v7751 = vlaneseq
    %v7752 = vshrl.u32 %v7751, 7
    %v7753 = vsub.s32 %v2915, %v7752
    %v7754 = vrot.slane %v7741, %v7753
    %v7755 = vlaneseq
    %v7756 = vshrl.u32 %v7755, 7
    %v7757 = vsub.s32 %v2920, %v7756
    %v7758 = vrot.slane %v7744, %v7757
    %v7759 = vsel %vm2925, %v7758, %v7754
    %v7760 = vlaneseq
    %v7761 = vshrl.u32 %v7760, 7
    %v7762 = vsub.s32 %v2915, %v7761
    %v7763 = vrot.slane %v7747, %v7762
    %v7764 = vlaneseq
    %v7765 = vshrl.u32 %v7764, 7
    %v7766 = vsub.s32 %v2920, %v7765
    %v7767 = vrot.slane %v7750, %v7766
    %v7768 = vsel %vm2925, %v7767, %v7763
    %v7769 = vsel %vm185, %v7768, %v7759
    %v7771 = vsel %vm2938, %v7769, 0.0
    %7772 = vadd.xlane.f32.xlu0 %v7771
    %v7773 = vpop.xlane.xlu0 %7772
    %v7775 = vlaneseq
    %v7776 = vshrl.u32 %v7775, 7
    %v7777 = vsub.s32 0, %v7776
    %v7778 = vrot.slane %v7773, %v7777
    %v7779 = vlaneseq
    %v7780 = vshrl.u32 %v7779, 7
    %v7781 = vsub.s32 1, %v7780
    %v7782 = vrot.slane %v7773, %v7781
    %v7785 = vrcp.pop %v7778
    %v7786 = vmul.f32 %v7728, %v7785
    %v7787 = vmul.f32 %v7730, %v7785
    %v7788 = vrcp.pop %v7782
    %v7789 = vmul.f32 %v7732, %v7788
    %v7790 = vmul.f32 %v7734, %v7788
    %7792 = vset.pattern.permute.xlu0 0
    %7793 = vperm.xlu0 %7792, %v7786
    %v7794 = vpop.permute.xlu0 %7793
    %7797 = vset.pattern.permute.xlu0 0
    %7798 = vperm.xlu0 %7797, %v7787
    %v7799 = vpop.permute.xlu0 %7798
    %7802 = vset.pattern.permute.xlu0 0
    %7803 = vperm.xlu0 %7802, %v7789
    %v7804 = vpop.permute.xlu0 %7803
    %7807 = vset.pattern.permute.xlu0 0
    %7808 = vperm.xlu0 %7807, %v7790
    %v7809 = vpop.permute.xlu0 %7808
    %v7811 = vmul.f32 %v7794, %v1941
    %v7812 = vmul.f32 %v7799, %v1943
    %v7813 = vmul.f32 %v7804, %v1942
    %v7814 = vmul.f32 %v7809, %v1944
    %v7815 = vsel %vm2181, %v7811, 0.0
    %v7816 = vsel %vm167, %v7812, 0.0
    %v7817 = vadd.f32 %v7815, %v7816
    %v7818 = vrot.slane %v7817, 4
    %v7819 = vadd.f32 %v7817, %v7818
    %v7820 = vrot.slane %v7819, 2
    %v7821 = vadd.f32 %v7819, %v7820
    %v7822 = vrot.slane %v7821, 1
    %v7823 = vadd.f32 %v7821, %v7822
    %v7824 = vsel %vm2181, %v7813, 0.0
    %v7825 = vsel %vm167, %v7814, 0.0
    %v7826 = vadd.f32 %v7824, %v7825
    %v7827 = vrot.slane %v7826, 4
    %v7828 = vadd.f32 %v7826, %v7827
    %v7829 = vrot.slane %v7828, 2
    %v7830 = vadd.f32 %v7828, %v7829
    %v7831 = vrot.slane %v7830, 1
    %v7832 = vadd.f32 %v7830, %v7831
    %v7835 = vsel %vm185, %v7832, %v7823
    %v7836 = vlaneseq
    %v7837 = vshrl.u32 %v7836, 7
    %v7838 = vsub.s32 0, %v7837
    %v7839 = vrot.slane %v2601, %v7838
    %v7840 = vlaneseq
    %v7841 = vshrl.u32 %v7840, 7
    %v7842 = vsub.s32 0, %v7841
    %v7843 = vrot.slane %v2618, %v7842
    %v7844 = vsel %vm185, %v7843, %v7839
    %v7846 = vsel %vm2181, %v7835, 0
    %7848 = vmatprep.subr.mxu0 0.0
    %7849 = vmatpush1.msra.mxu0 %v1993
    %7850 = vmatprep.subr.mxu0 0.0
    %7851 = vmatpush1.msra.mxu0 %v1994
    %7852 = vmatprep.subr.mxu0 0.0
    %7853 = vmatpush1.msra.mxu0 %v1995
    %7854 = vmatprep.subr.mxu0 0.0
    %7855 = vmatpush1.msra.mxu0 %v1996
    %7856 = vmatprep.subr.mxu0 0.0
    %7857 = vmatpush1.msra.mxu0 %v1997
    %7858 = vmatprep.subr.mxu0 0.0
    %7859 = vmatpush1.msra.mxu0 %v1998
    %7860 = vmatprep.subr.mxu0 0.0
    %7861 = vmatpush1.msra.mxu0 %v1999
    %7862 = vmatprep.subr.mxu0 0.0
    %7863 = vmatpush1.msra.mxu0 %v2000
    %7864 = vmatprep.subr.mxu0 0.0
    %7865 = vmatpush1.msra.mxu0 0.0
    %7866 = vmatprep.subr.mxu0 0.0
    %7867 = vmatpush1.msra.mxu0 0.0
    %7868 = vmatprep.subr.mxu0 0.0
    %7869 = vmatpush1.msra.mxu0 0.0
    %7870 = vmatprep.subr.mxu0 0.0
    %7871 = vmatpush1.msra.mxu0 0.0
    %7872 = vmatprep.subr.mxu0 0.0
    %7873 = vmatpush1.msra.mxu0 0.0
    %7874 = vmatprep.subr.mxu0 0.0
    %7875 = vmatpush1.msra.mxu0 0.0
    %7876 = vmatprep.subr.mxu0 0.0
    %7877 = vmatpush1.msra.mxu0 0.0
    %7878 = vmatprep.subr.mxu0 0.0
    %7879 = vmatpush1.msra.mxu0 0.0
    %7880 = vmatprep.subr.mxu0 0.0
    %7881 = vmatpush1.msra.mxu0 0.0
    %7882 = vmatprep.subr.mxu0 0.0
    %7883 = vmatpush1.msra.mxu0 0.0
    %7884 = vmatprep.subr.mxu0 0.0
    %7885 = vmatpush1.msra.mxu0 0.0
    %7886 = vmatprep.subr.mxu0 0.0
    %7887 = vmatpush1.msra.mxu0 0.0
    %7888 = vmatprep.subr.mxu0 0.0
    %7889 = vmatpush1.msra.mxu0 0.0
    %7890 = vmatprep.subr.mxu0 0.0
    %7891 = vmatpush1.msra.mxu0 0.0
    %7892 = vmatprep.subr.mxu0 0.0
    %7893 = vmatpush1.msra.mxu0 0.0
    %7894 = vmatprep.subr.mxu0 0.0
    %7895 = vmatpush1.msra.mxu0 0.0
    %7896 = vmatprep.subr.mxu0 0.0
    %7897 = vmatpush1.msra.mxu0 0.0
    %7898 = vmatprep.subr.mxu0 0.0
    %7899 = vmatpush1.msra.mxu0 0.0
    %7900 = vmatprep.subr.mxu0 0.0
    %7901 = vmatpush1.msra.mxu0 0.0
    %7902 = vmatprep.subr.mxu0 0.0
    %7903 = vmatpush1.msra.mxu0 0.0
    %7904 = vmatprep.subr.mxu0 0.0
    %7905 = vmatpush1.msra.mxu0 0.0
    %7906 = vmatprep.subr.mxu0 0.0
    %7907 = vmatpush1.msra.mxu0 0.0
    %7908 = vmatprep.subr.mxu0 0.0
    %7909 = vmatpush1.msra.mxu0 0.0
    %7910 = vmatprep.subr.mxu0 0.0
    %7911 = vmatpush1.msra.mxu0 0.0
    %7912 = vmatprep.mubr.f32.mxu0 0.0
    %7913 = vmatmul.mubr.f32.gmra.mrb[0].mxu0 %v7846
    %v7914 = vpop.f32.mrb[0].mxu0
    %v7915 = vadd.f32 %v7844, %v7914
    %v7916 = vpop.f32.mrb[0].mxu0
    %7917 = vdwg.mxu0
    %7919 = vrot.lane.b32.xlu0 %v7432, 5
    %v7920 = vpop.permute.xlu0 %7919
    %v7922 = vsel %vm2484, %v7915, %v7920
    %v7924 = vsel %vm3164, %v7922, 0
    %7926 = vmatprep.subr.mxu0 %v1975
    %7927 = vmatpush1.msra.mxu0 %v1974
    %7928 = vmatprep.subr.mxu0 %v1977
    %7929 = vmatpush1.msra.mxu0 %v1976
    %7930 = vmatprep.subr.mxu0 %v1979
    %7931 = vmatpush1.msra.mxu0 %v1978
    %7932 = vmatprep.subr.mxu0 %v1981
    %7933 = vmatpush1.msra.mxu0 %v1980
    %7934 = vmatprep.subr.mxu0 %v1983
    %7935 = vmatpush1.msra.mxu0 %v1982
    %7936 = vmatprep.subr.mxu0 %v1985
    %7937 = vmatpush1.msra.mxu0 %v1984
    %7938 = vmatprep.subr.mxu0 %v1987
    %7939 = vmatpush1.msra.mxu0 %v1986
    %7940 = vmatprep.subr.mxu0 %v1989
    %7941 = vmatpush1.msra.mxu0 %v1988
    %7942 = vmatprep.subr.mxu0 %v3172
    %7943 = vmatpush1.msra.mxu0 %v3169
    %7944 = vmatprep.subr.mxu0 0.0
    %7945 = vmatpush1.msra.mxu0 0.0
    %7946 = vmatprep.subr.mxu0 0.0
    %7947 = vmatpush1.msra.mxu0 0.0
    %7948 = vmatprep.subr.mxu0 0.0
    %7949 = vmatpush1.msra.mxu0 0.0
    %7950 = vmatprep.subr.mxu0 0.0
    %7951 = vmatpush1.msra.mxu0 0.0
    %7952 = vmatprep.subr.mxu0 0.0
    %7953 = vmatpush1.msra.mxu0 0.0
    %7954 = vmatprep.subr.mxu0 0.0
    %7955 = vmatpush1.msra.mxu0 0.0
    %7956 = vmatprep.subr.mxu0 0.0
    %7957 = vmatpush1.msra.mxu0 0.0
    %7958 = vmatprep.subr.mxu0 0.0
    %7959 = vmatpush1.msra.mxu0 0.0
    %7960 = vmatprep.subr.mxu0 0.0
    %7961 = vmatpush1.msra.mxu0 0.0
    %7962 = vmatprep.subr.mxu0 0.0
    %7963 = vmatpush1.msra.mxu0 0.0
    %7964 = vmatprep.subr.mxu0 0.0
    %7965 = vmatpush1.msra.mxu0 0.0
    %7966 = vmatprep.subr.mxu0 0.0
    %7967 = vmatpush1.msra.mxu0 0.0
    %7968 = vmatprep.subr.mxu0 0.0
    %7969 = vmatpush1.msra.mxu0 0.0
    %7970 = vmatprep.subr.mxu0 0.0
    %7971 = vmatpush1.msra.mxu0 0.0
    %7972 = vmatprep.subr.mxu0 0.0
    %7973 = vmatpush1.msra.mxu0 0.0
    %7974 = vmatprep.subr.mxu0 0.0
    %7975 = vmatpush1.msra.mxu0 0.0
    %7976 = vmatprep.subr.mxu0 0.0
    %7977 = vmatpush1.msra.mxu0 0.0
    %7978 = vmatprep.subr.mxu0 0.0
    %7979 = vmatpush1.msra.mxu0 0.0
    %7980 = vmatprep.subr.mxu0 0.0
    %7981 = vmatpush1.msra.mxu0 0.0
    %7982 = vmatprep.subr.mxu0 0.0
    %7983 = vmatpush1.msra.mxu0 0.0
    %7984 = vmatprep.subr.mxu0 0.0
    %7985 = vmatpush1.msra.mxu0 0.0
    %7986 = vmatprep.subr.mxu0 0.0
    %7987 = vmatpush1.msra.mxu0 0.0
    %7988 = vmatprep.subr.mxu0 0.0
    %7989 = vmatpush1.msra.mxu0 0.0
    %7990 = vmatprep.mubr.f32.mxu0 0.0
    %7991 = vmatmul.mubr.f32.gmra.mrb[0].mxu0 %v7924
    %v7992 = vpop.f32.mrb[0].mxu0
    %v7993 = vadd.f32 %v3157, %v7992
    %v7994 = vpop.f32.mrb[0].mxu0
    %v7995 = vadd.f32 %v3161, %v7994
    %7996 = vdwg.mxu0
    %v7997 = vxor.u32 %v7993, 2147483648
    %v7998 = vmul.f32 %v7997, 1.442695
    %v7999 = vpow.pop %v7998
    %v8000 = vadd.f32 %v7999, 1.0
    %v8001 = vrcp.pop %v8000
    %v8002 = vmul.f32 1.0, %v8001
    %v8003 = vxor.u32 %v7995, 2147483648
    %v8004 = vmul.f32 %v8003, 1.442695
    %v8005 = vpow.pop %v8004
    %v8006 = vadd.f32 %v8005, 1.0
    %v8007 = vrcp.pop %v8006
    %v8008 = vmul.f32 1.0, %v8007
    %v8009 = vtanh.pop %v7995
    %v8010 = vmul.f32 %v8002, %v7426
    %8012 = vrot.lane.b32.xlu0 %v8009, 64
    %v8013 = vpop.permute.xlu0 %8012
    %v8015 = vmul.f32 %v8002, %v8013
    %8017 = vrot.lane.b32.xlu0 %v8015, 64
    %v8018 = vpop.permute.xlu0 %8017
    %v8020 = vadd.f32 %v8010, %v8018
    %v8021 = vtanh.pop %v8020
    %8023 = vrot.lane.b32.xlu0 %v8021, 64
    %v8024 = vpop.permute.xlu0 %8023
    %v8026 = vmul.f32 %v8008, %v8024
    %v8027 = vsel %vm2181, %v8026, %v8020
    %8028 = vmatprep.subr.mxu0 0.0
    %8029 = vmatpush1.msra.mxu0 %v1947
    %8030 = vmatprep.subr.mxu0 0.0
    %8031 = vmatpush1.msra.mxu0 %v1948
    %8032 = vmatprep.subr.mxu0 0.0
    %8033 = vmatpush1.msra.mxu0 %v1949
    %8034 = vmatprep.subr.mxu0 0.0
    %8035 = vmatpush1.msra.mxu0 %v1950
    %8036 = vmatprep.subr.mxu0 0.0
    %8037 = vmatpush1.msra.mxu0 %v1951
    %8038 = vmatprep.subr.mxu0 0.0
    %8039 = vmatpush1.msra.mxu0 %v1952
    %8040 = vmatprep.subr.mxu0 0.0
    %8041 = vmatpush1.msra.mxu0 %v1953
    %8042 = vmatprep.subr.mxu0 0.0
    %8043 = vmatpush1.msra.mxu0 %v1954
    %8044 = vmatprep.subr.mxu0 0.0
    %8045 = vmatpush1.msra.mxu0 %v1955
    %8046 = vmatprep.subr.mxu0 0.0
    %8047 = vmatpush1.msra.mxu0 %v1956
    %8048 = vmatprep.subr.mxu0 0.0
    %8049 = vmatpush1.msra.mxu0 %v1957
    %8050 = vmatprep.subr.mxu0 0.0
    %8051 = vmatpush1.msra.mxu0 %v1958
    %8052 = vmatprep.subr.mxu0 0.0
    %8053 = vmatpush1.msra.mxu0 %v1959
    %8054 = vmatprep.subr.mxu0 0.0
    %8055 = vmatpush1.msra.mxu0 %v1960
    %8056 = vmatprep.subr.mxu0 0.0
    %8057 = vmatpush1.msra.mxu0 %v1961
    %8058 = vmatprep.subr.mxu0 0.0
    %8059 = vmatpush1.msra.mxu0 %v1962
    %8060 = vmatprep.subr.mxu0 0.0
    %8061 = vmatpush1.msra.mxu0 0.0
    %8062 = vmatprep.subr.mxu0 0.0
    %8063 = vmatpush1.msra.mxu0 0.0
    %8064 = vmatprep.subr.mxu0 0.0
    %8065 = vmatpush1.msra.mxu0 0.0
    %8066 = vmatprep.subr.mxu0 0.0
    %8067 = vmatpush1.msra.mxu0 0.0
    %8068 = vmatprep.subr.mxu0 0.0
    %8069 = vmatpush1.msra.mxu0 0.0
    %8070 = vmatprep.subr.mxu0 0.0
    %8071 = vmatpush1.msra.mxu0 0.0
    %8072 = vmatprep.subr.mxu0 0.0
    %8073 = vmatpush1.msra.mxu0 0.0
    %8074 = vmatprep.subr.mxu0 0.0
    %8075 = vmatpush1.msra.mxu0 0.0
    %8076 = vmatprep.subr.mxu0 0.0
    %8077 = vmatpush1.msra.mxu0 0.0
    %8078 = vmatprep.subr.mxu0 0.0
    %8079 = vmatpush1.msra.mxu0 0.0
    %8080 = vmatprep.subr.mxu0 0.0
    %8081 = vmatpush1.msra.mxu0 0.0
    %8082 = vmatprep.subr.mxu0 0.0
    %8083 = vmatpush1.msra.mxu0 0.0
    %8084 = vmatprep.subr.mxu0 0.0
    %8085 = vmatpush1.msra.mxu0 0.0
    %8086 = vmatprep.subr.mxu0 0.0
    %8087 = vmatpush1.msra.mxu0 0.0
    %8088 = vmatprep.subr.mxu0 0.0
    %8089 = vmatpush1.msra.mxu0 0.0
    %8090 = vmatprep.subr.mxu0 0.0
    %8091 = vmatpush1.msra.mxu0 0.0
    %8092 = vmatprep.mubr.f32.mxu0 0.0
    %8093 = vmatmul.mubr.f32.gmra.mrb[0].mxu0 %v8027
    %v8094 = vpop.f32.mrb[0].mxu0
    %v8095 = vadd.f32 0.0, %v8094
    %v8096 = vpop.f32.mrb[0].mxu0
    %8097 = vdwg.mxu0
    %v8100 = vunpack.c.l.s4 1966171168
    %v8101 = vunpack.c.0.s8 %v8100
    %v8102 = vlaneseq
    %v8103 = vshrl.u32 %v8102, 7
    %v8104 = vsub.s32 %v8101, %v8103
    %v8105 = vrot.slane %v8095, %v8104
    %v8106 = vcombine.high %v8105, %v8105
    %v8108 = vunpack.c.l.s4 1966171168
    %v8109 = vunpack.c.0.s8 %v8108
    %v8110 = vlaneseq
    %v8111 = vshrl.u32 %v8110, 7
    %v8112 = vsub.s32 %v8109, %v8111
    %v8113 = vrot.slane %v8105, %v8112
    %v8115 = vunpack.c.l.s4 1966171168
    %v8116 = vunpack.c.0.s8 %v8115
    %v8117 = vlaneseq
    %v8118 = vshrl.u32 %v8117, 7
    %v8119 = vsub.s32 %v8116, %v8118
    %v8120 = vrot.slane %v8106, %v8119
    %v8121 = vlaneseq
    %v8122 = vshrl.u32 %v8121, 7
    %v8123 = vsub.s32 0, %v8122
    %v8124 = vrot.slane %v8113, %v8123
    %v8125 = vlaneseq
    %v8126 = vshrl.u32 %v8125, 7
    %v8127 = vsub.s32 0, %v8126
    %v8128 = vrot.slane %v8120, %v8127
    %v8129 = vcombine.high %v8124, %v8124
    %v8131 = vunpack.c.l.s4 1983009808
    %v8132 = vunpack.c.0.s8 %v8131
    %v8133 = vlaneseq
    %v8134 = vshrl.u32 %v8133, 7
    %v8135 = vsub.s32 %v8132, %v8134
    %v8136 = vrot.slane %v8124, %v8135
    %v8138 = vunpack.c.l.s4 1983009808
    %v8139 = vunpack.c.0.s8 %v8138
    %v8140 = vlaneseq
    %v8141 = vshrl.u32 %v8140, 7
    %v8142 = vsub.s32 %v8139, %v8141
    %v8143 = vrot.slane %v8129, %v8142
    %v8144 = vcombine.high %v8136, %v8136
    %v8145 = vcombine.high %v8143, %v8143
    %v8146 = vcombine.high %v8128, %v8128
    %v8148 = vunpack.c.l.s4 1983009808
    %v8149 = vunpack.c.0.s8 %v8148
    %v8150 = vlaneseq
    %v8151 = vshrl.u32 %v8150, 7
    %v8152 = vsub.s32 %v8149, %v8151
    %v8153 = vrot.slane %v8128, %v8152
    %v8155 = vunpack.c.l.s4 1983009808
    %v8156 = vunpack.c.0.s8 %v8155
    %v8157 = vlaneseq
    %v8158 = vshrl.u32 %v8157, 7
    %v8159 = vsub.s32 %v8156, %v8158
    %v8160 = vrot.slane %v8146, %v8159
    %v8161 = vcombine.high %v8153, %v8153
    %v8162 = vcombine.high %v8160, %v8160
    %v8171 = vadd.f32 %v2278, %v8136
    %v8172 = vadd.f32 %v2286, %v8144
    %v8173 = vadd.f32 %v2285, %v8143
    %v8174 = vadd.f32 %v2287, %v8145
    %v8175 = vadd.f32 %v2295, %v8136
    %v8176 = vadd.f32 %v2303, %v8153
    %v8177 = vadd.f32 %v2302, %v8161
    %v8178 = vadd.f32 %v2304, %v8160
    %v8179 = vadd.f32 %v2311, %v8162
    %v8180 = vadd.f32 %v2312, %v8153
    %v8181 = vtanh.pop %v8171
    %v8182 = vtanh.pop %v8172
    %v8183 = vtanh.pop %v8173
    %v8184 = vtanh.pop %v8174
    %v8185 = vtanh.pop %v8175
    %v8186 = vtanh.pop %v8176
    %v8187 = vtanh.pop %v8177
    %v8188 = vtanh.pop %v8178
    %v8189 = vtanh.pop %v8179
    %v8190 = vtanh.pop %v8180
    %v8191 = vmul.f32 %v8181, %v2799
    %v8192 = vmul.f32 %v8182, %v2807
    %v8193 = vmul.f32 %v8183, %v2806
    %v8194 = vmul.f32 %v8184, %v2808
    %v8195 = vmul.f32 %v8185, %v2799
    %v8196 = vmul.f32 %v8186, %v2799
    %v8197 = vmul.f32 %v8187, %v2807
    %v8198 = vmul.f32 %v8188, %v2806
    %v8199 = vmul.f32 %v8189, %v2808
    %v8200 = vmul.f32 %v8190, %v2799
    %v8211 = vcombine.low %v8191, %v8192
    %v8212 = vcombine.low %v8193, %v8194
    %v8214 = vunpack.c.l.s4 1983009808
    %v8215 = vunpack.c.0.s8 %v8214
    %v8216 = vlaneseq
    %v8217 = vshrl.u32 %v8216, 7
    %v8218 = vsub.s32 %v8215, %v8217
    %v8219 = vrot.slane %v8211, %v8218
    %v8221 = vunpack.c.l.s4 1983009808
    %v8222 = vunpack.c.0.s8 %v8221
    %v8223 = vlaneseq
    %v8224 = vshrl.u32 %v8223, 7
    %v8225 = vsub.s32 %v8222, %v8224
    %v8226 = vrot.slane %v8212, %v8225
    %v8227 = vcombine.low %v8219, %v8226
    %v8229 = vunpack.c.l.s4 1983009808
    %v8230 = vunpack.c.0.s8 %v8229
    %v8231 = vlaneseq
    %v8232 = vshrl.u32 %v8231, 7
    %v8233 = vsub.s32 %v8230, %v8232
    %v8234 = vrot.slane %v8195, %v8233
    %v8235 = vcombine.low %v8196, %v8197
    %v8236 = vcombine.low %v8198, %v8199
    %v8238 = vunpack.c.l.s4 1983009808
    %v8239 = vunpack.c.0.s8 %v8238
    %v8240 = vlaneseq
    %v8241 = vshrl.u32 %v8240, 7
    %v8242 = vsub.s32 %v8239, %v8241
    %v8243 = vrot.slane %v8235, %v8242
    %v8245 = vunpack.c.l.s4 1983009808
    %v8246 = vunpack.c.0.s8 %v8245
    %v8247 = vlaneseq
    %v8248 = vshrl.u32 %v8247, 7
    %v8249 = vsub.s32 %v8246, %v8248
    %v8250 = vrot.slane %v8236, %v8249
    %v8251 = vcombine.low %v8243, %v8250
    %v8253 = vunpack.c.l.s4 1983009808
    %v8254 = vunpack.c.0.s8 %v8253
    %v8255 = vlaneseq
    %v8256 = vshrl.u32 %v8255, 7
    %v8257 = vsub.s32 %v8254, %v8256
    %v8258 = vrot.slane %v8200, %v8257
    %v8263 = vsel %vm2181, %v8227, 0.0
    %8264 = vadd.xlane.f32.xlu0 %v8263
    %v8265 = vpop.xlane.xlu0 %8264
    %v8266 = vsel %vm167, %v8234, 0.0
    %8267 = vadd.xlane.f32.xlu0 %v8266
    %v8268 = vpop.xlane.xlu0 %8267
    %v8269 = vsel %vm2181, %v8251, 0.0
    %8270 = vadd.xlane.f32.xlu0 %v8269
    %v8271 = vpop.xlane.xlu0 %8270
    %v8272 = vsel %vm167, %v8258, 0.0
    %8273 = vadd.xlane.f32.xlu0 %v8272
    %v8274 = vpop.xlane.xlu0 %8273
    %v8275 = vadd.f32 %v8265, %v2904
    %v8276 = vadd.f32 %v8268, %v2904
    %v8277 = vadd.f32 %v8271, %v2904
    %v8278 = vadd.f32 %v8274, %v2904
    %v8283 = vlaneseq
    %v8284 = vshrl.u32 %v8283, 7
    %v8285 = vsub.s32 %v2915, %v8284
    %v8286 = vrot.slane %v8275, %v8285
    %v8287 = vlaneseq
    %v8288 = vshrl.u32 %v8287, 7
    %v8289 = vsub.s32 %v2920, %v8288
    %v8290 = vrot.slane %v8276, %v8289
    %v8291 = vsel %vm2925, %v8290, %v8286
    %v8292 = vlaneseq
    %v8293 = vshrl.u32 %v8292, 7
    %v8294 = vsub.s32 %v2915, %v8293
    %v8295 = vrot.slane %v8277, %v8294
    %v8296 = vlaneseq
    %v8297 = vshrl.u32 %v8296, 7
    %v8298 = vsub.s32 %v2920, %v8297
    %v8299 = vrot.slane %v8278, %v8298
    %v8300 = vsel %vm2925, %v8299, %v8295
    %v8301 = vsel %vm185, %v8300, %v8291
    %v8303 = vsel %vm2938, %v8301, -inf
    %8304 = vmax.xlane.f32.xlu0 %v8303
    %v8305 = vpop.xlane.xlu0 %8304
    %v8307 = vlaneseq
    %v8308 = vshrl.u32 %v8307, 7
    %v8309 = vsub.s32 0, %v8308
    %v8310 = vrot.slane %v8305, %v8309
    %v8311 = vlaneseq
    %v8312 = vshrl.u32 %v8311, 7
    %v8313 = vsub.s32 1, %v8312
    %v8314 = vrot.slane %v8305, %v8313
    %v8317 = vsub.f32 %v8275, %v8310
    %v8318 = vsub.f32 %v8276, %v8310
    %v8319 = vsub.f32 %v8277, %v8314
    %v8320 = vsub.f32 %v8278, %v8314
    %v8321 = vmul.f32 %v8317, 1.442695
    %v8322 = vpow.pop %v8321
    %v8323 = vmul.f32 %v8318, 1.442695
    %v8324 = vpow.pop %v8323
    %v8325 = vmul.f32 %v8319, 1.442695
    %v8326 = vpow.pop %v8325
    %v8327 = vmul.f32 %v8320, 1.442695
    %v8328 = vpow.pop %v8327
    %8333 = vset.pattern.permute.xlu0 0
    %8334 = vperm.xlu0 %8333, %v8322
    %v8335 = vpop.permute.xlu0 %8334
    %8336 = vset.pattern.permute.xlu0 0
    %8337 = vperm.xlu0 %8336, %v8324
    %v8338 = vpop.permute.xlu0 %8337
    %8339 = vset.pattern.permute.xlu0 0
    %8340 = vperm.xlu0 %8339, %v8326
    %v8341 = vpop.permute.xlu0 %8340
    %8342 = vset.pattern.permute.xlu0 0
    %8343 = vperm.xlu0 %8342, %v8328
    %v8344 = vpop.permute.xlu0 %8343
    %v8345 = vlaneseq
    %v8346 = vshrl.u32 %v8345, 7
    %v8347 = vsub.s32 %v2915, %v8346
    %v8348 = vrot.slane %v8335, %v8347
    %v8349 = vlaneseq
    %v8350 = vshrl.u32 %v8349, 7
    %v8351 = vsub.s32 %v2920, %v8350
    %v8352 = vrot.slane %v8338, %v8351
    %v8353 = vsel %vm2925, %v8352, %v8348
    %v8354 = vlaneseq
    %v8355 = vshrl.u32 %v8354, 7
    %v8356 = vsub.s32 %v2915, %v8355
    %v8357 = vrot.slane %v8341, %v8356
    %v8358 = vlaneseq
    %v8359 = vshrl.u32 %v8358, 7
    %v8360 = vsub.s32 %v2920, %v8359
    %v8361 = vrot.slane %v8344, %v8360
    %v8362 = vsel %vm2925, %v8361, %v8357
    %v8363 = vsel %vm185, %v8362, %v8353
    %v8365 = vsel %vm2938, %v8363, 0.0
    %8366 = vadd.xlane.f32.xlu0 %v8365
    %v8367 = vpop.xlane.xlu0 %8366
    %v8369 = vlaneseq
    %v8370 = vshrl.u32 %v8369, 7
    %v8371 = vsub.s32 0, %v8370
    %v8372 = vrot.slane %v8367, %v8371
    %v8373 = vlaneseq
    %v8374 = vshrl.u32 %v8373, 7
    %v8375 = vsub.s32 1, %v8374
    %v8376 = vrot.slane %v8367, %v8375
    %v8379 = vrcp.pop %v8372
    %v8380 = vmul.f32 %v8322, %v8379
    %v8381 = vmul.f32 %v8324, %v8379
    %v8382 = vrcp.pop %v8376
    %v8383 = vmul.f32 %v8326, %v8382
    %v8384 = vmul.f32 %v8328, %v8382
    %8386 = vset.pattern.permute.xlu0 0
    %8387 = vperm.xlu0 %8386, %v8380
    %v8388 = vpop.permute.xlu0 %8387
    %8391 = vset.pattern.permute.xlu0 0
    %8392 = vperm.xlu0 %8391, %v8381
    %v8393 = vpop.permute.xlu0 %8392
    %8396 = vset.pattern.permute.xlu0 0
    %8397 = vperm.xlu0 %8396, %v8383
    %v8398 = vpop.permute.xlu0 %8397
    %8401 = vset.pattern.permute.xlu0 0
    %8402 = vperm.xlu0 %8401, %v8384
    %v8403 = vpop.permute.xlu0 %8402
    %v8405 = vmul.f32 %v8388, %v1941
    %v8406 = vmul.f32 %v8393, %v1943
    %v8407 = vmul.f32 %v8398, %v1942
    %v8408 = vmul.f32 %v8403, %v1944
    %v8409 = vsel %vm2181, %v8405, 0.0
    %v8410 = vsel %vm167, %v8406, 0.0
    %v8411 = vadd.f32 %v8409, %v8410
    %v8412 = vrot.slane %v8411, 4
    %v8413 = vadd.f32 %v8411, %v8412
    %v8414 = vrot.slane %v8413, 2
    %v8415 = vadd.f32 %v8413, %v8414
    %v8416 = vrot.slane %v8415, 1
    %v8417 = vadd.f32 %v8415, %v8416
    %v8418 = vsel %vm2181, %v8407, 0.0
    %v8419 = vsel %vm167, %v8408, 0.0
    %v8420 = vadd.f32 %v8418, %v8419
    %v8421 = vrot.slane %v8420, 4
    %v8422 = vadd.f32 %v8420, %v8421
    %v8423 = vrot.slane %v8422, 2
    %v8424 = vadd.f32 %v8422, %v8423
    %v8425 = vrot.slane %v8424, 1
    %v8426 = vadd.f32 %v8424, %v8425
    %v8429 = vsel %vm185, %v8426, %v8417
    %v8430 = vlaneseq
    %v8431 = vshrl.u32 %v8430, 7
    %v8432 = vsub.s32 1, %v8431
    %v8433 = vrot.slane %v2601, %v8432
    %v8434 = vlaneseq
    %v8435 = vshrl.u32 %v8434, 7
    %v8436 = vsub.s32 1, %v8435
    %v8437 = vrot.slane %v2618, %v8436
    %v8438 = vsel %vm185, %v8437, %v8433
    %v8440 = vsel %vm2181, %v8429, 0
    %8442 = vmatprep.subr.mxu0 0.0
    %8443 = vmatpush1.msra.mxu0 %v1993
    %8444 = vmatprep.subr.mxu0 0.0
    %8445 = vmatpush1.msra.mxu0 %v1994
    %8446 = vmatprep.subr.mxu0 0.0
    %8447 = vmatpush1.msra.mxu0 %v1995
    %8448 = vmatprep.subr.mxu0 0.0
    %8449 = vmatpush1.msra.mxu0 %v1996
    %8450 = vmatprep.subr.mxu0 0.0
    %8451 = vmatpush1.msra.mxu0 %v1997
    %8452 = vmatprep.subr.mxu0 0.0
    %8453 = vmatpush1.msra.mxu0 %v1998
    %8454 = vmatprep.subr.mxu0 0.0
    %8455 = vmatpush1.msra.mxu0 %v1999
    %8456 = vmatprep.subr.mxu0 0.0
    %8457 = vmatpush1.msra.mxu0 %v2000
    %8458 = vmatprep.subr.mxu0 0.0
    %8459 = vmatpush1.msra.mxu0 0.0
    %8460 = vmatprep.subr.mxu0 0.0
    %8461 = vmatpush1.msra.mxu0 0.0
    %8462 = vmatprep.subr.mxu0 0.0
    %8463 = vmatpush1.msra.mxu0 0.0
    %8464 = vmatprep.subr.mxu0 0.0
    %8465 = vmatpush1.msra.mxu0 0.0
    %8466 = vmatprep.subr.mxu0 0.0
    %8467 = vmatpush1.msra.mxu0 0.0
    %8468 = vmatprep.subr.mxu0 0.0
    %8469 = vmatpush1.msra.mxu0 0.0
    %8470 = vmatprep.subr.mxu0 0.0
    %8471 = vmatpush1.msra.mxu0 0.0
    %8472 = vmatprep.subr.mxu0 0.0
    %8473 = vmatpush1.msra.mxu0 0.0
    %8474 = vmatprep.subr.mxu0 0.0
    %8475 = vmatpush1.msra.mxu0 0.0
    %8476 = vmatprep.subr.mxu0 0.0
    %8477 = vmatpush1.msra.mxu0 0.0
    %8478 = vmatprep.subr.mxu0 0.0
    %8479 = vmatpush1.msra.mxu0 0.0
    %8480 = vmatprep.subr.mxu0 0.0
    %8481 = vmatpush1.msra.mxu0 0.0
    %8482 = vmatprep.subr.mxu0 0.0
    %8483 = vmatpush1.msra.mxu0 0.0
    %8484 = vmatprep.subr.mxu0 0.0
    %8485 = vmatpush1.msra.mxu0 0.0
    %8486 = vmatprep.subr.mxu0 0.0
    %8487 = vmatpush1.msra.mxu0 0.0
    %8488 = vmatprep.subr.mxu0 0.0
    %8489 = vmatpush1.msra.mxu0 0.0
    %8490 = vmatprep.subr.mxu0 0.0
    %8491 = vmatpush1.msra.mxu0 0.0
    %8492 = vmatprep.subr.mxu0 0.0
    %8493 = vmatpush1.msra.mxu0 0.0
    %8494 = vmatprep.subr.mxu0 0.0
    %8495 = vmatpush1.msra.mxu0 0.0
    %8496 = vmatprep.subr.mxu0 0.0
    %8497 = vmatpush1.msra.mxu0 0.0
    %8498 = vmatprep.subr.mxu0 0.0
    %8499 = vmatpush1.msra.mxu0 0.0
    %8500 = vmatprep.subr.mxu0 0.0
    %8501 = vmatpush1.msra.mxu0 0.0
    %8502 = vmatprep.subr.mxu0 0.0
    %8503 = vmatpush1.msra.mxu0 0.0
    %8504 = vmatprep.subr.mxu0 0.0
    %8505 = vmatpush1.msra.mxu0 0.0
    %8506 = vmatprep.mubr.f32.mxu0 0.0
    %8507 = vmatmul.mubr.f32.gmra.mrb[0].mxu0 %v8440
    %v8508 = vpop.f32.mrb[0].mxu0
    %v8509 = vadd.f32 %v8438, %v8508
    %v8510 = vpop.f32.mrb[0].mxu0
    %8511 = vdwg.mxu0
    %8513 = vrot.lane.b32.xlu0 %v8026, 5
    %v8514 = vpop.permute.xlu0 %8513
    %v8516 = vsel %vm2484, %v8509, %v8514
    %v8518 = vsel %vm3164, %v8516, 0
    %8520 = vmatprep.subr.mxu0 %v1975
    %8521 = vmatpush1.msra.mxu0 %v1974
    %8522 = vmatprep.subr.mxu0 %v1977
    %8523 = vmatpush1.msra.mxu0 %v1976
    %8524 = vmatprep.subr.mxu0 %v1979
    %8525 = vmatpush1.msra.mxu0 %v1978
    %8526 = vmatprep.subr.mxu0 %v1981
    %8527 = vmatpush1.msra.mxu0 %v1980
    %8528 = vmatprep.subr.mxu0 %v1983
    %8529 = vmatpush1.msra.mxu0 %v1982
    %8530 = vmatprep.subr.mxu0 %v1985
    %8531 = vmatpush1.msra.mxu0 %v1984
    %8532 = vmatprep.subr.mxu0 %v1987
    %8533 = vmatpush1.msra.mxu0 %v1986
    %8534 = vmatprep.subr.mxu0 %v1989
    %8535 = vmatpush1.msra.mxu0 %v1988
    %8536 = vmatprep.subr.mxu0 %v3172
    %8537 = vmatpush1.msra.mxu0 %v3169
    %8538 = vmatprep.subr.mxu0 0.0
    %8539 = vmatpush1.msra.mxu0 0.0
    %8540 = vmatprep.subr.mxu0 0.0
    %8541 = vmatpush1.msra.mxu0 0.0
    %8542 = vmatprep.subr.mxu0 0.0
    %8543 = vmatpush1.msra.mxu0 0.0
    %8544 = vmatprep.subr.mxu0 0.0
    %8545 = vmatpush1.msra.mxu0 0.0
    %8546 = vmatprep.subr.mxu0 0.0
    %8547 = vmatpush1.msra.mxu0 0.0
    %8548 = vmatprep.subr.mxu0 0.0
    %8549 = vmatpush1.msra.mxu0 0.0
    %8550 = vmatprep.subr.mxu0 0.0
    %8551 = vmatpush1.msra.mxu0 0.0
    %8552 = vmatprep.subr.mxu0 0.0
    %8553 = vmatpush1.msra.mxu0 0.0
    %8554 = vmatprep.subr.mxu0 0.0
    %8555 = vmatpush1.msra.mxu0 0.0
    %8556 = vmatprep.subr.mxu0 0.0
    %8557 = vmatpush1.msra.mxu0 0.0
    %8558 = vmatprep.subr.mxu0 0.0
    %8559 = vmatpush1.msra.mxu0 0.0
    %8560 = vmatprep.subr.mxu0 0.0
    %8561 = vmatpush1.msra.mxu0 0.0
    %8562 = vmatprep.subr.mxu0 0.0
    %8563 = vmatpush1.msra.mxu0 0.0
    %8564 = vmatprep.subr.mxu0 0.0
    %8565 = vmatpush1.msra.mxu0 0.0
    %8566 = vmatprep.subr.mxu0 0.0
    %8567 = vmatpush1.msra.mxu0 0.0
    %8568 = vmatprep.subr.mxu0 0.0
    %8569 = vmatpush1.msra.mxu0 0.0
    %8570 = vmatprep.subr.mxu0 0.0
    %8571 = vmatpush1.msra.mxu0 0.0
    %8572 = vmatprep.subr.mxu0 0.0
    %8573 = vmatpush1.msra.mxu0 0.0
    %8574 = vmatprep.subr.mxu0 0.0
    %8575 = vmatpush1.msra.mxu0 0.0
    %8576 = vmatprep.subr.mxu0 0.0
    %8577 = vmatpush1.msra.mxu0 0.0
    %8578 = vmatprep.subr.mxu0 0.0
    %8579 = vmatpush1.msra.mxu0 0.0
    %8580 = vmatprep.subr.mxu0 0.0
    %8581 = vmatpush1.msra.mxu0 0.0
    %8582 = vmatprep.subr.mxu0 0.0
    %8583 = vmatpush1.msra.mxu0 0.0
    %8584 = vmatprep.mubr.f32.mxu0 0.0
    %8585 = vmatmul.mubr.f32.gmra.mrb[0].mxu0 %v8518
    %v8586 = vpop.f32.mrb[0].mxu0
    %v8587 = vadd.f32 %v3157, %v8586
    %v8588 = vpop.f32.mrb[0].mxu0
    %v8589 = vadd.f32 %v3161, %v8588
    %8590 = vdwg.mxu0
    %v8591 = vxor.u32 %v8587, 2147483648
    %v8592 = vmul.f32 %v8591, 1.442695
    %v8593 = vpow.pop %v8592
    %v8594 = vadd.f32 %v8593, 1.0
    %v8595 = vrcp.pop %v8594
    %v8596 = vmul.f32 1.0, %v8595
    %v8597 = vxor.u32 %v8589, 2147483648
    %v8598 = vmul.f32 %v8597, 1.442695
    %v8599 = vpow.pop %v8598
    %v8600 = vadd.f32 %v8599, 1.0
    %v8601 = vrcp.pop %v8600
    %v8602 = vmul.f32 1.0, %v8601
    %v8603 = vtanh.pop %v8589
    %v8604 = vmul.f32 %v8596, %v8020
    %8606 = vrot.lane.b32.xlu0 %v8603, 64
    %v8607 = vpop.permute.xlu0 %8606
    %v8609 = vmul.f32 %v8596, %v8607
    %8611 = vrot.lane.b32.xlu0 %v8609, 64
    %v8612 = vpop.permute.xlu0 %8611
    %v8614 = vadd.f32 %v8604, %v8612
    %v8615 = vtanh.pop %v8614
    %8617 = vrot.lane.b32.xlu0 %v8615, 64
    %v8618 = vpop.permute.xlu0 %8617
    %v8620 = vmul.f32 %v8602, %v8618
    %8621 = vrot.lane.b32.xlu0 %v8429, 64
    %v8622 = vpop.permute.xlu0 %8621
    %v8624 = vsel %vm2181, %v8620, %v8622
    %v8626 = vlaneseq
    %v8627 = vshrl.u32 %v8626, 7
    %v8628 = vsub.s32 0, %v8627
    %v8629 = vrot.slane %v2019, %v8628
    %8631 = vmatprep.subr.mxu0 0.0
    %8632 = vmatpush1.msra.mxu0 %v2003
    %8633 = vmatprep.subr.mxu0 0.0
    %8634 = vmatpush1.msra.mxu0 %v2004
    %8635 = vmatprep.subr.mxu0 0.0
    %8636 = vmatpush1.msra.mxu0 %v2005
    %8637 = vmatprep.subr.mxu0 0.0
    %8638 = vmatpush1.msra.mxu0 %v2006
    %8639 = vmatprep.subr.mxu0 0.0
    %8640 = vmatpush1.msra.mxu0 %v2007
    %8641 = vmatprep.subr.mxu0 0.0
    %8642 = vmatpush1.msra.mxu0 %v2008
    %8643 = vmatprep.subr.mxu0 0.0
    %8644 = vmatpush1.msra.mxu0 %v2009
    %8645 = vmatprep.subr.mxu0 0.0
    %8646 = vmatpush1.msra.mxu0 %v2010
    %8647 = vmatprep.subr.mxu0 0.0
    %8648 = vmatpush1.msra.mxu0 %v2011
    %8649 = vmatprep.subr.mxu0 0.0
    %8650 = vmatpush1.msra.mxu0 %v2012
    %8651 = vmatprep.subr.mxu0 0.0
    %8652 = vmatpush1.msra.mxu0 %v2013
    %8653 = vmatprep.subr.mxu0 0.0
    %8654 = vmatpush1.msra.mxu0 %v2014
    %8655 = vmatprep.subr.mxu0 0.0
    %8656 = vmatpush1.msra.mxu0 %v2015
    %8657 = vmatprep.subr.mxu0 0.0
    %8658 = vmatpush1.msra.mxu0 %v2016
    %8659 = vmatprep.subr.mxu0 0.0
    %8660 = vmatpush1.msra.mxu0 %v2017
    %8661 = vmatprep.subr.mxu0 0.0
    %8662 = vmatpush1.msra.mxu0 %v2018
    %8663 = vmatprep.subr.mxu0 0.0
    %8664 = vmatpush1.msra.mxu0 0.0
    %8665 = vmatprep.subr.mxu0 0.0
    %8666 = vmatpush1.msra.mxu0 0.0
    %8667 = vmatprep.subr.mxu0 0.0
    %8668 = vmatpush1.msra.mxu0 0.0
    %8669 = vmatprep.subr.mxu0 0.0
    %8670 = vmatpush1.msra.mxu0 0.0
    %8671 = vmatprep.subr.mxu0 0.0
    %8672 = vmatpush1.msra.mxu0 0.0
    %8673 = vmatprep.subr.mxu0 0.0
    %8674 = vmatpush1.msra.mxu0 0.0
    %8675 = vmatprep.subr.mxu0 0.0
    %8676 = vmatpush1.msra.mxu0 0.0
    %8677 = vmatprep.subr.mxu0 0.0
    %8678 = vmatpush1.msra.mxu0 0.0
    %8679 = vmatprep.subr.mxu0 0.0
    %8680 = vmatpush1.msra.mxu0 0.0
    %8681 = vmatprep.subr.mxu0 0.0
    %8682 = vmatpush1.msra.mxu0 0.0
    %8683 = vmatprep.subr.mxu0 0.0
    %8684 = vmatpush1.msra.mxu0 0.0
    %8685 = vmatprep.subr.mxu0 0.0
    %8686 = vmatpush1.msra.mxu0 0.0
    %8687 = vmatprep.subr.mxu0 0.0
    %8688 = vmatpush1.msra.mxu0 0.0
    %8689 = vmatprep.subr.mxu0 0.0
    %8690 = vmatpush1.msra.mxu0 0.0
    %8691 = vmatprep.subr.mxu0 0.0
    %8692 = vmatpush1.msra.mxu0 0.0
    %8693 = vmatprep.subr.mxu0 0.0
    %8694 = vmatpush1.msra.mxu0 0.0
    %8695 = vmatprep.mubr.f32.mxu0 0.0
    %8696 = vmatmul.mubr.f32.gmra.mrb[0].mxu0 %v8624
    %v8697 = vpop.f32.mrb[0].mxu0
    %v8698 = vadd.f32 %v8629, %v8697
    %v8699 = vpop.f32.mrb[0].mxu0
    %8700 = vdwg.mxu0
    %vm8701 = vcmask 33792
    %8702 = vst.msk [vmem:[#allocation4] sm:$0x3] %vm8701, %v8698
    // Predicated region
    $region98: #{tpu_custom_call.1} parent=1 // pred_check
      _
    $region99: #{tpu_custom_call.1} parent=1 // pred_check_branch
      %8704 = sbr.rel (0) target = $region101
    $region100: #{tpu_custom_call.1} parent=1 // pred_region
      %s8706 = ssub.s32 32, 32
      %8707 = vsyncadd [#allocation5], %s8706
      %s8709 = sshll.u32 [#allocation4], 4
      %s8710 = int_to_ptr.vmem [resolvable:$true] %s8709
      %8712 = dma.vmem_to_hbm [thread:$0]  %s8710, 32, %s24, [#allocation5]
    $region101: #{tpu_custom_call.1} parent=1 // pred_fallthru
      _
    // Predicated region
    $region102: #{tpu_custom_call.1} parent=1 // pred_check
      _
    $region103: #{tpu_custom_call.1} parent=1 // pred_check_branch
      %8714 = sbr.rel (0) target = $region105
    $region104: #{tpu_custom_call.1} parent=1 // pred_region
      %8715 = dma.done [#allocation5], 32
    $region105: #{tpu_custom_call.1} parent=1 // pred_fallthru
      _
    %8716 = vsyncpa [#allocation5], 1

</llo_original>
